<compile_context>
chip_gen: v6e
topology: v6e:2x2x1
jax: 0.10.0
libtpu: 0.0.40
codegen_flags: <defaults>
</compile_context>

<pallas_src>
import functools

import jax
import jax.numpy as jnp
from jax.experimental import pallas as pl
from jax.experimental.pallas import tpu as pltpu


# ---------------------------------------------------------------------------
# Parameter construction (plain-JAX glue)
# ---------------------------------------------------------------------------
def init_conv3xc2_params(key, c_in, c_out, gain=2, groups=2):
    """Deterministic init of the raw Conv3XC2 sub-conv parameters."""
    cin_g = c_in // groups
    ks = jax.random.split(key, 8)
    f32 = jnp.float32
    return dict(
        sk_w=0.1 * jax.random.normal(ks[0], (c_out, cin_g, 1, 1), f32),
        sk_b=0.05 * jax.random.normal(ks[1], (c_out,), f32),
        w1=0.1 * jax.random.normal(ks[2], (c_in * gain, cin_g, 1, 1), f32),
        b1=0.05 * jax.random.normal(ks[3], (c_in * gain,), f32),
        w2=0.1 * jax.random.normal(ks[4], (c_out * gain, c_in * gain // groups, 3, 3), f32),
        b2=0.05 * jax.random.normal(ks[5], (c_out * gain,), f32),
        w3=0.1 * jax.random.normal(ks[6], (c_out, c_out * gain // groups, 1, 1), f32),
        b3=0.05 * jax.random.normal(ks[7], (c_out,), f32),
    )


def collapse_conv3xc2(p, c_in, c_out, gain=2, groups=2):
    """Exact re-parameterization of Conv3XC2 into a single grouped 3x3 conv.

    Returns (W, B) with W in grouped OIHW layout (c_out, c_in//groups, 3, 3).
    Equivalent to Conv3XC2.update_params (the 1x1 convs are pure channel
    mixes, so the flip/permute conv-of-conv trick reduces to an einsum).
    """
    cin_g = c_in // groups
    cout_g = c_out // groups
    W = jnp.zeros((c_out, cin_g, 3, 3), jnp.float32)
    B = jnp.zeros((c_out,), jnp.float32)
    for g in range(groups):
        s_mid = slice(g * cout_g * gain, (g + 1) * cout_g * gain)
        s_out = slice(g * cout_g, (g + 1) * cout_g)
        w1_g = p["w1"][s_mid, :, 0, 0]          # (cout_g*gain, cin_g)
        b1_g = p["b1"][s_mid]
        w2_g = p["w2"][s_mid]                   # (cout_g*gain, cin_g*gain, 3, 3)
        b2_g = p["b2"][s_mid]
        w3_g = p["w3"][s_out, :, 0, 0]          # (cout_g, cout_g*gain)
        b3_g = p["b3"][s_out]
        w_g = jnp.einsum("op,pmhw,mi->oihw", w3_g, w2_g, w1_g)
        b_mid = jnp.einsum("pmhw,m->p", w2_g, b1_g) + b2_g
        b_g = w3_g @ b_mid + b3_g
        W = W.at[s_out].set(w_g)
        B = B.at[s_out].set(b_g)
    # add the 1x1 skip conv at the center tap
    W = W.at[:, :, 1, 1].add(p["sk_w"][:, :, 0, 0])
    B = B + p["sk_b"]
    return W, B


def grouped_oihw_to_dense_hwio(w_grouped, c_in, c_out, groups):
    """Grouped OIHW (c_out, c_in//g, 3, 3) -> dense block-diagonal HWIO."""
    cin_g = c_in // groups
    cout_g = c_out // groups
    dense = jnp.zeros((3, 3, c_in, c_out), jnp.float32)
    for g in range(groups):
        wg = w_grouped[g * cout_g:(g + 1) * cout_g]        # (cout_g, cin_g, 3, 3)
        dense = dense.at[:, :, g * cin_g:(g + 1) * cin_g,
                         g * cout_g:(g + 1) * cout_g].set(
            jnp.transpose(wg, (2, 3, 1, 0)))
    return dense


def build_spab2_params(key, c):
    k1, k2, k3 = jax.random.split(key, 3)
    p1 = init_conv3xc2_params(k1, c, c)
    p2 = init_conv3xc2_params(k2, c, c)
    p3 = init_conv3xc2_params(k3, c, c)
    W1, B1 = collapse_conv3xc2(p1, c, c)
    W2, B2 = collapse_conv3xc2(p2, c, c)
    W3, B3 = collapse_conv3xc2(p3, c, c)
    return {
        "w1_grouped": W1, "b1": B1,
        "w2_grouped": W2, "b2": B2,
        "w3_grouped": W3, "b3": B3,
        "w1_dense": grouped_oihw_to_dense_hwio(W1, c, c, 2),
        "w2_dense": grouped_oihw_to_dense_hwio(W2, c, c, 2),
        "w3_dense": grouped_oihw_to_dense_hwio(W3, c, c, 2),
        # CustomActivation.alpha initialized to ones (as in the PyTorch module)
        "alpha1": jnp.ones((c,), jnp.float32),
        "alpha2": jnp.ones((c,), jnp.float32),
    }


# ---------------------------------------------------------------------------
# Fused Pallas kernel: whole SPAB2 block for one batch element per grid step
# ---------------------------------------------------------------------------
def _spab2_fused_kernel(x_ref, w_ref, vec_ref, out1_ref, out3_ref,
                        pad_ref, cols_ref, *, H, W, C):
    """out1 = c1(x); out3 = SiLU(c3(act2(c2(act1(out1))))) + x  (all fused)."""
    f32 = jnp.float32
    x = x_ref[0]                                     # (H, W, C) f32
    vecs = vec_ref[...]                              # (5, C) f32, read once
    b1, b2, b3 = vecs[0:1], vecs[1:2], vecs[2:3]     # (1, C) each
    a1, a2 = vecs[3:4], vecs[4:5]

    # Zero the padded slab; every stage rewrites only the interior, so the
    # 1-pixel zero border implements padding=1.  (act1(0) == 0, so applying
    # the activation before writing into the padded slab is exact.)
    pad_ref[...] = jnp.zeros_like(pad_ref)

    def conv3x3(inp_hwc, widx):
        # In-kernel "same" conv: write interior, im2col into a (H*W, 9C)
        # VMEM scratch via static lane-sliced stores, then ONE MXU matmul
        # with K = 9*C and f32 accumulation.
        pad_ref[1:H + 1, 1:W + 1, :] = inp_hwc
        xp = pad_ref[...]                            # (H+2, W+2, C)
        for kh in range(3):
            for kw in range(3):
                t = kh * 3 + kw
                patch = xp[kh:kh + H, kw:kw + W, :].reshape(H * W, C)
                cols_ref[:, t * C:(t + 1) * C] = patch.astype(cols_ref.dtype)
        return jnp.dot(cols_ref[...], w_ref[widx],
                       preferred_element_type=f32)   # (H*W, C) f32

    # stage 1: out1 = c1_r(x)
    y1 = conv3x3(x, 0) + b1
    out1_ref[0] = y1.reshape(H, W, C).astype(out1_ref.dtype)
    y1a = y1 * jax.nn.sigmoid(a1 * y1)               # CustomActivation 1

    # stage 2: out2_act = act2(c2_r(out1_act))
    y2 = conv3x3(y1a.reshape(H, W, C), 1) + b2
    y2a = y2 * jax.nn.sigmoid(a2 * y2)               # CustomActivation 2

    # stage 3: out3 = SiLU(c3_r(out2_act)) + x
    y3 = conv3x3(y2a.reshape(H, W, C), 2) + b3
    y3 = y3 * jax.nn.sigmoid(y3)                     # SiLU
    out3_ref[0] = (y3.reshape(H, W, C) + x).astype(out3_ref.dtype)


# ---------------------------------------------------------------------------
# Wrappers
# ---------------------------------------------------------------------------
def spab2_forward_nhwc(x_nhwc, params, *, matmul_dtype=jnp.float32):
    """NHWC entry point (preferred: avoids boundary transposes).

    Returns (out3, out1) in NHWC.
    """
    N, H, W, C = x_nhwc.shape
    x = x_nhwc.astype(jnp.float32)

    # Flatten each collapsed 3x3 conv to (9*C, C) matching the im2col column
    # order (kh-major, then kw, then cin); stack into one weight operand.
    w_stack = jnp.stack([params["w1_dense"].reshape(9 * C, C),
                         params["w2_dense"].reshape(9 * C, C),
                         params["w3_dense"].reshape(9 * C, C)]
                        ).astype(matmul_dtype)                   # (3, 9C, C)
    vecs = jnp.stack([params["b1"], params["b2"], params["b3"],
                      params["alpha1"], params["alpha2"]]
                     ).astype(jnp.float32)                       # (5, C)

    kernel = functools.partial(_spab2_fused_kernel, H=H, W=W, C=C)

    itemsize_w = jnp.dtype(matmul_dtype).itemsize
    flops = 3 * 2 * N * H * W * (9 * C) * C
    transcendentals = 3 * N * H * W * C
    bytes_accessed = (4 * 3 * N * H * W * C            # x read + out1/out3 write
                      + 3 * 9 * C * C * itemsize_w     # weights
                      + 5 * C * 4)                     # biases / alphas

    out1, out3 = pl.pallas_call(
        kernel,
        out_shape=(jax.ShapeDtypeStruct((N, H, W, C), jnp.float32),
                   jax.ShapeDtypeStruct((N, H, W, C), jnp.float32)),
        grid=(N,),
        in_specs=[pl.BlockSpec((1, H, W, C), lambda n: (n, 0, 0, 0)),
                  pl.BlockSpec((3, 9 * C, C), lambda n: (0, 0, 0)),
                  pl.BlockSpec((5, C), lambda n: (0, 0))],
        out_specs=(pl.BlockSpec((1, H, W, C), lambda n: (n, 0, 0, 0)),
                   pl.BlockSpec((1, H, W, C), lambda n: (n, 0, 0, 0))),
        scratch_shapes=[pltpu.VMEM((H + 2, W + 2, C), jnp.float32),
                        pltpu.VMEM((H * W, 9 * C), matmul_dtype)],
        compiler_params=pltpu.CompilerParams(
            dimension_semantics=("parallel",)),
        cost_estimate=pl.CostEstimate(flops=flops,
                                      transcendentals=transcendentals,
                                      bytes_accessed=bytes_accessed),
    )(x, w_stack, vecs)
    return out3, out1


def spab2_forward(x_nchw, params, *, matmul_dtype=jnp.float32):
    """PyTorch-convention entry: NCHW in, (out3, out1, out3) NCHW out."""
    x_nhwc = jnp.transpose(x_nchw, (0, 2, 3, 1))
    out3, out1 = spab2_forward_nhwc(x_nhwc, params, matmul_dtype=matmul_dtype)
    to_nchw = lambda t: jnp.transpose(t, (0, 3, 1, 2))
    out3_nchw = to_nchw(out3)                 # transpose once; returned twice
    return out3_nchw, to_nchw(out1), out3_nchw


# ---------------------------------------------------------------------------
# Pure-JAX reference (for correctness check)
# ---------------------------------------------------------------------------
def ref_spab2(x, params):
    def gconv(xx, Wg, B):
        y = jax.lax.conv_general_dilated(
            xx, Wg, window_strides=(1, 1), padding=((1, 1), (1, 1)),
            dimension_numbers=("NCHW", "OIHW", "NCHW"), feature_group_count=2)
        return y + B.reshape(1, -1, 1, 1)

    a1 = params["alpha1"].reshape(1, -1, 1, 1)
    a2 = params["alpha2"].reshape(1, -1, 1, 1)
    out1 = gconv(x, params["w1_grouped"], params["b1"])
    out1a = out1 * jax.nn.sigmoid(a1 * out1)
    out2 = gconv(out1a, params["w2_grouped"], params["b2"])
    out2a = out2 * jax.nn.sigmoid(a2 * out2)
    out3 = gconv(out2a, params["w3_grouped"], params["b3"])
    out3 = out3 * jax.nn.sigmoid(out3) + x
    return out3, out1, out3


if __name__ == "__main__":
    key = jax.random.PRNGKey(0)
    kx, kp = jax.random.split(key)
    N, C, H, W = 2, 4, 16, 16                 # x: NCHW, like the PyTorch module
    x = jax.random.normal(kx, (N, C, H, W), jnp.float32)
    params = build_spab2_params(kp, C)

    r3, r1, _ = ref_spab2(x, params)

    # --- f32 MXU path (default; matches PyTorch numerics tightly) ---
    out3, out1, out3_b = jax.jit(spab2_forward)(x, params)
    jax.block_until_ready((out3, out1, out3_b))
    assert out3.shape == (N, C, H, W) and out1.shape == (N, C, H, W)
    assert jnp.allclose(out3, r3, atol=1e-4, rtol=1e-4), \
        float(jnp.max(jnp.abs(out3 - r3)))
    assert jnp.allclose(out1, r1, atol=1e-4, rtol=1e-4), \
        float(jnp.max(jnp.abs(out1 - r1)))
    assert jnp.allclose(out3_b, out3)

    # --- bf16 MXU inputs, f32 accumulate (v6e/v7x fast path) ---
    fwd_bf16 = jax.jit(functools.partial(spab2_forward,
                                         matmul_dtype=jnp.bfloat16))
    o3b, o1b, _ = fwd_bf16(x, params)
    jax.block_until_ready((o3b, o1b))
    assert jnp.allclose(o3b, r3, atol=2e-2, rtol=2e-2), \
        float(jnp.max(jnp.abs(o3b - r3)))
    assert jnp.allclose(o1b, r1, atol=2e-2, rtol=2e-2), \
        float(jnp.max(jnp.abs(o1b - r1)))

    print("KERNEL_OK")
</pallas_src>

<mosaic_0001>
module attributes {stable_mosaic.version = 11 : i64} {
  func.func @_spab2_fused_kernel(%arg0: i32, %arg1: memref<1x16x16x4xf32, #tpu.memory_space<vmem>>, %arg2: memref<3x36x4xf32, #tpu.memory_space<vmem>>, %arg3: memref<5x4xf32, #tpu.memory_space<vmem>>, %arg4: memref<1x16x16x4xf32, #tpu.memory_space<vmem>>, %arg5: memref<1x16x16x4xf32, #tpu.memory_space<vmem>>, %arg6: memref<18x18x4xf32, #tpu.memory_space<vmem>>, %arg7: memref<256x36xf32, #tpu.memory_space<vmem>>) attributes {dimension_semantics = [#tpu.dimension_semantics<parallel>], iteration_bounds = array<i64: 2>, scalar_prefetch = 0 : i64, scratch_operands = 2 : i64, tpu.core_type = #tpu.core_type<tc>, window_params = [{transform_indices = @transform_0, window_bounds = array<i64: 1, 16, 16, 4>}, {pipeline_mode = #tpu.pipeline_mode<synchronous>, transform_indices = @transform_1, window_bounds = array<i64: 3, 36, 4>}, {pipeline_mode = #tpu.pipeline_mode<synchronous>, transform_indices = @transform_2, window_bounds = array<i64: 5, 4>}, {transform_indices = @transform_3, window_bounds = array<i64: 1, 16, 16, 4>}, {transform_indices = @transform_4, window_bounds = array<i64: 1, 16, 16, 4>}]} {
    %c0 = arith.constant 0 : index
    %c0_0 = arith.constant 0 : index
    %c0_1 = arith.constant 0 : index
    %c0_2 = arith.constant 0 : index
    %0 = vector.load %arg1[%c0, %c0_0, %c0_1, %c0_2] : memref<1x16x16x4xf32, #tpu.memory_space<vmem>>, vector<1x16x16x4xf32>
    %1 = vector.shape_cast %0 : vector<1x16x16x4xf32> to vector<16x16x4xf32>
    %c0_3 = arith.constant 0 : index
    %c0_4 = arith.constant 0 : index
    %2 = vector.load %arg3[%c0_3, %c0_4] : memref<5x4xf32, #tpu.memory_space<vmem>>, vector<5x4xf32>
    %3 = vector.extract_strided_slice %2 {offsets = [0, 0], sizes = [1, 4], strides = [1, 1]} : vector<5x4xf32> to vector<1x4xf32>
    %4 = vector.extract_strided_slice %2 {offsets = [1, 0], sizes = [1, 4], strides = [1, 1]} : vector<5x4xf32> to vector<1x4xf32>
    %5 = vector.extract_strided_slice %2 {offsets = [2, 0], sizes = [1, 4], strides = [1, 1]} : vector<5x4xf32> to vector<1x4xf32>
    %6 = vector.extract_strided_slice %2 {offsets = [3, 0], sizes = [1, 4], strides = [1, 1]} : vector<5x4xf32> to vector<1x4xf32>
    %7 = vector.extract_strided_slice %2 {offsets = [4, 0], sizes = [1, 4], strides = [1, 1]} : vector<5x4xf32> to vector<1x4xf32>
    %cst = arith.constant 0.000000e+00 : f32
    %8 = vector.broadcast %cst : f32 to vector<18x18x4xf32>
    %c0_5 = arith.constant 0 : index
    %c0_6 = arith.constant 0 : index
    %c0_7 = arith.constant 0 : index
    %9 = vector.load %arg6[%c0_5, %c0_6, %c0_7] : memref<18x18x4xf32, #tpu.memory_space<vmem>>, vector<18x18x4xf32>
    tpu.vector_store %arg6[%c0_5, %c0_6, %c0_7], %8 {strides = array<i32>} : memref<18x18x4xf32, #tpu.memory_space<vmem>>, vector<18x18x4xf32>,
    %c1 = arith.constant 1 : index
    %c1_8 = arith.constant 1 : index
    %c0_9 = arith.constant 0 : index
    %10 = vector.load %arg6[%c1, %c1_8, %c0_9] : memref<18x18x4xf32, #tpu.memory_space<vmem>>, vector<16x16x4xf32>
    tpu.vector_store %arg6[%c1, %c1_8, %c0_9], %1 {strides = array<i32>} : memref<18x18x4xf32, #tpu.memory_space<vmem>>, vector<16x16x4xf32>,
    %c0_10 = arith.constant 0 : index
    %c0_11 = arith.constant 0 : index
    %c0_12 = arith.constant 0 : index
    %11 = vector.load %arg6[%c0_10, %c0_11, %c0_12] : memref<18x18x4xf32, #tpu.memory_space<vmem>>, vector<18x18x4xf32>
    %12 = vector.extract_strided_slice %11 {offsets = [0, 0, 0], sizes = [16, 16, 4], strides = [1, 1, 1]} : vector<18x18x4xf32> to vector<16x16x4xf32>
    %13 = vector.shape_cast %12 : vector<16x16x4xf32> to vector<256x4xf32>
    %c0_13 = arith.constant 0 : index
    %c0_14 = arith.constant 0 : index
    %14 = vector.load %arg7[%c0_13, %c0_14] : memref<256x36xf32, #tpu.memory_space<vmem>>, vector<256x4xf32>
    tpu.vector_store %arg7[%c0_13, %c0_14], %13 {strides = array<i32>} : memref<256x36xf32, #tpu.memory_space<vmem>>, vector<256x4xf32>,
    %15 = vector.extract_strided_slice %11 {offsets = [0, 1, 0], sizes = [16, 16, 4], strides = [1, 1, 1]} : vector<18x18x4xf32> to vector<16x16x4xf32>
    %16 = vector.shape_cast %15 : vector<16x16x4xf32> to vector<256x4xf32>
    %c0_15 = arith.constant 0 : index
    %c4 = arith.constant 4 : index
    %17 = vector.load %arg7[%c0_15, %c4] : memref<256x36xf32, #tpu.memory_space<vmem>>, vector<256x4xf32>
    tpu.vector_store %arg7[%c0_15, %c4], %16 {strides = array<i32>} : memref<256x36xf32, #tpu.memory_space<vmem>>, vector<256x4xf32>,
    %18 = vector.extract_strided_slice %11 {offsets = [0, 2, 0], sizes = [16, 16, 4], strides = [1, 1, 1]} : vector<18x18x4xf32> to vector<16x16x4xf32>
    %19 = vector.shape_cast %18 : vector<16x16x4xf32> to vector<256x4xf32>
    %c0_16 = arith.constant 0 : index
    %c8 = arith.constant 8 : index
    %20 = vector.load %arg7[%c0_16, %c8] : memref<256x36xf32, #tpu.memory_space<vmem>>, vector<256x4xf32>
    tpu.vector_store %arg7[%c0_16, %c8], %19 {strides = array<i32>} : memref<256x36xf32, #tpu.memory_space<vmem>>, vector<256x4xf32>,
    %21 = vector.extract_strided_slice %11 {offsets = [1, 0, 0], sizes = [16, 16, 4], strides = [1, 1, 1]} : vector<18x18x4xf32> to vector<16x16x4xf32>
    %22 = vector.shape_cast %21 : vector<16x16x4xf32> to vector<256x4xf32>
    %c0_17 = arith.constant 0 : index
    %c12 = arith.constant 12 : index
    %23 = vector.load %arg7[%c0_17, %c12] : memref<256x36xf32, #tpu.memory_space<vmem>>, vector<256x4xf32>
    tpu.vector_store %arg7[%c0_17, %c12], %22 {strides = array<i32>} : memref<256x36xf32, #tpu.memory_space<vmem>>, vector<256x4xf32>,
    %24 = vector.extract_strided_slice %11 {offsets = [1, 1, 0], sizes = [16, 16, 4], strides = [1, 1, 1]} : vector<18x18x4xf32> to vector<16x16x4xf32>
    %25 = vector.shape_cast %24 : vector<16x16x4xf32> to vector<256x4xf32>
    %c0_18 = arith.constant 0 : index
    %c16 = arith.constant 16 : index
    %26 = vector.load %arg7[%c0_18, %c16] : memref<256x36xf32, #tpu.memory_space<vmem>>, vector<256x4xf32>
    tpu.vector_store %arg7[%c0_18, %c16], %25 {strides = array<i32>} : memref<256x36xf32, #tpu.memory_space<vmem>>, vector<256x4xf32>,
    %27 = vector.extract_strided_slice %11 {offsets = [1, 2, 0], sizes = [16, 16, 4], strides = [1, 1, 1]} : vector<18x18x4xf32> to vector<16x16x4xf32>
    %28 = vector.shape_cast %27 : vector<16x16x4xf32> to vector<256x4xf32>
    %c0_19 = arith.constant 0 : index
    %c20 = arith.constant 20 : index
    %29 = vector.load %arg7[%c0_19, %c20] : memref<256x36xf32, #tpu.memory_space<vmem>>, vector<256x4xf32>
    tpu.vector_store %arg7[%c0_19, %c20], %28 {strides = array<i32>} : memref<256x36xf32, #tpu.memory_space<vmem>>, vector<256x4xf32>,
    %30 = vector.extract_strided_slice %11 {offsets = [2, 0, 0], sizes = [16, 16, 4], strides = [1, 1, 1]} : vector<18x18x4xf32> to vector<16x16x4xf32>
    %31 = vector.shape_cast %30 : vector<16x16x4xf32> to vector<256x4xf32>
    %c0_20 = arith.constant 0 : index
    %c24 = arith.constant 24 : index
    %32 = vector.load %arg7[%c0_20, %c24] : memref<256x36xf32, #tpu.memory_space<vmem>>, vector<256x4xf32>
    tpu.vector_store %arg7[%c0_20, %c24], %31 {strides = array<i32>} : memref<256x36xf32, #tpu.memory_space<vmem>>, vector<256x4xf32>,
    %33 = vector.extract_strided_slice %11 {offsets = [2, 1, 0], sizes = [16, 16, 4], strides = [1, 1, 1]} : vector<18x18x4xf32> to vector<16x16x4xf32>
    %34 = vector.shape_cast %33 : vector<16x16x4xf32> to vector<256x4xf32>
    %c0_21 = arith.constant 0 : index
    %c28 = arith.constant 28 : index
    %35 = vector.load %arg7[%c0_21, %c28] : memref<256x36xf32, #tpu.memory_space<vmem>>, vector<256x4xf32>
    tpu.vector_store %arg7[%c0_21, %c28], %34 {strides = array<i32>} : memref<256x36xf32, #tpu.memory_space<vmem>>, vector<256x4xf32>,
    %36 = vector.extract_strided_slice %11 {offsets = [2, 2, 0], sizes = [16, 16, 4], strides = [1, 1, 1]} : vector<18x18x4xf32> to vector<16x16x4xf32>
    %37 = vector.shape_cast %36 : vector<16x16x4xf32> to vector<256x4xf32>
    %c0_22 = arith.constant 0 : index
    %c32 = arith.constant 32 : index
    %38 = vector.load %arg7[%c0_22, %c32] : memref<256x36xf32, #tpu.memory_space<vmem>>, vector<256x4xf32>
    tpu.vector_store %arg7[%c0_22, %c32], %37 {strides = array<i32>} : memref<256x36xf32, #tpu.memory_space<vmem>>, vector<256x4xf32>,
    %c0_23 = arith.constant 0 : index
    %c0_24 = arith.constant 0 : index
    %39 = vector.load %arg7[%c0_23, %c0_24] : memref<256x36xf32, #tpu.memory_space<vmem>>, vector<256x36xf32>
    %c0_25 = arith.constant 0 : index
    %c0_26 = arith.constant 0 : index
    %c0_27 = arith.constant 0 : index
    %40 = vector.load %arg2[%c0_25, %c0_26, %c0_27] : memref<3x36x4xf32, #tpu.memory_space<vmem>>, vector<1x36x4xf32>
    %41 = vector.shape_cast %40 : vector<1x36x4xf32> to vector<36x4xf32>
    %cst_28 = arith.constant dense<0.000000e+00> : vector<256x4xf32>
    %42 = tpu.matmul %39, %41, %cst_28 {dimension_numbers = #tpu.dot_dimension_numbers<[1], [0], [0], [1], [0, 0, 1, 1], [], []>} : vector<256x36xf32>, vector<36x4xf32>, vector<256x4xf32> -> vector<256x4xf32>
    %43 = vector.broadcast %3 : vector<1x4xf32> to vector<256x4xf32>
    %44 = arith.addf %42, %43 : vector<256x4xf32>
    %45 = vector.shape_cast %44 : vector<256x4xf32> to vector<16x16x4xf32>
    %c0_29 = arith.constant 0 : index
    %c0_30 = arith.constant 0 : index
    %c0_31 = arith.constant 0 : index
    %c0_32 = arith.constant 0 : index
    %46 = vector.load %arg4[%c0_29, %c0_30, %c0_31, %c0_32] : memref<1x16x16x4xf32, #tpu.memory_space<vmem>>, vector<1x16x16x4xf32>
    %47 = vector.shape_cast %46 : vector<1x16x16x4xf32> to vector<16x16x4xf32>
    %48 = vector.shape_cast %45 : vector<16x16x4xf32> to vector<1x16x16x4xf32>
    tpu.vector_store %arg4[%c0_29, %c0_30, %c0_31, %c0_32], %48 {strides = array<i32>} : memref<1x16x16x4xf32, #tpu.memory_space<vmem>>, vector<1x16x16x4xf32>,
    %49 = vector.broadcast %6 : vector<1x4xf32> to vector<256x4xf32>
    %50 = arith.mulf %49, %44 : vector<256x4xf32>
    %51 = arith.negf %50 : vector<256x4xf32>
    %52 = math.exp %51 : vector<256x4xf32>
    %cst_33 = arith.constant 1.000000e+00 : f32
    %53 = vector.broadcast %cst_33 : f32 to vector<256x4xf32>
    %54 = arith.addf %53, %52 : vector<256x4xf32>
    %55 = arith.divf %53, %54 : vector<256x4xf32>
    %56 = arith.mulf %44, %55 : vector<256x4xf32>
    %57 = vector.shape_cast %56 : vector<256x4xf32> to vector<16x16x4xf32>
    %c1_34 = arith.constant 1 : index
    %c1_35 = arith.constant 1 : index
    %c0_36 = arith.constant 0 : index
    %58 = vector.load %arg6[%c1_34, %c1_35, %c0_36] : memref<18x18x4xf32, #tpu.memory_space<vmem>>, vector<16x16x4xf32>
    tpu.vector_store %arg6[%c1_34, %c1_35, %c0_36], %57 {strides = array<i32>} : memref<18x18x4xf32, #tpu.memory_space<vmem>>, vector<16x16x4xf32>,
    %c0_37 = arith.constant 0 : index
    %c0_38 = arith.constant 0 : index
    %c0_39 = arith.constant 0 : index
    %59 = vector.load %arg6[%c0_37, %c0_38, %c0_39] : memref<18x18x4xf32, #tpu.memory_space<vmem>>, vector<18x18x4xf32>
    %60 = vector.extract_strided_slice %59 {offsets = [0, 0, 0], sizes = [16, 16, 4], strides = [1, 1, 1]} : vector<18x18x4xf32> to vector<16x16x4xf32>
    %61 = vector.shape_cast %60 : vector<16x16x4xf32> to vector<256x4xf32>
    %c0_40 = arith.constant 0 : index
    %c0_41 = arith.constant 0 : index
    %62 = vector.load %arg7[%c0_40, %c0_41] : memref<256x36xf32, #tpu.memory_space<vmem>>, vector<256x4xf32>
    tpu.vector_store %arg7[%c0_40, %c0_41], %61 {strides = array<i32>} : memref<256x36xf32, #tpu.memory_space<vmem>>, vector<256x4xf32>,
    %63 = vector.extract_strided_slice %59 {offsets = [0, 1, 0], sizes = [16, 16, 4], strides = [1, 1, 1]} : vector<18x18x4xf32> to vector<16x16x4xf32>
    %64 = vector.shape_cast %63 : vector<16x16x4xf32> to vector<256x4xf32>
    %c0_42 = arith.constant 0 : index
    %c4_43 = arith.constant 4 : index
    %65 = vector.load %arg7[%c0_42, %c4_43] : memref<256x36xf32, #tpu.memory_space<vmem>>, vector<256x4xf32>
    tpu.vector_store %arg7[%c0_42, %c4_43], %64 {strides = array<i32>} : memref<256x36xf32, #tpu.memory_space<vmem>>, vector<256x4xf32>,
    %66 = vector.extract_strided_slice %59 {offsets = [0, 2, 0], sizes = [16, 16, 4], strides = [1, 1, 1]} : vector<18x18x4xf32> to vector<16x16x4xf32>
    %67 = vector.shape_cast %66 : vector<16x16x4xf32> to vector<256x4xf32>
    %c0_44 = arith.constant 0 : index
    %c8_45 = arith.constant 8 : index
    %68 = vector.load %arg7[%c0_44, %c8_45] : memref<256x36xf32, #tpu.memory_space<vmem>>, vector<256x4xf32>
    tpu.vector_store %arg7[%c0_44, %c8_45], %67 {strides = array<i32>} : memref<256x36xf32, #tpu.memory_space<vmem>>, vector<256x4xf32>,
    %69 = vector.extract_strided_slice %59 {offsets = [1, 0, 0], sizes = [16, 16, 4], strides = [1, 1, 1]} : vector<18x18x4xf32> to vector<16x16x4xf32>
    %70 = vector.shape_cast %69 : vector<16x16x4xf32> to vector<256x4xf32>
    %c0_46 = arith.constant 0 : index
    %c12_47 = arith.constant 12 : index
    %71 = vector.load %arg7[%c0_46, %c12_47] : memref<256x36xf32, #tpu.memory_space<vmem>>, vector<256x4xf32>
    tpu.vector_store %arg7[%c0_46, %c12_47], %70 {strides = array<i32>} : memref<256x36xf32, #tpu.memory_space<vmem>>, vector<256x4xf32>,
    %72 = vector.extract_strided_slice %59 {offsets = [1, 1, 0], sizes = [16, 16, 4], strides = [1, 1, 1]} : vector<18x18x4xf32> to vector<16x16x4xf32>
    %73 = vector.shape_cast %72 : vector<16x16x4xf32> to vector<256x4xf32>
    %c0_48 = arith.constant 0 : index
    %c16_49 = arith.constant 16 : index
    %74 = vector.load %arg7[%c0_48, %c16_49] : memref<256x36xf32, #tpu.memory_space<vmem>>, vector<256x4xf32>
    tpu.vector_store %arg7[%c0_48, %c16_49], %73 {strides = array<i32>} : memref<256x36xf32, #tpu.memory_space<vmem>>, vector<256x4xf32>,
    %75 = vector.extract_strided_slice %59 {offsets = [1, 2, 0], sizes = [16, 16, 4], strides = [1, 1, 1]} : vector<18x18x4xf32> to vector<16x16x4xf32>
    %76 = vector.shape_cast %75 : vector<16x16x4xf32> to vector<256x4xf32>
    %c0_50 = arith.constant 0 : index
    %c20_51 = arith.constant 20 : index
    %77 = vector.load %arg7[%c0_50, %c20_51] : memref<256x36xf32, #tpu.memory_space<vmem>>, vector<256x4xf32>
    tpu.vector_store %arg7[%c0_50, %c20_51], %76 {strides = array<i32>} : memref<256x36xf32, #tpu.memory_space<vmem>>, vector<256x4xf32>,
    %78 = vector.extract_strided_slice %59 {offsets = [2, 0, 0], sizes = [16, 16, 4], strides = [1, 1, 1]} : vector<18x18x4xf32> to vector<16x16x4xf32>
    %79 = vector.shape_cast %78 : vector<16x16x4xf32> to vector<256x4xf32>
    %c0_52 = arith.constant 0 : index
    %c24_53 = arith.constant 24 : index
    %80 = vector.load %arg7[%c0_52, %c24_53] : memref<256x36xf32, #tpu.memory_space<vmem>>, vector<256x4xf32>
    tpu.vector_store %arg7[%c0_52, %c24_53], %79 {strides = array<i32>} : memref<256x36xf32, #tpu.memory_space<vmem>>, vector<256x4xf32>,
    %81 = vector.extract_strided_slice %59 {offsets = [2, 1, 0], sizes = [16, 16, 4], strides = [1, 1, 1]} : vector<18x18x4xf32> to vector<16x16x4xf32>
    %82 = vector.shape_cast %81 : vector<16x16x4xf32> to vector<256x4xf32>
    %c0_54 = arith.constant 0 : index
    %c28_55 = arith.constant 28 : index
    %83 = vector.load %arg7[%c0_54, %c28_55] : memref<256x36xf32, #tpu.memory_space<vmem>>, vector<256x4xf32>
    tpu.vector_store %arg7[%c0_54, %c28_55], %82 {strides = array<i32>} : memref<256x36xf32, #tpu.memory_space<vmem>>, vector<256x4xf32>,
    %84 = vector.extract_strided_slice %59 {offsets = [2, 2, 0], sizes = [16, 16, 4], strides = [1, 1, 1]} : vector<18x18x4xf32> to vector<16x16x4xf32>
    %85 = vector.shape_cast %84 : vector<16x16x4xf32> to vector<256x4xf32>
    %c0_56 = arith.constant 0 : index
    %c32_57 = arith.constant 32 : index
    %86 = vector.load %arg7[%c0_56, %c32_57] : memref<256x36xf32, #tpu.memory_space<vmem>>, vector<256x4xf32>
    tpu.vector_store %arg7[%c0_56, %c32_57], %85 {strides = array<i32>} : memref<256x36xf32, #tpu.memory_space<vmem>>, vector<256x4xf32>,
    %c0_58 = arith.constant 0 : index
    %c0_59 = arith.constant 0 : index
    %87 = vector.load %arg7[%c0_58, %c0_59] : memref<256x36xf32, #tpu.memory_space<vmem>>, vector<256x36xf32>
    %c1_60 = arith.constant 1 : index
    %c0_61 = arith.constant 0 : index
    %c0_62 = arith.constant 0 : index
    %88 = vector.load %arg2[%c1_60, %c0_61, %c0_62] : memref<3x36x4xf32, #tpu.memory_space<vmem>>, vector<1x36x4xf32>
    %89 = vector.shape_cast %88 : vector<1x36x4xf32> to vector<36x4xf32>
    %cst_63 = arith.constant dense<0.000000e+00> : vector<256x4xf32>
    %90 = tpu.matmul %87, %89, %cst_63 {dimension_numbers = #tpu.dot_dimension_numbers<[1], [0], [0], [1], [0, 0, 1, 1], [], []>} : vector<256x36xf32>, vector<36x4xf32>, vector<256x4xf32> -> vector<256x4xf32>
    %91 = vector.broadcast %4 : vector<1x4xf32> to vector<256x4xf32>
    %92 = arith.addf %90, %91 : vector<256x4xf32>
    %93 = vector.broadcast %7 : vector<1x4xf32> to vector<256x4xf32>
    %94 = arith.mulf %93, %92 : vector<256x4xf32>
    %95 = arith.negf %94 : vector<256x4xf32>
    %96 = math.exp %95 : vector<256x4xf32>
    %cst_64 = arith.constant 1.000000e+00 : f32
    %97 = vector.broadcast %cst_64 : f32 to vector<256x4xf32>
    %98 = arith.addf %97, %96 : vector<256x4xf32>
    %99 = arith.divf %97, %98 : vector<256x4xf32>
    %100 = arith.mulf %92, %99 : vector<256x4xf32>
    %101 = vector.shape_cast %100 : vector<256x4xf32> to vector<16x16x4xf32>
    %c1_65 = arith.constant 1 : index
    %c1_66 = arith.constant 1 : index
    %c0_67 = arith.constant 0 : index
    %102 = vector.load %arg6[%c1_65, %c1_66, %c0_67] : memref<18x18x4xf32, #tpu.memory_space<vmem>>, vector<16x16x4xf32>
    tpu.vector_store %arg6[%c1_65, %c1_66, %c0_67], %101 {strides = array<i32>} : memref<18x18x4xf32, #tpu.memory_space<vmem>>, vector<16x16x4xf32>,
    %c0_68 = arith.constant 0 : index
    %c0_69 = arith.constant 0 : index
    %c0_70 = arith.constant 0 : index
    %103 = vector.load %arg6[%c0_68, %c0_69, %c0_70] : memref<18x18x4xf32, #tpu.memory_space<vmem>>, vector<18x18x4xf32>
    %104 = vector.extract_strided_slice %103 {offsets = [0, 0, 0], sizes = [16, 16, 4], strides = [1, 1, 1]} : vector<18x18x4xf32> to vector<16x16x4xf32>
    %105 = vector.shape_cast %104 : vector<16x16x4xf32> to vector<256x4xf32>
    %c0_71 = arith.constant 0 : index
    %c0_72 = arith.constant 0 : index
    %106 = vector.load %arg7[%c0_71, %c0_72] : memref<256x36xf32, #tpu.memory_space<vmem>>, vector<256x4xf32>
    tpu.vector_store %arg7[%c0_71, %c0_72], %105 {strides = array<i32>} : memref<256x36xf32, #tpu.memory_space<vmem>>, vector<256x4xf32>,
    %107 = vector.extract_strided_slice %103 {offsets = [0, 1, 0], sizes = [16, 16, 4], strides = [1, 1, 1]} : vector<18x18x4xf32> to vector<16x16x4xf32>
    %108 = vector.shape_cast %107 : vector<16x16x4xf32> to vector<256x4xf32>
    %c0_73 = arith.constant 0 : index
    %c4_74 = arith.constant 4 : index
    %109 = vector.load %arg7[%c0_73, %c4_74] : memref<256x36xf32, #tpu.memory_space<vmem>>, vector<256x4xf32>
    tpu.vector_store %arg7[%c0_73, %c4_74], %108 {strides = array<i32>} : memref<256x36xf32, #tpu.memory_space<vmem>>, vector<256x4xf32>,
    %110 = vector.extract_strided_slice %103 {offsets = [0, 2, 0], sizes = [16, 16, 4], strides = [1, 1, 1]} : vector<18x18x4xf32> to vector<16x16x4xf32>
    %111 = vector.shape_cast %110 : vector<16x16x4xf32> to vector<256x4xf32>
    %c0_75 = arith.constant 0 : index
    %c8_76 = arith.constant 8 : index
    %112 = vector.load %arg7[%c0_75, %c8_76] : memref<256x36xf32, #tpu.memory_space<vmem>>, vector<256x4xf32>
    tpu.vector_store %arg7[%c0_75, %c8_76], %111 {strides = array<i32>} : memref<256x36xf32, #tpu.memory_space<vmem>>, vector<256x4xf32>,
    %113 = vector.extract_strided_slice %103 {offsets = [1, 0, 0], sizes = [16, 16, 4], strides = [1, 1, 1]} : vector<18x18x4xf32> to vector<16x16x4xf32>
    %114 = vector.shape_cast %113 : vector<16x16x4xf32> to vector<256x4xf32>
    %c0_77 = arith.constant 0 : index
    %c12_78 = arith.constant 12 : index
    %115 = vector.load %arg7[%c0_77, %c12_78] : memref<256x36xf32, #tpu.memory_space<vmem>>, vector<256x4xf32>
    tpu.vector_store %arg7[%c0_77, %c12_78], %114 {strides = array<i32>} : memref<256x36xf32, #tpu.memory_space<vmem>>, vector<256x4xf32>,
    %116 = vector.extract_strided_slice %103 {offsets = [1, 1, 0], sizes = [16, 16, 4], strides = [1, 1, 1]} : vector<18x18x4xf32> to vector<16x16x4xf32>
    %117 = vector.shape_cast %116 : vector<16x16x4xf32> to vector<256x4xf32>
    %c0_79 = arith.constant 0 : index
    %c16_80 = arith.constant 16 : index
    %118 = vector.load %arg7[%c0_79, %c16_80] : memref<256x36xf32, #tpu.memory_space<vmem>>, vector<256x4xf32>
    tpu.vector_store %arg7[%c0_79, %c16_80], %117 {strides = array<i32>} : memref<256x36xf32, #tpu.memory_space<vmem>>, vector<256x4xf32>,
    %119 = vector.extract_strided_slice %103 {offsets = [1, 2, 0], sizes = [16, 16, 4], strides = [1, 1, 1]} : vector<18x18x4xf32> to vector<16x16x4xf32>
    %120 = vector.shape_cast %119 : vector<16x16x4xf32> to vector<256x4xf32>
    %c0_81 = arith.constant 0 : index
    %c20_82 = arith.constant 20 : index
    %121 = vector.load %arg7[%c0_81, %c20_82] : memref<256x36xf32, #tpu.memory_space<vmem>>, vector<256x4xf32>
    tpu.vector_store %arg7[%c0_81, %c20_82], %120 {strides = array<i32>} : memref<256x36xf32, #tpu.memory_space<vmem>>, vector<256x4xf32>,
    %122 = vector.extract_strided_slice %103 {offsets = [2, 0, 0], sizes = [16, 16, 4], strides = [1, 1, 1]} : vector<18x18x4xf32> to vector<16x16x4xf32>
    %123 = vector.shape_cast %122 : vector<16x16x4xf32> to vector<256x4xf32>
    %c0_83 = arith.constant 0 : index
    %c24_84 = arith.constant 24 : index
    %124 = vector.load %arg7[%c0_83, %c24_84] : memref<256x36xf32, #tpu.memory_space<vmem>>, vector<256x4xf32>
    tpu.vector_store %arg7[%c0_83, %c24_84], %123 {strides = array<i32>} : memref<256x36xf32, #tpu.memory_space<vmem>>, vector<256x4xf32>,
    %125 = vector.extract_strided_slice %103 {offsets = [2, 1, 0], sizes = [16, 16, 4], strides = [1, 1, 1]} : vector<18x18x4xf32> to vector<16x16x4xf32>
    %126 = vector.shape_cast %125 : vector<16x16x4xf32> to vector<256x4xf32>
    %c0_85 = arith.constant 0 : index
    %c28_86 = arith.constant 28 : index
    %127 = vector.load %arg7[%c0_85, %c28_86] : memref<256x36xf32, #tpu.memory_space<vmem>>, vector<256x4xf32>
    tpu.vector_store %arg7[%c0_85, %c28_86], %126 {strides = array<i32>} : memref<256x36xf32, #tpu.memory_space<vmem>>, vector<256x4xf32>,
    %128 = vector.extract_strided_slice %103 {offsets = [2, 2, 0], sizes = [16, 16, 4], strides = [1, 1, 1]} : vector<18x18x4xf32> to vector<16x16x4xf32>
    %129 = vector.shape_cast %128 : vector<16x16x4xf32> to vector<256x4xf32>
    %c0_87 = arith.constant 0 : index
    %c32_88 = arith.constant 32 : index
    %130 = vector.load %arg7[%c0_87, %c32_88] : memref<256x36xf32, #tpu.memory_space<vmem>>, vector<256x4xf32>
    tpu.vector_store %arg7[%c0_87, %c32_88], %129 {strides = array<i32>} : memref<256x36xf32, #tpu.memory_space<vmem>>, vector<256x4xf32>,
    %c0_89 = arith.constant 0 : index
    %c0_90 = arith.constant 0 : index
    %131 = vector.load %arg7[%c0_89, %c0_90] : memref<256x36xf32, #tpu.memory_space<vmem>>, vector<256x36xf32>
    %c2 = arith.constant 2 : index
    %c0_91 = arith.constant 0 : index
    %c0_92 = arith.constant 0 : index
    %132 = vector.load %arg2[%c2, %c0_91, %c0_92] : memref<3x36x4xf32, #tpu.memory_space<vmem>>, vector<1x36x4xf32>
    %133 = vector.shape_cast %132 : vector<1x36x4xf32> to vector<36x4xf32>
    %cst_93 = arith.constant dense<0.000000e+00> : vector<256x4xf32>
    %134 = tpu.matmul %131, %133, %cst_93 {dimension_numbers = #tpu.dot_dimension_numbers<[1], [0], [0], [1], [0, 0, 1, 1], [], []>} : vector<256x36xf32>, vector<36x4xf32>, vector<256x4xf32> -> vector<256x4xf32>
    %135 = vector.broadcast %5 : vector<1x4xf32> to vector<256x4xf32>
    %136 = arith.addf %134, %135 : vector<256x4xf32>
    %137 = arith.negf %136 : vector<256x4xf32>
    %138 = math.exp %137 : vector<256x4xf32>
    %cst_94 = arith.constant 1.000000e+00 : f32
    %139 = vector.broadcast %cst_94 : f32 to vector<256x4xf32>
    %140 = arith.addf %139, %138 : vector<256x4xf32>
    %141 = arith.divf %139, %140 : vector<256x4xf32>
    %142 = arith.mulf %136, %141 : vector<256x4xf32>
    %143 = vector.shape_cast %142 : vector<256x4xf32> to vector<16x16x4xf32>
    %144 = arith.addf %143, %1 : vector<16x16x4xf32>
    %c0_95 = arith.constant 0 : index
    %c0_96 = arith.constant 0 : index
    %c0_97 = arith.constant 0 : index
    %c0_98 = arith.constant 0 : index
    %145 = vector.load %arg5[%c0_95, %c0_96, %c0_97, %c0_98] : memref<1x16x16x4xf32, #tpu.memory_space<vmem>>, vector<1x16x16x4xf32>
    %146 = vector.shape_cast %145 : vector<1x16x16x4xf32> to vector<16x16x4xf32>
    %147 = vector.shape_cast %144 : vector<16x16x4xf32> to vector<1x16x16x4xf32>
    tpu.vector_store %arg5[%c0_95, %c0_96, %c0_97, %c0_98], %147 {strides = array<i32>} : memref<1x16x16x4xf32, #tpu.memory_space<vmem>>, vector<1x16x16x4xf32>,
    return
  }
  func.func @transform_0(%arg0: i32) -> (i32, i32, i32, i32) {
    %c0_i32 = arith.constant 0 : i32
    %c0_i32_0 = arith.constant 0 : i32
    %c0_i32_1 = arith.constant 0 : i32
    %c0_i32_2 = arith.constant 0 : i32
    return %arg0, %c0_i32, %c0_i32_0, %c0_i32_1 : i32, i32, i32, i32
  }
  func.func @transform_1(%arg0: i32) -> (i32, i32, i32) {
    %c0_i32 = arith.constant 0 : i32
    %c0_i32_0 = arith.constant 0 : i32
    %c0_i32_1 = arith.constant 0 : i32
    %c0_i32_2 = arith.constant 0 : i32
    return %c0_i32, %c0_i32_0, %c0_i32_1 : i32, i32, i32
  }
  func.func @transform_2(%arg0: i32) -> (i32, i32) {
    %c0_i32 = arith.constant 0 : i32
    %c0_i32_0 = arith.constant 0 : i32
    %c0_i32_1 = arith.constant 0 : i32
    return %c0_i32, %c0_i32_0 : i32, i32
  }
  func.func @transform_3(%arg0: i32) -> (i32, i32, i32, i32) {
    %c0_i32 = arith.constant 0 : i32
    %c0_i32_0 = arith.constant 0 : i32
    %c0_i32_1 = arith.constant 0 : i32
    %c0_i32_2 = arith.constant 0 : i32
    return %arg0, %c0_i32, %c0_i32_0, %c0_i32_1 : i32, i32, i32, i32
  }
  func.func @transform_4(%arg0: i32) -> (i32, i32, i32, i32) {
    %c0_i32 = arith.constant 0 : i32
    %c0_i32_0 = arith.constant 0 : i32
    %c0_i32_1 = arith.constant 0 : i32
    %c0_i32_2 = arith.constant 0 : i32
    return %arg0, %c0_i32, %c0_i32_0, %c0_i32_1 : i32, i32, i32, i32
  }
}

</mosaic_0001>

<llo_original>
// kernel: spab2_forward.1
$region0: #{spab2_forward.1}
  #allocation0 [shape = 'u32[]', space=smem, size = 0x4, offset = 0x4, fixed_abs, tag = 'smem constant byte address 0x4 - core index']
  #allocation1 [shape = 'u32[144,128]{1,0:T(1,128)}', space=vmem, size = 0x12000, scoped, tag = 'internal scratch']
  #allocation2 [shape = 'f32[18,18,4]{2,1,0:T(8,128)}', space=vmem, size = 0x36000, scoped, tag = 'scratch operand']
  #allocation3 [shape = 'f32[256,36]{1,0:T(8,128)}', space=vmem, size = 0x20000, scoped, tag = 'scratch operand']
  %s0 = inlined_call_operand.vmem [shape: f32[2,16,16,4], index: 0, kind: input, shape index: {}]
  %s1 = inlined_call_operand.vmem [shape: f32[3,36,4], index: 1, kind: input, shape index: {}]
  %s2 = inlined_call_operand.vmem [shape: f32[5,4], index: 2, kind: input, shape index: {}]
  %s3 = inlined_call_operand.vmem [shape: f32[2,16,16,4], index: 3, kind: output, shape index: {0}]
  %s4 = inlined_call_operand.vmem [shape: f32[2,16,16,4], index: 4, kind: output, shape index: {1}]
  %5 = xla_tuple %s3, %s4
  %s6 = sld [smem:[#allocation0]]
  $region53: #{spab2_forward.1} parent=0
    _
  %s8 = ssub.s32 1, %s6
  %s9 = scalar_select 0, %s8, %s6
  loop: start=0, step=1, limit=4
  $region2: #{spab2_forward.1} parent=0 // loop_pre_header
    _
  $region3: #{spab2_forward.1} parent=0 // loop_header
    %s11 = sphi 0, %s15
    %p12 = scmp.ge.s32.totalorder %s11, 4
    %s21 = sphi 0, %s23
    %s24 = sphi 0, %s21
    %s25 = sphi 0, %s24
    %s41 = sphi 0, %s25
    %s45 = sphi 0, %s45
    %s47 = sphi 0, %s45
    %s48 = sphi 0, %s47
    %s62 = sphi 0, %s48
    %s66 = sphi 0, %s66
    %s68 = sphi 0, %s66
    %s69 = sphi 0, %s68
    %s83 = sphi 0, %s69
    %s89 = sphi 0, %s91
    %s92 = sphi 0, %s89
    %s93 = sphi 0, %s92
    %s109 = sphi 0, %s93
    %s115 = sphi 0, %s117
    %s118 = sphi 0, %s115
    %s119 = sphi 0, %s118
    %s135 = sphi 0, %s119
  $region4: #{spab2_forward.1} parent=0 // loop_header_branch
    %14 = sbr.rel (%p12) target = $region8
  $region5: #{spab2_forward.1} parent=0 // loop_body
    %s16 = ssub.s32 %s11, 1
    %s17 = ssub.s32 %s11, 2
    %s18 = sadd.s32 %s11, 1
    %s19 = ssub.s32 %s11, %s18
    %p20 = scmp.eq.s32.totalorder %s19, 0
    %s22 = sadd.s32 %s21, 1
    %s23 = scalar_select %p20, %s21, %s22
    %p26 = pneg %p20
    %p27 = scmp.eq.s32.totalorder %s11, 1
    %p28 = por %p26, %p27
    %p29 = scmp.ne.s32.totalorder %s21, %s24
    %p30 = scmp.eq.s32.totalorder %s11, 0
    %p31 = por %p29, %p30
    %p32 = scmp.ne.s32.totalorder %s21, %s24
    %p33 = scmp.eq.s32.totalorder %s16, 1
    %p34 = por %p32, %p33
    %p35 = scmp.ne.s32.totalorder %s24, %s25
    %p36 = scmp.eq.s32.totalorder %s16, 0
    %p37 = por %p35, %p36
    %p38 = scmp.ne.s32.totalorder %s24, %s25
    %p39 = scmp.eq.s32.totalorder %s17, 1
    %p40 = por %p38, %p39
    %p42 = scmp.ne.s32.totalorder %s25, %s41
    %p43 = scmp.eq.s32.totalorder %s17, 0
    %p44 = por %p42, %p43
    %s46 = sadd.s32 %s45, 1
    %p49 = scmp.eq.s32.totalorder %s11, 1
    %p50 = scmp.ne.s32.totalorder %s45, %s47
    %p51 = scmp.eq.s32.totalorder %s11, 0
    %p52 = por %p50, %p51
    %p53 = scmp.ne.s32.totalorder %s45, %s47
    %p54 = scmp.eq.s32.totalorder %s16, 1
    %p55 = por %p53, %p54
    %p56 = scmp.ne.s32.totalorder %s47, %s48
    %p57 = scmp.eq.s32.totalorder %s16, 0
    %p58 = por %p56, %p57
    %p59 = scmp.ne.s32.totalorder %s47, %s48
    %p60 = scmp.eq.s32.totalorder %s17, 1
    %p61 = por %p59, %p60
    %p63 = scmp.ne.s32.totalorder %s48, %s62
    %p64 = scmp.eq.s32.totalorder %s17, 0
    %p65 = por %p63, %p64
    %s67 = sadd.s32 %s66, 1
    %p70 = scmp.eq.s32.totalorder %s11, 1
    %p71 = scmp.ne.s32.totalorder %s66, %s68
    %p72 = scmp.eq.s32.totalorder %s11, 0
    %p73 = por %p71, %p72
    %p74 = scmp.ne.s32.totalorder %s66, %s68
    %p75 = scmp.eq.s32.totalorder %s16, 1
    %p76 = por %p74, %p75
    %p77 = scmp.ne.s32.totalorder %s68, %s69
    %p78 = scmp.eq.s32.totalorder %s16, 0
    %p79 = por %p77, %p78
    %p80 = scmp.ne.s32.totalorder %s68, %s69
    %p81 = scmp.eq.s32.totalorder %s17, 1
    %p82 = por %p80, %p81
    %p84 = scmp.ne.s32.totalorder %s69, %s83
    %p85 = scmp.eq.s32.totalorder %s17, 0
    %p86 = por %p84, %p85
    %s87 = ssub.s32 %s11, %s18
    %p88 = scmp.eq.s32.totalorder %s87, 0
    %s90 = sadd.s32 %s89, 1
    %s91 = scalar_select %p88, %s89, %s90
    %p94 = pneg %p88
    %p95 = scmp.eq.s32.totalorder %s11, 1
    %p96 = por %p94, %p95
    %p97 = scmp.ne.s32.totalorder %s89, %s92
    %p98 = scmp.eq.s32.totalorder %s11, 0
    %p99 = por %p97, %p98
    %p100 = scmp.ne.s32.totalorder %s89, %s92
    %p101 = scmp.eq.s32.totalorder %s16, 1
    %p102 = por %p100, %p101
    %p103 = scmp.ne.s32.totalorder %s92, %s93
    %p104 = scmp.eq.s32.totalorder %s16, 0
    %p105 = por %p103, %p104
    %p106 = scmp.ne.s32.totalorder %s92, %s93
    %p107 = scmp.eq.s32.totalorder %s17, 1
    %p108 = por %p106, %p107
    %p110 = scmp.ne.s32.totalorder %s93, %s109
    %p111 = scmp.eq.s32.totalorder %s17, 0
    %p112 = por %p110, %p111
    %s113 = ssub.s32 %s11, %s18
    %p114 = scmp.eq.s32.totalorder %s113, 0
    %s116 = sadd.s32 %s115, 1
    %s117 = scalar_select %p114, %s115, %s116
    %p120 = pneg %p114
    %p121 = scmp.eq.s32.totalorder %s11, 1
    %p122 = por %p120, %p121
    %p123 = scmp.ne.s32.totalorder %s115, %s118
    %p124 = scmp.eq.s32.totalorder %s11, 0
    %p125 = por %p123, %p124
    %p126 = scmp.ne.s32.totalorder %s115, %s118
    %p127 = scmp.eq.s32.totalorder %s16, 1
    %p128 = por %p126, %p127
    %p129 = scmp.ne.s32.totalorder %s118, %s119
    %p130 = scmp.eq.s32.totalorder %s16, 0
    %p131 = por %p129, %p130
    %p132 = scmp.ne.s32.totalorder %s118, %s119
    %p133 = scmp.eq.s32.totalorder %s17, 1
    %p134 = por %p132, %p133
    %p136 = scmp.ne.s32.totalorder %s119, %s135
    %p137 = scmp.eq.s32.totalorder %s17, 0
    %p138 = por %p136, %p137
    %p139 = scmp.le.s32.totalorder 1, %s11
    %p140 = scmp.lt.s32.totalorder %s11, 3
    %p141 = pnand %p139, %p140
    %p142 = pneg %p141
    // Predicated region
    $region9: #{spab2_forward.1} parent=5 // pred_check
      _
    $region10: #{spab2_forward.1} parent=5 // pred_check_branch
      %144 = sbr.rel (%p141) target = $region12
    $region11: #{spab2_forward.1} parent=5 // pred_region
      %s145 = ssub.s32 %s11, 1
      // Predicated region
      $region13: #{spab2_forward.1} parent=11 // pred_check
        %p146 = pneg %p58
      $region14: #{spab2_forward.1} parent=11 // pred_check_branch
        %148 = sbr.rel (%p146) target = $region16
      $region15: #{spab2_forward.1} parent=11 // pred_region
        _
      $region16: #{spab2_forward.1} parent=11 // pred_fallthru
        _
      // Predicated region
      $region17: #{spab2_forward.1} parent=11 // pred_check
        %p149 = pneg %p79
      $region18: #{spab2_forward.1} parent=11 // pred_check_branch
        %151 = sbr.rel (%p149) target = $region20
      $region19: #{spab2_forward.1} parent=11 // pred_region
        _
      $region20: #{spab2_forward.1} parent=11 // pred_fallthru
        _
    $region12: #{spab2_forward.1} parent=5 // pred_fallthru
      _
    %p152 = scmp.lt.s32.totalorder %s11, 2
    // Predicated region
    $region21: #{spab2_forward.1} parent=5 // pred_check
      %p153 = pneg %p152
    $region22: #{spab2_forward.1} parent=5 // pred_check_branch
      %155 = sbr.rel (%p153) target = $region24
    $region23: #{spab2_forward.1} parent=5 // pred_region
      // Predicated region
      $region25: #{spab2_forward.1} parent=23 // pred_check
        %p156 = pneg %p31
      $region26: #{spab2_forward.1} parent=23 // pred_check_branch
        %158 = sbr.rel (%p156) target = $region28
      $region27: #{spab2_forward.1} parent=23 // pred_region
        %p159 = scmp.lt.s32.totalorder %s11, 1
        %s160 = scalar_select %p159, %s11, 1
        %s161 = smul.addr %s160, 32
        %s162 = smul.addr %s161, 8
        %s163 = scalar_lea.vmem %s0, %s162
      $region28: #{spab2_forward.1} parent=23 // pred_fallthru
        _
    $region24: #{spab2_forward.1} parent=5 // pred_fallthru
      _
    %p164 = scmp.le.s32.totalorder 1, %s11
    %p165 = scmp.lt.s32.totalorder %s11, 3
    %p166 = pnand %p164, %p165
    %p167 = pneg %p166
    // Predicated region
    $region29: #{spab2_forward.1} parent=5 // pred_check
      _
    $region30: #{spab2_forward.1} parent=5 // pred_check_branch
      %169 = sbr.rel (%p166) target = $region32
    $region31: #{spab2_forward.1} parent=5 // pred_region
      %s170 = ssub.s32 %s11, 1
      %p171 = scmp.lt.s32.totalorder %s16, 1
      %s172 = scalar_select %p171, %s16, 1
      %s173 = smul.addr %s172, 32
      %s174 = smul.addr %s173, 8
      %s175 = scalar_lea.vmem %s0, %s174
      %p176 = pneg %p37
      %p177 = pneg %p34
      %p178 = pneg %p58
      %p179 = pneg %p55
      %p180 = pneg %p79
      %p181 = pneg %p76
      %p182 = pneg %p105
      %p183 = pneg %p102
      %p184 = scmp.lt.s32.totalorder %s16, 1
      %s185 = scalar_select %p184, %s16, 1
      %s186 = smul.addr %s185, 32
      %s187 = smul.addr %s186, 8
      %s188 = scalar_lea.vmem %s3, %s187
      %p189 = pneg %p131
      %p190 = pneg %p128
      %p191 = scmp.lt.s32.totalorder %s16, 1
      %s192 = scalar_select %p191, %s16, 1
      %s193 = smul.addr %s192, 32
      %s194 = smul.addr %s193, 8
      %s195 = scalar_lea.vmem %s4, %s194
      %p196 = scmp.lt.s32.totalorder %s16, 1
      %s197 = scalar_select %p196, %s16, 1
      %s198 = smul.addr %s197, 32
      %s199 = smul.addr %s198, 8
      %s200 = scalar_lea.vmem %s0, %s199
      %p201 = scmp.lt.s32.totalorder %s16, 1
      %s202 = scalar_select %p201, %s16, 1
      %s203 = smul.addr %s202, 32
      %s204 = smul.addr %s203, 8
      %s205 = scalar_lea.vmem %s3, %s204
      %p206 = scmp.lt.s32.totalorder %s16, 1
      %s207 = scalar_select %p206, %s16, 1
      %s208 = smul.addr %s207, 32
      %s209 = smul.addr %s208, 8
      %s210 = scalar_lea.vmem %s4, %s209
      %v211 = vld [vmem:[%s200] sm:$0xff]
      %v212 = vld [vmem:[%s200 + $0x8] sm:$0xff]
      %v213 = vld [vmem:[%s200 + $0x10] sm:$0xff]
      %v214 = vld [vmem:[%s200 + $0x18] sm:$0xff]
      %v215 = vld [vmem:[%s200 + $0x20] sm:$0xff]
      %v216 = vld [vmem:[%s200 + $0x28] sm:$0xff]
      %v217 = vld [vmem:[%s200 + $0x30] sm:$0xff]
      %v218 = vld [vmem:[%s200 + $0x38] sm:$0xff]
      %v219 = vld [vmem:[%s200 + $0x40] sm:$0xff]
      %v220 = vld [vmem:[%s200 + $0x48] sm:$0xff]
      %v221 = vld [vmem:[%s200 + $0x50] sm:$0xff]
      %v222 = vld [vmem:[%s200 + $0x58] sm:$0xff]
      %v223 = vld [vmem:[%s200 + $0x60] sm:$0xff]
      %v224 = vld [vmem:[%s200 + $0x68] sm:$0xff]
      %v225 = vld [vmem:[%s200 + $0x70] sm:$0xff]
      %v226 = vld [vmem:[%s200 + $0x78] sm:$0xff]
      %v227 = vld [vmem:[%s200 + $0x80] sm:$0xff]
      %v228 = vld [vmem:[%s200 + $0x88] sm:$0xff]
      %v229 = vld [vmem:[%s200 + $0x90] sm:$0xff]
      %v230 = vld [vmem:[%s200 + $0x98] sm:$0xff]
      %v231 = vld [vmem:[%s200 + $0xa0] sm:$0xff]
      %v232 = vld [vmem:[%s200 + $0xa8] sm:$0xff]
      %v233 = vld [vmem:[%s200 + $0xb0] sm:$0xff]
      %v234 = vld [vmem:[%s200 + $0xb8] sm:$0xff]
      %v235 = vld [vmem:[%s200 + $0xc0] sm:$0xff]
      %v236 = vld [vmem:[%s200 + $0xc8] sm:$0xff]
      %v237 = vld [vmem:[%s200 + $0xd0] sm:$0xff]
      %v238 = vld [vmem:[%s200 + $0xd8] sm:$0xff]
      %v239 = vld [vmem:[%s200 + $0xe0] sm:$0xff]
      %v240 = vld [vmem:[%s200 + $0xe8] sm:$0xff]
      %v241 = vld [vmem:[%s200 + $0xf0] sm:$0xff]
      %v242 = vld [vmem:[%s200 + $0xf8] sm:$0xff]
      %v243 = vld [vmem:[%s2] sm:$0x1f]
      %vm244 = vcmask 31744
      %245 = vst.msk [vmem:[#allocation2] sm:$0xff] %vm244, 0.0
      %246 = vst.msk [vmem:[#allocation2 + $0x8] sm:$0xff] %vm244, 0.0
      %vm247 = vcmask 25600
      %248 = vst.msk [vmem:[#allocation2 + $0x10] sm:$0x3] %vm247, 0.0
      %249 = vst.msk [vmem:[#allocation2 + $0x18] sm:$0xff] %vm244, 0.0
      %250 = vst.msk [vmem:[#allocation2 + $0x20] sm:$0xff] %vm244, 0.0
      %251 = vst.msk [vmem:[#allocation2 + $0x28] sm:$0x3] %vm247, 0.0
      %252 = vst.msk [vmem:[#allocation2 + $0x30] sm:$0xff] %vm244, 0.0
      %253 = vst.msk [vmem:[#allocation2 + $0x38] sm:$0xff] %vm244, 0.0
      %254 = vst.msk [vmem:[#allocation2 + $0x40] sm:$0x3] %vm247, 0.0
      %255 = vst.msk [vmem:[#allocation2 + $0x48] sm:$0xff] %vm244, 0.0
      %256 = vst.msk [vmem:[#allocation2 + $0x50] sm:$0xff] %vm244, 0.0
      %257 = vst.msk [vmem:[#allocation2 + $0x58] sm:$0x3] %vm247, 0.0
      %258 = vst.msk [vmem:[#allocation2 + $0x60] sm:$0xff] %vm244, 0.0
      %259 = vst.msk [vmem:[#allocation2 + $0x68] sm:$0xff] %vm244, 0.0
      %260 = vst.msk [vmem:[#allocation2 + $0x70] sm:$0x3] %vm247, 0.0
      %261 = vst.msk [vmem:[#allocation2 + $0x78] sm:$0xff] %vm244, 0.0
      %262 = vst.msk [vmem:[#allocation2 + $0x80] sm:$0xff] %vm244, 0.0
      %263 = vst.msk [vmem:[#allocation2 + $0x88] sm:$0x3] %vm247, 0.0
      %264 = vst.msk [vmem:[#allocation2 + $0x90] sm:$0xff] %vm244, 0.0
      %265 = vst.msk [vmem:[#allocation2 + $0x98] sm:$0xff] %vm244, 0.0
      %266 = vst.msk [vmem:[#allocation2 + $0xa0] sm:$0x3] %vm247, 0.0
      %267 = vst.msk [vmem:[#allocation2 + $0xa8] sm:$0xff] %vm244, 0.0
      %268 = vst.msk [vmem:[#allocation2 + $0xb0] sm:$0xff] %vm244, 0.0
      %269 = vst.msk [vmem:[#allocation2 + $0xb8] sm:$0x3] %vm247, 0.0
      %270 = vst.msk [vmem:[#allocation2 + $0xc0] sm:$0xff] %vm244, 0.0
      %271 = vst.msk [vmem:[#allocation2 + $0xc8] sm:$0xff] %vm244, 0.0
      %272 = vst.msk [vmem:[#allocation2 + $0xd0] sm:$0x3] %vm247, 0.0
      %273 = vst.msk [vmem:[#allocation2 + $0xd8] sm:$0xff] %vm244, 0.0
      %274 = vst.msk [vmem:[#allocation2 + $0xe0] sm:$0xff] %vm244, 0.0
      %275 = vst.msk [vmem:[#allocation2 + $0xe8] sm:$0x3] %vm247, 0.0
      %276 = vst.msk [vmem:[#allocation2 + $0xf0] sm:$0xff] %vm244, 0.0
      %277 = vst.msk [vmem:[#allocation2 + $0xf8] sm:$0xff] %vm244, 0.0
      %278 = vst.msk [vmem:[#allocation2 + $0x100] sm:$0x3] %vm247, 0.0
      %279 = vst.msk [vmem:[#allocation2 + $0x108] sm:$0xff] %vm244, 0.0
      %280 = vst.msk [vmem:[#allocation2 + $0x110] sm:$0xff] %vm244, 0.0
      %281 = vst.msk [vmem:[#allocation2 + $0x118] sm:$0x3] %vm247, 0.0
      %282 = vst.msk [vmem:[#allocation2 + $0x120] sm:$0xff] %vm244, 0.0
      %283 = vst.msk [vmem:[#allocation2 + $0x128] sm:$0xff] %vm244, 0.0
      %284 = vst.msk [vmem:[#allocation2 + $0x130] sm:$0x3] %vm247, 0.0
      %285 = vst.msk [vmem:[#allocation2 + $0x138] sm:$0xff] %vm244, 0.0
      %286 = vst.msk [vmem:[#allocation2 + $0x140] sm:$0xff] %vm244, 0.0
      %287 = vst.msk [vmem:[#allocation2 + $0x148] sm:$0x3] %vm247, 0.0
      %288 = vst.msk [vmem:[#allocation2 + $0x150] sm:$0xff] %vm244, 0.0
      %289 = vst.msk [vmem:[#allocation2 + $0x158] sm:$0xff] %vm244, 0.0
      %290 = vst.msk [vmem:[#allocation2 + $0x160] sm:$0x3] %vm247, 0.0
      %291 = vst.msk [vmem:[#allocation2 + $0x168] sm:$0xff] %vm244, 0.0
      %292 = vst.msk [vmem:[#allocation2 + $0x170] sm:$0xff] %vm244, 0.0
      %293 = vst.msk [vmem:[#allocation2 + $0x178] sm:$0x3] %vm247, 0.0
      %294 = vst.msk [vmem:[#allocation2 + $0x180] sm:$0xff] %vm244, 0.0
      %295 = vst.msk [vmem:[#allocation2 + $0x188] sm:$0xff] %vm244, 0.0
      %296 = vst.msk [vmem:[#allocation2 + $0x190] sm:$0x3] %vm247, 0.0
      %297 = vst.msk [vmem:[#allocation2 + $0x198] sm:$0xff] %vm244, 0.0
      %298 = vst.msk [vmem:[#allocation2 + $0x1a0] sm:$0xff] %vm244, 0.0
      %299 = vst.msk [vmem:[#allocation2 + $0x1a8] sm:$0x3] %vm247, 0.0
      %s300 = scalar_lea.vmem [#allocation2], 24
      %301 = vst.msk [vmem:[%s300 + $0x1] sm:$0xff] %vm244, %v211
      %302 = vst.msk [vmem:[%s300 + $0x9] sm:$0xff] %vm244, %v212
      %303 = vst.msk [vmem:[%s300 + $0x19] sm:$0xff] %vm244, %v213
      %304 = vst.msk [vmem:[%s300 + $0x21] sm:$0xff] %vm244, %v214
      %305 = vst.msk [vmem:[%s300 + $0x31] sm:$0xff] %vm244, %v215
      %306 = vst.msk [vmem:[%s300 + $0x39] sm:$0xff] %vm244, %v216
      %307 = vst.msk [vmem:[%s300 + $0x49] sm:$0xff] %vm244, %v217
      %308 = vst.msk [vmem:[%s300 + $0x51] sm:$0xff] %vm244, %v218
      %309 = vst.msk [vmem:[%s300 + $0x61] sm:$0xff] %vm244, %v219
      %310 = vst.msk [vmem:[%s300 + $0x69] sm:$0xff] %vm244, %v220
      %311 = vst.msk [vmem:[%s300 + $0x79] sm:$0xff] %vm244, %v221
      %312 = vst.msk [vmem:[%s300 + $0x81] sm:$0xff] %vm244, %v222
      %313 = vst.msk [vmem:[%s300 + $0x91] sm:$0xff] %vm244, %v223
      %314 = vst.msk [vmem:[%s300 + $0x99] sm:$0xff] %vm244, %v224
      %315 = vst.msk [vmem:[%s300 + $0xa9] sm:$0xff] %vm244, %v225
      %316 = vst.msk [vmem:[%s300 + $0xb1] sm:$0xff] %vm244, %v226
      %317 = vst.msk [vmem:[%s300 + $0xc1] sm:$0xff] %vm244, %v227
      %318 = vst.msk [vmem:[%s300 + $0xc9] sm:$0xff] %vm244, %v228
      %319 = vst.msk [vmem:[%s300 + $0xd9] sm:$0xff] %vm244, %v229
      %320 = vst.msk [vmem:[%s300 + $0xe1] sm:$0xff] %vm244, %v230
      %321 = vst.msk [vmem:[%s300 + $0xf1] sm:$0xff] %vm244, %v231
      %322 = vst.msk [vmem:[%s300 + $0xf9] sm:$0xff] %vm244, %v232
      %323 = vst.msk [vmem:[%s300 + $0x109] sm:$0xff] %vm244, %v233
      %324 = vst.msk [vmem:[%s300 + $0x111] sm:$0xff] %vm244, %v234
      %325 = vst.msk [vmem:[%s300 + $0x121] sm:$0xff] %vm244, %v235
      %326 = vst.msk [vmem:[%s300 + $0x129] sm:$0xff] %vm244, %v236
      %327 = vst.msk [vmem:[%s300 + $0x139] sm:$0xff] %vm244, %v237
      %328 = vst.msk [vmem:[%s300 + $0x141] sm:$0xff] %vm244, %v238
      %329 = vst.msk [vmem:[%s300 + $0x151] sm:$0xff] %vm244, %v239
      %330 = vst.msk [vmem:[%s300 + $0x159] sm:$0xff] %vm244, %v240
      %331 = vst.msk [vmem:[%s300 + $0x169] sm:$0xff] %vm244, %v241
      %332 = vst.msk [vmem:[%s300 + $0x171] sm:$0xff] %vm244, %v242
      %v333 = vld [vmem:[#allocation2] sm:$0xff]
      %v334 = vld [vmem:[#allocation2 + $0x8] sm:$0xff]
      %v335 = vld [vmem:[#allocation2 + $0x10] sm:$0x3]
      %v336 = vld [vmem:[#allocation2 + $0x18] sm:$0xff]
      %v337 = vld [vmem:[#allocation2 + $0x20] sm:$0xff]
      %v338 = vld [vmem:[#allocation2 + $0x28] sm:$0x3]
      %v339 = vld [vmem:[#allocation2 + $0x30] sm:$0xff]
      %v340 = vld [vmem:[#allocation2 + $0x38] sm:$0xff]
      %v341 = vld [vmem:[#allocation2 + $0x40] sm:$0x3]
      %v342 = vld [vmem:[#allocation2 + $0x48] sm:$0xff]
      %v343 = vld [vmem:[#allocation2 + $0x50] sm:$0xff]
      %v344 = vld [vmem:[#allocation2 + $0x58] sm:$0x3]
      %v345 = vld [vmem:[#allocation2 + $0x60] sm:$0xff]
      %v346 = vld [vmem:[#allocation2 + $0x68] sm:$0xff]
      %v347 = vld [vmem:[#allocation2 + $0x70] sm:$0x3]
      %v348 = vld [vmem:[#allocation2 + $0x78] sm:$0xff]
      %v349 = vld [vmem:[#allocation2 + $0x80] sm:$0xff]
      %v350 = vld [vmem:[#allocation2 + $0x88] sm:$0x3]
      %v351 = vld [vmem:[#allocation2 + $0x90] sm:$0xff]
      %v352 = vld [vmem:[#allocation2 + $0x98] sm:$0xff]
      %v353 = vld [vmem:[#allocation2 + $0xa0] sm:$0x3]
      %v354 = vld [vmem:[#allocation2 + $0xa8] sm:$0xff]
      %v355 = vld [vmem:[#allocation2 + $0xb0] sm:$0xff]
      %v356 = vld [vmem:[#allocation2 + $0xb8] sm:$0x3]
      %v357 = vld [vmem:[#allocation2 + $0xc0] sm:$0xff]
      %v358 = vld [vmem:[#allocation2 + $0xc8] sm:$0xff]
      %v359 = vld [vmem:[#allocation2 + $0xd0] sm:$0x3]
      %v360 = vld [vmem:[#allocation2 + $0xd8] sm:$0xff]
      %v361 = vld [vmem:[#allocation2 + $0xe0] sm:$0xff]
      %v362 = vld [vmem:[#allocation2 + $0xe8] sm:$0x3]
      %v363 = vld [vmem:[#allocation2 + $0xf0] sm:$0xff]
      %v364 = vld [vmem:[#allocation2 + $0xf8] sm:$0xff]
      %v365 = vld [vmem:[#allocation2 + $0x100] sm:$0x3]
      %v366 = vld [vmem:[#allocation2 + $0x108] sm:$0xff]
      %v367 = vld [vmem:[#allocation2 + $0x110] sm:$0xff]
      %v368 = vld [vmem:[#allocation2 + $0x118] sm:$0x3]
      %v369 = vld [vmem:[#allocation2 + $0x120] sm:$0xff]
      %v370 = vld [vmem:[#allocation2 + $0x128] sm:$0xff]
      %v371 = vld [vmem:[#allocation2 + $0x130] sm:$0x3]
      %v372 = vld [vmem:[#allocation2 + $0x138] sm:$0xff]
      %v373 = vld [vmem:[#allocation2 + $0x140] sm:$0xff]
      %v374 = vld [vmem:[#allocation2 + $0x148] sm:$0x3]
      %v375 = vld [vmem:[#allocation2 + $0x150] sm:$0xff]
      %v376 = vld [vmem:[#allocation2 + $0x158] sm:$0xff]
      %v377 = vld [vmem:[#allocation2 + $0x160] sm:$0x3]
      %v378 = vld [vmem:[#allocation2 + $0x168] sm:$0xff]
      %v379 = vld [vmem:[#allocation2 + $0x170] sm:$0xff]
      %v380 = vld [vmem:[#allocation2 + $0x178] sm:$0x3]
      %v381 = vld [vmem:[#allocation2 + $0x180] sm:$0xff]
      %v382 = vld [vmem:[#allocation2 + $0x188] sm:$0xff]
      %v383 = vld [vmem:[#allocation2 + $0x190] sm:$0x3]
      %v384 = vld [vmem:[#allocation2 + $0x198] sm:$0xff]
      %v385 = vld [vmem:[#allocation2 + $0x1a0] sm:$0xff]
      %v386 = vld [vmem:[#allocation2 + $0x1a8] sm:$0x3]
      %387 = vst.msk [vmem:[#allocation3] sm:$0xff] %vm244, %v333
      %388 = vst.msk [vmem:[#allocation3 + $0x8] sm:$0xff] %vm244, %v334
      %389 = vst.msk [vmem:[#allocation3 + $0x10] sm:$0xff] %vm244, %v336
      %390 = vst.msk [vmem:[#allocation3 + $0x18] sm:$0xff] %vm244, %v337
      %391 = vst.msk [vmem:[#allocation3 + $0x20] sm:$0xff] %vm244, %v339
      %392 = vst.msk [vmem:[#allocation3 + $0x28] sm:$0xff] %vm244, %v340
      %393 = vst.msk [vmem:[#allocation3 + $0x30] sm:$0xff] %vm244, %v342
      %394 = vst.msk [vmem:[#allocation3 + $0x38] sm:$0xff] %vm244, %v343
      %395 = vst.msk [vmem:[#allocation3 + $0x40] sm:$0xff] %vm244, %v345
      %396 = vst.msk [vmem:[#allocation3 + $0x48] sm:$0xff] %vm244, %v346
      %397 = vst.msk [vmem:[#allocation3 + $0x50] sm:$0xff] %vm244, %v348
      %398 = vst.msk [vmem:[#allocation3 + $0x58] sm:$0xff] %vm244, %v349
      %399 = vst.msk [vmem:[#allocation3 + $0x60] sm:$0xff] %vm244, %v351
      %400 = vst.msk [vmem:[#allocation3 + $0x68] sm:$0xff] %vm244, %v352
      %401 = vst.msk [vmem:[#allocation3 + $0x70] sm:$0xff] %vm244, %v354
      %402 = vst.msk [vmem:[#allocation3 + $0x78] sm:$0xff] %vm244, %v355
      %403 = vst.msk [vmem:[#allocation3 + $0x80] sm:$0xff] %vm244, %v357
      %404 = vst.msk [vmem:[#allocation3 + $0x88] sm:$0xff] %vm244, %v358
      %405 = vst.msk [vmem:[#allocation3 + $0x90] sm:$0xff] %vm244, %v360
      %406 = vst.msk [vmem:[#allocation3 + $0x98] sm:$0xff] %vm244, %v361
      %407 = vst.msk [vmem:[#allocation3 + $0xa0] sm:$0xff] %vm244, %v363
      %408 = vst.msk [vmem:[#allocation3 + $0xa8] sm:$0xff] %vm244, %v364
      %409 = vst.msk [vmem:[#allocation3 + $0xb0] sm:$0xff] %vm244, %v366
      %410 = vst.msk [vmem:[#allocation3 + $0xb8] sm:$0xff] %vm244, %v367
      %411 = vst.msk [vmem:[#allocation3 + $0xc0] sm:$0xff] %vm244, %v369
      %412 = vst.msk [vmem:[#allocation3 + $0xc8] sm:$0xff] %vm244, %v370
      %413 = vst.msk [vmem:[#allocation3 + $0xd0] sm:$0xff] %vm244, %v372
      %414 = vst.msk [vmem:[#allocation3 + $0xd8] sm:$0xff] %vm244, %v373
      %415 = vst.msk [vmem:[#allocation3 + $0xe0] sm:$0xff] %vm244, %v375
      %416 = vst.msk [vmem:[#allocation3 + $0xe8] sm:$0xff] %vm244, %v376
      %417 = vst.msk [vmem:[#allocation3 + $0xf0] sm:$0xff] %vm244, %v378
      %418 = vst.msk [vmem:[#allocation3 + $0xf8] sm:$0xff] %vm244, %v379
      %vm467 = vcmask 1046528
      %v468 = vrot.slane %v333, 1
      %v469 = vrot.slane %v334, 1
      %v470 = vsel %vm467, %v468, %v469
      %v471 = vrot.slane %v335, 1
      %v472 = vsel %vm467, %v469, %v471
      %v473 = vrot.slane %v336, 1
      %v474 = vrot.slane %v337, 1
      %v475 = vsel %vm467, %v473, %v474
      %v476 = vrot.slane %v338, 1
      %v477 = vsel %vm467, %v474, %v476
      %v478 = vrot.slane %v339, 1
      %v479 = vrot.slane %v340, 1
      %v480 = vsel %vm467, %v478, %v479
      %v481 = vrot.slane %v341, 1
      %v482 = vsel %vm467, %v479, %v481
      %v483 = vrot.slane %v342, 1
      %v484 = vrot.slane %v343, 1
      %v485 = vsel %vm467, %v483, %v484
      %v486 = vrot.slane %v344, 1
      %v487 = vsel %vm467, %v484, %v486
      %v488 = vrot.slane %v345, 1
      %v489 = vrot.slane %v346, 1
      %v490 = vsel %vm467, %v488, %v489
      %v491 = vrot.slane %v347, 1
      %v492 = vsel %vm467, %v489, %v491
      %v493 = vrot.slane %v348, 1
      %v494 = vrot.slane %v349, 1
      %v495 = vsel %vm467, %v493, %v494
      %v496 = vrot.slane %v350, 1
      %v497 = vsel %vm467, %v494, %v496
      %v498 = vrot.slane %v351, 1
      %v499 = vrot.slane %v352, 1
      %v500 = vsel %vm467, %v498, %v499
      %v501 = vrot.slane %v353, 1
      %v502 = vsel %vm467, %v499, %v501
      %v503 = vrot.slane %v354, 1
      %v504 = vrot.slane %v355, 1
      %v505 = vsel %vm467, %v503, %v504
      %v506 = vrot.slane %v356, 1
      %v507 = vsel %vm467, %v504, %v506
      %v508 = vrot.slane %v357, 1
      %v509 = vrot.slane %v358, 1
      %v510 = vsel %vm467, %v508, %v509
      %v511 = vrot.slane %v359, 1
      %v512 = vsel %vm467, %v509, %v511
      %v513 = vrot.slane %v360, 1
      %v514 = vrot.slane %v361, 1
      %v515 = vsel %vm467, %v513, %v514
      %v516 = vrot.slane %v362, 1
      %v517 = vsel %vm467, %v514, %v516
      %v518 = vrot.slane %v363, 1
      %v519 = vrot.slane %v364, 1
      %v520 = vsel %vm467, %v518, %v519
      %v521 = vrot.slane %v365, 1
      %v522 = vsel %vm467, %v519, %v521
      %v523 = vrot.slane %v366, 1
      %v524 = vrot.slane %v367, 1
      %v525 = vsel %vm467, %v523, %v524
      %v526 = vrot.slane %v368, 1
      %v527 = vsel %vm467, %v524, %v526
      %v528 = vrot.slane %v369, 1
      %v529 = vrot.slane %v370, 1
      %v530 = vsel %vm467, %v528, %v529
      %v531 = vrot.slane %v371, 1
      %v532 = vsel %vm467, %v529, %v531
      %v533 = vrot.slane %v372, 1
      %v534 = vrot.slane %v373, 1
      %v535 = vsel %vm467, %v533, %v534
      %v536 = vrot.slane %v374, 1
      %v537 = vsel %vm467, %v534, %v536
      %v538 = vrot.slane %v375, 1
      %v539 = vrot.slane %v376, 1
      %v540 = vsel %vm467, %v538, %v539
      %v541 = vrot.slane %v377, 1
      %v542 = vsel %vm467, %v539, %v541
      %v543 = vrot.slane %v378, 1
      %v544 = vrot.slane %v379, 1
      %v545 = vsel %vm467, %v543, %v544
      %v546 = vrot.slane %v380, 1
      %v547 = vsel %vm467, %v544, %v546
      %548 = vrot.lane.b32.xlu0 %v470, 4
      %v549 = vpop.permute.xlu0 %548
      %550 = vrot.lane.b32.xlu0 %v472, 4
      %v551 = vpop.permute.xlu0 %550
      %552 = vrot.lane.b32.xlu0 %v475, 4
      %v553 = vpop.permute.xlu0 %552
      %554 = vrot.lane.b32.xlu0 %v477, 4
      %v555 = vpop.permute.xlu0 %554
      %556 = vrot.lane.b32.xlu0 %v480, 4
      %v557 = vpop.permute.xlu0 %556
      %558 = vrot.lane.b32.xlu0 %v482, 4
      %v559 = vpop.permute.xlu0 %558
      %560 = vrot.lane.b32.xlu0 %v485, 4
      %v561 = vpop.permute.xlu0 %560
      %562 = vrot.lane.b32.xlu0 %v487, 4
      %v563 = vpop.permute.xlu0 %562
      %564 = vrot.lane.b32.xlu0 %v490, 4
      %v565 = vpop.permute.xlu0 %564
      %566 = vrot.lane.b32.xlu0 %v492, 4
      %v567 = vpop.permute.xlu0 %566
      %568 = vrot.lane.b32.xlu0 %v495, 4
      %v569 = vpop.permute.xlu0 %568
      %570 = vrot.lane.b32.xlu0 %v497, 4
      %v571 = vpop.permute.xlu0 %570
      %572 = vrot.lane.b32.xlu0 %v500, 4
      %v573 = vpop.permute.xlu0 %572
      %574 = vrot.lane.b32.xlu0 %v502, 4
      %v575 = vpop.permute.xlu0 %574
      %576 = vrot.lane.b32.xlu0 %v505, 4
      %v577 = vpop.permute.xlu0 %576
      %578 = vrot.lane.b32.xlu0 %v507, 4
      %v579 = vpop.permute.xlu0 %578
      %580 = vrot.lane.b32.xlu0 %v510, 4
      %v581 = vpop.permute.xlu0 %580
      %582 = vrot.lane.b32.xlu0 %v512, 4
      %v583 = vpop.permute.xlu0 %582
      %584 = vrot.lane.b32.xlu0 %v515, 4
      %v585 = vpop.permute.xlu0 %584
      %586 = vrot.lane.b32.xlu0 %v517, 4
      %v587 = vpop.permute.xlu0 %586
      %588 = vrot.lane.b32.xlu0 %v520, 4
      %v589 = vpop.permute.xlu0 %588
      %590 = vrot.lane.b32.xlu0 %v522, 4
      %v591 = vpop.permute.xlu0 %590
      %592 = vrot.lane.b32.xlu0 %v525, 4
      %v593 = vpop.permute.xlu0 %592
      %594 = vrot.lane.b32.xlu0 %v527, 4
      %v595 = vpop.permute.xlu0 %594
      %596 = vrot.lane.b32.xlu0 %v530, 4
      %v597 = vpop.permute.xlu0 %596
      %598 = vrot.lane.b32.xlu0 %v532, 4
      %v599 = vpop.permute.xlu0 %598
      %600 = vrot.lane.b32.xlu0 %v535, 4
      %v601 = vpop.permute.xlu0 %600
      %602 = vrot.lane.b32.xlu0 %v537, 4
      %v603 = vpop.permute.xlu0 %602
      %604 = vrot.lane.b32.xlu0 %v540, 4
      %v605 = vpop.permute.xlu0 %604
      %606 = vrot.lane.b32.xlu0 %v542, 4
      %v607 = vpop.permute.xlu0 %606
      %608 = vrot.lane.b32.xlu0 %v545, 4
      %v609 = vpop.permute.xlu0 %608
      %610 = vrot.lane.b32.xlu0 %v547, 4
      %v611 = vpop.permute.xlu0 %610
      %vm644 = vcmask 64544
      %645 = vst.msk [vmem:[#allocation3] sm:$0xff] %vm644, %v549
      %646 = vst.msk [vmem:[#allocation3 + $0x8] sm:$0xff] %vm644, %v551
      %647 = vst.msk [vmem:[#allocation3 + $0x10] sm:$0xff] %vm644, %v553
      %648 = vst.msk [vmem:[#allocation3 + $0x18] sm:$0xff] %vm644, %v555
      %649 = vst.msk [vmem:[#allocation3 + $0x20] sm:$0xff] %vm644, %v557
      %650 = vst.msk [vmem:[#allocation3 + $0x28] sm:$0xff] %vm644, %v559
      %651 = vst.msk [vmem:[#allocation3 + $0x30] sm:$0xff] %vm644, %v561
      %652 = vst.msk [vmem:[#allocation3 + $0x38] sm:$0xff] %vm644, %v563
      %653 = vst.msk [vmem:[#allocation3 + $0x40] sm:$0xff] %vm644, %v565
      %654 = vst.msk [vmem:[#allocation3 + $0x48] sm:$0xff] %vm644, %v567
      %655 = vst.msk [vmem:[#allocation3 + $0x50] sm:$0xff] %vm644, %v569
      %656 = vst.msk [vmem:[#allocation3 + $0x58] sm:$0xff] %vm644, %v571
      %657 = vst.msk [vmem:[#allocation3 + $0x60] sm:$0xff] %vm644, %v573
      %658 = vst.msk [vmem:[#allocation3 + $0x68] sm:$0xff] %vm644, %v575
      %659 = vst.msk [vmem:[#allocation3 + $0x70] sm:$0xff] %vm644, %v577
      %660 = vst.msk [vmem:[#allocation3 + $0x78] sm:$0xff] %vm644, %v579
      %661 = vst.msk [vmem:[#allocation3 + $0x80] sm:$0xff] %vm644, %v581
      %662 = vst.msk [vmem:[#allocation3 + $0x88] sm:$0xff] %vm644, %v583
      %663 = vst.msk [vmem:[#allocation3 + $0x90] sm:$0xff] %vm644, %v585
      %664 = vst.msk [vmem:[#allocation3 + $0x98] sm:$0xff] %vm644, %v587
      %665 = vst.msk [vmem:[#allocation3 + $0xa0] sm:$0xff] %vm644, %v589
      %666 = vst.msk [vmem:[#allocation3 + $0xa8] sm:$0xff] %vm644, %v591
      %667 = vst.msk [vmem:[#allocation3 + $0xb0] sm:$0xff] %vm644, %v593
      %668 = vst.msk [vmem:[#allocation3 + $0xb8] sm:$0xff] %vm644, %v595
      %669 = vst.msk [vmem:[#allocation3 + $0xc0] sm:$0xff] %vm644, %v597
      %670 = vst.msk [vmem:[#allocation3 + $0xc8] sm:$0xff] %vm644, %v599
      %671 = vst.msk [vmem:[#allocation3 + $0xd0] sm:$0xff] %vm644, %v601
      %672 = vst.msk [vmem:[#allocation3 + $0xd8] sm:$0xff] %vm644, %v603
      %673 = vst.msk [vmem:[#allocation3 + $0xe0] sm:$0xff] %vm644, %v605
      %674 = vst.msk [vmem:[#allocation3 + $0xe8] sm:$0xff] %vm644, %v607
      %675 = vst.msk [vmem:[#allocation3 + $0xf0] sm:$0xff] %vm644, %v609
      %676 = vst.msk [vmem:[#allocation3 + $0xf8] sm:$0xff] %vm644, %v611
      %vm677 = vcmask 1045504
      %v678 = vrot.slane %v333, 2
      %v679 = vrot.slane %v334, 2
      %v680 = vsel %vm677, %v678, %v679
      %v681 = vrot.slane %v335, 2
      %v682 = vsel %vm677, %v679, %v681
      %v683 = vrot.slane %v336, 2
      %v684 = vrot.slane %v337, 2
      %v685 = vsel %vm677, %v683, %v684
      %v686 = vrot.slane %v338, 2
      %v687 = vsel %vm677, %v684, %v686
      %v688 = vrot.slane %v339, 2
      %v689 = vrot.slane %v340, 2
      %v690 = vsel %vm677, %v688, %v689
      %v691 = vrot.slane %v341, 2
      %v692 = vsel %vm677, %v689, %v691
      %v693 = vrot.slane %v342, 2
      %v694 = vrot.slane %v343, 2
      %v695 = vsel %vm677, %v693, %v694
      %v696 = vrot.slane %v344, 2
      %v697 = vsel %vm677, %v694, %v696
      %v698 = vrot.slane %v345, 2
      %v699 = vrot.slane %v346, 2
      %v700 = vsel %vm677, %v698, %v699
      %v701 = vrot.slane %v347, 2
      %v702 = vsel %vm677, %v699, %v701
      %v703 = vrot.slane %v348, 2
      %v704 = vrot.slane %v349, 2
      %v705 = vsel %vm677, %v703, %v704
      %v706 = vrot.slane %v350, 2
      %v707 = vsel %vm677, %v704, %v706
      %v708 = vrot.slane %v351, 2
      %v709 = vrot.slane %v352, 2
      %v710 = vsel %vm677, %v708, %v709
      %v711 = vrot.slane %v353, 2
      %v712 = vsel %vm677, %v709, %v711
      %v713 = vrot.slane %v354, 2
      %v714 = vrot.slane %v355, 2
      %v715 = vsel %vm677, %v713, %v714
      %v716 = vrot.slane %v356, 2
      %v717 = vsel %vm677, %v714, %v716
      %v718 = vrot.slane %v357, 2
      %v719 = vrot.slane %v358, 2
      %v720 = vsel %vm677, %v718, %v719
      %v721 = vrot.slane %v359, 2
      %v722 = vsel %vm677, %v719, %v721
      %v723 = vrot.slane %v360, 2
      %v724 = vrot.slane %v361, 2
      %v725 = vsel %vm677, %v723, %v724
      %v726 = vrot.slane %v362, 2
      %v727 = vsel %vm677, %v724, %v726
      %v728 = vrot.slane %v363, 2
      %v729 = vrot.slane %v364, 2
      %v730 = vsel %vm677, %v728, %v729
      %v731 = vrot.slane %v365, 2
      %v732 = vsel %vm677, %v729, %v731
      %v733 = vrot.slane %v366, 2
      %v734 = vrot.slane %v367, 2
      %v735 = vsel %vm677, %v733, %v734
      %v736 = vrot.slane %v368, 2
      %v737 = vsel %vm677, %v734, %v736
      %v738 = vrot.slane %v369, 2
      %v739 = vrot.slane %v370, 2
      %v740 = vsel %vm677, %v738, %v739
      %v741 = vrot.slane %v371, 2
      %v742 = vsel %vm677, %v739, %v741
      %v743 = vrot.slane %v372, 2
      %v744 = vrot.slane %v373, 2
      %v745 = vsel %vm677, %v743, %v744
      %v746 = vrot.slane %v374, 2
      %v747 = vsel %vm677, %v744, %v746
      %v748 = vrot.slane %v375, 2
      %v749 = vrot.slane %v376, 2
      %v750 = vsel %vm677, %v748, %v749
      %v751 = vrot.slane %v377, 2
      %v752 = vsel %vm677, %v749, %v751
      %v753 = vrot.slane %v378, 2
      %v754 = vrot.slane %v379, 2
      %v755 = vsel %vm677, %v753, %v754
      %v756 = vrot.slane %v380, 2
      %v757 = vsel %vm677, %v754, %v756
      %758 = vrot.lane.b32.xlu0 %v680, 8
      %v759 = vpop.permute.xlu0 %758
      %760 = vrot.lane.b32.xlu0 %v682, 8
      %v761 = vpop.permute.xlu0 %760
      %762 = vrot.lane.b32.xlu0 %v685, 8
      %v763 = vpop.permute.xlu0 %762
      %764 = vrot.lane.b32.xlu0 %v687, 8
      %v765 = vpop.permute.xlu0 %764
      %766 = vrot.lane.b32.xlu0 %v690, 8
      %v767 = vpop.permute.xlu0 %766
      %768 = vrot.lane.b32.xlu0 %v692, 8
      %v769 = vpop.permute.xlu0 %768
      %770 = vrot.lane.b32.xlu0 %v695, 8
      %v771 = vpop.permute.xlu0 %770
      %772 = vrot.lane.b32.xlu0 %v697, 8
      %v773 = vpop.permute.xlu0 %772
      %774 = vrot.lane.b32.xlu0 %v700, 8
      %v775 = vpop.permute.xlu0 %774
      %776 = vrot.lane.b32.xlu0 %v702, 8
      %v777 = vpop.permute.xlu0 %776
      %778 = vrot.lane.b32.xlu0 %v705, 8
      %v779 = vpop.permute.xlu0 %778
      %780 = vrot.lane.b32.xlu0 %v707, 8
      %v781 = vpop.permute.xlu0 %780
      %782 = vrot.lane.b32.xlu0 %v710, 8
      %v783 = vpop.permute.xlu0 %782
      %784 = vrot.lane.b32.xlu0 %v712, 8
      %v785 = vpop.permute.xlu0 %784
      %786 = vrot.lane.b32.xlu0 %v715, 8
      %v787 = vpop.permute.xlu0 %786
      %788 = vrot.lane.b32.xlu0 %v717, 8
      %v789 = vpop.permute.xlu0 %788
      %790 = vrot.lane.b32.xlu0 %v720, 8
      %v791 = vpop.permute.xlu0 %790
      %792 = vrot.lane.b32.xlu0 %v722, 8
      %v793 = vpop.permute.xlu0 %792
      %794 = vrot.lane.b32.xlu0 %v725, 8
      %v795 = vpop.permute.xlu0 %794
      %796 = vrot.lane.b32.xlu0 %v727, 8
      %v797 = vpop.permute.xlu0 %796
      %798 = vrot.lane.b32.xlu0 %v730, 8
      %v799 = vpop.permute.xlu0 %798
      %800 = vrot.lane.b32.xlu0 %v732, 8
      %v801 = vpop.permute.xlu0 %800
      %802 = vrot.lane.b32.xlu0 %v735, 8
      %v803 = vpop.permute.xlu0 %802
      %804 = vrot.lane.b32.xlu0 %v737, 8
      %v805 = vpop.permute.xlu0 %804
      %806 = vrot.lane.b32.xlu0 %v740, 8
      %v807 = vpop.permute.xlu0 %806
      %808 = vrot.lane.b32.xlu0 %v742, 8
      %v809 = vpop.permute.xlu0 %808
      %810 = vrot.lane.b32.xlu0 %v745, 8
      %v811 = vpop.permute.xlu0 %810
      %812 = vrot.lane.b32.xlu0 %v747, 8
      %v813 = vpop.permute.xlu0 %812
      %814 = vrot.lane.b32.xlu0 %v750, 8
      %v815 = vpop.permute.xlu0 %814
      %816 = vrot.lane.b32.xlu0 %v752, 8
      %v817 = vpop.permute.xlu0 %816
      %818 = vrot.lane.b32.xlu0 %v755, 8
      %v819 = vpop.permute.xlu0 %818
      %820 = vrot.lane.b32.xlu0 %v757, 8
      %v821 = vpop.permute.xlu0 %820
      %vm854 = vcmask 97344
      %855 = vst.msk [vmem:[#allocation3] sm:$0xff] %vm854, %v759
      %856 = vst.msk [vmem:[#allocation3 + $0x8] sm:$0xff] %vm854, %v761
      %857 = vst.msk [vmem:[#allocation3 + $0x10] sm:$0xff] %vm854, %v763
      %858 = vst.msk [vmem:[#allocation3 + $0x18] sm:$0xff] %vm854, %v765
      %859 = vst.msk [vmem:[#allocation3 + $0x20] sm:$0xff] %vm854, %v767
      %860 = vst.msk [vmem:[#allocation3 + $0x28] sm:$0xff] %vm854, %v769
      %861 = vst.msk [vmem:[#allocation3 + $0x30] sm:$0xff] %vm854, %v771
      %862 = vst.msk [vmem:[#allocation3 + $0x38] sm:$0xff] %vm854, %v773
      %863 = vst.msk [vmem:[#allocation3 + $0x40] sm:$0xff] %vm854, %v775
      %864 = vst.msk [vmem:[#allocation3 + $0x48] sm:$0xff] %vm854, %v777
      %865 = vst.msk [vmem:[#allocation3 + $0x50] sm:$0xff] %vm854, %v779
      %866 = vst.msk [vmem:[#allocation3 + $0x58] sm:$0xff] %vm854, %v781
      %867 = vst.msk [vmem:[#allocation3 + $0x60] sm:$0xff] %vm854, %v783
      %868 = vst.msk [vmem:[#allocation3 + $0x68] sm:$0xff] %vm854, %v785
      %869 = vst.msk [vmem:[#allocation3 + $0x70] sm:$0xff] %vm854, %v787
      %870 = vst.msk [vmem:[#allocation3 + $0x78] sm:$0xff] %vm854, %v789
      %871 = vst.msk [vmem:[#allocation3 + $0x80] sm:$0xff] %vm854, %v791
      %872 = vst.msk [vmem:[#allocation3 + $0x88] sm:$0xff] %vm854, %v793
      %873 = vst.msk [vmem:[#allocation3 + $0x90] sm:$0xff] %vm854, %v795
      %874 = vst.msk [vmem:[#allocation3 + $0x98] sm:$0xff] %vm854, %v797
      %875 = vst.msk [vmem:[#allocation3 + $0xa0] sm:$0xff] %vm854, %v799
      %876 = vst.msk [vmem:[#allocation3 + $0xa8] sm:$0xff] %vm854, %v801
      %877 = vst.msk [vmem:[#allocation3 + $0xb0] sm:$0xff] %vm854, %v803
      %878 = vst.msk [vmem:[#allocation3 + $0xb8] sm:$0xff] %vm854, %v805
      %879 = vst.msk [vmem:[#allocation3 + $0xc0] sm:$0xff] %vm854, %v807
      %880 = vst.msk [vmem:[#allocation3 + $0xc8] sm:$0xff] %vm854, %v809
      %881 = vst.msk [vmem:[#allocation3 + $0xd0] sm:$0xff] %vm854, %v811
      %882 = vst.msk [vmem:[#allocation3 + $0xd8] sm:$0xff] %vm854, %v813
      %883 = vst.msk [vmem:[#allocation3 + $0xe0] sm:$0xff] %vm854, %v815
      %884 = vst.msk [vmem:[#allocation3 + $0xe8] sm:$0xff] %vm854, %v817
      %885 = vst.msk [vmem:[#allocation3 + $0xf0] sm:$0xff] %vm854, %v819
      %886 = vst.msk [vmem:[#allocation3 + $0xf8] sm:$0xff] %vm854, %v821
      %889 = vrot.lane.b32.xlu0 %v336, 12
      %v890 = vpop.permute.xlu0 %889
      %891 = vrot.lane.b32.xlu0 %v337, 12
      %v892 = vpop.permute.xlu0 %891
      %893 = vrot.lane.b32.xlu0 %v339, 12
      %v894 = vpop.permute.xlu0 %893
      %895 = vrot.lane.b32.xlu0 %v340, 12
      %v896 = vpop.permute.xlu0 %895
      %897 = vrot.lane.b32.xlu0 %v342, 12
      %v898 = vpop.permute.xlu0 %897
      %899 = vrot.lane.b32.xlu0 %v343, 12
      %v900 = vpop.permute.xlu0 %899
      %901 = vrot.lane.b32.xlu0 %v345, 12
      %v902 = vpop.permute.xlu0 %901
      %903 = vrot.lane.b32.xlu0 %v346, 12
      %v904 = vpop.permute.xlu0 %903
      %905 = vrot.lane.b32.xlu0 %v348, 12
      %v906 = vpop.permute.xlu0 %905
      %907 = vrot.lane.b32.xlu0 %v349, 12
      %v908 = vpop.permute.xlu0 %907
      %909 = vrot.lane.b32.xlu0 %v351, 12
      %v910 = vpop.permute.xlu0 %909
      %911 = vrot.lane.b32.xlu0 %v352, 12
      %v912 = vpop.permute.xlu0 %911
      %913 = vrot.lane.b32.xlu0 %v354, 12
      %v914 = vpop.permute.xlu0 %913
      %915 = vrot.lane.b32.xlu0 %v355, 12
      %v916 = vpop.permute.xlu0 %915
      %917 = vrot.lane.b32.xlu0 %v357, 12
      %v918 = vpop.permute.xlu0 %917
      %919 = vrot.lane.b32.xlu0 %v358, 12
      %v920 = vpop.permute.xlu0 %919
      %921 = vrot.lane.b32.xlu0 %v360, 12
      %v922 = vpop.permute.xlu0 %921
      %923 = vrot.lane.b32.xlu0 %v361, 12
      %v924 = vpop.permute.xlu0 %923
      %925 = vrot.lane.b32.xlu0 %v363, 12
      %v926 = vpop.permute.xlu0 %925
      %927 = vrot.lane.b32.xlu0 %v364, 12
      %v928 = vpop.permute.xlu0 %927
      %929 = vrot.lane.b32.xlu0 %v366, 12
      %v930 = vpop.permute.xlu0 %929
      %931 = vrot.lane.b32.xlu0 %v367, 12
      %v932 = vpop.permute.xlu0 %931
      %933 = vrot.lane.b32.xlu0 %v369, 12
      %v934 = vpop.permute.xlu0 %933
      %935 = vrot.lane.b32.xlu0 %v370, 12
      %v936 = vpop.permute.xlu0 %935
      %937 = vrot.lane.b32.xlu0 %v372, 12
      %v938 = vpop.permute.xlu0 %937
      %939 = vrot.lane.b32.xlu0 %v373, 12
      %v940 = vpop.permute.xlu0 %939
      %941 = vrot.lane.b32.xlu0 %v375, 12
      %v942 = vpop.permute.xlu0 %941
      %943 = vrot.lane.b32.xlu0 %v376, 12
      %v944 = vpop.permute.xlu0 %943
      %945 = vrot.lane.b32.xlu0 %v378, 12
      %v946 = vpop.permute.xlu0 %945
      %947 = vrot.lane.b32.xlu0 %v379, 12
      %v948 = vpop.permute.xlu0 %947
      %949 = vrot.lane.b32.xlu0 %v381, 12
      %v950 = vpop.permute.xlu0 %949
      %951 = vrot.lane.b32.xlu0 %v382, 12
      %v952 = vpop.permute.xlu0 %951
      %vm985 = vcmask 130144
      %986 = vst.msk [vmem:[#allocation3] sm:$0xff] %vm985, %v890
      %987 = vst.msk [vmem:[#allocation3 + $0x8] sm:$0xff] %vm985, %v892
      %988 = vst.msk [vmem:[#allocation3 + $0x10] sm:$0xff] %vm985, %v894
      %989 = vst.msk [vmem:[#allocation3 + $0x18] sm:$0xff] %vm985, %v896
      %990 = vst.msk [vmem:[#allocation3 + $0x20] sm:$0xff] %vm985, %v898
      %991 = vst.msk [vmem:[#allocation3 + $0x28] sm:$0xff] %vm985, %v900
      %992 = vst.msk [vmem:[#allocation3 + $0x30] sm:$0xff] %vm985, %v902
      %993 = vst.msk [vmem:[#allocation3 + $0x38] sm:$0xff] %vm985, %v904
      %994 = vst.msk [vmem:[#allocation3 + $0x40] sm:$0xff] %vm985, %v906
      %995 = vst.msk [vmem:[#allocation3 + $0x48] sm:$0xff] %vm985, %v908
      %996 = vst.msk [vmem:[#allocation3 + $0x50] sm:$0xff] %vm985, %v910
      %997 = vst.msk [vmem:[#allocation3 + $0x58] sm:$0xff] %vm985, %v912
      %998 = vst.msk [vmem:[#allocation3 + $0x60] sm:$0xff] %vm985, %v914
      %999 = vst.msk [vmem:[#allocation3 + $0x68] sm:$0xff] %vm985, %v916
      %1000 = vst.msk [vmem:[#allocation3 + $0x70] sm:$0xff] %vm985, %v918
      %1001 = vst.msk [vmem:[#allocation3 + $0x78] sm:$0xff] %vm985, %v920
      %1002 = vst.msk [vmem:[#allocation3 + $0x80] sm:$0xff] %vm985, %v922
      %1003 = vst.msk [vmem:[#allocation3 + $0x88] sm:$0xff] %vm985, %v924
      %1004 = vst.msk [vmem:[#allocation3 + $0x90] sm:$0xff] %vm985, %v926
      %1005 = vst.msk [vmem:[#allocation3 + $0x98] sm:$0xff] %vm985, %v928
      %1006 = vst.msk [vmem:[#allocation3 + $0xa0] sm:$0xff] %vm985, %v930
      %1007 = vst.msk [vmem:[#allocation3 + $0xa8] sm:$0xff] %vm985, %v932
      %1008 = vst.msk [vmem:[#allocation3 + $0xb0] sm:$0xff] %vm985, %v934
      %1009 = vst.msk [vmem:[#allocation3 + $0xb8] sm:$0xff] %vm985, %v936
      %1010 = vst.msk [vmem:[#allocation3 + $0xc0] sm:$0xff] %vm985, %v938
      %1011 = vst.msk [vmem:[#allocation3 + $0xc8] sm:$0xff] %vm985, %v940
      %1012 = vst.msk [vmem:[#allocation3 + $0xd0] sm:$0xff] %vm985, %v942
      %1013 = vst.msk [vmem:[#allocation3 + $0xd8] sm:$0xff] %vm985, %v944
      %1014 = vst.msk [vmem:[#allocation3 + $0xe0] sm:$0xff] %vm985, %v946
      %1015 = vst.msk [vmem:[#allocation3 + $0xe8] sm:$0xff] %vm985, %v948
      %1016 = vst.msk [vmem:[#allocation3 + $0xf0] sm:$0xff] %vm985, %v950
      %1017 = vst.msk [vmem:[#allocation3 + $0xf8] sm:$0xff] %vm985, %v952
      %v1019 = vrot.slane %v381, 1
      %v1020 = vrot.slane %v382, 1
      %v1021 = vsel %vm467, %v1019, %v1020
      %v1022 = vrot.slane %v383, 1
      %v1023 = vsel %vm467, %v1020, %v1022
      %1024 = vrot.lane.b32.xlu0 %v475, 16
      %v1025 = vpop.permute.xlu0 %1024
      %1026 = vrot.lane.b32.xlu0 %v477, 16
      %v1027 = vpop.permute.xlu0 %1026
      %1028 = vrot.lane.b32.xlu0 %v480, 16
      %v1029 = vpop.permute.xlu0 %1028
      %1030 = vrot.lane.b32.xlu0 %v482, 16
      %v1031 = vpop.permute.xlu0 %1030
      %1032 = vrot.lane.b32.xlu0 %v485, 16
      %v1033 = vpop.permute.xlu0 %1032
      %1034 = vrot.lane.b32.xlu0 %v487, 16
      %v1035 = vpop.permute.xlu0 %1034
      %1036 = vrot.lane.b32.xlu0 %v490, 16
      %v1037 = vpop.permute.xlu0 %1036
      %1038 = vrot.lane.b32.xlu0 %v492, 16
      %v1039 = vpop.permute.xlu0 %1038
      %1040 = vrot.lane.b32.xlu0 %v495, 16
      %v1041 = vpop.permute.xlu0 %1040
      %1042 = vrot.lane.b32.xlu0 %v497, 16
      %v1043 = vpop.permute.xlu0 %1042
      %1044 = vrot.lane.b32.xlu0 %v500, 16
      %v1045 = vpop.permute.xlu0 %1044
      %1046 = vrot.lane.b32.xlu0 %v502, 16
      %v1047 = vpop.permute.xlu0 %1046
      %1048 = vrot.lane.b32.xlu0 %v505, 16
      %v1049 = vpop.permute.xlu0 %1048
      %1050 = vrot.lane.b32.xlu0 %v507, 16
      %v1051 = vpop.permute.xlu0 %1050
      %1052 = vrot.lane.b32.xlu0 %v510, 16
      %v1053 = vpop.permute.xlu0 %1052
      %1054 = vrot.lane.b32.xlu0 %v512, 16
      %v1055 = vpop.permute.xlu0 %1054
      %1056 = vrot.lane.b32.xlu0 %v515, 16
      %v1057 = vpop.permute.xlu0 %1056
      %1058 = vrot.lane.b32.xlu0 %v517, 16
      %v1059 = vpop.permute.xlu0 %1058
      %1060 = vrot.lane.b32.xlu0 %v520, 16
      %v1061 = vpop.permute.xlu0 %1060
      %1062 = vrot.lane.b32.xlu0 %v522, 16
      %v1063 = vpop.permute.xlu0 %1062
      %1064 = vrot.lane.b32.xlu0 %v525, 16
      %v1065 = vpop.permute.xlu0 %1064
      %1066 = vrot.lane.b32.xlu0 %v527, 16
      %v1067 = vpop.permute.xlu0 %1066
      %1068 = vrot.lane.b32.xlu0 %v530, 16
      %v1069 = vpop.permute.xlu0 %1068
      %1070 = vrot.lane.b32.xlu0 %v532, 16
      %v1071 = vpop.permute.xlu0 %1070
      %1072 = vrot.lane.b32.xlu0 %v535, 16
      %v1073 = vpop.permute.xlu0 %1072
      %1074 = vrot.lane.b32.xlu0 %v537, 16
      %v1075 = vpop.permute.xlu0 %1074
      %1076 = vrot.lane.b32.xlu0 %v540, 16
      %v1077 = vpop.permute.xlu0 %1076
      %1078 = vrot.lane.b32.xlu0 %v542, 16
      %v1079 = vpop.permute.xlu0 %1078
      %1080 = vrot.lane.b32.xlu0 %v545, 16
      %v1081 = vpop.permute.xlu0 %1080
      %1082 = vrot.lane.b32.xlu0 %v547, 16
      %v1083 = vpop.permute.xlu0 %1082
      %1084 = vrot.lane.b32.xlu0 %v1021, 16
      %v1085 = vpop.permute.xlu0 %1084
      %1086 = vrot.lane.b32.xlu0 %v1023, 16
      %v1087 = vpop.permute.xlu0 %1086
      %vm1120 = vcmask 162944
      %1121 = vst.msk [vmem:[#allocation3] sm:$0xff] %vm1120, %v1025
      %1122 = vst.msk [vmem:[#allocation3 + $0x8] sm:$0xff] %vm1120, %v1027
      %1123 = vst.msk [vmem:[#allocation3 + $0x10] sm:$0xff] %vm1120, %v1029
      %1124 = vst.msk [vmem:[#allocation3 + $0x18] sm:$0xff] %vm1120, %v1031
      %1125 = vst.msk [vmem:[#allocation3 + $0x20] sm:$0xff] %vm1120, %v1033
      %1126 = vst.msk [vmem:[#allocation3 + $0x28] sm:$0xff] %vm1120, %v1035
      %1127 = vst.msk [vmem:[#allocation3 + $0x30] sm:$0xff] %vm1120, %v1037
      %1128 = vst.msk [vmem:[#allocation3 + $0x38] sm:$0xff] %vm1120, %v1039
      %1129 = vst.msk [vmem:[#allocation3 + $0x40] sm:$0xff] %vm1120, %v1041
      %1130 = vst.msk [vmem:[#allocation3 + $0x48] sm:$0xff] %vm1120, %v1043
      %1131 = vst.msk [vmem:[#allocation3 + $0x50] sm:$0xff] %vm1120, %v1045
      %1132 = vst.msk [vmem:[#allocation3 + $0x58] sm:$0xff] %vm1120, %v1047
      %1133 = vst.msk [vmem:[#allocation3 + $0x60] sm:$0xff] %vm1120, %v1049
      %1134 = vst.msk [vmem:[#allocation3 + $0x68] sm:$0xff] %vm1120, %v1051
      %1135 = vst.msk [vmem:[#allocation3 + $0x70] sm:$0xff] %vm1120, %v1053
      %1136 = vst.msk [vmem:[#allocation3 + $0x78] sm:$0xff] %vm1120, %v1055
      %1137 = vst.msk [vmem:[#allocation3 + $0x80] sm:$0xff] %vm1120, %v1057
      %1138 = vst.msk [vmem:[#allocation3 + $0x88] sm:$0xff] %vm1120, %v1059
      %1139 = vst.msk [vmem:[#allocation3 + $0x90] sm:$0xff] %vm1120, %v1061
      %1140 = vst.msk [vmem:[#allocation3 + $0x98] sm:$0xff] %vm1120, %v1063
      %1141 = vst.msk [vmem:[#allocation3 + $0xa0] sm:$0xff] %vm1120, %v1065
      %1142 = vst.msk [vmem:[#allocation3 + $0xa8] sm:$0xff] %vm1120, %v1067
      %1143 = vst.msk [vmem:[#allocation3 + $0xb0] sm:$0xff] %vm1120, %v1069
      %1144 = vst.msk [vmem:[#allocation3 + $0xb8] sm:$0xff] %vm1120, %v1071
      %1145 = vst.msk [vmem:[#allocation3 + $0xc0] sm:$0xff] %vm1120, %v1073
      %1146 = vst.msk [vmem:[#allocation3 + $0xc8] sm:$0xff] %vm1120, %v1075
      %1147 = vst.msk [vmem:[#allocation3 + $0xd0] sm:$0xff] %vm1120, %v1077
      %1148 = vst.msk [vmem:[#allocation3 + $0xd8] sm:$0xff] %vm1120, %v1079
      %1149 = vst.msk [vmem:[#allocation3 + $0xe0] sm:$0xff] %vm1120, %v1081
      %1150 = vst.msk [vmem:[#allocation3 + $0xe8] sm:$0xff] %vm1120, %v1083
      %1151 = vst.msk [vmem:[#allocation3 + $0xf0] sm:$0xff] %vm1120, %v1085
      %1152 = vst.msk [vmem:[#allocation3 + $0xf8] sm:$0xff] %vm1120, %v1087
      %v1153 = vrot.slane %v381, 2
      %v1154 = vrot.slane %v382, 2
      %v1155 = vsel %vm677, %v1153, %v1154
      %v1156 = vrot.slane %v383, 2
      %v1157 = vsel %vm677, %v1154, %v1156
      %1158 = vrot.lane.b32.xlu0 %v685, 20
      %v1159 = vpop.permute.xlu0 %1158
      %1160 = vrot.lane.b32.xlu0 %v687, 20
      %v1161 = vpop.permute.xlu0 %1160
      %1162 = vrot.lane.b32.xlu0 %v690, 20
      %v1163 = vpop.permute.xlu0 %1162
      %1164 = vrot.lane.b32.xlu0 %v692, 20
      %v1165 = vpop.permute.xlu0 %1164
      %1166 = vrot.lane.b32.xlu0 %v695, 20
      %v1167 = vpop.permute.xlu0 %1166
      %1168 = vrot.lane.b32.xlu0 %v697, 20
      %v1169 = vpop.permute.xlu0 %1168
      %1170 = vrot.lane.b32.xlu0 %v700, 20
      %v1171 = vpop.permute.xlu0 %1170
      %1172 = vrot.lane.b32.xlu0 %v702, 20
      %v1173 = vpop.permute.xlu0 %1172
      %1174 = vrot.lane.b32.xlu0 %v705, 20
      %v1175 = vpop.permute.xlu0 %1174
      %1176 = vrot.lane.b32.xlu0 %v707, 20
      %v1177 = vpop.permute.xlu0 %1176
      %1178 = vrot.lane.b32.xlu0 %v710, 20
      %v1179 = vpop.permute.xlu0 %1178
      %1180 = vrot.lane.b32.xlu0 %v712, 20
      %v1181 = vpop.permute.xlu0 %1180
      %1182 = vrot.lane.b32.xlu0 %v715, 20
      %v1183 = vpop.permute.xlu0 %1182
      %1184 = vrot.lane.b32.xlu0 %v717, 20
      %v1185 = vpop.permute.xlu0 %1184
      %1186 = vrot.lane.b32.xlu0 %v720, 20
      %v1187 = vpop.permute.xlu0 %1186
      %1188 = vrot.lane.b32.xlu0 %v722, 20
      %v1189 = vpop.permute.xlu0 %1188
      %1190 = vrot.lane.b32.xlu0 %v725, 20
      %v1191 = vpop.permute.xlu0 %1190
      %1192 = vrot.lane.b32.xlu0 %v727, 20
      %v1193 = vpop.permute.xlu0 %1192
      %1194 = vrot.lane.b32.xlu0 %v730, 20
      %v1195 = vpop.permute.xlu0 %1194
      %1196 = vrot.lane.b32.xlu0 %v732, 20
      %v1197 = vpop.permute.xlu0 %1196
      %1198 = vrot.lane.b32.xlu0 %v735, 20
      %v1199 = vpop.permute.xlu0 %1198
      %1200 = vrot.lane.b32.xlu0 %v737, 20
      %v1201 = vpop.permute.xlu0 %1200
      %1202 = vrot.lane.b32.xlu0 %v740, 20
      %v1203 = vpop.permute.xlu0 %1202
      %1204 = vrot.lane.b32.xlu0 %v742, 20
      %v1205 = vpop.permute.xlu0 %1204
      %1206 = vrot.lane.b32.xlu0 %v745, 20
      %v1207 = vpop.permute.xlu0 %1206
      %1208 = vrot.lane.b32.xlu0 %v747, 20
      %v1209 = vpop.permute.xlu0 %1208
      %1210 = vrot.lane.b32.xlu0 %v750, 20
      %v1211 = vpop.permute.xlu0 %1210
      %1212 = vrot.lane.b32.xlu0 %v752, 20
      %v1213 = vpop.permute.xlu0 %1212
      %1214 = vrot.lane.b32.xlu0 %v755, 20
      %v1215 = vpop.permute.xlu0 %1214
      %1216 = vrot.lane.b32.xlu0 %v757, 20
      %v1217 = vpop.permute.xlu0 %1216
      %1218 = vrot.lane.b32.xlu0 %v1155, 20
      %v1219 = vpop.permute.xlu0 %1218
      %1220 = vrot.lane.b32.xlu0 %v1157, 20
      %v1221 = vpop.permute.xlu0 %1220
      %vm1254 = vcmask 195744
      %1255 = vst.msk [vmem:[#allocation3] sm:$0xff] %vm1254, %v1159
      %1256 = vst.msk [vmem:[#allocation3 + $0x8] sm:$0xff] %vm1254, %v1161
      %1257 = vst.msk [vmem:[#allocation3 + $0x10] sm:$0xff] %vm1254, %v1163
      %1258 = vst.msk [vmem:[#allocation3 + $0x18] sm:$0xff] %vm1254, %v1165
      %1259 = vst.msk [vmem:[#allocation3 + $0x20] sm:$0xff] %vm1254, %v1167
      %1260 = vst.msk [vmem:[#allocation3 + $0x28] sm:$0xff] %vm1254, %v1169
      %1261 = vst.msk [vmem:[#allocation3 + $0x30] sm:$0xff] %vm1254, %v1171
      %1262 = vst.msk [vmem:[#allocation3 + $0x38] sm:$0xff] %vm1254, %v1173
      %1263 = vst.msk [vmem:[#allocation3 + $0x40] sm:$0xff] %vm1254, %v1175
      %1264 = vst.msk [vmem:[#allocation3 + $0x48] sm:$0xff] %vm1254, %v1177
      %1265 = vst.msk [vmem:[#allocation3 + $0x50] sm:$0xff] %vm1254, %v1179
      %1266 = vst.msk [vmem:[#allocation3 + $0x58] sm:$0xff] %vm1254, %v1181
      %1267 = vst.msk [vmem:[#allocation3 + $0x60] sm:$0xff] %vm1254, %v1183
      %1268 = vst.msk [vmem:[#allocation3 + $0x68] sm:$0xff] %vm1254, %v1185
      %1269 = vst.msk [vmem:[#allocation3 + $0x70] sm:$0xff] %vm1254, %v1187
      %1270 = vst.msk [vmem:[#allocation3 + $0x78] sm:$0xff] %vm1254, %v1189
      %1271 = vst.msk [vmem:[#allocation3 + $0x80] sm:$0xff] %vm1254, %v1191
      %1272 = vst.msk [vmem:[#allocation3 + $0x88] sm:$0xff] %vm1254, %v1193
      %1273 = vst.msk [vmem:[#allocation3 + $0x90] sm:$0xff] %vm1254, %v1195
      %1274 = vst.msk [vmem:[#allocation3 + $0x98] sm:$0xff] %vm1254, %v1197
      %1275 = vst.msk [vmem:[#allocation3 + $0xa0] sm:$0xff] %vm1254, %v1199
      %1276 = vst.msk [vmem:[#allocation3 + $0xa8] sm:$0xff] %vm1254, %v1201
      %1277 = vst.msk [vmem:[#allocation3 + $0xb0] sm:$0xff] %vm1254, %v1203
      %1278 = vst.msk [vmem:[#allocation3 + $0xb8] sm:$0xff] %vm1254, %v1205
      %1279 = vst.msk [vmem:[#allocation3 + $0xc0] sm:$0xff] %vm1254, %v1207
      %1280 = vst.msk [vmem:[#allocation3 + $0xc8] sm:$0xff] %vm1254, %v1209
      %1281 = vst.msk [vmem:[#allocation3 + $0xd0] sm:$0xff] %vm1254, %v1211
      %1282 = vst.msk [vmem:[#allocation3 + $0xd8] sm:$0xff] %vm1254, %v1213
      %1283 = vst.msk [vmem:[#allocation3 + $0xe0] sm:$0xff] %vm1254, %v1215
      %1284 = vst.msk [vmem:[#allocation3 + $0xe8] sm:$0xff] %vm1254, %v1217
      %1285 = vst.msk [vmem:[#allocation3 + $0xf0] sm:$0xff] %vm1254, %v1219
      %1286 = vst.msk [vmem:[#allocation3 + $0xf8] sm:$0xff] %vm1254, %v1221
      %1289 = vrot.lane.b32.xlu0 %v339, 24
      %v1290 = vpop.permute.xlu0 %1289
      %1291 = vrot.lane.b32.xlu0 %v340, 24
      %v1292 = vpop.permute.xlu0 %1291
      %1293 = vrot.lane.b32.xlu0 %v342, 24
      %v1294 = vpop.permute.xlu0 %1293
      %1295 = vrot.lane.b32.xlu0 %v343, 24
      %v1296 = vpop.permute.xlu0 %1295
      %1297 = vrot.lane.b32.xlu0 %v345, 24
      %v1298 = vpop.permute.xlu0 %1297
      %1299 = vrot.lane.b32.xlu0 %v346, 24
      %v1300 = vpop.permute.xlu0 %1299
      %1301 = vrot.lane.b32.xlu0 %v348, 24
      %v1302 = vpop.permute.xlu0 %1301
      %1303 = vrot.lane.b32.xlu0 %v349, 24
      %v1304 = vpop.permute.xlu0 %1303
      %1305 = vrot.lane.b32.xlu0 %v351, 24
      %v1306 = vpop.permute.xlu0 %1305
      %1307 = vrot.lane.b32.xlu0 %v352, 24
      %v1308 = vpop.permute.xlu0 %1307
      %1309 = vrot.lane.b32.xlu0 %v354, 24
      %v1310 = vpop.permute.xlu0 %1309
      %1311 = vrot.lane.b32.xlu0 %v355, 24
      %v1312 = vpop.permute.xlu0 %1311
      %1313 = vrot.lane.b32.xlu0 %v357, 24
      %v1314 = vpop.permute.xlu0 %1313
      %1315 = vrot.lane.b32.xlu0 %v358, 24
      %v1316 = vpop.permute.xlu0 %1315
      %1317 = vrot.lane.b32.xlu0 %v360, 24
      %v1318 = vpop.permute.xlu0 %1317
      %1319 = vrot.lane.b32.xlu0 %v361, 24
      %v1320 = vpop.permute.xlu0 %1319
      %1321 = vrot.lane.b32.xlu0 %v363, 24
      %v1322 = vpop.permute.xlu0 %1321
      %1323 = vrot.lane.b32.xlu0 %v364, 24
      %v1324 = vpop.permute.xlu0 %1323
      %1325 = vrot.lane.b32.xlu0 %v366, 24
      %v1326 = vpop.permute.xlu0 %1325
      %1327 = vrot.lane.b32.xlu0 %v367, 24
      %v1328 = vpop.permute.xlu0 %1327
      %1329 = vrot.lane.b32.xlu0 %v369, 24
      %v1330 = vpop.permute.xlu0 %1329
      %1331 = vrot.lane.b32.xlu0 %v370, 24
      %v1332 = vpop.permute.xlu0 %1331
      %1333 = vrot.lane.b32.xlu0 %v372, 24
      %v1334 = vpop.permute.xlu0 %1333
      %1335 = vrot.lane.b32.xlu0 %v373, 24
      %v1336 = vpop.permute.xlu0 %1335
      %1337 = vrot.lane.b32.xlu0 %v375, 24
      %v1338 = vpop.permute.xlu0 %1337
      %1339 = vrot.lane.b32.xlu0 %v376, 24
      %v1340 = vpop.permute.xlu0 %1339
      %1341 = vrot.lane.b32.xlu0 %v378, 24
      %v1342 = vpop.permute.xlu0 %1341
      %1343 = vrot.lane.b32.xlu0 %v379, 24
      %v1344 = vpop.permute.xlu0 %1343
      %1345 = vrot.lane.b32.xlu0 %v381, 24
      %v1346 = vpop.permute.xlu0 %1345
      %1347 = vrot.lane.b32.xlu0 %v382, 24
      %v1348 = vpop.permute.xlu0 %1347
      %1349 = vrot.lane.b32.xlu0 %v384, 24
      %v1350 = vpop.permute.xlu0 %1349
      %1351 = vrot.lane.b32.xlu0 %v385, 24
      %v1352 = vpop.permute.xlu0 %1351
      %vm1385 = vcmask 228544
      %1386 = vst.msk [vmem:[#allocation3] sm:$0xff] %vm1385, %v1290
      %1387 = vst.msk [vmem:[#allocation3 + $0x8] sm:$0xff] %vm1385, %v1292
      %1388 = vst.msk [vmem:[#allocation3 + $0x10] sm:$0xff] %vm1385, %v1294
      %1389 = vst.msk [vmem:[#allocation3 + $0x18] sm:$0xff] %vm1385, %v1296
      %1390 = vst.msk [vmem:[#allocation3 + $0x20] sm:$0xff] %vm1385, %v1298
      %1391 = vst.msk [vmem:[#allocation3 + $0x28] sm:$0xff] %vm1385, %v1300
      %1392 = vst.msk [vmem:[#allocation3 + $0x30] sm:$0xff] %vm1385, %v1302
      %1393 = vst.msk [vmem:[#allocation3 + $0x38] sm:$0xff] %vm1385, %v1304
      %1394 = vst.msk [vmem:[#allocation3 + $0x40] sm:$0xff] %vm1385, %v1306
      %1395 = vst.msk [vmem:[#allocation3 + $0x48] sm:$0xff] %vm1385, %v1308
      %1396 = vst.msk [vmem:[#allocation3 + $0x50] sm:$0xff] %vm1385, %v1310
      %1397 = vst.msk [vmem:[#allocation3 + $0x58] sm:$0xff] %vm1385, %v1312
      %1398 = vst.msk [vmem:[#allocation3 + $0x60] sm:$0xff] %vm1385, %v1314
      %1399 = vst.msk [vmem:[#allocation3 + $0x68] sm:$0xff] %vm1385, %v1316
      %1400 = vst.msk [vmem:[#allocation3 + $0x70] sm:$0xff] %vm1385, %v1318
      %1401 = vst.msk [vmem:[#allocation3 + $0x78] sm:$0xff] %vm1385, %v1320
      %1402 = vst.msk [vmem:[#allocation3 + $0x80] sm:$0xff] %vm1385, %v1322
      %1403 = vst.msk [vmem:[#allocation3 + $0x88] sm:$0xff] %vm1385, %v1324
      %1404 = vst.msk [vmem:[#allocation3 + $0x90] sm:$0xff] %vm1385, %v1326
      %1405 = vst.msk [vmem:[#allocation3 + $0x98] sm:$0xff] %vm1385, %v1328
      %1406 = vst.msk [vmem:[#allocation3 + $0xa0] sm:$0xff] %vm1385, %v1330
      %1407 = vst.msk [vmem:[#allocation3 + $0xa8] sm:$0xff] %vm1385, %v1332
      %1408 = vst.msk [vmem:[#allocation3 + $0xb0] sm:$0xff] %vm1385, %v1334
      %1409 = vst.msk [vmem:[#allocation3 + $0xb8] sm:$0xff] %vm1385, %v1336
      %1410 = vst.msk [vmem:[#allocation3 + $0xc0] sm:$0xff] %vm1385, %v1338
      %1411 = vst.msk [vmem:[#allocation3 + $0xc8] sm:$0xff] %vm1385, %v1340
      %1412 = vst.msk [vmem:[#allocation3 + $0xd0] sm:$0xff] %vm1385, %v1342
      %1413 = vst.msk [vmem:[#allocation3 + $0xd8] sm:$0xff] %vm1385, %v1344
      %1414 = vst.msk [vmem:[#allocation3 + $0xe0] sm:$0xff] %vm1385, %v1346
      %1415 = vst.msk [vmem:[#allocation3 + $0xe8] sm:$0xff] %vm1385, %v1348
      %1416 = vst.msk [vmem:[#allocation3 + $0xf0] sm:$0xff] %vm1385, %v1350
      %1417 = vst.msk [vmem:[#allocation3 + $0xf8] sm:$0xff] %vm1385, %v1352
      %v1419 = vrot.slane %v384, 1
      %v1420 = vrot.slane %v385, 1
      %v1421 = vsel %vm467, %v1419, %v1420
      %v1422 = vrot.slane %v386, 1
      %v1423 = vsel %vm467, %v1420, %v1422
      %1424 = vrot.lane.b32.xlu0 %v480, 28
      %v1425 = vpop.permute.xlu0 %1424
      %1426 = vrot.lane.b32.xlu0 %v482, 28
      %v1427 = vpop.permute.xlu0 %1426
      %1428 = vrot.lane.b32.xlu0 %v485, 28
      %v1429 = vpop.permute.xlu0 %1428
      %1430 = vrot.lane.b32.xlu0 %v487, 28
      %v1431 = vpop.permute.xlu0 %1430
      %1432 = vrot.lane.b32.xlu0 %v490, 28
      %v1433 = vpop.permute.xlu0 %1432
      %1434 = vrot.lane.b32.xlu0 %v492, 28
      %v1435 = vpop.permute.xlu0 %1434
      %1436 = vrot.lane.b32.xlu0 %v495, 28
      %v1437 = vpop.permute.xlu0 %1436
      %1438 = vrot.lane.b32.xlu0 %v497, 28
      %v1439 = vpop.permute.xlu0 %1438
      %1440 = vrot.lane.b32.xlu0 %v500, 28
      %v1441 = vpop.permute.xlu0 %1440
      %1442 = vrot.lane.b32.xlu0 %v502, 28
      %v1443 = vpop.permute.xlu0 %1442
      %1444 = vrot.lane.b32.xlu0 %v505, 28
      %v1445 = vpop.permute.xlu0 %1444
      %1446 = vrot.lane.b32.xlu0 %v507, 28
      %v1447 = vpop.permute.xlu0 %1446
      %1448 = vrot.lane.b32.xlu0 %v510, 28
      %v1449 = vpop.permute.xlu0 %1448
      %1450 = vrot.lane.b32.xlu0 %v512, 28
      %v1451 = vpop.permute.xlu0 %1450
      %1452 = vrot.lane.b32.xlu0 %v515, 28
      %v1453 = vpop.permute.xlu0 %1452
      %1454 = vrot.lane.b32.xlu0 %v517, 28
      %v1455 = vpop.permute.xlu0 %1454
      %1456 = vrot.lane.b32.xlu0 %v520, 28
      %v1457 = vpop.permute.xlu0 %1456
      %1458 = vrot.lane.b32.xlu0 %v522, 28
      %v1459 = vpop.permute.xlu0 %1458
      %1460 = vrot.lane.b32.xlu0 %v525, 28
      %v1461 = vpop.permute.xlu0 %1460
      %1462 = vrot.lane.b32.xlu0 %v527, 28
      %v1463 = vpop.permute.xlu0 %1462
      %1464 = vrot.lane.b32.xlu0 %v530, 28
      %v1465 = vpop.permute.xlu0 %1464
      %1466 = vrot.lane.b32.xlu0 %v532, 28
      %v1467 = vpop.permute.xlu0 %1466
      %1468 = vrot.lane.b32.xlu0 %v535, 28
      %v1469 = vpop.permute.xlu0 %1468
      %1470 = vrot.lane.b32.xlu0 %v537, 28
      %v1471 = vpop.permute.xlu0 %1470
      %1472 = vrot.lane.b32.xlu0 %v540, 28
      %v1473 = vpop.permute.xlu0 %1472
      %1474 = vrot.lane.b32.xlu0 %v542, 28
      %v1475 = vpop.permute.xlu0 %1474
      %1476 = vrot.lane.b32.xlu0 %v545, 28
      %v1477 = vpop.permute.xlu0 %1476
      %1478 = vrot.lane.b32.xlu0 %v547, 28
      %v1479 = vpop.permute.xlu0 %1478
      %1480 = vrot.lane.b32.xlu0 %v1021, 28
      %v1481 = vpop.permute.xlu0 %1480
      %1482 = vrot.lane.b32.xlu0 %v1023, 28
      %v1483 = vpop.permute.xlu0 %1482
      %1484 = vrot.lane.b32.xlu0 %v1421, 28
      %v1485 = vpop.permute.xlu0 %1484
      %1486 = vrot.lane.b32.xlu0 %v1423, 28
      %v1487 = vpop.permute.xlu0 %1486
      %vm1520 = vcmask 261344
      %1521 = vst.msk [vmem:[#allocation3] sm:$0xff] %vm1520, %v1425
      %1522 = vst.msk [vmem:[#allocation3 + $0x8] sm:$0xff] %vm1520, %v1427
      %1523 = vst.msk [vmem:[#allocation3 + $0x10] sm:$0xff] %vm1520, %v1429
      %1524 = vst.msk [vmem:[#allocation3 + $0x18] sm:$0xff] %vm1520, %v1431
      %1525 = vst.msk [vmem:[#allocation3 + $0x20] sm:$0xff] %vm1520, %v1433
      %1526 = vst.msk [vmem:[#allocation3 + $0x28] sm:$0xff] %vm1520, %v1435
      %1527 = vst.msk [vmem:[#allocation3 + $0x30] sm:$0xff] %vm1520, %v1437
      %1528 = vst.msk [vmem:[#allocation3 + $0x38] sm:$0xff] %vm1520, %v1439
      %1529 = vst.msk [vmem:[#allocation3 + $0x40] sm:$0xff] %vm1520, %v1441
      %1530 = vst.msk [vmem:[#allocation3 + $0x48] sm:$0xff] %vm1520, %v1443
      %1531 = vst.msk [vmem:[#allocation3 + $0x50] sm:$0xff] %vm1520, %v1445
      %1532 = vst.msk [vmem:[#allocation3 + $0x58] sm:$0xff] %vm1520, %v1447
      %1533 = vst.msk [vmem:[#allocation3 + $0x60] sm:$0xff] %vm1520, %v1449
      %1534 = vst.msk [vmem:[#allocation3 + $0x68] sm:$0xff] %vm1520, %v1451
      %1535 = vst.msk [vmem:[#allocation3 + $0x70] sm:$0xff] %vm1520, %v1453
      %1536 = vst.msk [vmem:[#allocation3 + $0x78] sm:$0xff] %vm1520, %v1455
      %1537 = vst.msk [vmem:[#allocation3 + $0x80] sm:$0xff] %vm1520, %v1457
      %1538 = vst.msk [vmem:[#allocation3 + $0x88] sm:$0xff] %vm1520, %v1459
      %1539 = vst.msk [vmem:[#allocation3 + $0x90] sm:$0xff] %vm1520, %v1461
      %1540 = vst.msk [vmem:[#allocation3 + $0x98] sm:$0xff] %vm1520, %v1463
      %1541 = vst.msk [vmem:[#allocation3 + $0xa0] sm:$0xff] %vm1520, %v1465
      %1542 = vst.msk [vmem:[#allocation3 + $0xa8] sm:$0xff] %vm1520, %v1467
      %1543 = vst.msk [vmem:[#allocation3 + $0xb0] sm:$0xff] %vm1520, %v1469
      %1544 = vst.msk [vmem:[#allocation3 + $0xb8] sm:$0xff] %vm1520, %v1471
      %1545 = vst.msk [vmem:[#allocation3 + $0xc0] sm:$0xff] %vm1520, %v1473
      %1546 = vst.msk [vmem:[#allocation3 + $0xc8] sm:$0xff] %vm1520, %v1475
      %1547 = vst.msk [vmem:[#allocation3 + $0xd0] sm:$0xff] %vm1520, %v1477
      %1548 = vst.msk [vmem:[#allocation3 + $0xd8] sm:$0xff] %vm1520, %v1479
      %1549 = vst.msk [vmem:[#allocation3 + $0xe0] sm:$0xff] %vm1520, %v1481
      %1550 = vst.msk [vmem:[#allocation3 + $0xe8] sm:$0xff] %vm1520, %v1483
      %1551 = vst.msk [vmem:[#allocation3 + $0xf0] sm:$0xff] %vm1520, %v1485
      %1552 = vst.msk [vmem:[#allocation3 + $0xf8] sm:$0xff] %vm1520, %v1487
      %v1553 = vrot.slane %v384, 2
      %v1554 = vrot.slane %v385, 2
      %v1555 = vsel %vm677, %v1553, %v1554
      %v1556 = vrot.slane %v386, 2
      %v1557 = vsel %vm677, %v1554, %v1556
      %1558 = vrot.lane.b32.xlu0 %v690, 32
      %v1559 = vpop.permute.xlu0 %1558
      %1560 = vrot.lane.b32.xlu0 %v692, 32
      %v1561 = vpop.permute.xlu0 %1560
      %1562 = vrot.lane.b32.xlu0 %v695, 32
      %v1563 = vpop.permute.xlu0 %1562
      %1564 = vrot.lane.b32.xlu0 %v697, 32
      %v1565 = vpop.permute.xlu0 %1564
      %1566 = vrot.lane.b32.xlu0 %v700, 32
      %v1567 = vpop.permute.xlu0 %1566
      %1568 = vrot.lane.b32.xlu0 %v702, 32
      %v1569 = vpop.permute.xlu0 %1568
      %1570 = vrot.lane.b32.xlu0 %v705, 32
      %v1571 = vpop.permute.xlu0 %1570
      %1572 = vrot.lane.b32.xlu0 %v707, 32
      %v1573 = vpop.permute.xlu0 %1572
      %1574 = vrot.lane.b32.xlu0 %v710, 32
      %v1575 = vpop.permute.xlu0 %1574
      %1576 = vrot.lane.b32.xlu0 %v712, 32
      %v1577 = vpop.permute.xlu0 %1576
      %1578 = vrot.lane.b32.xlu0 %v715, 32
      %v1579 = vpop.permute.xlu0 %1578
      %1580 = vrot.lane.b32.xlu0 %v717, 32
      %v1581 = vpop.permute.xlu0 %1580
      %1582 = vrot.lane.b32.xlu0 %v720, 32
      %v1583 = vpop.permute.xlu0 %1582
      %1584 = vrot.lane.b32.xlu0 %v722, 32
      %v1585 = vpop.permute.xlu0 %1584
      %1586 = vrot.lane.b32.xlu0 %v725, 32
      %v1587 = vpop.permute.xlu0 %1586
      %1588 = vrot.lane.b32.xlu0 %v727, 32
      %v1589 = vpop.permute.xlu0 %1588
      %1590 = vrot.lane.b32.xlu0 %v730, 32
      %v1591 = vpop.permute.xlu0 %1590
      %1592 = vrot.lane.b32.xlu0 %v732, 32
      %v1593 = vpop.permute.xlu0 %1592
      %1594 = vrot.lane.b32.xlu0 %v735, 32
      %v1595 = vpop.permute.xlu0 %1594
      %1596 = vrot.lane.b32.xlu0 %v737, 32
      %v1597 = vpop.permute.xlu0 %1596
      %1598 = vrot.lane.b32.xlu0 %v740, 32
      %v1599 = vpop.permute.xlu0 %1598
      %1600 = vrot.lane.b32.xlu0 %v742, 32
      %v1601 = vpop.permute.xlu0 %1600
      %1602 = vrot.lane.b32.xlu0 %v745, 32
      %v1603 = vpop.permute.xlu0 %1602
      %1604 = vrot.lane.b32.xlu0 %v747, 32
      %v1605 = vpop.permute.xlu0 %1604
      %1606 = vrot.lane.b32.xlu0 %v750, 32
      %v1607 = vpop.permute.xlu0 %1606
      %1608 = vrot.lane.b32.xlu0 %v752, 32
      %v1609 = vpop.permute.xlu0 %1608
      %1610 = vrot.lane.b32.xlu0 %v755, 32
      %v1611 = vpop.permute.xlu0 %1610
      %1612 = vrot.lane.b32.xlu0 %v757, 32
      %v1613 = vpop.permute.xlu0 %1612
      %1614 = vrot.lane.b32.xlu0 %v1155, 32
      %v1615 = vpop.permute.xlu0 %1614
      %1616 = vrot.lane.b32.xlu0 %v1157, 32
      %v1617 = vpop.permute.xlu0 %1616
      %1618 = vrot.lane.b32.xlu0 %v1555, 32
      %v1619 = vpop.permute.xlu0 %1618
      %1620 = vrot.lane.b32.xlu0 %v1557, 32
      %v1621 = vpop.permute.xlu0 %1620
      %vm1654 = vcmask 294144
      %1655 = vst.msk [vmem:[#allocation3] sm:$0xff] %vm1654, %v1559
      %1656 = vst.msk [vmem:[#allocation3 + $0x8] sm:$0xff] %vm1654, %v1561
      %1657 = vst.msk [vmem:[#allocation3 + $0x10] sm:$0xff] %vm1654, %v1563
      %1658 = vst.msk [vmem:[#allocation3 + $0x18] sm:$0xff] %vm1654, %v1565
      %1659 = vst.msk [vmem:[#allocation3 + $0x20] sm:$0xff] %vm1654, %v1567
      %1660 = vst.msk [vmem:[#allocation3 + $0x28] sm:$0xff] %vm1654, %v1569
      %1661 = vst.msk [vmem:[#allocation3 + $0x30] sm:$0xff] %vm1654, %v1571
      %1662 = vst.msk [vmem:[#allocation3 + $0x38] sm:$0xff] %vm1654, %v1573
      %1663 = vst.msk [vmem:[#allocation3 + $0x40] sm:$0xff] %vm1654, %v1575
      %1664 = vst.msk [vmem:[#allocation3 + $0x48] sm:$0xff] %vm1654, %v1577
      %1665 = vst.msk [vmem:[#allocation3 + $0x50] sm:$0xff] %vm1654, %v1579
      %1666 = vst.msk [vmem:[#allocation3 + $0x58] sm:$0xff] %vm1654, %v1581
      %1667 = vst.msk [vmem:[#allocation3 + $0x60] sm:$0xff] %vm1654, %v1583
      %1668 = vst.msk [vmem:[#allocation3 + $0x68] sm:$0xff] %vm1654, %v1585
      %1669 = vst.msk [vmem:[#allocation3 + $0x70] sm:$0xff] %vm1654, %v1587
      %1670 = vst.msk [vmem:[#allocation3 + $0x78] sm:$0xff] %vm1654, %v1589
      %1671 = vst.msk [vmem:[#allocation3 + $0x80] sm:$0xff] %vm1654, %v1591
      %1672 = vst.msk [vmem:[#allocation3 + $0x88] sm:$0xff] %vm1654, %v1593
      %1673 = vst.msk [vmem:[#allocation3 + $0x90] sm:$0xff] %vm1654, %v1595
      %1674 = vst.msk [vmem:[#allocation3 + $0x98] sm:$0xff] %vm1654, %v1597
      %1675 = vst.msk [vmem:[#allocation3 + $0xa0] sm:$0xff] %vm1654, %v1599
      %1676 = vst.msk [vmem:[#allocation3 + $0xa8] sm:$0xff] %vm1654, %v1601
      %1677 = vst.msk [vmem:[#allocation3 + $0xb0] sm:$0xff] %vm1654, %v1603
      %1678 = vst.msk [vmem:[#allocation3 + $0xb8] sm:$0xff] %vm1654, %v1605
      %1679 = vst.msk [vmem:[#allocation3 + $0xc0] sm:$0xff] %vm1654, %v1607
      %1680 = vst.msk [vmem:[#allocation3 + $0xc8] sm:$0xff] %vm1654, %v1609
      %1681 = vst.msk [vmem:[#allocation3 + $0xd0] sm:$0xff] %vm1654, %v1611
      %1682 = vst.msk [vmem:[#allocation3 + $0xd8] sm:$0xff] %vm1654, %v1613
      %1683 = vst.msk [vmem:[#allocation3 + $0xe0] sm:$0xff] %vm1654, %v1615
      %1684 = vst.msk [vmem:[#allocation3 + $0xe8] sm:$0xff] %vm1654, %v1617
      %1685 = vst.msk [vmem:[#allocation3 + $0xf0] sm:$0xff] %vm1654, %v1619
      %1686 = vst.msk [vmem:[#allocation3 + $0xf8] sm:$0xff] %vm1654, %v1621
      %v1687 = vld [vmem:[#allocation3] sm:$0xff]
      %v1688 = vld [vmem:[#allocation3 + $0x8] sm:$0xff]
      %v1689 = vld [vmem:[#allocation3 + $0x10] sm:$0xff]
      %v1690 = vld [vmem:[#allocation3 + $0x18] sm:$0xff]
      %v1691 = vld [vmem:[#allocation3 + $0x20] sm:$0xff]
      %v1692 = vld [vmem:[#allocation3 + $0x28] sm:$0xff]
      %v1693 = vld [vmem:[#allocation3 + $0x30] sm:$0xff]
      %v1694 = vld [vmem:[#allocation3 + $0x38] sm:$0xff]
      %v1695 = vld [vmem:[#allocation3 + $0x40] sm:$0xff]
      %v1696 = vld [vmem:[#allocation3 + $0x48] sm:$0xff]
      %v1697 = vld [vmem:[#allocation3 + $0x50] sm:$0xff]
      %v1698 = vld [vmem:[#allocation3 + $0x58] sm:$0xff]
      %v1699 = vld [vmem:[#allocation3 + $0x60] sm:$0xff]
      %v1700 = vld [vmem:[#allocation3 + $0x68] sm:$0xff]
      %v1701 = vld [vmem:[#allocation3 + $0x70] sm:$0xff]
      %v1702 = vld [vmem:[#allocation3 + $0x78] sm:$0xff]
      %v1703 = vld [vmem:[#allocation3 + $0x80] sm:$0xff]
      %v1704 = vld [vmem:[#allocation3 + $0x88] sm:$0xff]
      %v1705 = vld [vmem:[#allocation3 + $0x90] sm:$0xff]
      %v1706 = vld [vmem:[#allocation3 + $0x98] sm:$0xff]
      %v1707 = vld [vmem:[#allocation3 + $0xa0] sm:$0xff]
      %v1708 = vld [vmem:[#allocation3 + $0xa8] sm:$0xff]
      %v1709 = vld [vmem:[#allocation3 + $0xb0] sm:$0xff]
      %v1710 = vld [vmem:[#allocation3 + $0xb8] sm:$0xff]
      %v1711 = vld [vmem:[#allocation3 + $0xc0] sm:$0xff]
      %v1712 = vld [vmem:[#allocation3 + $0xc8] sm:$0xff]
      %v1713 = vld [vmem:[#allocation3 + $0xd0] sm:$0xff]
      %v1714 = vld [vmem:[#allocation3 + $0xd8] sm:$0xff]
      %v1715 = vld [vmem:[#allocation3 + $0xe0] sm:$0xff]
      %v1716 = vld [vmem:[#allocation3 + $0xe8] sm:$0xff]
      %v1717 = vld [vmem:[#allocation3 + $0xf0] sm:$0xff]
      %v1718 = vld [vmem:[#allocation3 + $0xf8] sm:$0xff]
      %v1719 = vld [vmem:[%s1] sm:$0xff]
      %v1720 = vld [vmem:[%s1 + $0x8] sm:$0xff]
      %v1721 = vld [vmem:[%s1 + $0x10] sm:$0xff]
      %v1722 = vld [vmem:[%s1 + $0x18] sm:$0xff]
      %v1723 = vld [vmem:[%s1 + $0x20] sm:$0xf]
      %v1724 = vlaneseq
      %v1725 = vshrl.u32 %v1724, 7
      %v1726 = vsub.s32 0, %v1725
      %v1727 = vrot.slane %v243, %v1726
      %vm1728 = vcmask 293888
      %v1730 = vsel %vm1728, %v1687, 0
      %v1733 = vsel %vm1728, %v1688, 0
      %v1736 = vsel %vm1728, %v1689, 0
      %v1739 = vsel %vm1728, %v1690, 0
      %v1742 = vsel %vm1728, %v1691, 0
      %v1745 = vsel %vm1728, %v1692, 0
      %v1748 = vsel %vm1728, %v1693, 0
      %v1751 = vsel %vm1728, %v1694, 0
      %v1754 = vsel %vm1728, %v1695, 0
      %v1757 = vsel %vm1728, %v1696, 0
      %v1760 = vsel %vm1728, %v1697, 0
      %v1763 = vsel %vm1728, %v1698, 0
      %v1766 = vsel %vm1728, %v1699, 0
      %v1769 = vsel %vm1728, %v1700, 0
      %v1772 = vsel %vm1728, %v1701, 0
      %v1775 = vsel %vm1728, %v1702, 0
      %v1778 = vsel %vm1728, %v1703, 0
      %v1781 = vsel %vm1728, %v1704, 0
      %v1784 = vsel %vm1728, %v1705, 0
      %v1787 = vsel %vm1728, %v1706, 0
      %v1790 = vsel %vm1728, %v1707, 0
      %v1793 = vsel %vm1728, %v1708, 0
      %v1796 = vsel %vm1728, %v1709, 0
      %v1799 = vsel %vm1728, %v1710, 0
      %v1802 = vsel %vm1728, %v1711, 0
      %v1805 = vsel %vm1728, %v1712, 0
      %v1808 = vsel %vm1728, %v1713, 0
      %v1811 = vsel %vm1728, %v1714, 0
      %v1814 = vsel %vm1728, %v1715, 0
      %v1817 = vsel %vm1728, %v1716, 0
      %v1820 = vsel %vm1728, %v1717, 0
      %v1823 = vsel %vm1728, %v1718, 0
      %vm1825 = vcmask 1043456
      %v1827 = vsel %vm1825, %v1723, 0
      %1829 = vmatprep.subr.mxu0 0.0
      %1830 = vmatpush1.msra.mxu0 0.0
      %1831 = vmatprep.subr.mxu0 0.0
      %1832 = vmatpush1.msra.mxu0 0.0
      %1833 = vmatprep.subr.mxu0 0.0
      %1834 = vmatpush1.msra.mxu0 0.0
      %1835 = vmatprep.subr.mxu0 0.0
      %1836 = vmatpush1.msra.mxu0 0.0
      %1837 = vmatprep.subr.mxu0 0.0
      %1838 = vmatpush1.msra.mxu0 0.0
      %1839 = vmatprep.subr.mxu0 0.0
      %1840 = vmatpush1.msra.mxu0 0.0
      %1841 = vmatprep.subr.mxu0 0.0
      %1842 = vmatpush1.msra.mxu0 0.0
      %1843 = vmatprep.subr.mxu0 0.0
      %1844 = vmatpush1.msra.mxu0 0.0
      %1845 = vmatprep.subr.mxu0 0.0
      %1846 = vmatpush1.msra.mxu0 0.0
      %1847 = vmatprep.subr.mxu0 0.0
      %1848 = vmatpush1.msra.mxu0 0.0
      %1849 = vmatprep.subr.mxu0 0.0
      %1850 = vmatpush1.msra.mxu0 0.0
      %1851 = vmatprep.subr.mxu0 0.0
      %1852 = vmatpush1.msra.mxu0 %v1827
      %1853 = vmatprep.subr.mxu0 0.0
      %1854 = vmatpush1.msra.mxu0 %v1722
      %1855 = vmatprep.subr.mxu0 0.0
      %1856 = vmatpush1.msra.mxu0 %v1721
      %1857 = vmatprep.subr.mxu0 0.0
      %1858 = vmatpush1.msra.mxu0 %v1720
      %1859 = vmatprep.subr.mxu0 0.0
      %1860 = vmatpush1.msra.mxu0 %v1719
      %1861 = vmatprep.subr.mxu0 0.0
      %1862 = vmatpush2.msra.mxu0 0.0
      %1863 = vmatprep.subr.mxu0 0.0
      %1864 = vmatpush2.msra.mxu0 0.0
      %1865 = vmatprep.subr.mxu0 0.0
      %1866 = vmatpush2.msra.mxu0 0.0
      %1867 = vmatprep.subr.mxu0 0.0
      %1868 = vmatpush2.msra.mxu0 0.0
      %1869 = vmatprep.subr.mxu0 0.0
      %1870 = vmatpush2.msra.mxu0 0.0
      %1871 = vmatprep.subr.mxu0 0.0
      %1872 = vmatpush2.msra.mxu0 0.0
      %1873 = vmatprep.subr.mxu0 0.0
      %1874 = vmatpush2.msra.mxu0 0.0
      %1875 = vmatprep.subr.mxu0 0.0
      %1876 = vmatpush2.msra.mxu0 0.0
      %1877 = vmatprep.subr.mxu0 0.0
      %1878 = vmatpush2.msra.mxu0 0.0
      %1879 = vmatprep.subr.mxu0 0.0
      %1880 = vmatpush2.msra.mxu0 0.0
      %1881 = vmatprep.subr.mxu0 0.0
      %1882 = vmatpush2.msra.mxu0 0.0
      %1883 = vmatprep.subr.mxu0 0.0
      %1884 = vmatpush2.msra.mxu0 0.0
      %1885 = vmatprep.subr.mxu0 0.0
      %1886 = vmatpush2.msra.mxu0 0.0
      %1887 = vmatprep.subr.mxu0 0.0
      %1888 = vmatpush2.msra.mxu0 0.0
      %1889 = vmatprep.subr.mxu0 0.0
      %1890 = vmatpush2.msra.mxu0 0.0
      %1891 = vmatprep.subr.mxu0 0.0
      %1892 = vmatpush2.msra.mxu0 0.0
      %1893 = vmatprep.mubr.f32.mxu0 0.0
      %1894 = vmatmul.mubr.f32.gmra.mxu0 %v1730
      %v1895 = vpop.f32.mrf.mxu0
      %v1896 = vadd.f32 %v1727, %v1895
      %v1897 = vpop.f32.mrf.mxu0
      %1898 = vmatprep.mubr.f32.mxu0 0.0
      %1899 = vmatmul.mubr.f32.gmra.mxu0 %v1733
      %v1900 = vpop.f32.mrf.mxu0
      %v1901 = vadd.f32 %v1727, %v1900
      %v1902 = vpop.f32.mrf.mxu0
      %1903 = vmatprep.mubr.f32.mxu0 0.0
      %1904 = vmatmul.mubr.f32.gmra.mxu0 %v1736
      %v1905 = vpop.f32.mrf.mxu0
      %v1906 = vadd.f32 %v1727, %v1905
      %v1907 = vpop.f32.mrf.mxu0
      %1908 = vmatprep.mubr.f32.mxu0 0.0
      %1909 = vmatmul.mubr.f32.gmra.mxu0 %v1739
      %v1910 = vpop.f32.mrf.mxu0
      %v1911 = vadd.f32 %v1727, %v1910
      %v1912 = vpop.f32.mrf.mxu0
      %1913 = vmatprep.mubr.f32.mxu0 0.0
      %1914 = vmatmul.mubr.f32.gmra.mxu0 %v1742
      %v1915 = vpop.f32.mrf.mxu0
      %v1916 = vadd.f32 %v1727, %v1915
      %v1917 = vpop.f32.mrf.mxu0
      %1918 = vmatprep.mubr.f32.mxu0 0.0
      %1919 = vmatmul.mubr.f32.gmra.mxu0 %v1745
      %v1920 = vpop.f32.mrf.mxu0
      %v1921 = vadd.f32 %v1727, %v1920
      %v1922 = vpop.f32.mrf.mxu0
      %1923 = vmatprep.mubr.f32.mxu0 0.0
      %1924 = vmatmul.mubr.f32.gmra.mxu0 %v1748
      %v1925 = vpop.f32.mrf.mxu0
      %v1926 = vadd.f32 %v1727, %v1925
      %v1927 = vpop.f32.mrf.mxu0
      %1928 = vmatprep.mubr.f32.mxu0 0.0
      %1929 = vmatmul.mubr.f32.gmra.mxu0 %v1751
      %v1930 = vpop.f32.mrf.mxu0
      %v1931 = vadd.f32 %v1727, %v1930
      %v1932 = vpop.f32.mrf.mxu0
      %1933 = vmatprep.mubr.f32.mxu0 0.0
      %1934 = vmatmul.mubr.f32.gmra.mxu0 %v1754
      %v1935 = vpop.f32.mrf.mxu0
      %v1936 = vadd.f32 %v1727, %v1935
      %v1937 = vpop.f32.mrf.mxu0
      %1938 = vmatprep.mubr.f32.mxu0 0.0
      %1939 = vmatmul.mubr.f32.gmra.mxu0 %v1757
      %v1940 = vpop.f32.mrf.mxu0
      %v1941 = vadd.f32 %v1727, %v1940
      %v1942 = vpop.f32.mrf.mxu0
      %1943 = vmatprep.mubr.f32.mxu0 0.0
      %1944 = vmatmul.mubr.f32.gmra.mxu0 %v1760
      %v1945 = vpop.f32.mrf.mxu0
      %v1946 = vadd.f32 %v1727, %v1945
      %v1947 = vpop.f32.mrf.mxu0
      %1948 = vmatprep.mubr.f32.mxu0 0.0
      %1949 = vmatmul.mubr.f32.gmra.mxu0 %v1763
      %v1950 = vpop.f32.mrf.mxu0
      %v1951 = vadd.f32 %v1727, %v1950
      %v1952 = vpop.f32.mrf.mxu0
      %1953 = vmatprep.mubr.f32.mxu0 0.0
      %1954 = vmatmul.mubr.f32.gmra.mxu0 %v1766
      %v1955 = vpop.f32.mrf.mxu0
      %v1956 = vadd.f32 %v1727, %v1955
      %v1957 = vpop.f32.mrf.mxu0
      %1958 = vmatprep.mubr.f32.mxu0 0.0
      %1959 = vmatmul.mubr.f32.gmra.mxu0 %v1769
      %v1960 = vpop.f32.mrf.mxu0
      %v1961 = vadd.f32 %v1727, %v1960
      %v1962 = vpop.f32.mrf.mxu0
      %1963 = vmatprep.mubr.f32.mxu0 0.0
      %1964 = vmatmul.mubr.f32.gmra.mxu0 %v1772
      %v1965 = vpop.f32.mrf.mxu0
      %v1966 = vadd.f32 %v1727, %v1965
      %v1967 = vpop.f32.mrf.mxu0
      %1968 = vmatprep.mubr.f32.mxu0 0.0
      %1969 = vmatmul.mubr.f32.gmra.mxu0 %v1775
      %v1970 = vpop.f32.mrf.mxu0
      %v1971 = vadd.f32 %v1727, %v1970
      %v1972 = vpop.f32.mrf.mxu0
      %1973 = vmatprep.mubr.f32.mxu0 0.0
      %1974 = vmatmul.mubr.f32.gmra.mxu0 %v1778
      %v1975 = vpop.f32.mrf.mxu0
      %v1976 = vadd.f32 %v1727, %v1975
      %v1977 = vpop.f32.mrf.mxu0
      %1978 = vmatprep.mubr.f32.mxu0 0.0
      %1979 = vmatmul.mubr.f32.gmra.mxu0 %v1781
      %v1980 = vpop.f32.mrf.mxu0
      %v1981 = vadd.f32 %v1727, %v1980
      %v1982 = vpop.f32.mrf.mxu0
      %1983 = vmatprep.mubr.f32.mxu0 0.0
      %1984 = vmatmul.mubr.f32.gmra.mxu0 %v1784
      %v1985 = vpop.f32.mrf.mxu0
      %v1986 = vadd.f32 %v1727, %v1985
      %v1987 = vpop.f32.mrf.mxu0
      %1988 = vmatprep.mubr.f32.mxu0 0.0
      %1989 = vmatmul.mubr.f32.gmra.mxu0 %v1787
      %v1990 = vpop.f32.mrf.mxu0
      %v1991 = vadd.f32 %v1727, %v1990
      %v1992 = vpop.f32.mrf.mxu0
      %1993 = vmatprep.mubr.f32.mxu0 0.0
      %1994 = vmatmul.mubr.f32.gmra.mxu0 %v1790
      %v1995 = vpop.f32.mrf.mxu0
      %v1996 = vadd.f32 %v1727, %v1995
      %v1997 = vpop.f32.mrf.mxu0
      %1998 = vmatprep.mubr.f32.mxu0 0.0
      %1999 = vmatmul.mubr.f32.gmra.mxu0 %v1793
      %v2000 = vpop.f32.mrf.mxu0
      %v2001 = vadd.f32 %v1727, %v2000
      %v2002 = vpop.f32.mrf.mxu0
      %2003 = vmatprep.mubr.f32.mxu0 0.0
      %2004 = vmatmul.mubr.f32.gmra.mxu0 %v1796
      %v2005 = vpop.f32.mrf.mxu0
      %v2006 = vadd.f32 %v1727, %v2005
      %v2007 = vpop.f32.mrf.mxu0
      %2008 = vmatprep.mubr.f32.mxu0 0.0
      %2009 = vmatmul.mubr.f32.gmra.mxu0 %v1799
      %v2010 = vpop.f32.mrf.mxu0
      %v2011 = vadd.f32 %v1727, %v2010
      %v2012 = vpop.f32.mrf.mxu0
      %2013 = vmatprep.mubr.f32.mxu0 0.0
      %2014 = vmatmul.mubr.f32.gmra.mxu0 %v1802
      %v2015 = vpop.f32.mrf.mxu0
      %v2016 = vadd.f32 %v1727, %v2015
      %v2017 = vpop.f32.mrf.mxu0
      %2018 = vmatprep.mubr.f32.mxu0 0.0
      %2019 = vmatmul.mubr.f32.gmra.mxu0 %v1805
      %v2020 = vpop.f32.mrf.mxu0
      %v2021 = vadd.f32 %v1727, %v2020
      %v2022 = vpop.f32.mrf.mxu0
      %2023 = vmatprep.mubr.f32.mxu0 0.0
      %2024 = vmatmul.mubr.f32.gmra.mxu0 %v1808
      %v2025 = vpop.f32.mrf.mxu0
      %v2026 = vadd.f32 %v1727, %v2025
      %v2027 = vpop.f32.mrf.mxu0
      %2028 = vmatprep.mubr.f32.mxu0 0.0
      %2029 = vmatmul.mubr.f32.gmra.mxu0 %v1811
      %v2030 = vpop.f32.mrf.mxu0
      %v2031 = vadd.f32 %v1727, %v2030
      %v2032 = vpop.f32.mrf.mxu0
      %2033 = vmatprep.mubr.f32.mxu0 0.0
      %2034 = vmatmul.mubr.f32.gmra.mxu0 %v1814
      %v2035 = vpop.f32.mrf.mxu0
      %v2036 = vadd.f32 %v1727, %v2035
      %v2037 = vpop.f32.mrf.mxu0
      %2038 = vmatprep.mubr.f32.mxu0 0.0
      %2039 = vmatmul.mubr.f32.gmra.mxu0 %v1817
      %v2040 = vpop.f32.mrf.mxu0
      %v2041 = vadd.f32 %v1727, %v2040
      %v2042 = vpop.f32.mrf.mxu0
      %2043 = vmatprep.mubr.f32.mxu0 0.0
      %2044 = vmatmul.mubr.f32.gmra.mxu0 %v1820
      %v2045 = vpop.f32.mrf.mxu0
      %v2046 = vadd.f32 %v1727, %v2045
      %v2047 = vpop.f32.mrf.mxu0
      %2048 = vmatprep.mubr.f32.mxu0 0.0
      %2049 = vmatmul.mubr.f32.gmra.mxu0 %v1823
      %v2050 = vpop.f32.mrf.mxu0
      %v2051 = vadd.f32 %v1727, %v2050
      %v2052 = vpop.f32.mrf.mxu0
      %2053 = vdwg.mxu0
      %2054 = vst.msk [vmem:[%s205] sm:$0xff] %vm244, %v1896
      %2055 = vst.msk [vmem:[%s205 + $0x8] sm:$0xff] %vm244, %v1901
      %2056 = vst.msk [vmem:[%s205 + $0x10] sm:$0xff] %vm244, %v1906
      %2057 = vst.msk [vmem:[%s205 + $0x18] sm:$0xff] %vm244, %v1911
      %2058 = vst.msk [vmem:[%s205 + $0x20] sm:$0xff] %vm244, %v1916
      %2059 = vst.msk [vmem:[%s205 + $0x28] sm:$0xff] %vm244, %v1921
      %2060 = vst.msk [vmem:[%s205 + $0x30] sm:$0xff] %vm244, %v1926
      %2061 = vst.msk [vmem:[%s205 + $0x38] sm:$0xff] %vm244, %v1931
      %2062 = vst.msk [vmem:[%s205 + $0x40] sm:$0xff] %vm244, %v1936
      %2063 = vst.msk [vmem:[%s205 + $0x48] sm:$0xff] %vm244, %v1941
      %2064 = vst.msk [vmem:[%s205 + $0x50] sm:$0xff] %vm244, %v1946
      %2065 = vst.msk [vmem:[%s205 + $0x58] sm:$0xff] %vm244, %v1951
      %2066 = vst.msk [vmem:[%s205 + $0x60] sm:$0xff] %vm244, %v1956
      %2067 = vst.msk [vmem:[%s205 + $0x68] sm:$0xff] %vm244, %v1961
      %2068 = vst.msk [vmem:[%s205 + $0x70] sm:$0xff] %vm244, %v1966
      %2069 = vst.msk [vmem:[%s205 + $0x78] sm:$0xff] %vm244, %v1971
      %2070 = vst.msk [vmem:[%s205 + $0x80] sm:$0xff] %vm244, %v1976
      %2071 = vst.msk [vmem:[%s205 + $0x88] sm:$0xff] %vm244, %v1981
      %2072 = vst.msk [vmem:[%s205 + $0x90] sm:$0xff] %vm244, %v1986
      %2073 = vst.msk [vmem:[%s205 + $0x98] sm:$0xff] %vm244, %v1991
      %2074 = vst.msk [vmem:[%s205 + $0xa0] sm:$0xff] %vm244, %v1996
      %2075 = vst.msk [vmem:[%s205 + $0xa8] sm:$0xff] %vm244, %v2001
      %2076 = vst.msk [vmem:[%s205 + $0xb0] sm:$0xff] %vm244, %v2006
      %2077 = vst.msk [vmem:[%s205 + $0xb8] sm:$0xff] %vm244, %v2011
      %2078 = vst.msk [vmem:[%s205 + $0xc0] sm:$0xff] %vm244, %v2016
      %2079 = vst.msk [vmem:[%s205 + $0xc8] sm:$0xff] %vm244, %v2021
      %2080 = vst.msk [vmem:[%s205 + $0xd0] sm:$0xff] %vm244, %v2026
      %2081 = vst.msk [vmem:[%s205 + $0xd8] sm:$0xff] %vm244, %v2031
      %2082 = vst.msk [vmem:[%s205 + $0xe0] sm:$0xff] %vm244, %v2036
      %2083 = vst.msk [vmem:[%s205 + $0xe8] sm:$0xff] %vm244, %v2041
      %2084 = vst.msk [vmem:[%s205 + $0xf0] sm:$0xff] %vm244, %v2046
      %2085 = vst.msk [vmem:[%s205 + $0xf8] sm:$0xff] %vm244, %v2051
      %v2086 = vlaneseq
      %v2087 = vshrl.u32 %v2086, 7
      %v2088 = vsub.s32 3, %v2087
      %v2089 = vrot.slane %v243, %v2088
      %v2090 = vmul.f32 %v2089, %v1896
      %v2091 = vmul.f32 %v2089, %v1901
      %v2092 = vmul.f32 %v2089, %v1906
      %v2093 = vmul.f32 %v2089, %v1911
      %v2094 = vmul.f32 %v2089, %v1916
      %v2095 = vmul.f32 %v2089, %v1921
      %v2096 = vmul.f32 %v2089, %v1926
      %v2097 = vmul.f32 %v2089, %v1931
      %v2098 = vmul.f32 %v2089, %v1936
      %v2099 = vmul.f32 %v2089, %v1941
      %v2100 = vmul.f32 %v2089, %v1946
      %v2101 = vmul.f32 %v2089, %v1951
      %v2102 = vmul.f32 %v2089, %v1956
      %v2103 = vmul.f32 %v2089, %v1961
      %v2104 = vmul.f32 %v2089, %v1966
      %v2105 = vmul.f32 %v2089, %v1971
      %v2106 = vmul.f32 %v2089, %v1976
      %v2107 = vmul.f32 %v2089, %v1981
      %v2108 = vmul.f32 %v2089, %v1986
      %v2109 = vmul.f32 %v2089, %v1991
      %v2110 = vmul.f32 %v2089, %v1996
      %v2111 = vmul.f32 %v2089, %v2001
      %v2112 = vmul.f32 %v2089, %v2006
      %v2113 = vmul.f32 %v2089, %v2011
      %v2114 = vmul.f32 %v2089, %v2016
      %v2115 = vmul.f32 %v2089, %v2021
      %v2116 = vmul.f32 %v2089, %v2026
      %v2117 = vmul.f32 %v2089, %v2031
      %v2118 = vmul.f32 %v2089, %v2036
      %v2119 = vmul.f32 %v2089, %v2041
      %v2120 = vmul.f32 %v2089, %v2046
      %v2121 = vmul.f32 %v2089, %v2051
      %v2122 = vxor.u32 %v2090, 2147483648
      %v2123 = vxor.u32 %v2091, 2147483648
      %v2124 = vxor.u32 %v2092, 2147483648
      %v2125 = vxor.u32 %v2093, 2147483648
      %v2126 = vxor.u32 %v2094, 2147483648
      %v2127 = vxor.u32 %v2095, 2147483648
      %v2128 = vxor.u32 %v2096, 2147483648
      %v2129 = vxor.u32 %v2097, 2147483648
      %v2130 = vxor.u32 %v2098, 2147483648
      %v2131 = vxor.u32 %v2099, 2147483648
      %v2132 = vxor.u32 %v2100, 2147483648
      %v2133 = vxor.u32 %v2101, 2147483648
      %v2134 = vxor.u32 %v2102, 2147483648
      %v2135 = vxor.u32 %v2103, 2147483648
      %v2136 = vxor.u32 %v2104, 2147483648
      %v2137 = vxor.u32 %v2105, 2147483648
      %v2138 = vxor.u32 %v2106, 2147483648
      %v2139 = vxor.u32 %v2107, 2147483648
      %v2140 = vxor.u32 %v2108, 2147483648
      %v2141 = vxor.u32 %v2109, 2147483648
      %v2142 = vxor.u32 %v2110, 2147483648
      %v2143 = vxor.u32 %v2111, 2147483648
      %v2144 = vxor.u32 %v2112, 2147483648
      %v2145 = vxor.u32 %v2113, 2147483648
      %v2146 = vxor.u32 %v2114, 2147483648
      %v2147 = vxor.u32 %v2115, 2147483648
      %v2148 = vxor.u32 %v2116, 2147483648
      %v2149 = vxor.u32 %v2117, 2147483648
      %v2150 = vxor.u32 %v2118, 2147483648
      %v2151 = vxor.u32 %v2119, 2147483648
      %v2152 = vxor.u32 %v2120, 2147483648
      %v2153 = vxor.u32 %v2121, 2147483648
      %v2154 = vmul.f32 %v2122, 1.442695
      %v2155 = vpow.pop %v2154
      %v2156 = vmul.f32 %v2123, 1.442695
      %v2157 = vpow.pop %v2156
      %v2158 = vmul.f32 %v2124, 1.442695
      %v2159 = vpow.pop %v2158
      %v2160 = vmul.f32 %v2125, 1.442695
      %v2161 = vpow.pop %v2160
      %v2162 = vmul.f32 %v2126, 1.442695
      %v2163 = vpow.pop %v2162
      %v2164 = vmul.f32 %v2127, 1.442695
      %v2165 = vpow.pop %v2164
      %v2166 = vmul.f32 %v2128, 1.442695
      %v2167 = vpow.pop %v2166
      %v2168 = vmul.f32 %v2129, 1.442695
      %v2169 = vpow.pop %v2168
      %v2170 = vmul.f32 %v2130, 1.442695
      %v2171 = vpow.pop %v2170
      %v2172 = vmul.f32 %v2131, 1.442695
      %v2173 = vpow.pop %v2172
      %v2174 = vmul.f32 %v2132, 1.442695
      %v2175 = vpow.pop %v2174
      %v2176 = vmul.f32 %v2133, 1.442695
      %v2177 = vpow.pop %v2176
      %v2178 = vmul.f32 %v2134, 1.442695
      %v2179 = vpow.pop %v2178
      %v2180 = vmul.f32 %v2135, 1.442695
      %v2181 = vpow.pop %v2180
      %v2182 = vmul.f32 %v2136, 1.442695
      %v2183 = vpow.pop %v2182
      %v2184 = vmul.f32 %v2137, 1.442695
      %v2185 = vpow.pop %v2184
      %v2186 = vmul.f32 %v2138, 1.442695
      %v2187 = vpow.pop %v2186
      %v2188 = vmul.f32 %v2139, 1.442695
      %v2189 = vpow.pop %v2188
      %v2190 = vmul.f32 %v2140, 1.442695
      %v2191 = vpow.pop %v2190
      %v2192 = vmul.f32 %v2141, 1.442695
      %v2193 = vpow.pop %v2192
      %v2194 = vmul.f32 %v2142, 1.442695
      %v2195 = vpow.pop %v2194
      %v2196 = vmul.f32 %v2143, 1.442695
      %v2197 = vpow.pop %v2196
      %v2198 = vmul.f32 %v2144, 1.442695
      %v2199 = vpow.pop %v2198
      %v2200 = vmul.f32 %v2145, 1.442695
      %v2201 = vpow.pop %v2200
      %v2202 = vmul.f32 %v2146, 1.442695
      %v2203 = vpow.pop %v2202
      %v2204 = vmul.f32 %v2147, 1.442695
      %v2205 = vpow.pop %v2204
      %v2206 = vmul.f32 %v2148, 1.442695
      %v2207 = vpow.pop %v2206
      %v2208 = vmul.f32 %v2149, 1.442695
      %v2209 = vpow.pop %v2208
      %v2210 = vmul.f32 %v2150, 1.442695
      %v2211 = vpow.pop %v2210
      %v2212 = vmul.f32 %v2151, 1.442695
      %v2213 = vpow.pop %v2212
      %v2214 = vmul.f32 %v2152, 1.442695
      %v2215 = vpow.pop %v2214
      %v2216 = vmul.f32 %v2153, 1.442695
      %v2217 = vpow.pop %v2216
      %v2218 = vadd.f32 %v2155, 1.0
      %v2219 = vadd.f32 %v2157, 1.0
      %v2220 = vadd.f32 %v2159, 1.0
      %v2221 = vadd.f32 %v2161, 1.0
      %v2222 = vadd.f32 %v2163, 1.0
      %v2223 = vadd.f32 %v2165, 1.0
      %v2224 = vadd.f32 %v2167, 1.0
      %v2225 = vadd.f32 %v2169, 1.0
      %v2226 = vadd.f32 %v2171, 1.0
      %v2227 = vadd.f32 %v2173, 1.0
      %v2228 = vadd.f32 %v2175, 1.0
      %v2229 = vadd.f32 %v2177, 1.0
      %v2230 = vadd.f32 %v2179, 1.0
      %v2231 = vadd.f32 %v2181, 1.0
      %v2232 = vadd.f32 %v2183, 1.0
      %v2233 = vadd.f32 %v2185, 1.0
      %v2234 = vadd.f32 %v2187, 1.0
      %v2235 = vadd.f32 %v2189, 1.0
      %v2236 = vadd.f32 %v2191, 1.0
      %v2237 = vadd.f32 %v2193, 1.0
      %v2238 = vadd.f32 %v2195, 1.0
      %v2239 = vadd.f32 %v2197, 1.0
      %v2240 = vadd.f32 %v2199, 1.0
      %v2241 = vadd.f32 %v2201, 1.0
      %v2242 = vadd.f32 %v2203, 1.0
      %v2243 = vadd.f32 %v2205, 1.0
      %v2244 = vadd.f32 %v2207, 1.0
      %v2245 = vadd.f32 %v2209, 1.0
      %v2246 = vadd.f32 %v2211, 1.0
      %v2247 = vadd.f32 %v2213, 1.0
      %v2248 = vadd.f32 %v2215, 1.0
      %v2249 = vadd.f32 %v2217, 1.0
      %v2250 = vrcp.pop %v2218
      %v2251 = vmul.f32 1.0, %v2250
      %v2252 = vrcp.pop %v2219
      %v2253 = vmul.f32 1.0, %v2252
      %v2254 = vrcp.pop %v2220
      %v2255 = vmul.f32 1.0, %v2254
      %v2256 = vrcp.pop %v2221
      %v2257 = vmul.f32 1.0, %v2256
      %v2258 = vrcp.pop %v2222
      %v2259 = vmul.f32 1.0, %v2258
      %v2260 = vrcp.pop %v2223
      %v2261 = vmul.f32 1.0, %v2260
      %v2262 = vrcp.pop %v2224
      %v2263 = vmul.f32 1.0, %v2262
      %v2264 = vrcp.pop %v2225
      %v2265 = vmul.f32 1.0, %v2264
      %v2266 = vrcp.pop %v2226
      %v2267 = vmul.f32 1.0, %v2266
      %v2268 = vrcp.pop %v2227
      %v2269 = vmul.f32 1.0, %v2268
      %v2270 = vrcp.pop %v2228
      %v2271 = vmul.f32 1.0, %v2270
      %v2272 = vrcp.pop %v2229
      %v2273 = vmul.f32 1.0, %v2272
      %v2274 = vrcp.pop %v2230
      %v2275 = vmul.f32 1.0, %v2274
      %v2276 = vrcp.pop %v2231
      %v2277 = vmul.f32 1.0, %v2276
      %v2278 = vrcp.pop %v2232
      %v2279 = vmul.f32 1.0, %v2278
      %v2280 = vrcp.pop %v2233
      %v2281 = vmul.f32 1.0, %v2280
      %v2282 = vrcp.pop %v2234
      %v2283 = vmul.f32 1.0, %v2282
      %v2284 = vrcp.pop %v2235
      %v2285 = vmul.f32 1.0, %v2284
      %v2286 = vrcp.pop %v2236
      %v2287 = vmul.f32 1.0, %v2286
      %v2288 = vrcp.pop %v2237
      %v2289 = vmul.f32 1.0, %v2288
      %v2290 = vrcp.pop %v2238
      %v2291 = vmul.f32 1.0, %v2290
      %v2292 = vrcp.pop %v2239
      %v2293 = vmul.f32 1.0, %v2292
      %v2294 = vrcp.pop %v2240
      %v2295 = vmul.f32 1.0, %v2294
      %v2296 = vrcp.pop %v2241
      %v2297 = vmul.f32 1.0, %v2296
      %v2298 = vrcp.pop %v2242
      %v2299 = vmul.f32 1.0, %v2298
      %v2300 = vrcp.pop %v2243
      %v2301 = vmul.f32 1.0, %v2300
      %v2302 = vrcp.pop %v2244
      %v2303 = vmul.f32 1.0, %v2302
      %v2304 = vrcp.pop %v2245
      %v2305 = vmul.f32 1.0, %v2304
      %v2306 = vrcp.pop %v2246
      %v2307 = vmul.f32 1.0, %v2306
      %v2308 = vrcp.pop %v2247
      %v2309 = vmul.f32 1.0, %v2308
      %v2310 = vrcp.pop %v2248
      %v2311 = vmul.f32 1.0, %v2310
      %v2312 = vrcp.pop %v2249
      %v2313 = vmul.f32 1.0, %v2312
      %v2314 = vmul.f32 %v1896, %v2251
      %v2315 = vmul.f32 %v1901, %v2253
      %v2316 = vmul.f32 %v1906, %v2255
      %v2317 = vmul.f32 %v1911, %v2257
      %v2318 = vmul.f32 %v1916, %v2259
      %v2319 = vmul.f32 %v1921, %v2261
      %v2320 = vmul.f32 %v1926, %v2263
      %v2321 = vmul.f32 %v1931, %v2265
      %v2322 = vmul.f32 %v1936, %v2267
      %v2323 = vmul.f32 %v1941, %v2269
      %v2324 = vmul.f32 %v1946, %v2271
      %v2325 = vmul.f32 %v1951, %v2273
      %v2326 = vmul.f32 %v1956, %v2275
      %v2327 = vmul.f32 %v1961, %v2277
      %v2328 = vmul.f32 %v1966, %v2279
      %v2329 = vmul.f32 %v1971, %v2281
      %v2330 = vmul.f32 %v1976, %v2283
      %v2331 = vmul.f32 %v1981, %v2285
      %v2332 = vmul.f32 %v1986, %v2287
      %v2333 = vmul.f32 %v1991, %v2289
      %v2334 = vmul.f32 %v1996, %v2291
      %v2335 = vmul.f32 %v2001, %v2293
      %v2336 = vmul.f32 %v2006, %v2295
      %v2337 = vmul.f32 %v2011, %v2297
      %v2338 = vmul.f32 %v2016, %v2299
      %v2339 = vmul.f32 %v2021, %v2301
      %v2340 = vmul.f32 %v2026, %v2303
      %v2341 = vmul.f32 %v2031, %v2305
      %v2342 = vmul.f32 %v2036, %v2307
      %v2343 = vmul.f32 %v2041, %v2309
      %v2344 = vmul.f32 %v2046, %v2311
      %v2345 = vmul.f32 %v2051, %v2313
      %2346 = vst.msk [vmem:[%s300 + $0x1] sm:$0xff] %vm244, %v2314
      %2347 = vst.msk [vmem:[%s300 + $0x9] sm:$0xff] %vm244, %v2315
      %2348 = vst.msk [vmem:[%s300 + $0x19] sm:$0xff] %vm244, %v2316
      %2349 = vst.msk [vmem:[%s300 + $0x21] sm:$0xff] %vm244, %v2317
      %2350 = vst.msk [vmem:[%s300 + $0x31] sm:$0xff] %vm244, %v2318
      %2351 = vst.msk [vmem:[%s300 + $0x39] sm:$0xff] %vm244, %v2319
      %2352 = vst.msk [vmem:[%s300 + $0x49] sm:$0xff] %vm244, %v2320
      %2353 = vst.msk [vmem:[%s300 + $0x51] sm:$0xff] %vm244, %v2321
      %2354 = vst.msk [vmem:[%s300 + $0x61] sm:$0xff] %vm244, %v2322
      %2355 = vst.msk [vmem:[%s300 + $0x69] sm:$0xff] %vm244, %v2323
      %2356 = vst.msk [vmem:[%s300 + $0x79] sm:$0xff] %vm244, %v2324
      %2357 = vst.msk [vmem:[%s300 + $0x81] sm:$0xff] %vm244, %v2325
      %2358 = vst.msk [vmem:[%s300 + $0x91] sm:$0xff] %vm244, %v2326
      %2359 = vst.msk [vmem:[%s300 + $0x99] sm:$0xff] %vm244, %v2327
      %2360 = vst.msk [vmem:[%s300 + $0xa9] sm:$0xff] %vm244, %v2328
      %2361 = vst.msk [vmem:[%s300 + $0xb1] sm:$0xff] %vm244, %v2329
      %2362 = vst.msk [vmem:[%s300 + $0xc1] sm:$0xff] %vm244, %v2330
      %2363 = vst.msk [vmem:[%s300 + $0xc9] sm:$0xff] %vm244, %v2331
      %2364 = vst.msk [vmem:[%s300 + $0xd9] sm:$0xff] %vm244, %v2332
      %2365 = vst.msk [vmem:[%s300 + $0xe1] sm:$0xff] %vm244, %v2333
      %2366 = vst.msk [vmem:[%s300 + $0xf1] sm:$0xff] %vm244, %v2334
      %2367 = vst.msk [vmem:[%s300 + $0xf9] sm:$0xff] %vm244, %v2335
      %2368 = vst.msk [vmem:[%s300 + $0x109] sm:$0xff] %vm244, %v2336
      %2369 = vst.msk [vmem:[%s300 + $0x111] sm:$0xff] %vm244, %v2337
      %2370 = vst.msk [vmem:[%s300 + $0x121] sm:$0xff] %vm244, %v2338
      %2371 = vst.msk [vmem:[%s300 + $0x129] sm:$0xff] %vm244, %v2339
      %2372 = vst.msk [vmem:[%s300 + $0x139] sm:$0xff] %vm244, %v2340
      %2373 = vst.msk [vmem:[%s300 + $0x141] sm:$0xff] %vm244, %v2341
      %2374 = vst.msk [vmem:[%s300 + $0x151] sm:$0xff] %vm244, %v2342
      %2375 = vst.msk [vmem:[%s300 + $0x159] sm:$0xff] %vm244, %v2343
      %2376 = vst.msk [vmem:[%s300 + $0x169] sm:$0xff] %vm244, %v2344
      %2377 = vst.msk [vmem:[%s300 + $0x171] sm:$0xff] %vm244, %v2345
      %v2378 = vld [vmem:[#allocation2] sm:$0xff]
      %v2379 = vld [vmem:[#allocation2 + $0x8] sm:$0xff]
      %v2380 = vld [vmem:[#allocation2 + $0x10] sm:$0x3]
      %v2381 = vld [vmem:[#allocation2 + $0x18] sm:$0xff]
      %v2382 = vld [vmem:[#allocation2 + $0x20] sm:$0xff]
      %v2383 = vld [vmem:[#allocation2 + $0x28] sm:$0x3]
      %v2384 = vld [vmem:[#allocation2 + $0x30] sm:$0xff]
      %v2385 = vld [vmem:[#allocation2 + $0x38] sm:$0xff]
      %v2386 = vld [vmem:[#allocation2 + $0x40] sm:$0x3]
      %v2387 = vld [vmem:[#allocation2 + $0x48] sm:$0xff]
      %v2388 = vld [vmem:[#allocation2 + $0x50] sm:$0xff]
      %v2389 = vld [vmem:[#allocation2 + $0x58] sm:$0x3]
      %v2390 = vld [vmem:[#allocation2 + $0x60] sm:$0xff]
      %v2391 = vld [vmem:[#allocation2 + $0x68] sm:$0xff]
      %v2392 = vld [vmem:[#allocation2 + $0x70] sm:$0x3]
      %v2393 = vld [vmem:[#allocation2 + $0x78] sm:$0xff]
      %v2394 = vld [vmem:[#allocation2 + $0x80] sm:$0xff]
      %v2395 = vld [vmem:[#allocation2 + $0x88] sm:$0x3]
      %v2396 = vld [vmem:[#allocation2 + $0x90] sm:$0xff]
      %v2397 = vld [vmem:[#allocation2 + $0x98] sm:$0xff]
      %v2398 = vld [vmem:[#allocation2 + $0xa0] sm:$0x3]
      %v2399 = vld [vmem:[#allocation2 + $0xa8] sm:$0xff]
      %v2400 = vld [vmem:[#allocation2 + $0xb0] sm:$0xff]
      %v2401 = vld [vmem:[#allocation2 + $0xb8] sm:$0x3]
      %v2402 = vld [vmem:[#allocation2 + $0xc0] sm:$0xff]
      %v2403 = vld [vmem:[#allocation2 + $0xc8] sm:$0xff]
      %v2404 = vld [vmem:[#allocation2 + $0xd0] sm:$0x3]
      %v2405 = vld [vmem:[#allocation2 + $0xd8] sm:$0xff]
      %v2406 = vld [vmem:[#allocation2 + $0xe0] sm:$0xff]
      %v2407 = vld [vmem:[#allocation2 + $0xe8] sm:$0x3]
      %v2408 = vld [vmem:[#allocation2 + $0xf0] sm:$0xff]
      %v2409 = vld [vmem:[#allocation2 + $0xf8] sm:$0xff]
      %v2410 = vld [vmem:[#allocation2 + $0x100] sm:$0x3]
      %v2411 = vld [vmem:[#allocation2 + $0x108] sm:$0xff]
      %v2412 = vld [vmem:[#allocation2 + $0x110] sm:$0xff]
      %v2413 = vld [vmem:[#allocation2 + $0x118] sm:$0x3]
      %v2414 = vld [vmem:[#allocation2 + $0x120] sm:$0xff]
      %v2415 = vld [vmem:[#allocation2 + $0x128] sm:$0xff]
      %v2416 = vld [vmem:[#allocation2 + $0x130] sm:$0x3]
      %v2417 = vld [vmem:[#allocation2 + $0x138] sm:$0xff]
      %v2418 = vld [vmem:[#allocation2 + $0x140] sm:$0xff]
      %v2419 = vld [vmem:[#allocation2 + $0x148] sm:$0x3]
      %v2420 = vld [vmem:[#allocation2 + $0x150] sm:$0xff]
      %v2421 = vld [vmem:[#allocation2 + $0x158] sm:$0xff]
      %v2422 = vld [vmem:[#allocation2 + $0x160] sm:$0x3]
      %v2423 = vld [vmem:[#allocation2 + $0x168] sm:$0xff]
      %v2424 = vld [vmem:[#allocation2 + $0x170] sm:$0xff]
      %v2425 = vld [vmem:[#allocation2 + $0x178] sm:$0x3]
      %v2426 = vld [vmem:[#allocation2 + $0x180] sm:$0xff]
      %v2427 = vld [vmem:[#allocation2 + $0x188] sm:$0xff]
      %v2428 = vld [vmem:[#allocation2 + $0x190] sm:$0x3]
      %v2429 = vld [vmem:[#allocation2 + $0x198] sm:$0xff]
      %v2430 = vld [vmem:[#allocation2 + $0x1a0] sm:$0xff]
      %v2431 = vld [vmem:[#allocation2 + $0x1a8] sm:$0x3]
      %2432 = vst.msk [vmem:[#allocation3] sm:$0xff] %vm244, %v2378
      %2433 = vst.msk [vmem:[#allocation3 + $0x8] sm:$0xff] %vm244, %v2379
      %2434 = vst.msk [vmem:[#allocation3 + $0x10] sm:$0xff] %vm244, %v2381
      %2435 = vst.msk [vmem:[#allocation3 + $0x18] sm:$0xff] %vm244, %v2382
      %2436 = vst.msk [vmem:[#allocation3 + $0x20] sm:$0xff] %vm244, %v2384
      %2437 = vst.msk [vmem:[#allocation3 + $0x28] sm:$0xff] %vm244, %v2385
      %2438 = vst.msk [vmem:[#allocation3 + $0x30] sm:$0xff] %vm244, %v2387
      %2439 = vst.msk [vmem:[#allocation3 + $0x38] sm:$0xff] %vm244, %v2388
      %2440 = vst.msk [vmem:[#allocation3 + $0x40] sm:$0xff] %vm244, %v2390
      %2441 = vst.msk [vmem:[#allocation3 + $0x48] sm:$0xff] %vm244, %v2391
      %2442 = vst.msk [vmem:[#allocation3 + $0x50] sm:$0xff] %vm244, %v2393
      %2443 = vst.msk [vmem:[#allocation3 + $0x58] sm:$0xff] %vm244, %v2394
      %2444 = vst.msk [vmem:[#allocation3 + $0x60] sm:$0xff] %vm244, %v2396
      %2445 = vst.msk [vmem:[#allocation3 + $0x68] sm:$0xff] %vm244, %v2397
      %2446 = vst.msk [vmem:[#allocation3 + $0x70] sm:$0xff] %vm244, %v2399
      %2447 = vst.msk [vmem:[#allocation3 + $0x78] sm:$0xff] %vm244, %v2400
      %2448 = vst.msk [vmem:[#allocation3 + $0x80] sm:$0xff] %vm244, %v2402
      %2449 = vst.msk [vmem:[#allocation3 + $0x88] sm:$0xff] %vm244, %v2403
      %2450 = vst.msk [vmem:[#allocation3 + $0x90] sm:$0xff] %vm244, %v2405
      %2451 = vst.msk [vmem:[#allocation3 + $0x98] sm:$0xff] %vm244, %v2406
      %2452 = vst.msk [vmem:[#allocation3 + $0xa0] sm:$0xff] %vm244, %v2408
      %2453 = vst.msk [vmem:[#allocation3 + $0xa8] sm:$0xff] %vm244, %v2409
      %2454 = vst.msk [vmem:[#allocation3 + $0xb0] sm:$0xff] %vm244, %v2411
      %2455 = vst.msk [vmem:[#allocation3 + $0xb8] sm:$0xff] %vm244, %v2412
      %2456 = vst.msk [vmem:[#allocation3 + $0xc0] sm:$0xff] %vm244, %v2414
      %2457 = vst.msk [vmem:[#allocation3 + $0xc8] sm:$0xff] %vm244, %v2415
      %2458 = vst.msk [vmem:[#allocation3 + $0xd0] sm:$0xff] %vm244, %v2417
      %2459 = vst.msk [vmem:[#allocation3 + $0xd8] sm:$0xff] %vm244, %v2418
      %2460 = vst.msk [vmem:[#allocation3 + $0xe0] sm:$0xff] %vm244, %v2420
      %2461 = vst.msk [vmem:[#allocation3 + $0xe8] sm:$0xff] %vm244, %v2421
      %2462 = vst.msk [vmem:[#allocation3 + $0xf0] sm:$0xff] %vm244, %v2423
      %2463 = vst.msk [vmem:[#allocation3 + $0xf8] sm:$0xff] %vm244, %v2424
      %v2512 = vrot.slane %v2378, 1
      %v2513 = vrot.slane %v2379, 1
      %v2514 = vsel %vm467, %v2512, %v2513
      %v2515 = vrot.slane %v2380, 1
      %v2516 = vsel %vm467, %v2513, %v2515
      %v2517 = vrot.slane %v2381, 1
      %v2518 = vrot.slane %v2382, 1
      %v2519 = vsel %vm467, %v2517, %v2518
      %v2520 = vrot.slane %v2383, 1
      %v2521 = vsel %vm467, %v2518, %v2520
      %v2522 = vrot.slane %v2384, 1
      %v2523 = vrot.slane %v2385, 1
      %v2524 = vsel %vm467, %v2522, %v2523
      %v2525 = vrot.slane %v2386, 1
      %v2526 = vsel %vm467, %v2523, %v2525
      %v2527 = vrot.slane %v2387, 1
      %v2528 = vrot.slane %v2388, 1
      %v2529 = vsel %vm467, %v2527, %v2528
      %v2530 = vrot.slane %v2389, 1
      %v2531 = vsel %vm467, %v2528, %v2530
      %v2532 = vrot.slane %v2390, 1
      %v2533 = vrot.slane %v2391, 1
      %v2534 = vsel %vm467, %v2532, %v2533
      %v2535 = vrot.slane %v2392, 1
      %v2536 = vsel %vm467, %v2533, %v2535
      %v2537 = vrot.slane %v2393, 1
      %v2538 = vrot.slane %v2394, 1
      %v2539 = vsel %vm467, %v2537, %v2538
      %v2540 = vrot.slane %v2395, 1
      %v2541 = vsel %vm467, %v2538, %v2540
      %v2542 = vrot.slane %v2396, 1
      %v2543 = vrot.slane %v2397, 1
      %v2544 = vsel %vm467, %v2542, %v2543
      %v2545 = vrot.slane %v2398, 1
      %v2546 = vsel %vm467, %v2543, %v2545
      %v2547 = vrot.slane %v2399, 1
      %v2548 = vrot.slane %v2400, 1
      %v2549 = vsel %vm467, %v2547, %v2548
      %v2550 = vrot.slane %v2401, 1
      %v2551 = vsel %vm467, %v2548, %v2550
      %v2552 = vrot.slane %v2402, 1
      %v2553 = vrot.slane %v2403, 1
      %v2554 = vsel %vm467, %v2552, %v2553
      %v2555 = vrot.slane %v2404, 1
      %v2556 = vsel %vm467, %v2553, %v2555
      %v2557 = vrot.slane %v2405, 1
      %v2558 = vrot.slane %v2406, 1
      %v2559 = vsel %vm467, %v2557, %v2558
      %v2560 = vrot.slane %v2407, 1
      %v2561 = vsel %vm467, %v2558, %v2560
      %v2562 = vrot.slane %v2408, 1
      %v2563 = vrot.slane %v2409, 1
      %v2564 = vsel %vm467, %v2562, %v2563
      %v2565 = vrot.slane %v2410, 1
      %v2566 = vsel %vm467, %v2563, %v2565
      %v2567 = vrot.slane %v2411, 1
      %v2568 = vrot.slane %v2412, 1
      %v2569 = vsel %vm467, %v2567, %v2568
      %v2570 = vrot.slane %v2413, 1
      %v2571 = vsel %vm467, %v2568, %v2570
      %v2572 = vrot.slane %v2414, 1
      %v2573 = vrot.slane %v2415, 1
      %v2574 = vsel %vm467, %v2572, %v2573
      %v2575 = vrot.slane %v2416, 1
      %v2576 = vsel %vm467, %v2573, %v2575
      %v2577 = vrot.slane %v2417, 1
      %v2578 = vrot.slane %v2418, 1
      %v2579 = vsel %vm467, %v2577, %v2578
      %v2580 = vrot.slane %v2419, 1
      %v2581 = vsel %vm467, %v2578, %v2580
      %v2582 = vrot.slane %v2420, 1
      %v2583 = vrot.slane %v2421, 1
      %v2584 = vsel %vm467, %v2582, %v2583
      %v2585 = vrot.slane %v2422, 1
      %v2586 = vsel %vm467, %v2583, %v2585
      %v2587 = vrot.slane %v2423, 1
      %v2588 = vrot.slane %v2424, 1
      %v2589 = vsel %vm467, %v2587, %v2588
      %v2590 = vrot.slane %v2425, 1
      %v2591 = vsel %vm467, %v2588, %v2590
      %2592 = vrot.lane.b32.xlu0 %v2514, 4
      %v2593 = vpop.permute.xlu0 %2592
      %2594 = vrot.lane.b32.xlu0 %v2516, 4
      %v2595 = vpop.permute.xlu0 %2594
      %2596 = vrot.lane.b32.xlu0 %v2519, 4
      %v2597 = vpop.permute.xlu0 %2596
      %2598 = vrot.lane.b32.xlu0 %v2521, 4
      %v2599 = vpop.permute.xlu0 %2598
      %2600 = vrot.lane.b32.xlu0 %v2524, 4
      %v2601 = vpop.permute.xlu0 %2600
      %2602 = vrot.lane.b32.xlu0 %v2526, 4
      %v2603 = vpop.permute.xlu0 %2602
      %2604 = vrot.lane.b32.xlu0 %v2529, 4
      %v2605 = vpop.permute.xlu0 %2604
      %2606 = vrot.lane.b32.xlu0 %v2531, 4
      %v2607 = vpop.permute.xlu0 %2606
      %2608 = vrot.lane.b32.xlu0 %v2534, 4
      %v2609 = vpop.permute.xlu0 %2608
      %2610 = vrot.lane.b32.xlu0 %v2536, 4
      %v2611 = vpop.permute.xlu0 %2610
      %2612 = vrot.lane.b32.xlu0 %v2539, 4
      %v2613 = vpop.permute.xlu0 %2612
      %2614 = vrot.lane.b32.xlu0 %v2541, 4
      %v2615 = vpop.permute.xlu0 %2614
      %2616 = vrot.lane.b32.xlu0 %v2544, 4
      %v2617 = vpop.permute.xlu0 %2616
      %2618 = vrot.lane.b32.xlu0 %v2546, 4
      %v2619 = vpop.permute.xlu0 %2618
      %2620 = vrot.lane.b32.xlu0 %v2549, 4
      %v2621 = vpop.permute.xlu0 %2620
      %2622 = vrot.lane.b32.xlu0 %v2551, 4
      %v2623 = vpop.permute.xlu0 %2622
      %2624 = vrot.lane.b32.xlu0 %v2554, 4
      %v2625 = vpop.permute.xlu0 %2624
      %2626 = vrot.lane.b32.xlu0 %v2556, 4
      %v2627 = vpop.permute.xlu0 %2626
      %2628 = vrot.lane.b32.xlu0 %v2559, 4
      %v2629 = vpop.permute.xlu0 %2628
      %2630 = vrot.lane.b32.xlu0 %v2561, 4
      %v2631 = vpop.permute.xlu0 %2630
      %2632 = vrot.lane.b32.xlu0 %v2564, 4
      %v2633 = vpop.permute.xlu0 %2632
      %2634 = vrot.lane.b32.xlu0 %v2566, 4
      %v2635 = vpop.permute.xlu0 %2634
      %2636 = vrot.lane.b32.xlu0 %v2569, 4
      %v2637 = vpop.permute.xlu0 %2636
      %2638 = vrot.lane.b32.xlu0 %v2571, 4
      %v2639 = vpop.permute.xlu0 %2638
      %2640 = vrot.lane.b32.xlu0 %v2574, 4
      %v2641 = vpop.permute.xlu0 %2640
      %2642 = vrot.lane.b32.xlu0 %v2576, 4
      %v2643 = vpop.permute.xlu0 %2642
      %2644 = vrot.lane.b32.xlu0 %v2579, 4
      %v2645 = vpop.permute.xlu0 %2644
      %2646 = vrot.lane.b32.xlu0 %v2581, 4
      %v2647 = vpop.permute.xlu0 %2646
      %2648 = vrot.lane.b32.xlu0 %v2584, 4
      %v2649 = vpop.permute.xlu0 %2648
      %2650 = vrot.lane.b32.xlu0 %v2586, 4
      %v2651 = vpop.permute.xlu0 %2650
      %2652 = vrot.lane.b32.xlu0 %v2589, 4
      %v2653 = vpop.permute.xlu0 %2652
      %2654 = vrot.lane.b32.xlu0 %v2591, 4
      %v2655 = vpop.permute.xlu0 %2654
      %2688 = vst.msk [vmem:[#allocation3] sm:$0xff] %vm644, %v2593
      %2689 = vst.msk [vmem:[#allocation3 + $0x8] sm:$0xff] %vm644, %v2595
      %2690 = vst.msk [vmem:[#allocation3 + $0x10] sm:$0xff] %vm644, %v2597
      %2691 = vst.msk [vmem:[#allocation3 + $0x18] sm:$0xff] %vm644, %v2599
      %2692 = vst.msk [vmem:[#allocation3 + $0x20] sm:$0xff] %vm644, %v2601
      %2693 = vst.msk [vmem:[#allocation3 + $0x28] sm:$0xff] %vm644, %v2603
      %2694 = vst.msk [vmem:[#allocation3 + $0x30] sm:$0xff] %vm644, %v2605
      %2695 = vst.msk [vmem:[#allocation3 + $0x38] sm:$0xff] %vm644, %v2607
      %2696 = vst.msk [vmem:[#allocation3 + $0x40] sm:$0xff] %vm644, %v2609
      %2697 = vst.msk [vmem:[#allocation3 + $0x48] sm:$0xff] %vm644, %v2611
      %2698 = vst.msk [vmem:[#allocation3 + $0x50] sm:$0xff] %vm644, %v2613
      %2699 = vst.msk [vmem:[#allocation3 + $0x58] sm:$0xff] %vm644, %v2615
      %2700 = vst.msk [vmem:[#allocation3 + $0x60] sm:$0xff] %vm644, %v2617
      %2701 = vst.msk [vmem:[#allocation3 + $0x68] sm:$0xff] %vm644, %v2619
      %2702 = vst.msk [vmem:[#allocation3 + $0x70] sm:$0xff] %vm644, %v2621
      %2703 = vst.msk [vmem:[#allocation3 + $0x78] sm:$0xff] %vm644, %v2623
      %2704 = vst.msk [vmem:[#allocation3 + $0x80] sm:$0xff] %vm644, %v2625
      %2705 = vst.msk [vmem:[#allocation3 + $0x88] sm:$0xff] %vm644, %v2627
      %2706 = vst.msk [vmem:[#allocation3 + $0x90] sm:$0xff] %vm644, %v2629
      %2707 = vst.msk [vmem:[#allocation3 + $0x98] sm:$0xff] %vm644, %v2631
      %2708 = vst.msk [vmem:[#allocation3 + $0xa0] sm:$0xff] %vm644, %v2633
      %2709 = vst.msk [vmem:[#allocation3 + $0xa8] sm:$0xff] %vm644, %v2635
      %2710 = vst.msk [vmem:[#allocation3 + $0xb0] sm:$0xff] %vm644, %v2637
      %2711 = vst.msk [vmem:[#allocation3 + $0xb8] sm:$0xff] %vm644, %v2639
      %2712 = vst.msk [vmem:[#allocation3 + $0xc0] sm:$0xff] %vm644, %v2641
      %2713 = vst.msk [vmem:[#allocation3 + $0xc8] sm:$0xff] %vm644, %v2643
      %2714 = vst.msk [vmem:[#allocation3 + $0xd0] sm:$0xff] %vm644, %v2645
      %2715 = vst.msk [vmem:[#allocation3 + $0xd8] sm:$0xff] %vm644, %v2647
      %2716 = vst.msk [vmem:[#allocation3 + $0xe0] sm:$0xff] %vm644, %v2649
      %2717 = vst.msk [vmem:[#allocation3 + $0xe8] sm:$0xff] %vm644, %v2651
      %2718 = vst.msk [vmem:[#allocation3 + $0xf0] sm:$0xff] %vm644, %v2653
      %2719 = vst.msk [vmem:[#allocation3 + $0xf8] sm:$0xff] %vm644, %v2655
      %v2720 = vrot.slane %v2378, 2
      %v2721 = vrot.slane %v2379, 2
      %v2722 = vsel %vm677, %v2720, %v2721
      %v2723 = vrot.slane %v2380, 2
      %v2724 = vsel %vm677, %v2721, %v2723
      %v2725 = vrot.slane %v2381, 2
      %v2726 = vrot.slane %v2382, 2
      %v2727 = vsel %vm677, %v2725, %v2726
      %v2728 = vrot.slane %v2383, 2
      %v2729 = vsel %vm677, %v2726, %v2728
      %v2730 = vrot.slane %v2384, 2
      %v2731 = vrot.slane %v2385, 2
      %v2732 = vsel %vm677, %v2730, %v2731
      %v2733 = vrot.slane %v2386, 2
      %v2734 = vsel %vm677, %v2731, %v2733
      %v2735 = vrot.slane %v2387, 2
      %v2736 = vrot.slane %v2388, 2
      %v2737 = vsel %vm677, %v2735, %v2736
      %v2738 = vrot.slane %v2389, 2
      %v2739 = vsel %vm677, %v2736, %v2738
      %v2740 = vrot.slane %v2390, 2
      %v2741 = vrot.slane %v2391, 2
      %v2742 = vsel %vm677, %v2740, %v2741
      %v2743 = vrot.slane %v2392, 2
      %v2744 = vsel %vm677, %v2741, %v2743
      %v2745 = vrot.slane %v2393, 2
      %v2746 = vrot.slane %v2394, 2
      %v2747 = vsel %vm677, %v2745, %v2746
      %v2748 = vrot.slane %v2395, 2
      %v2749 = vsel %vm677, %v2746, %v2748
      %v2750 = vrot.slane %v2396, 2
      %v2751 = vrot.slane %v2397, 2
      %v2752 = vsel %vm677, %v2750, %v2751
      %v2753 = vrot.slane %v2398, 2
      %v2754 = vsel %vm677, %v2751, %v2753
      %v2755 = vrot.slane %v2399, 2
      %v2756 = vrot.slane %v2400, 2
      %v2757 = vsel %vm677, %v2755, %v2756
      %v2758 = vrot.slane %v2401, 2
      %v2759 = vsel %vm677, %v2756, %v2758
      %v2760 = vrot.slane %v2402, 2
      %v2761 = vrot.slane %v2403, 2
      %v2762 = vsel %vm677, %v2760, %v2761
      %v2763 = vrot.slane %v2404, 2
      %v2764 = vsel %vm677, %v2761, %v2763
      %v2765 = vrot.slane %v2405, 2
      %v2766 = vrot.slane %v2406, 2
      %v2767 = vsel %vm677, %v2765, %v2766
      %v2768 = vrot.slane %v2407, 2
      %v2769 = vsel %vm677, %v2766, %v2768
      %v2770 = vrot.slane %v2408, 2
      %v2771 = vrot.slane %v2409, 2
      %v2772 = vsel %vm677, %v2770, %v2771
      %v2773 = vrot.slane %v2410, 2
      %v2774 = vsel %vm677, %v2771, %v2773
      %v2775 = vrot.slane %v2411, 2
      %v2776 = vrot.slane %v2412, 2
      %v2777 = vsel %vm677, %v2775, %v2776
      %v2778 = vrot.slane %v2413, 2
      %v2779 = vsel %vm677, %v2776, %v2778
      %v2780 = vrot.slane %v2414, 2
      %v2781 = vrot.slane %v2415, 2
      %v2782 = vsel %vm677, %v2780, %v2781
      %v2783 = vrot.slane %v2416, 2
      %v2784 = vsel %vm677, %v2781, %v2783
      %v2785 = vrot.slane %v2417, 2
      %v2786 = vrot.slane %v2418, 2
      %v2787 = vsel %vm677, %v2785, %v2786
      %v2788 = vrot.slane %v2419, 2
      %v2789 = vsel %vm677, %v2786, %v2788
      %v2790 = vrot.slane %v2420, 2
      %v2791 = vrot.slane %v2421, 2
      %v2792 = vsel %vm677, %v2790, %v2791
      %v2793 = vrot.slane %v2422, 2
      %v2794 = vsel %vm677, %v2791, %v2793
      %v2795 = vrot.slane %v2423, 2
      %v2796 = vrot.slane %v2424, 2
      %v2797 = vsel %vm677, %v2795, %v2796
      %v2798 = vrot.slane %v2425, 2
      %v2799 = vsel %vm677, %v2796, %v2798
      %2800 = vrot.lane.b32.xlu0 %v2722, 8
      %v2801 = vpop.permute.xlu0 %2800
      %2802 = vrot.lane.b32.xlu0 %v2724, 8
      %v2803 = vpop.permute.xlu0 %2802
      %2804 = vrot.lane.b32.xlu0 %v2727, 8
      %v2805 = vpop.permute.xlu0 %2804
      %2806 = vrot.lane.b32.xlu0 %v2729, 8
      %v2807 = vpop.permute.xlu0 %2806
      %2808 = vrot.lane.b32.xlu0 %v2732, 8
      %v2809 = vpop.permute.xlu0 %2808
      %2810 = vrot.lane.b32.xlu0 %v2734, 8
      %v2811 = vpop.permute.xlu0 %2810
      %2812 = vrot.lane.b32.xlu0 %v2737, 8
      %v2813 = vpop.permute.xlu0 %2812
      %2814 = vrot.lane.b32.xlu0 %v2739, 8
      %v2815 = vpop.permute.xlu0 %2814
      %2816 = vrot.lane.b32.xlu0 %v2742, 8
      %v2817 = vpop.permute.xlu0 %2816
      %2818 = vrot.lane.b32.xlu0 %v2744, 8
      %v2819 = vpop.permute.xlu0 %2818
      %2820 = vrot.lane.b32.xlu0 %v2747, 8
      %v2821 = vpop.permute.xlu0 %2820
      %2822 = vrot.lane.b32.xlu0 %v2749, 8
      %v2823 = vpop.permute.xlu0 %2822
      %2824 = vrot.lane.b32.xlu0 %v2752, 8
      %v2825 = vpop.permute.xlu0 %2824
      %2826 = vrot.lane.b32.xlu0 %v2754, 8
      %v2827 = vpop.permute.xlu0 %2826
      %2828 = vrot.lane.b32.xlu0 %v2757, 8
      %v2829 = vpop.permute.xlu0 %2828
      %2830 = vrot.lane.b32.xlu0 %v2759, 8
      %v2831 = vpop.permute.xlu0 %2830
      %2832 = vrot.lane.b32.xlu0 %v2762, 8
      %v2833 = vpop.permute.xlu0 %2832
      %2834 = vrot.lane.b32.xlu0 %v2764, 8
      %v2835 = vpop.permute.xlu0 %2834
      %2836 = vrot.lane.b32.xlu0 %v2767, 8
      %v2837 = vpop.permute.xlu0 %2836
      %2838 = vrot.lane.b32.xlu0 %v2769, 8
      %v2839 = vpop.permute.xlu0 %2838
      %2840 = vrot.lane.b32.xlu0 %v2772, 8
      %v2841 = vpop.permute.xlu0 %2840
      %2842 = vrot.lane.b32.xlu0 %v2774, 8
      %v2843 = vpop.permute.xlu0 %2842
      %2844 = vrot.lane.b32.xlu0 %v2777, 8
      %v2845 = vpop.permute.xlu0 %2844
      %2846 = vrot.lane.b32.xlu0 %v2779, 8
      %v2847 = vpop.permute.xlu0 %2846
      %2848 = vrot.lane.b32.xlu0 %v2782, 8
      %v2849 = vpop.permute.xlu0 %2848
      %2850 = vrot.lane.b32.xlu0 %v2784, 8
      %v2851 = vpop.permute.xlu0 %2850
      %2852 = vrot.lane.b32.xlu0 %v2787, 8
      %v2853 = vpop.permute.xlu0 %2852
      %2854 = vrot.lane.b32.xlu0 %v2789, 8
      %v2855 = vpop.permute.xlu0 %2854
      %2856 = vrot.lane.b32.xlu0 %v2792, 8
      %v2857 = vpop.permute.xlu0 %2856
      %2858 = vrot.lane.b32.xlu0 %v2794, 8
      %v2859 = vpop.permute.xlu0 %2858
      %2860 = vrot.lane.b32.xlu0 %v2797, 8
      %v2861 = vpop.permute.xlu0 %2860
      %2862 = vrot.lane.b32.xlu0 %v2799, 8
      %v2863 = vpop.permute.xlu0 %2862
      %2896 = vst.msk [vmem:[#allocation3] sm:$0xff] %vm854, %v2801
      %2897 = vst.msk [vmem:[#allocation3 + $0x8] sm:$0xff] %vm854, %v2803
      %2898 = vst.msk [vmem:[#allocation3 + $0x10] sm:$0xff] %vm854, %v2805
      %2899 = vst.msk [vmem:[#allocation3 + $0x18] sm:$0xff] %vm854, %v2807
      %2900 = vst.msk [vmem:[#allocation3 + $0x20] sm:$0xff] %vm854, %v2809
      %2901 = vst.msk [vmem:[#allocation3 + $0x28] sm:$0xff] %vm854, %v2811
      %2902 = vst.msk [vmem:[#allocation3 + $0x30] sm:$0xff] %vm854, %v2813
      %2903 = vst.msk [vmem:[#allocation3 + $0x38] sm:$0xff] %vm854, %v2815
      %2904 = vst.msk [vmem:[#allocation3 + $0x40] sm:$0xff] %vm854, %v2817
      %2905 = vst.msk [vmem:[#allocation3 + $0x48] sm:$0xff] %vm854, %v2819
      %2906 = vst.msk [vmem:[#allocation3 + $0x50] sm:$0xff] %vm854, %v2821
      %2907 = vst.msk [vmem:[#allocation3 + $0x58] sm:$0xff] %vm854, %v2823
      %2908 = vst.msk [vmem:[#allocation3 + $0x60] sm:$0xff] %vm854, %v2825
      %2909 = vst.msk [vmem:[#allocation3 + $0x68] sm:$0xff] %vm854, %v2827
      %2910 = vst.msk [vmem:[#allocation3 + $0x70] sm:$0xff] %vm854, %v2829
      %2911 = vst.msk [vmem:[#allocation3 + $0x78] sm:$0xff] %vm854, %v2831
      %2912 = vst.msk [vmem:[#allocation3 + $0x80] sm:$0xff] %vm854, %v2833
      %2913 = vst.msk [vmem:[#allocation3 + $0x88] sm:$0xff] %vm854, %v2835
      %2914 = vst.msk [vmem:[#allocation3 + $0x90] sm:$0xff] %vm854, %v2837
      %2915 = vst.msk [vmem:[#allocation3 + $0x98] sm:$0xff] %vm854, %v2839
      %2916 = vst.msk [vmem:[#allocation3 + $0xa0] sm:$0xff] %vm854, %v2841
      %2917 = vst.msk [vmem:[#allocation3 + $0xa8] sm:$0xff] %vm854, %v2843
      %2918 = vst.msk [vmem:[#allocation3 + $0xb0] sm:$0xff] %vm854, %v2845
      %2919 = vst.msk [vmem:[#allocation3 + $0xb8] sm:$0xff] %vm854, %v2847
      %2920 = vst.msk [vmem:[#allocation3 + $0xc0] sm:$0xff] %vm854, %v2849
      %2921 = vst.msk [vmem:[#allocation3 + $0xc8] sm:$0xff] %vm854, %v2851
      %2922 = vst.msk [vmem:[#allocation3 + $0xd0] sm:$0xff] %vm854, %v2853
      %2923 = vst.msk [vmem:[#allocation3 + $0xd8] sm:$0xff] %vm854, %v2855
      %2924 = vst.msk [vmem:[#allocation3 + $0xe0] sm:$0xff] %vm854, %v2857
      %2925 = vst.msk [vmem:[#allocation3 + $0xe8] sm:$0xff] %vm854, %v2859
      %2926 = vst.msk [vmem:[#allocation3 + $0xf0] sm:$0xff] %vm854, %v2861
      %2927 = vst.msk [vmem:[#allocation3 + $0xf8] sm:$0xff] %vm854, %v2863
      %2930 = vrot.lane.b32.xlu0 %v2381, 12
      %v2931 = vpop.permute.xlu0 %2930
      %2932 = vrot.lane.b32.xlu0 %v2382, 12
      %v2933 = vpop.permute.xlu0 %2932
      %2934 = vrot.lane.b32.xlu0 %v2384, 12
      %v2935 = vpop.permute.xlu0 %2934
      %2936 = vrot.lane.b32.xlu0 %v2385, 12
      %v2937 = vpop.permute.xlu0 %2936
      %2938 = vrot.lane.b32.xlu0 %v2387, 12
      %v2939 = vpop.permute.xlu0 %2938
      %2940 = vrot.lane.b32.xlu0 %v2388, 12
      %v2941 = vpop.permute.xlu0 %2940
      %2942 = vrot.lane.b32.xlu0 %v2390, 12
      %v2943 = vpop.permute.xlu0 %2942
      %2944 = vrot.lane.b32.xlu0 %v2391, 12
      %v2945 = vpop.permute.xlu0 %2944
      %2946 = vrot.lane.b32.xlu0 %v2393, 12
      %v2947 = vpop.permute.xlu0 %2946
      %2948 = vrot.lane.b32.xlu0 %v2394, 12
      %v2949 = vpop.permute.xlu0 %2948
      %2950 = vrot.lane.b32.xlu0 %v2396, 12
      %v2951 = vpop.permute.xlu0 %2950
      %2952 = vrot.lane.b32.xlu0 %v2397, 12
      %v2953 = vpop.permute.xlu0 %2952
      %2954 = vrot.lane.b32.xlu0 %v2399, 12
      %v2955 = vpop.permute.xlu0 %2954
      %2956 = vrot.lane.b32.xlu0 %v2400, 12
      %v2957 = vpop.permute.xlu0 %2956
      %2958 = vrot.lane.b32.xlu0 %v2402, 12
      %v2959 = vpop.permute.xlu0 %2958
      %2960 = vrot.lane.b32.xlu0 %v2403, 12
      %v2961 = vpop.permute.xlu0 %2960
      %2962 = vrot.lane.b32.xlu0 %v2405, 12
      %v2963 = vpop.permute.xlu0 %2962
      %2964 = vrot.lane.b32.xlu0 %v2406, 12
      %v2965 = vpop.permute.xlu0 %2964
      %2966 = vrot.lane.b32.xlu0 %v2408, 12
      %v2967 = vpop.permute.xlu0 %2966
      %2968 = vrot.lane.b32.xlu0 %v2409, 12
      %v2969 = vpop.permute.xlu0 %2968
      %2970 = vrot.lane.b32.xlu0 %v2411, 12
      %v2971 = vpop.permute.xlu0 %2970
      %2972 = vrot.lane.b32.xlu0 %v2412, 12
      %v2973 = vpop.permute.xlu0 %2972
      %2974 = vrot.lane.b32.xlu0 %v2414, 12
      %v2975 = vpop.permute.xlu0 %2974
      %2976 = vrot.lane.b32.xlu0 %v2415, 12
      %v2977 = vpop.permute.xlu0 %2976
      %2978 = vrot.lane.b32.xlu0 %v2417, 12
      %v2979 = vpop.permute.xlu0 %2978
      %2980 = vrot.lane.b32.xlu0 %v2418, 12
      %v2981 = vpop.permute.xlu0 %2980
      %2982 = vrot.lane.b32.xlu0 %v2420, 12
      %v2983 = vpop.permute.xlu0 %2982
      %2984 = vrot.lane.b32.xlu0 %v2421, 12
      %v2985 = vpop.permute.xlu0 %2984
      %2986 = vrot.lane.b32.xlu0 %v2423, 12
      %v2987 = vpop.permute.xlu0 %2986
      %2988 = vrot.lane.b32.xlu0 %v2424, 12
      %v2989 = vpop.permute.xlu0 %2988
      %2990 = vrot.lane.b32.xlu0 %v2426, 12
      %v2991 = vpop.permute.xlu0 %2990
      %2992 = vrot.lane.b32.xlu0 %v2427, 12
      %v2993 = vpop.permute.xlu0 %2992
      %3026 = vst.msk [vmem:[#allocation3] sm:$0xff] %vm985, %v2931
      %3027 = vst.msk [vmem:[#allocation3 + $0x8] sm:$0xff] %vm985, %v2933
      %3028 = vst.msk [vmem:[#allocation3 + $0x10] sm:$0xff] %vm985, %v2935
      %3029 = vst.msk [vmem:[#allocation3 + $0x18] sm:$0xff] %vm985, %v2937
      %3030 = vst.msk [vmem:[#allocation3 + $0x20] sm:$0xff] %vm985, %v2939
      %3031 = vst.msk [vmem:[#allocation3 + $0x28] sm:$0xff] %vm985, %v2941
      %3032 = vst.msk [vmem:[#allocation3 + $0x30] sm:$0xff] %vm985, %v2943
      %3033 = vst.msk [vmem:[#allocation3 + $0x38] sm:$0xff] %vm985, %v2945
      %3034 = vst.msk [vmem:[#allocation3 + $0x40] sm:$0xff] %vm985, %v2947
      %3035 = vst.msk [vmem:[#allocation3 + $0x48] sm:$0xff] %vm985, %v2949
      %3036 = vst.msk [vmem:[#allocation3 + $0x50] sm:$0xff] %vm985, %v2951
      %3037 = vst.msk [vmem:[#allocation3 + $0x58] sm:$0xff] %vm985, %v2953
      %3038 = vst.msk [vmem:[#allocation3 + $0x60] sm:$0xff] %vm985, %v2955
      %3039 = vst.msk [vmem:[#allocation3 + $0x68] sm:$0xff] %vm985, %v2957
      %3040 = vst.msk [vmem:[#allocation3 + $0x70] sm:$0xff] %vm985, %v2959
      %3041 = vst.msk [vmem:[#allocation3 + $0x78] sm:$0xff] %vm985, %v2961
      %3042 = vst.msk [vmem:[#allocation3 + $0x80] sm:$0xff] %vm985, %v2963
      %3043 = vst.msk [vmem:[#allocation3 + $0x88] sm:$0xff] %vm985, %v2965
      %3044 = vst.msk [vmem:[#allocation3 + $0x90] sm:$0xff] %vm985, %v2967
      %3045 = vst.msk [vmem:[#allocation3 + $0x98] sm:$0xff] %vm985, %v2969
      %3046 = vst.msk [vmem:[#allocation3 + $0xa0] sm:$0xff] %vm985, %v2971
      %3047 = vst.msk [vmem:[#allocation3 + $0xa8] sm:$0xff] %vm985, %v2973
      %3048 = vst.msk [vmem:[#allocation3 + $0xb0] sm:$0xff] %vm985, %v2975
      %3049 = vst.msk [vmem:[#allocation3 + $0xb8] sm:$0xff] %vm985, %v2977
      %3050 = vst.msk [vmem:[#allocation3 + $0xc0] sm:$0xff] %vm985, %v2979
      %3051 = vst.msk [vmem:[#allocation3 + $0xc8] sm:$0xff] %vm985, %v2981
      %3052 = vst.msk [vmem:[#allocation3 + $0xd0] sm:$0xff] %vm985, %v2983
      %3053 = vst.msk [vmem:[#allocation3 + $0xd8] sm:$0xff] %vm985, %v2985
      %3054 = vst.msk [vmem:[#allocation3 + $0xe0] sm:$0xff] %vm985, %v2987
      %3055 = vst.msk [vmem:[#allocation3 + $0xe8] sm:$0xff] %vm985, %v2989
      %3056 = vst.msk [vmem:[#allocation3 + $0xf0] sm:$0xff] %vm985, %v2991
      %3057 = vst.msk [vmem:[#allocation3 + $0xf8] sm:$0xff] %vm985, %v2993
      %v3059 = vrot.slane %v2426, 1
      %v3060 = vrot.slane %v2427, 1
      %v3061 = vsel %vm467, %v3059, %v3060
      %v3062 = vrot.slane %v2428, 1
      %v3063 = vsel %vm467, %v3060, %v3062
      %3064 = vrot.lane.b32.xlu0 %v2519, 16
      %v3065 = vpop.permute.xlu0 %3064
      %3066 = vrot.lane.b32.xlu0 %v2521, 16
      %v3067 = vpop.permute.xlu0 %3066
      %3068 = vrot.lane.b32.xlu0 %v2524, 16
      %v3069 = vpop.permute.xlu0 %3068
      %3070 = vrot.lane.b32.xlu0 %v2526, 16
      %v3071 = vpop.permute.xlu0 %3070
      %3072 = vrot.lane.b32.xlu0 %v2529, 16
      %v3073 = vpop.permute.xlu0 %3072
      %3074 = vrot.lane.b32.xlu0 %v2531, 16
      %v3075 = vpop.permute.xlu0 %3074
      %3076 = vrot.lane.b32.xlu0 %v2534, 16
      %v3077 = vpop.permute.xlu0 %3076
      %3078 = vrot.lane.b32.xlu0 %v2536, 16
      %v3079 = vpop.permute.xlu0 %3078
      %3080 = vrot.lane.b32.xlu0 %v2539, 16
      %v3081 = vpop.permute.xlu0 %3080
      %3082 = vrot.lane.b32.xlu0 %v2541, 16
      %v3083 = vpop.permute.xlu0 %3082
      %3084 = vrot.lane.b32.xlu0 %v2544, 16
      %v3085 = vpop.permute.xlu0 %3084
      %3086 = vrot.lane.b32.xlu0 %v2546, 16
      %v3087 = vpop.permute.xlu0 %3086
      %3088 = vrot.lane.b32.xlu0 %v2549, 16
      %v3089 = vpop.permute.xlu0 %3088
      %3090 = vrot.lane.b32.xlu0 %v2551, 16
      %v3091 = vpop.permute.xlu0 %3090
      %3092 = vrot.lane.b32.xlu0 %v2554, 16
      %v3093 = vpop.permute.xlu0 %3092
      %3094 = vrot.lane.b32.xlu0 %v2556, 16
      %v3095 = vpop.permute.xlu0 %3094
      %3096 = vrot.lane.b32.xlu0 %v2559, 16
      %v3097 = vpop.permute.xlu0 %3096
      %3098 = vrot.lane.b32.xlu0 %v2561, 16
      %v3099 = vpop.permute.xlu0 %3098
      %3100 = vrot.lane.b32.xlu0 %v2564, 16
      %v3101 = vpop.permute.xlu0 %3100
      %3102 = vrot.lane.b32.xlu0 %v2566, 16
      %v3103 = vpop.permute.xlu0 %3102
      %3104 = vrot.lane.b32.xlu0 %v2569, 16
      %v3105 = vpop.permute.xlu0 %3104
      %3106 = vrot.lane.b32.xlu0 %v2571, 16
      %v3107 = vpop.permute.xlu0 %3106
      %3108 = vrot.lane.b32.xlu0 %v2574, 16
      %v3109 = vpop.permute.xlu0 %3108
      %3110 = vrot.lane.b32.xlu0 %v2576, 16
      %v3111 = vpop.permute.xlu0 %3110
      %3112 = vrot.lane.b32.xlu0 %v2579, 16
      %v3113 = vpop.permute.xlu0 %3112
      %3114 = vrot.lane.b32.xlu0 %v2581, 16
      %v3115 = vpop.permute.xlu0 %3114
      %3116 = vrot.lane.b32.xlu0 %v2584, 16
      %v3117 = vpop.permute.xlu0 %3116
      %3118 = vrot.lane.b32.xlu0 %v2586, 16
      %v3119 = vpop.permute.xlu0 %3118
      %3120 = vrot.lane.b32.xlu0 %v2589, 16
      %v3121 = vpop.permute.xlu0 %3120
      %3122 = vrot.lane.b32.xlu0 %v2591, 16
      %v3123 = vpop.permute.xlu0 %3122
      %3124 = vrot.lane.b32.xlu0 %v3061, 16
      %v3125 = vpop.permute.xlu0 %3124
      %3126 = vrot.lane.b32.xlu0 %v3063, 16
      %v3127 = vpop.permute.xlu0 %3126
      %3160 = vst.msk [vmem:[#allocation3] sm:$0xff] %vm1120, %v3065
      %3161 = vst.msk [vmem:[#allocation3 + $0x8] sm:$0xff] %vm1120, %v3067
      %3162 = vst.msk [vmem:[#allocation3 + $0x10] sm:$0xff] %vm1120, %v3069
      %3163 = vst.msk [vmem:[#allocation3 + $0x18] sm:$0xff] %vm1120, %v3071
      %3164 = vst.msk [vmem:[#allocation3 + $0x20] sm:$0xff] %vm1120, %v3073
      %3165 = vst.msk [vmem:[#allocation3 + $0x28] sm:$0xff] %vm1120, %v3075
      %3166 = vst.msk [vmem:[#allocation3 + $0x30] sm:$0xff] %vm1120, %v3077
      %3167 = vst.msk [vmem:[#allocation3 + $0x38] sm:$0xff] %vm1120, %v3079
      %3168 = vst.msk [vmem:[#allocation3 + $0x40] sm:$0xff] %vm1120, %v3081
      %3169 = vst.msk [vmem:[#allocation3 + $0x48] sm:$0xff] %vm1120, %v3083
      %3170 = vst.msk [vmem:[#allocation3 + $0x50] sm:$0xff] %vm1120, %v3085
      %3171 = vst.msk [vmem:[#allocation3 + $0x58] sm:$0xff] %vm1120, %v3087
      %3172 = vst.msk [vmem:[#allocation3 + $0x60] sm:$0xff] %vm1120, %v3089
      %3173 = vst.msk [vmem:[#allocation3 + $0x68] sm:$0xff] %vm1120, %v3091
      %3174 = vst.msk [vmem:[#allocation3 + $0x70] sm:$0xff] %vm1120, %v3093
      %3175 = vst.msk [vmem:[#allocation3 + $0x78] sm:$0xff] %vm1120, %v3095
      %3176 = vst.msk [vmem:[#allocation3 + $0x80] sm:$0xff] %vm1120, %v3097
      %3177 = vst.msk [vmem:[#allocation3 + $0x88] sm:$0xff] %vm1120, %v3099
      %3178 = vst.msk [vmem:[#allocation3 + $0x90] sm:$0xff] %vm1120, %v3101
      %3179 = vst.msk [vmem:[#allocation3 + $0x98] sm:$0xff] %vm1120, %v3103
      %3180 = vst.msk [vmem:[#allocation3 + $0xa0] sm:$0xff] %vm1120, %v3105
      %3181 = vst.msk [vmem:[#allocation3 + $0xa8] sm:$0xff] %vm1120, %v3107
      %3182 = vst.msk [vmem:[#allocation3 + $0xb0] sm:$0xff] %vm1120, %v3109
      %3183 = vst.msk [vmem:[#allocation3 + $0xb8] sm:$0xff] %vm1120, %v3111
      %3184 = vst.msk [vmem:[#allocation3 + $0xc0] sm:$0xff] %vm1120, %v3113
      %3185 = vst.msk [vmem:[#allocation3 + $0xc8] sm:$0xff] %vm1120, %v3115
      %3186 = vst.msk [vmem:[#allocation3 + $0xd0] sm:$0xff] %vm1120, %v3117
      %3187 = vst.msk [vmem:[#allocation3 + $0xd8] sm:$0xff] %vm1120, %v3119
      %3188 = vst.msk [vmem:[#allocation3 + $0xe0] sm:$0xff] %vm1120, %v3121
      %3189 = vst.msk [vmem:[#allocation3 + $0xe8] sm:$0xff] %vm1120, %v3123
      %3190 = vst.msk [vmem:[#allocation3 + $0xf0] sm:$0xff] %vm1120, %v3125
      %3191 = vst.msk [vmem:[#allocation3 + $0xf8] sm:$0xff] %vm1120, %v3127
      %v3192 = vrot.slane %v2426, 2
      %v3193 = vrot.slane %v2427, 2
      %v3194 = vsel %vm677, %v3192, %v3193
      %v3195 = vrot.slane %v2428, 2
      %v3196 = vsel %vm677, %v3193, %v3195
      %3197 = vrot.lane.b32.xlu0 %v2727, 20
      %v3198 = vpop.permute.xlu0 %3197
      %3199 = vrot.lane.b32.xlu0 %v2729, 20
      %v3200 = vpop.permute.xlu0 %3199
      %3201 = vrot.lane.b32.xlu0 %v2732, 20
      %v3202 = vpop.permute.xlu0 %3201
      %3203 = vrot.lane.b32.xlu0 %v2734, 20
      %v3204 = vpop.permute.xlu0 %3203
      %3205 = vrot.lane.b32.xlu0 %v2737, 20
      %v3206 = vpop.permute.xlu0 %3205
      %3207 = vrot.lane.b32.xlu0 %v2739, 20
      %v3208 = vpop.permute.xlu0 %3207
      %3209 = vrot.lane.b32.xlu0 %v2742, 20
      %v3210 = vpop.permute.xlu0 %3209
      %3211 = vrot.lane.b32.xlu0 %v2744, 20
      %v3212 = vpop.permute.xlu0 %3211
      %3213 = vrot.lane.b32.xlu0 %v2747, 20
      %v3214 = vpop.permute.xlu0 %3213
      %3215 = vrot.lane.b32.xlu0 %v2749, 20
      %v3216 = vpop.permute.xlu0 %3215
      %3217 = vrot.lane.b32.xlu0 %v2752, 20
      %v3218 = vpop.permute.xlu0 %3217
      %3219 = vrot.lane.b32.xlu0 %v2754, 20
      %v3220 = vpop.permute.xlu0 %3219
      %3221 = vrot.lane.b32.xlu0 %v2757, 20
      %v3222 = vpop.permute.xlu0 %3221
      %3223 = vrot.lane.b32.xlu0 %v2759, 20
      %v3224 = vpop.permute.xlu0 %3223
      %3225 = vrot.lane.b32.xlu0 %v2762, 20
      %v3226 = vpop.permute.xlu0 %3225
      %3227 = vrot.lane.b32.xlu0 %v2764, 20
      %v3228 = vpop.permute.xlu0 %3227
      %3229 = vrot.lane.b32.xlu0 %v2767, 20
      %v3230 = vpop.permute.xlu0 %3229
      %3231 = vrot.lane.b32.xlu0 %v2769, 20
      %v3232 = vpop.permute.xlu0 %3231
      %3233 = vrot.lane.b32.xlu0 %v2772, 20
      %v3234 = vpop.permute.xlu0 %3233
      %3235 = vrot.lane.b32.xlu0 %v2774, 20
      %v3236 = vpop.permute.xlu0 %3235
      %3237 = vrot.lane.b32.xlu0 %v2777, 20
      %v3238 = vpop.permute.xlu0 %3237
      %3239 = vrot.lane.b32.xlu0 %v2779, 20
      %v3240 = vpop.permute.xlu0 %3239
      %3241 = vrot.lane.b32.xlu0 %v2782, 20
      %v3242 = vpop.permute.xlu0 %3241
      %3243 = vrot.lane.b32.xlu0 %v2784, 20
      %v3244 = vpop.permute.xlu0 %3243
      %3245 = vrot.lane.b32.xlu0 %v2787, 20
      %v3246 = vpop.permute.xlu0 %3245
      %3247 = vrot.lane.b32.xlu0 %v2789, 20
      %v3248 = vpop.permute.xlu0 %3247
      %3249 = vrot.lane.b32.xlu0 %v2792, 20
      %v3250 = vpop.permute.xlu0 %3249
      %3251 = vrot.lane.b32.xlu0 %v2794, 20
      %v3252 = vpop.permute.xlu0 %3251
      %3253 = vrot.lane.b32.xlu0 %v2797, 20
      %v3254 = vpop.permute.xlu0 %3253
      %3255 = vrot.lane.b32.xlu0 %v2799, 20
      %v3256 = vpop.permute.xlu0 %3255
      %3257 = vrot.lane.b32.xlu0 %v3194, 20
      %v3258 = vpop.permute.xlu0 %3257
      %3259 = vrot.lane.b32.xlu0 %v3196, 20
      %v3260 = vpop.permute.xlu0 %3259
      %3293 = vst.msk [vmem:[#allocation3] sm:$0xff] %vm1254, %v3198
      %3294 = vst.msk [vmem:[#allocation3 + $0x8] sm:$0xff] %vm1254, %v3200
      %3295 = vst.msk [vmem:[#allocation3 + $0x10] sm:$0xff] %vm1254, %v3202
      %3296 = vst.msk [vmem:[#allocation3 + $0x18] sm:$0xff] %vm1254, %v3204
      %3297 = vst.msk [vmem:[#allocation3 + $0x20] sm:$0xff] %vm1254, %v3206
      %3298 = vst.msk [vmem:[#allocation3 + $0x28] sm:$0xff] %vm1254, %v3208
      %3299 = vst.msk [vmem:[#allocation3 + $0x30] sm:$0xff] %vm1254, %v3210
      %3300 = vst.msk [vmem:[#allocation3 + $0x38] sm:$0xff] %vm1254, %v3212
      %3301 = vst.msk [vmem:[#allocation3 + $0x40] sm:$0xff] %vm1254, %v3214
      %3302 = vst.msk [vmem:[#allocation3 + $0x48] sm:$0xff] %vm1254, %v3216
      %3303 = vst.msk [vmem:[#allocation3 + $0x50] sm:$0xff] %vm1254, %v3218
      %3304 = vst.msk [vmem:[#allocation3 + $0x58] sm:$0xff] %vm1254, %v3220
      %3305 = vst.msk [vmem:[#allocation3 + $0x60] sm:$0xff] %vm1254, %v3222
      %3306 = vst.msk [vmem:[#allocation3 + $0x68] sm:$0xff] %vm1254, %v3224
      %3307 = vst.msk [vmem:[#allocation3 + $0x70] sm:$0xff] %vm1254, %v3226
      %3308 = vst.msk [vmem:[#allocation3 + $0x78] sm:$0xff] %vm1254, %v3228
      %3309 = vst.msk [vmem:[#allocation3 + $0x80] sm:$0xff] %vm1254, %v3230
      %3310 = vst.msk [vmem:[#allocation3 + $0x88] sm:$0xff] %vm1254, %v3232
      %3311 = vst.msk [vmem:[#allocation3 + $0x90] sm:$0xff] %vm1254, %v3234
      %3312 = vst.msk [vmem:[#allocation3 + $0x98] sm:$0xff] %vm1254, %v3236
      %3313 = vst.msk [vmem:[#allocation3 + $0xa0] sm:$0xff] %vm1254, %v3238
      %3314 = vst.msk [vmem:[#allocation3 + $0xa8] sm:$0xff] %vm1254, %v3240
      %3315 = vst.msk [vmem:[#allocation3 + $0xb0] sm:$0xff] %vm1254, %v3242
      %3316 = vst.msk [vmem:[#allocation3 + $0xb8] sm:$0xff] %vm1254, %v3244
      %3317 = vst.msk [vmem:[#allocation3 + $0xc0] sm:$0xff] %vm1254, %v3246
      %3318 = vst.msk [vmem:[#allocation3 + $0xc8] sm:$0xff] %vm1254, %v3248
      %3319 = vst.msk [vmem:[#allocation3 + $0xd0] sm:$0xff] %vm1254, %v3250
      %3320 = vst.msk [vmem:[#allocation3 + $0xd8] sm:$0xff] %vm1254, %v3252
      %3321 = vst.msk [vmem:[#allocation3 + $0xe0] sm:$0xff] %vm1254, %v3254
      %3322 = vst.msk [vmem:[#allocation3 + $0xe8] sm:$0xff] %vm1254, %v3256
      %3323 = vst.msk [vmem:[#allocation3 + $0xf0] sm:$0xff] %vm1254, %v3258
      %3324 = vst.msk [vmem:[#allocation3 + $0xf8] sm:$0xff] %vm1254, %v3260
      %3327 = vrot.lane.b32.xlu0 %v2384, 24
      %v3328 = vpop.permute.xlu0 %3327
      %3329 = vrot.lane.b32.xlu0 %v2385, 24
      %v3330 = vpop.permute.xlu0 %3329
      %3331 = vrot.lane.b32.xlu0 %v2387, 24
      %v3332 = vpop.permute.xlu0 %3331
      %3333 = vrot.lane.b32.xlu0 %v2388, 24
      %v3334 = vpop.permute.xlu0 %3333
      %3335 = vrot.lane.b32.xlu0 %v2390, 24
      %v3336 = vpop.permute.xlu0 %3335
      %3337 = vrot.lane.b32.xlu0 %v2391, 24
      %v3338 = vpop.permute.xlu0 %3337
      %3339 = vrot.lane.b32.xlu0 %v2393, 24
      %v3340 = vpop.permute.xlu0 %3339
      %3341 = vrot.lane.b32.xlu0 %v2394, 24
      %v3342 = vpop.permute.xlu0 %3341
      %3343 = vrot.lane.b32.xlu0 %v2396, 24
      %v3344 = vpop.permute.xlu0 %3343
      %3345 = vrot.lane.b32.xlu0 %v2397, 24
      %v3346 = vpop.permute.xlu0 %3345
      %3347 = vrot.lane.b32.xlu0 %v2399, 24
      %v3348 = vpop.permute.xlu0 %3347
      %3349 = vrot.lane.b32.xlu0 %v2400, 24
      %v3350 = vpop.permute.xlu0 %3349
      %3351 = vrot.lane.b32.xlu0 %v2402, 24
      %v3352 = vpop.permute.xlu0 %3351
      %3353 = vrot.lane.b32.xlu0 %v2403, 24
      %v3354 = vpop.permute.xlu0 %3353
      %3355 = vrot.lane.b32.xlu0 %v2405, 24
      %v3356 = vpop.permute.xlu0 %3355
      %3357 = vrot.lane.b32.xlu0 %v2406, 24
      %v3358 = vpop.permute.xlu0 %3357
      %3359 = vrot.lane.b32.xlu0 %v2408, 24
      %v3360 = vpop.permute.xlu0 %3359
      %3361 = vrot.lane.b32.xlu0 %v2409, 24
      %v3362 = vpop.permute.xlu0 %3361
      %3363 = vrot.lane.b32.xlu0 %v2411, 24
      %v3364 = vpop.permute.xlu0 %3363
      %3365 = vrot.lane.b32.xlu0 %v2412, 24
      %v3366 = vpop.permute.xlu0 %3365
      %3367 = vrot.lane.b32.xlu0 %v2414, 24
      %v3368 = vpop.permute.xlu0 %3367
      %3369 = vrot.lane.b32.xlu0 %v2415, 24
      %v3370 = vpop.permute.xlu0 %3369
      %3371 = vrot.lane.b32.xlu0 %v2417, 24
      %v3372 = vpop.permute.xlu0 %3371
      %3373 = vrot.lane.b32.xlu0 %v2418, 24
      %v3374 = vpop.permute.xlu0 %3373
      %3375 = vrot.lane.b32.xlu0 %v2420, 24
      %v3376 = vpop.permute.xlu0 %3375
      %3377 = vrot.lane.b32.xlu0 %v2421, 24
      %v3378 = vpop.permute.xlu0 %3377
      %3379 = vrot.lane.b32.xlu0 %v2423, 24
      %v3380 = vpop.permute.xlu0 %3379
      %3381 = vrot.lane.b32.xlu0 %v2424, 24
      %v3382 = vpop.permute.xlu0 %3381
      %3383 = vrot.lane.b32.xlu0 %v2426, 24
      %v3384 = vpop.permute.xlu0 %3383
      %3385 = vrot.lane.b32.xlu0 %v2427, 24
      %v3386 = vpop.permute.xlu0 %3385
      %3387 = vrot.lane.b32.xlu0 %v2429, 24
      %v3388 = vpop.permute.xlu0 %3387
      %3389 = vrot.lane.b32.xlu0 %v2430, 24
      %v3390 = vpop.permute.xlu0 %3389
      %3423 = vst.msk [vmem:[#allocation3] sm:$0xff] %vm1385, %v3328
      %3424 = vst.msk [vmem:[#allocation3 + $0x8] sm:$0xff] %vm1385, %v3330
      %3425 = vst.msk [vmem:[#allocation3 + $0x10] sm:$0xff] %vm1385, %v3332
      %3426 = vst.msk [vmem:[#allocation3 + $0x18] sm:$0xff] %vm1385, %v3334
      %3427 = vst.msk [vmem:[#allocation3 + $0x20] sm:$0xff] %vm1385, %v3336
      %3428 = vst.msk [vmem:[#allocation3 + $0x28] sm:$0xff] %vm1385, %v3338
      %3429 = vst.msk [vmem:[#allocation3 + $0x30] sm:$0xff] %vm1385, %v3340
      %3430 = vst.msk [vmem:[#allocation3 + $0x38] sm:$0xff] %vm1385, %v3342
      %3431 = vst.msk [vmem:[#allocation3 + $0x40] sm:$0xff] %vm1385, %v3344
      %3432 = vst.msk [vmem:[#allocation3 + $0x48] sm:$0xff] %vm1385, %v3346
      %3433 = vst.msk [vmem:[#allocation3 + $0x50] sm:$0xff] %vm1385, %v3348
      %3434 = vst.msk [vmem:[#allocation3 + $0x58] sm:$0xff] %vm1385, %v3350
      %3435 = vst.msk [vmem:[#allocation3 + $0x60] sm:$0xff] %vm1385, %v3352
      %3436 = vst.msk [vmem:[#allocation3 + $0x68] sm:$0xff] %vm1385, %v3354
      %3437 = vst.msk [vmem:[#allocation3 + $0x70] sm:$0xff] %vm1385, %v3356
      %3438 = vst.msk [vmem:[#allocation3 + $0x78] sm:$0xff] %vm1385, %v3358
      %3439 = vst.msk [vmem:[#allocation3 + $0x80] sm:$0xff] %vm1385, %v3360
      %3440 = vst.msk [vmem:[#allocation3 + $0x88] sm:$0xff] %vm1385, %v3362
      %3441 = vst.msk [vmem:[#allocation3 + $0x90] sm:$0xff] %vm1385, %v3364
      %3442 = vst.msk [vmem:[#allocation3 + $0x98] sm:$0xff] %vm1385, %v3366
      %3443 = vst.msk [vmem:[#allocation3 + $0xa0] sm:$0xff] %vm1385, %v3368
      %3444 = vst.msk [vmem:[#allocation3 + $0xa8] sm:$0xff] %vm1385, %v3370
      %3445 = vst.msk [vmem:[#allocation3 + $0xb0] sm:$0xff] %vm1385, %v3372
      %3446 = vst.msk [vmem:[#allocation3 + $0xb8] sm:$0xff] %vm1385, %v3374
      %3447 = vst.msk [vmem:[#allocation3 + $0xc0] sm:$0xff] %vm1385, %v3376
      %3448 = vst.msk [vmem:[#allocation3 + $0xc8] sm:$0xff] %vm1385, %v3378
      %3449 = vst.msk [vmem:[#allocation3 + $0xd0] sm:$0xff] %vm1385, %v3380
      %3450 = vst.msk [vmem:[#allocation3 + $0xd8] sm:$0xff] %vm1385, %v3382
      %3451 = vst.msk [vmem:[#allocation3 + $0xe0] sm:$0xff] %vm1385, %v3384
      %3452 = vst.msk [vmem:[#allocation3 + $0xe8] sm:$0xff] %vm1385, %v3386
      %3453 = vst.msk [vmem:[#allocation3 + $0xf0] sm:$0xff] %vm1385, %v3388
      %3454 = vst.msk [vmem:[#allocation3 + $0xf8] sm:$0xff] %vm1385, %v3390
      %v3456 = vrot.slane %v2429, 1
      %v3457 = vrot.slane %v2430, 1
      %v3458 = vsel %vm467, %v3456, %v3457
      %v3459 = vrot.slane %v2431, 1
      %v3460 = vsel %vm467, %v3457, %v3459
      %3461 = vrot.lane.b32.xlu0 %v2524, 28
      %v3462 = vpop.permute.xlu0 %3461
      %3463 = vrot.lane.b32.xlu0 %v2526, 28
      %v3464 = vpop.permute.xlu0 %3463
      %3465 = vrot.lane.b32.xlu0 %v2529, 28
      %v3466 = vpop.permute.xlu0 %3465
      %3467 = vrot.lane.b32.xlu0 %v2531, 28
      %v3468 = vpop.permute.xlu0 %3467
      %3469 = vrot.lane.b32.xlu0 %v2534, 28
      %v3470 = vpop.permute.xlu0 %3469
      %3471 = vrot.lane.b32.xlu0 %v2536, 28
      %v3472 = vpop.permute.xlu0 %3471
      %3473 = vrot.lane.b32.xlu0 %v2539, 28
      %v3474 = vpop.permute.xlu0 %3473
      %3475 = vrot.lane.b32.xlu0 %v2541, 28
      %v3476 = vpop.permute.xlu0 %3475
      %3477 = vrot.lane.b32.xlu0 %v2544, 28
      %v3478 = vpop.permute.xlu0 %3477
      %3479 = vrot.lane.b32.xlu0 %v2546, 28
      %v3480 = vpop.permute.xlu0 %3479
      %3481 = vrot.lane.b32.xlu0 %v2549, 28
      %v3482 = vpop.permute.xlu0 %3481
      %3483 = vrot.lane.b32.xlu0 %v2551, 28
      %v3484 = vpop.permute.xlu0 %3483
      %3485 = vrot.lane.b32.xlu0 %v2554, 28
      %v3486 = vpop.permute.xlu0 %3485
      %3487 = vrot.lane.b32.xlu0 %v2556, 28
      %v3488 = vpop.permute.xlu0 %3487
      %3489 = vrot.lane.b32.xlu0 %v2559, 28
      %v3490 = vpop.permute.xlu0 %3489
      %3491 = vrot.lane.b32.xlu0 %v2561, 28
      %v3492 = vpop.permute.xlu0 %3491
      %3493 = vrot.lane.b32.xlu0 %v2564, 28
      %v3494 = vpop.permute.xlu0 %3493
      %3495 = vrot.lane.b32.xlu0 %v2566, 28
      %v3496 = vpop.permute.xlu0 %3495
      %3497 = vrot.lane.b32.xlu0 %v2569, 28
      %v3498 = vpop.permute.xlu0 %3497
      %3499 = vrot.lane.b32.xlu0 %v2571, 28
      %v3500 = vpop.permute.xlu0 %3499
      %3501 = vrot.lane.b32.xlu0 %v2574, 28
      %v3502 = vpop.permute.xlu0 %3501
      %3503 = vrot.lane.b32.xlu0 %v2576, 28
      %v3504 = vpop.permute.xlu0 %3503
      %3505 = vrot.lane.b32.xlu0 %v2579, 28
      %v3506 = vpop.permute.xlu0 %3505
      %3507 = vrot.lane.b32.xlu0 %v2581, 28
      %v3508 = vpop.permute.xlu0 %3507
      %3509 = vrot.lane.b32.xlu0 %v2584, 28
      %v3510 = vpop.permute.xlu0 %3509
      %3511 = vrot.lane.b32.xlu0 %v2586, 28
      %v3512 = vpop.permute.xlu0 %3511
      %3513 = vrot.lane.b32.xlu0 %v2589, 28
      %v3514 = vpop.permute.xlu0 %3513
      %3515 = vrot.lane.b32.xlu0 %v2591, 28
      %v3516 = vpop.permute.xlu0 %3515
      %3517 = vrot.lane.b32.xlu0 %v3061, 28
      %v3518 = vpop.permute.xlu0 %3517
      %3519 = vrot.lane.b32.xlu0 %v3063, 28
      %v3520 = vpop.permute.xlu0 %3519
      %3521 = vrot.lane.b32.xlu0 %v3458, 28
      %v3522 = vpop.permute.xlu0 %3521
      %3523 = vrot.lane.b32.xlu0 %v3460, 28
      %v3524 = vpop.permute.xlu0 %3523
      %3557 = vst.msk [vmem:[#allocation3] sm:$0xff] %vm1520, %v3462
      %3558 = vst.msk [vmem:[#allocation3 + $0x8] sm:$0xff] %vm1520, %v3464
      %3559 = vst.msk [vmem:[#allocation3 + $0x10] sm:$0xff] %vm1520, %v3466
      %3560 = vst.msk [vmem:[#allocation3 + $0x18] sm:$0xff] %vm1520, %v3468
      %3561 = vst.msk [vmem:[#allocation3 + $0x20] sm:$0xff] %vm1520, %v3470
      %3562 = vst.msk [vmem:[#allocation3 + $0x28] sm:$0xff] %vm1520, %v3472
      %3563 = vst.msk [vmem:[#allocation3 + $0x30] sm:$0xff] %vm1520, %v3474
      %3564 = vst.msk [vmem:[#allocation3 + $0x38] sm:$0xff] %vm1520, %v3476
      %3565 = vst.msk [vmem:[#allocation3 + $0x40] sm:$0xff] %vm1520, %v3478
      %3566 = vst.msk [vmem:[#allocation3 + $0x48] sm:$0xff] %vm1520, %v3480
      %3567 = vst.msk [vmem:[#allocation3 + $0x50] sm:$0xff] %vm1520, %v3482
      %3568 = vst.msk [vmem:[#allocation3 + $0x58] sm:$0xff] %vm1520, %v3484
      %3569 = vst.msk [vmem:[#allocation3 + $0x60] sm:$0xff] %vm1520, %v3486
      %3570 = vst.msk [vmem:[#allocation3 + $0x68] sm:$0xff] %vm1520, %v3488
      %3571 = vst.msk [vmem:[#allocation3 + $0x70] sm:$0xff] %vm1520, %v3490
      %3572 = vst.msk [vmem:[#allocation3 + $0x78] sm:$0xff] %vm1520, %v3492
      %3573 = vst.msk [vmem:[#allocation3 + $0x80] sm:$0xff] %vm1520, %v3494
      %3574 = vst.msk [vmem:[#allocation3 + $0x88] sm:$0xff] %vm1520, %v3496
      %3575 = vst.msk [vmem:[#allocation3 + $0x90] sm:$0xff] %vm1520, %v3498
      %3576 = vst.msk [vmem:[#allocation3 + $0x98] sm:$0xff] %vm1520, %v3500
      %3577 = vst.msk [vmem:[#allocation3 + $0xa0] sm:$0xff] %vm1520, %v3502
      %3578 = vst.msk [vmem:[#allocation3 + $0xa8] sm:$0xff] %vm1520, %v3504
      %3579 = vst.msk [vmem:[#allocation3 + $0xb0] sm:$0xff] %vm1520, %v3506
      %3580 = vst.msk [vmem:[#allocation3 + $0xb8] sm:$0xff] %vm1520, %v3508
      %3581 = vst.msk [vmem:[#allocation3 + $0xc0] sm:$0xff] %vm1520, %v3510
      %3582 = vst.msk [vmem:[#allocation3 + $0xc8] sm:$0xff] %vm1520, %v3512
      %3583 = vst.msk [vmem:[#allocation3 + $0xd0] sm:$0xff] %vm1520, %v3514
      %3584 = vst.msk [vmem:[#allocation3 + $0xd8] sm:$0xff] %vm1520, %v3516
      %3585 = vst.msk [vmem:[#allocation3 + $0xe0] sm:$0xff] %vm1520, %v3518
      %3586 = vst.msk [vmem:[#allocation3 + $0xe8] sm:$0xff] %vm1520, %v3520
      %3587 = vst.msk [vmem:[#allocation3 + $0xf0] sm:$0xff] %vm1520, %v3522
      %3588 = vst.msk [vmem:[#allocation3 + $0xf8] sm:$0xff] %vm1520, %v3524
      %v3589 = vrot.slane %v2429, 2
      %v3590 = vrot.slane %v2430, 2
      %v3591 = vsel %vm677, %v3589, %v3590
      %v3592 = vrot.slane %v2431, 2
      %v3593 = vsel %vm677, %v3590, %v3592
      %3594 = vrot.lane.b32.xlu0 %v2732, 32
      %v3595 = vpop.permute.xlu0 %3594
      %3596 = vrot.lane.b32.xlu0 %v2734, 32
      %v3597 = vpop.permute.xlu0 %3596
      %3598 = vrot.lane.b32.xlu0 %v2737, 32
      %v3599 = vpop.permute.xlu0 %3598
      %3600 = vrot.lane.b32.xlu0 %v2739, 32
      %v3601 = vpop.permute.xlu0 %3600
      %3602 = vrot.lane.b32.xlu0 %v2742, 32
      %v3603 = vpop.permute.xlu0 %3602
      %3604 = vrot.lane.b32.xlu0 %v2744, 32
      %v3605 = vpop.permute.xlu0 %3604
      %3606 = vrot.lane.b32.xlu0 %v2747, 32
      %v3607 = vpop.permute.xlu0 %3606
      %3608 = vrot.lane.b32.xlu0 %v2749, 32
      %v3609 = vpop.permute.xlu0 %3608
      %3610 = vrot.lane.b32.xlu0 %v2752, 32
      %v3611 = vpop.permute.xlu0 %3610
      %3612 = vrot.lane.b32.xlu0 %v2754, 32
      %v3613 = vpop.permute.xlu0 %3612
      %3614 = vrot.lane.b32.xlu0 %v2757, 32
      %v3615 = vpop.permute.xlu0 %3614
      %3616 = vrot.lane.b32.xlu0 %v2759, 32
      %v3617 = vpop.permute.xlu0 %3616
      %3618 = vrot.lane.b32.xlu0 %v2762, 32
      %v3619 = vpop.permute.xlu0 %3618
      %3620 = vrot.lane.b32.xlu0 %v2764, 32
      %v3621 = vpop.permute.xlu0 %3620
      %3622 = vrot.lane.b32.xlu0 %v2767, 32
      %v3623 = vpop.permute.xlu0 %3622
      %3624 = vrot.lane.b32.xlu0 %v2769, 32
      %v3625 = vpop.permute.xlu0 %3624
      %3626 = vrot.lane.b32.xlu0 %v2772, 32
      %v3627 = vpop.permute.xlu0 %3626
      %3628 = vrot.lane.b32.xlu0 %v2774, 32
      %v3629 = vpop.permute.xlu0 %3628
      %3630 = vrot.lane.b32.xlu0 %v2777, 32
      %v3631 = vpop.permute.xlu0 %3630
      %3632 = vrot.lane.b32.xlu0 %v2779, 32
      %v3633 = vpop.permute.xlu0 %3632
      %3634 = vrot.lane.b32.xlu0 %v2782, 32
      %v3635 = vpop.permute.xlu0 %3634
      %3636 = vrot.lane.b32.xlu0 %v2784, 32
      %v3637 = vpop.permute.xlu0 %3636
      %3638 = vrot.lane.b32.xlu0 %v2787, 32
      %v3639 = vpop.permute.xlu0 %3638
      %3640 = vrot.lane.b32.xlu0 %v2789, 32
      %v3641 = vpop.permute.xlu0 %3640
      %3642 = vrot.lane.b32.xlu0 %v2792, 32
      %v3643 = vpop.permute.xlu0 %3642
      %3644 = vrot.lane.b32.xlu0 %v2794, 32
      %v3645 = vpop.permute.xlu0 %3644
      %3646 = vrot.lane.b32.xlu0 %v2797, 32
      %v3647 = vpop.permute.xlu0 %3646
      %3648 = vrot.lane.b32.xlu0 %v2799, 32
      %v3649 = vpop.permute.xlu0 %3648
      %3650 = vrot.lane.b32.xlu0 %v3194, 32
      %v3651 = vpop.permute.xlu0 %3650
      %3652 = vrot.lane.b32.xlu0 %v3196, 32
      %v3653 = vpop.permute.xlu0 %3652
      %3654 = vrot.lane.b32.xlu0 %v3591, 32
      %v3655 = vpop.permute.xlu0 %3654
      %3656 = vrot.lane.b32.xlu0 %v3593, 32
      %v3657 = vpop.permute.xlu0 %3656
      %3690 = vst.msk [vmem:[#allocation3] sm:$0xff] %vm1654, %v3595
      %3691 = vst.msk [vmem:[#allocation3 + $0x8] sm:$0xff] %vm1654, %v3597
      %3692 = vst.msk [vmem:[#allocation3 + $0x10] sm:$0xff] %vm1654, %v3599
      %3693 = vst.msk [vmem:[#allocation3 + $0x18] sm:$0xff] %vm1654, %v3601
      %3694 = vst.msk [vmem:[#allocation3 + $0x20] sm:$0xff] %vm1654, %v3603
      %3695 = vst.msk [vmem:[#allocation3 + $0x28] sm:$0xff] %vm1654, %v3605
      %3696 = vst.msk [vmem:[#allocation3 + $0x30] sm:$0xff] %vm1654, %v3607
      %3697 = vst.msk [vmem:[#allocation3 + $0x38] sm:$0xff] %vm1654, %v3609
      %3698 = vst.msk [vmem:[#allocation3 + $0x40] sm:$0xff] %vm1654, %v3611
      %3699 = vst.msk [vmem:[#allocation3 + $0x48] sm:$0xff] %vm1654, %v3613
      %3700 = vst.msk [vmem:[#allocation3 + $0x50] sm:$0xff] %vm1654, %v3615
      %3701 = vst.msk [vmem:[#allocation3 + $0x58] sm:$0xff] %vm1654, %v3617
      %3702 = vst.msk [vmem:[#allocation3 + $0x60] sm:$0xff] %vm1654, %v3619
      %3703 = vst.msk [vmem:[#allocation3 + $0x68] sm:$0xff] %vm1654, %v3621
      %3704 = vst.msk [vmem:[#allocation3 + $0x70] sm:$0xff] %vm1654, %v3623
      %3705 = vst.msk [vmem:[#allocation3 + $0x78] sm:$0xff] %vm1654, %v3625
      %3706 = vst.msk [vmem:[#allocation3 + $0x80] sm:$0xff] %vm1654, %v3627
      %3707 = vst.msk [vmem:[#allocation3 + $0x88] sm:$0xff] %vm1654, %v3629
      %3708 = vst.msk [vmem:[#allocation3 + $0x90] sm:$0xff] %vm1654, %v3631
      %3709 = vst.msk [vmem:[#allocation3 + $0x98] sm:$0xff] %vm1654, %v3633
      %3710 = vst.msk [vmem:[#allocation3 + $0xa0] sm:$0xff] %vm1654, %v3635
      %3711 = vst.msk [vmem:[#allocation3 + $0xa8] sm:$0xff] %vm1654, %v3637
      %3712 = vst.msk [vmem:[#allocation3 + $0xb0] sm:$0xff] %vm1654, %v3639
      %3713 = vst.msk [vmem:[#allocation3 + $0xb8] sm:$0xff] %vm1654, %v3641
      %3714 = vst.msk [vmem:[#allocation3 + $0xc0] sm:$0xff] %vm1654, %v3643
      %3715 = vst.msk [vmem:[#allocation3 + $0xc8] sm:$0xff] %vm1654, %v3645
      %3716 = vst.msk [vmem:[#allocation3 + $0xd0] sm:$0xff] %vm1654, %v3647
      %3717 = vst.msk [vmem:[#allocation3 + $0xd8] sm:$0xff] %vm1654, %v3649
      %3718 = vst.msk [vmem:[#allocation3 + $0xe0] sm:$0xff] %vm1654, %v3651
      %3719 = vst.msk [vmem:[#allocation3 + $0xe8] sm:$0xff] %vm1654, %v3653
      %3720 = vst.msk [vmem:[#allocation3 + $0xf0] sm:$0xff] %vm1654, %v3655
      %3721 = vst.msk [vmem:[#allocation3 + $0xf8] sm:$0xff] %vm1654, %v3657
      %v3722 = vld [vmem:[#allocation3] sm:$0xff]
      %v3723 = vld [vmem:[#allocation3 + $0x8] sm:$0xff]
      %v3724 = vld [vmem:[#allocation3 + $0x10] sm:$0xff]
      %v3725 = vld [vmem:[#allocation3 + $0x18] sm:$0xff]
      %v3726 = vld [vmem:[#allocation3 + $0x20] sm:$0xff]
      %v3727 = vld [vmem:[#allocation3 + $0x28] sm:$0xff]
      %v3728 = vld [vmem:[#allocation3 + $0x30] sm:$0xff]
      %v3729 = vld [vmem:[#allocation3 + $0x38] sm:$0xff]
      %v3730 = vld [vmem:[#allocation3 + $0x40] sm:$0xff]
      %v3731 = vld [vmem:[#allocation3 + $0x48] sm:$0xff]
      %v3732 = vld [vmem:[#allocation3 + $0x50] sm:$0xff]
      %v3733 = vld [vmem:[#allocation3 + $0x58] sm:$0xff]
      %v3734 = vld [vmem:[#allocation3 + $0x60] sm:$0xff]
      %v3735 = vld [vmem:[#allocation3 + $0x68] sm:$0xff]
      %v3736 = vld [vmem:[#allocation3 + $0x70] sm:$0xff]
      %v3737 = vld [vmem:[#allocation3 + $0x78] sm:$0xff]
      %v3738 = vld [vmem:[#allocation3 + $0x80] sm:$0xff]
      %v3739 = vld [vmem:[#allocation3 + $0x88] sm:$0xff]
      %v3740 = vld [vmem:[#allocation3 + $0x90] sm:$0xff]
      %v3741 = vld [vmem:[#allocation3 + $0x98] sm:$0xff]
      %v3742 = vld [vmem:[#allocation3 + $0xa0] sm:$0xff]
      %v3743 = vld [vmem:[#allocation3 + $0xa8] sm:$0xff]
      %v3744 = vld [vmem:[#allocation3 + $0xb0] sm:$0xff]
      %v3745 = vld [vmem:[#allocation3 + $0xb8] sm:$0xff]
      %v3746 = vld [vmem:[#allocation3 + $0xc0] sm:$0xff]
      %v3747 = vld [vmem:[#allocation3 + $0xc8] sm:$0xff]
      %v3748 = vld [vmem:[#allocation3 + $0xd0] sm:$0xff]
      %v3749 = vld [vmem:[#allocation3 + $0xd8] sm:$0xff]
      %v3750 = vld [vmem:[#allocation3 + $0xe0] sm:$0xff]
      %v3751 = vld [vmem:[#allocation3 + $0xe8] sm:$0xff]
      %v3752 = vld [vmem:[#allocation3 + $0xf0] sm:$0xff]
      %v3753 = vld [vmem:[#allocation3 + $0xf8] sm:$0xff]
      %s3754 = scalar_lea.vmem %s1, 40
      %v3755 = vld [vmem:[%s3754] sm:$0xff]
      %v3756 = vld [vmem:[%s3754 + $0x8] sm:$0xff]
      %v3757 = vld [vmem:[%s3754 + $0x10] sm:$0xff]
      %v3758 = vld [vmem:[%s3754 + $0x18] sm:$0xff]
      %v3759 = vld [vmem:[%s3754 + $0x20] sm:$0xf]
      %v3760 = vlaneseq
      %v3761 = vshrl.u32 %v3760, 7
      %v3762 = vsub.s32 1, %v3761
      %v3763 = vrot.slane %v243, %v3762
      %v3765 = vsel %vm1728, %v3722, 0
      %v3768 = vsel %vm1728, %v3723, 0
      %v3771 = vsel %vm1728, %v3724, 0
      %v3774 = vsel %vm1728, %v3725, 0
      %v3777 = vsel %vm1728, %v3726, 0
      %v3780 = vsel %vm1728, %v3727, 0
      %v3783 = vsel %vm1728, %v3728, 0
      %v3786 = vsel %vm1728, %v3729, 0
      %v3789 = vsel %vm1728, %v3730, 0
      %v3792 = vsel %vm1728, %v3731, 0
      %v3795 = vsel %vm1728, %v3732, 0
      %v3798 = vsel %vm1728, %v3733, 0
      %v3801 = vsel %vm1728, %v3734, 0
      %v3804 = vsel %vm1728, %v3735, 0
      %v3807 = vsel %vm1728, %v3736, 0
      %v3810 = vsel %vm1728, %v3737, 0
      %v3813 = vsel %vm1728, %v3738, 0
      %v3816 = vsel %vm1728, %v3739, 0
      %v3819 = vsel %vm1728, %v3740, 0
      %v3822 = vsel %vm1728, %v3741, 0
      %v3825 = vsel %vm1728, %v3742, 0
      %v3828 = vsel %vm1728, %v3743, 0
      %v3831 = vsel %vm1728, %v3744, 0
      %v3834 = vsel %vm1728, %v3745, 0
      %v3837 = vsel %vm1728, %v3746, 0
      %v3840 = vsel %vm1728, %v3747, 0
      %v3843 = vsel %vm1728, %v3748, 0
      %v3846 = vsel %vm1728, %v3749, 0
      %v3849 = vsel %vm1728, %v3750, 0
      %v3852 = vsel %vm1728, %v3751, 0
      %v3855 = vsel %vm1728, %v3752, 0
      %v3858 = vsel %vm1728, %v3753, 0
      %v3861 = vsel %vm1825, %v3759, 0
      %3863 = vmatprep.subr.mxu0 0.0
      %3864 = vmatpush1.msra.mxu0 0.0
      %3865 = vmatprep.subr.mxu0 0.0
      %3866 = vmatpush1.msra.mxu0 0.0
      %3867 = vmatprep.subr.mxu0 0.0
      %3868 = vmatpush1.msra.mxu0 0.0
      %3869 = vmatprep.subr.mxu0 0.0
      %3870 = vmatpush1.msra.mxu0 0.0
      %3871 = vmatprep.subr.mxu0 0.0
      %3872 = vmatpush1.msra.mxu0 0.0
      %3873 = vmatprep.subr.mxu0 0.0
      %3874 = vmatpush1.msra.mxu0 0.0
      %3875 = vmatprep.subr.mxu0 0.0
      %3876 = vmatpush1.msra.mxu0 0.0
      %3877 = vmatprep.subr.mxu0 0.0
      %3878 = vmatpush1.msra.mxu0 0.0
      %3879 = vmatprep.subr.mxu0 0.0
      %3880 = vmatpush1.msra.mxu0 0.0
      %3881 = vmatprep.subr.mxu0 0.0
      %3882 = vmatpush1.msra.mxu0 0.0
      %3883 = vmatprep.subr.mxu0 0.0
      %3884 = vmatpush1.msra.mxu0 0.0
      %3885 = vmatprep.subr.mxu0 0.0
      %3886 = vmatpush1.msra.mxu0 %v3861
      %3887 = vmatprep.subr.mxu0 0.0
      %3888 = vmatpush1.msra.mxu0 %v3758
      %3889 = vmatprep.subr.mxu0 0.0
      %3890 = vmatpush1.msra.mxu0 %v3757
      %3891 = vmatprep.subr.mxu0 0.0
      %3892 = vmatpush1.msra.mxu0 %v3756
      %3893 = vmatprep.subr.mxu0 0.0
      %3894 = vmatpush1.msra.mxu0 %v3755
      %3895 = vmatprep.subr.mxu0 0.0
      %3896 = vmatpush2.msra.mxu0 0.0
      %3897 = vmatprep.subr.mxu0 0.0
      %3898 = vmatpush2.msra.mxu0 0.0
      %3899 = vmatprep.subr.mxu0 0.0
      %3900 = vmatpush2.msra.mxu0 0.0
      %3901 = vmatprep.subr.mxu0 0.0
      %3902 = vmatpush2.msra.mxu0 0.0
      %3903 = vmatprep.subr.mxu0 0.0
      %3904 = vmatpush2.msra.mxu0 0.0
      %3905 = vmatprep.subr.mxu0 0.0
      %3906 = vmatpush2.msra.mxu0 0.0
      %3907 = vmatprep.subr.mxu0 0.0
      %3908 = vmatpush2.msra.mxu0 0.0
      %3909 = vmatprep.subr.mxu0 0.0
      %3910 = vmatpush2.msra.mxu0 0.0
      %3911 = vmatprep.subr.mxu0 0.0
      %3912 = vmatpush2.msra.mxu0 0.0
      %3913 = vmatprep.subr.mxu0 0.0
      %3914 = vmatpush2.msra.mxu0 0.0
      %3915 = vmatprep.subr.mxu0 0.0
      %3916 = vmatpush2.msra.mxu0 0.0
      %3917 = vmatprep.subr.mxu0 0.0
      %3918 = vmatpush2.msra.mxu0 0.0
      %3919 = vmatprep.subr.mxu0 0.0
      %3920 = vmatpush2.msra.mxu0 0.0
      %3921 = vmatprep.subr.mxu0 0.0
      %3922 = vmatpush2.msra.mxu0 0.0
      %3923 = vmatprep.subr.mxu0 0.0
      %3924 = vmatpush2.msra.mxu0 0.0
      %3925 = vmatprep.subr.mxu0 0.0
      %3926 = vmatpush2.msra.mxu0 0.0
      %3927 = vmatprep.mubr.f32.mxu0 0.0
      %3928 = vmatmul.mubr.f32.gmra.mxu0 %v3765
      %v3929 = vpop.f32.mrf.mxu0
      %v3930 = vadd.f32 %v3763, %v3929
      %v3931 = vpop.f32.mrf.mxu0
      %3932 = vmatprep.mubr.f32.mxu0 0.0
      %3933 = vmatmul.mubr.f32.gmra.mxu0 %v3768
      %v3934 = vpop.f32.mrf.mxu0
      %v3935 = vadd.f32 %v3763, %v3934
      %v3936 = vpop.f32.mrf.mxu0
      %3937 = vmatprep.mubr.f32.mxu0 0.0
      %3938 = vmatmul.mubr.f32.gmra.mxu0 %v3771
      %v3939 = vpop.f32.mrf.mxu0
      %v3940 = vadd.f32 %v3763, %v3939
      %v3941 = vpop.f32.mrf.mxu0
      %3942 = vmatprep.mubr.f32.mxu0 0.0
      %3943 = vmatmul.mubr.f32.gmra.mxu0 %v3774
      %v3944 = vpop.f32.mrf.mxu0
      %v3945 = vadd.f32 %v3763, %v3944
      %v3946 = vpop.f32.mrf.mxu0
      %3947 = vmatprep.mubr.f32.mxu0 0.0
      %3948 = vmatmul.mubr.f32.gmra.mxu0 %v3777
      %v3949 = vpop.f32.mrf.mxu0
      %v3950 = vadd.f32 %v3763, %v3949
      %v3951 = vpop.f32.mrf.mxu0
      %3952 = vmatprep.mubr.f32.mxu0 0.0
      %3953 = vmatmul.mubr.f32.gmra.mxu0 %v3780
      %v3954 = vpop.f32.mrf.mxu0
      %v3955 = vadd.f32 %v3763, %v3954
      %v3956 = vpop.f32.mrf.mxu0
      %3957 = vmatprep.mubr.f32.mxu0 0.0
      %3958 = vmatmul.mubr.f32.gmra.mxu0 %v3783
      %v3959 = vpop.f32.mrf.mxu0
      %v3960 = vadd.f32 %v3763, %v3959
      %v3961 = vpop.f32.mrf.mxu0
      %3962 = vmatprep.mubr.f32.mxu0 0.0
      %3963 = vmatmul.mubr.f32.gmra.mxu0 %v3786
      %v3964 = vpop.f32.mrf.mxu0
      %v3965 = vadd.f32 %v3763, %v3964
      %v3966 = vpop.f32.mrf.mxu0
      %3967 = vmatprep.mubr.f32.mxu0 0.0
      %3968 = vmatmul.mubr.f32.gmra.mxu0 %v3789
      %v3969 = vpop.f32.mrf.mxu0
      %v3970 = vadd.f32 %v3763, %v3969
      %v3971 = vpop.f32.mrf.mxu0
      %3972 = vmatprep.mubr.f32.mxu0 0.0
      %3973 = vmatmul.mubr.f32.gmra.mxu0 %v3792
      %v3974 = vpop.f32.mrf.mxu0
      %v3975 = vadd.f32 %v3763, %v3974
      %v3976 = vpop.f32.mrf.mxu0
      %3977 = vmatprep.mubr.f32.mxu0 0.0
      %3978 = vmatmul.mubr.f32.gmra.mxu0 %v3795
      %v3979 = vpop.f32.mrf.mxu0
      %v3980 = vadd.f32 %v3763, %v3979
      %v3981 = vpop.f32.mrf.mxu0
      %3982 = vmatprep.mubr.f32.mxu0 0.0
      %3983 = vmatmul.mubr.f32.gmra.mxu0 %v3798
      %v3984 = vpop.f32.mrf.mxu0
      %v3985 = vadd.f32 %v3763, %v3984
      %v3986 = vpop.f32.mrf.mxu0
      %3987 = vmatprep.mubr.f32.mxu0 0.0
      %3988 = vmatmul.mubr.f32.gmra.mxu0 %v3801
      %v3989 = vpop.f32.mrf.mxu0
      %v3990 = vadd.f32 %v3763, %v3989
      %v3991 = vpop.f32.mrf.mxu0
      %3992 = vmatprep.mubr.f32.mxu0 0.0
      %3993 = vmatmul.mubr.f32.gmra.mxu0 %v3804
      %v3994 = vpop.f32.mrf.mxu0
      %v3995 = vadd.f32 %v3763, %v3994
      %v3996 = vpop.f32.mrf.mxu0
      %3997 = vmatprep.mubr.f32.mxu0 0.0
      %3998 = vmatmul.mubr.f32.gmra.mxu0 %v3807
      %v3999 = vpop.f32.mrf.mxu0
      %v4000 = vadd.f32 %v3763, %v3999
      %v4001 = vpop.f32.mrf.mxu0
      %4002 = vmatprep.mubr.f32.mxu0 0.0
      %4003 = vmatmul.mubr.f32.gmra.mxu0 %v3810
      %v4004 = vpop.f32.mrf.mxu0
      %v4005 = vadd.f32 %v3763, %v4004
      %v4006 = vpop.f32.mrf.mxu0
      %4007 = vmatprep.mubr.f32.mxu0 0.0
      %4008 = vmatmul.mubr.f32.gmra.mxu0 %v3813
      %v4009 = vpop.f32.mrf.mxu0
      %v4010 = vadd.f32 %v3763, %v4009
      %v4011 = vpop.f32.mrf.mxu0
      %4012 = vmatprep.mubr.f32.mxu0 0.0
      %4013 = vmatmul.mubr.f32.gmra.mxu0 %v3816
      %v4014 = vpop.f32.mrf.mxu0
      %v4015 = vadd.f32 %v3763, %v4014
      %v4016 = vpop.f32.mrf.mxu0
      %4017 = vmatprep.mubr.f32.mxu0 0.0
      %4018 = vmatmul.mubr.f32.gmra.mxu0 %v3819
      %v4019 = vpop.f32.mrf.mxu0
      %v4020 = vadd.f32 %v3763, %v4019
      %v4021 = vpop.f32.mrf.mxu0
      %4022 = vmatprep.mubr.f32.mxu0 0.0
      %4023 = vmatmul.mubr.f32.gmra.mxu0 %v3822
      %v4024 = vpop.f32.mrf.mxu0
      %v4025 = vadd.f32 %v3763, %v4024
      %v4026 = vpop.f32.mrf.mxu0
      %4027 = vmatprep.mubr.f32.mxu0 0.0
      %4028 = vmatmul.mubr.f32.gmra.mxu0 %v3825
      %v4029 = vpop.f32.mrf.mxu0
      %v4030 = vadd.f32 %v3763, %v4029
      %v4031 = vpop.f32.mrf.mxu0
      %4032 = vmatprep.mubr.f32.mxu0 0.0
      %4033 = vmatmul.mubr.f32.gmra.mxu0 %v3828
      %v4034 = vpop.f32.mrf.mxu0
      %v4035 = vadd.f32 %v3763, %v4034
      %v4036 = vpop.f32.mrf.mxu0
      %4037 = vmatprep.mubr.f32.mxu0 0.0
      %4038 = vmatmul.mubr.f32.gmra.mxu0 %v3831
      %v4039 = vpop.f32.mrf.mxu0
      %v4040 = vadd.f32 %v3763, %v4039
      %v4041 = vpop.f32.mrf.mxu0
      %4042 = vmatprep.mubr.f32.mxu0 0.0
      %4043 = vmatmul.mubr.f32.gmra.mxu0 %v3834
      %v4044 = vpop.f32.mrf.mxu0
      %v4045 = vadd.f32 %v3763, %v4044
      %v4046 = vpop.f32.mrf.mxu0
      %4047 = vmatprep.mubr.f32.mxu0 0.0
      %4048 = vmatmul.mubr.f32.gmra.mxu0 %v3837
      %v4049 = vpop.f32.mrf.mxu0
      %v4050 = vadd.f32 %v3763, %v4049
      %v4051 = vpop.f32.mrf.mxu0
      %4052 = vmatprep.mubr.f32.mxu0 0.0
      %4053 = vmatmul.mubr.f32.gmra.mxu0 %v3840
      %v4054 = vpop.f32.mrf.mxu0
      %v4055 = vadd.f32 %v3763, %v4054
      %v4056 = vpop.f32.mrf.mxu0
      %4057 = vmatprep.mubr.f32.mxu0 0.0
      %4058 = vmatmul.mubr.f32.gmra.mxu0 %v3843
      %v4059 = vpop.f32.mrf.mxu0
      %v4060 = vadd.f32 %v3763, %v4059
      %v4061 = vpop.f32.mrf.mxu0
      %4062 = vmatprep.mubr.f32.mxu0 0.0
      %4063 = vmatmul.mubr.f32.gmra.mxu0 %v3846
      %v4064 = vpop.f32.mrf.mxu0
      %v4065 = vadd.f32 %v3763, %v4064
      %v4066 = vpop.f32.mrf.mxu0
      %4067 = vmatprep.mubr.f32.mxu0 0.0
      %4068 = vmatmul.mubr.f32.gmra.mxu0 %v3849
      %v4069 = vpop.f32.mrf.mxu0
      %v4070 = vadd.f32 %v3763, %v4069
      %v4071 = vpop.f32.mrf.mxu0
      %4072 = vmatprep.mubr.f32.mxu0 0.0
      %4073 = vmatmul.mubr.f32.gmra.mxu0 %v3852
      %v4074 = vpop.f32.mrf.mxu0
      %v4075 = vadd.f32 %v3763, %v4074
      %v4076 = vpop.f32.mrf.mxu0
      %4077 = vmatprep.mubr.f32.mxu0 0.0
      %4078 = vmatmul.mubr.f32.gmra.mxu0 %v3855
      %v4079 = vpop.f32.mrf.mxu0
      %v4080 = vadd.f32 %v3763, %v4079
      %v4081 = vpop.f32.mrf.mxu0
      %4082 = vmatprep.mubr.f32.mxu0 0.0
      %4083 = vmatmul.mubr.f32.gmra.mxu0 %v3858
      %v4084 = vpop.f32.mrf.mxu0
      %v4085 = vadd.f32 %v3763, %v4084
      %v4086 = vpop.f32.mrf.mxu0
      %4087 = vdwg.mxu0
      %v4088 = vlaneseq
      %v4089 = vshrl.u32 %v4088, 7
      %v4090 = vsub.s32 4, %v4089
      %v4091 = vrot.slane %v243, %v4090
      %v4092 = vmul.f32 %v4091, %v3930
      %v4093 = vmul.f32 %v4091, %v3935
      %v4094 = vmul.f32 %v4091, %v3940
      %v4095 = vmul.f32 %v4091, %v3945
      %v4096 = vmul.f32 %v4091, %v3950
      %v4097 = vmul.f32 %v4091, %v3955
      %v4098 = vmul.f32 %v4091, %v3960
      %v4099 = vmul.f32 %v4091, %v3965
      %v4100 = vmul.f32 %v4091, %v3970
      %v4101 = vmul.f32 %v4091, %v3975
      %v4102 = vmul.f32 %v4091, %v3980
      %v4103 = vmul.f32 %v4091, %v3985
      %v4104 = vmul.f32 %v4091, %v3990
      %v4105 = vmul.f32 %v4091, %v3995
      %v4106 = vmul.f32 %v4091, %v4000
      %v4107 = vmul.f32 %v4091, %v4005
      %v4108 = vmul.f32 %v4091, %v4010
      %v4109 = vmul.f32 %v4091, %v4015
      %v4110 = vmul.f32 %v4091, %v4020
      %v4111 = vmul.f32 %v4091, %v4025
      %v4112 = vmul.f32 %v4091, %v4030
      %v4113 = vmul.f32 %v4091, %v4035
      %v4114 = vmul.f32 %v4091, %v4040
      %v4115 = vmul.f32 %v4091, %v4045
      %v4116 = vmul.f32 %v4091, %v4050
      %v4117 = vmul.f32 %v4091, %v4055
      %v4118 = vmul.f32 %v4091, %v4060
      %v4119 = vmul.f32 %v4091, %v4065
      %v4120 = vmul.f32 %v4091, %v4070
      %v4121 = vmul.f32 %v4091, %v4075
      %v4122 = vmul.f32 %v4091, %v4080
      %v4123 = vmul.f32 %v4091, %v4085
      %v4124 = vxor.u32 %v4092, 2147483648
      %v4125 = vxor.u32 %v4093, 2147483648
      %v4126 = vxor.u32 %v4094, 2147483648
      %v4127 = vxor.u32 %v4095, 2147483648
      %v4128 = vxor.u32 %v4096, 2147483648
      %v4129 = vxor.u32 %v4097, 2147483648
      %v4130 = vxor.u32 %v4098, 2147483648
      %v4131 = vxor.u32 %v4099, 2147483648
      %v4132 = vxor.u32 %v4100, 2147483648
      %v4133 = vxor.u32 %v4101, 2147483648
      %v4134 = vxor.u32 %v4102, 2147483648
      %v4135 = vxor.u32 %v4103, 2147483648
      %v4136 = vxor.u32 %v4104, 2147483648
      %v4137 = vxor.u32 %v4105, 2147483648
      %v4138 = vxor.u32 %v4106, 2147483648
      %v4139 = vxor.u32 %v4107, 2147483648
      %v4140 = vxor.u32 %v4108, 2147483648
      %v4141 = vxor.u32 %v4109, 2147483648
      %v4142 = vxor.u32 %v4110, 2147483648
      %v4143 = vxor.u32 %v4111, 2147483648
      %v4144 = vxor.u32 %v4112, 2147483648
      %v4145 = vxor.u32 %v4113, 2147483648
      %v4146 = vxor.u32 %v4114, 2147483648
      %v4147 = vxor.u32 %v4115, 2147483648
      %v4148 = vxor.u32 %v4116, 2147483648
      %v4149 = vxor.u32 %v4117, 2147483648
      %v4150 = vxor.u32 %v4118, 2147483648
      %v4151 = vxor.u32 %v4119, 2147483648
      %v4152 = vxor.u32 %v4120, 2147483648
      %v4153 = vxor.u32 %v4121, 2147483648
      %v4154 = vxor.u32 %v4122, 2147483648
      %v4155 = vxor.u32 %v4123, 2147483648
      %v4156 = vmul.f32 %v4124, 1.442695
      %v4157 = vpow.pop %v4156
      %v4158 = vmul.f32 %v4125, 1.442695
      %v4159 = vpow.pop %v4158
      %v4160 = vmul.f32 %v4126, 1.442695
      %v4161 = vpow.pop %v4160
      %v4162 = vmul.f32 %v4127, 1.442695
      %v4163 = vpow.pop %v4162
      %v4164 = vmul.f32 %v4128, 1.442695
      %v4165 = vpow.pop %v4164
      %v4166 = vmul.f32 %v4129, 1.442695
      %v4167 = vpow.pop %v4166
      %v4168 = vmul.f32 %v4130, 1.442695
      %v4169 = vpow.pop %v4168
      %v4170 = vmul.f32 %v4131, 1.442695
      %v4171 = vpow.pop %v4170
      %v4172 = vmul.f32 %v4132, 1.442695
      %v4173 = vpow.pop %v4172
      %v4174 = vmul.f32 %v4133, 1.442695
      %v4175 = vpow.pop %v4174
      %v4176 = vmul.f32 %v4134, 1.442695
      %v4177 = vpow.pop %v4176
      %v4178 = vmul.f32 %v4135, 1.442695
      %v4179 = vpow.pop %v4178
      %v4180 = vmul.f32 %v4136, 1.442695
      %v4181 = vpow.pop %v4180
      %v4182 = vmul.f32 %v4137, 1.442695
      %v4183 = vpow.pop %v4182
      %v4184 = vmul.f32 %v4138, 1.442695
      %v4185 = vpow.pop %v4184
      %v4186 = vmul.f32 %v4139, 1.442695
      %v4187 = vpow.pop %v4186
      %v4188 = vmul.f32 %v4140, 1.442695
      %v4189 = vpow.pop %v4188
      %v4190 = vmul.f32 %v4141, 1.442695
      %v4191 = vpow.pop %v4190
      %v4192 = vmul.f32 %v4142, 1.442695
      %v4193 = vpow.pop %v4192
      %v4194 = vmul.f32 %v4143, 1.442695
      %v4195 = vpow.pop %v4194
      %v4196 = vmul.f32 %v4144, 1.442695
      %v4197 = vpow.pop %v4196
      %v4198 = vmul.f32 %v4145, 1.442695
      %v4199 = vpow.pop %v4198
      %v4200 = vmul.f32 %v4146, 1.442695
      %v4201 = vpow.pop %v4200
      %v4202 = vmul.f32 %v4147, 1.442695
      %v4203 = vpow.pop %v4202
      %v4204 = vmul.f32 %v4148, 1.442695
      %v4205 = vpow.pop %v4204
      %v4206 = vmul.f32 %v4149, 1.442695
      %v4207 = vpow.pop %v4206
      %v4208 = vmul.f32 %v4150, 1.442695
      %v4209 = vpow.pop %v4208
      %v4210 = vmul.f32 %v4151, 1.442695
      %v4211 = vpow.pop %v4210
      %v4212 = vmul.f32 %v4152, 1.442695
      %v4213 = vpow.pop %v4212
      %v4214 = vmul.f32 %v4153, 1.442695
      %v4215 = vpow.pop %v4214
      %v4216 = vmul.f32 %v4154, 1.442695
      %v4217 = vpow.pop %v4216
      %v4218 = vmul.f32 %v4155, 1.442695
      %v4219 = vpow.pop %v4218
      %v4220 = vadd.f32 %v4157, 1.0
      %v4221 = vadd.f32 %v4159, 1.0
      %v4222 = vadd.f32 %v4161, 1.0
      %v4223 = vadd.f32 %v4163, 1.0
      %v4224 = vadd.f32 %v4165, 1.0
      %v4225 = vadd.f32 %v4167, 1.0
      %v4226 = vadd.f32 %v4169, 1.0
      %v4227 = vadd.f32 %v4171, 1.0
      %v4228 = vadd.f32 %v4173, 1.0
      %v4229 = vadd.f32 %v4175, 1.0
      %v4230 = vadd.f32 %v4177, 1.0
      %v4231 = vadd.f32 %v4179, 1.0
      %v4232 = vadd.f32 %v4181, 1.0
      %v4233 = vadd.f32 %v4183, 1.0
      %v4234 = vadd.f32 %v4185, 1.0
      %v4235 = vadd.f32 %v4187, 1.0
      %v4236 = vadd.f32 %v4189, 1.0
      %v4237 = vadd.f32 %v4191, 1.0
      %v4238 = vadd.f32 %v4193, 1.0
      %v4239 = vadd.f32 %v4195, 1.0
      %v4240 = vadd.f32 %v4197, 1.0
      %v4241 = vadd.f32 %v4199, 1.0
      %v4242 = vadd.f32 %v4201, 1.0
      %v4243 = vadd.f32 %v4203, 1.0
      %v4244 = vadd.f32 %v4205, 1.0
      %v4245 = vadd.f32 %v4207, 1.0
      %v4246 = vadd.f32 %v4209, 1.0
      %v4247 = vadd.f32 %v4211, 1.0
      %v4248 = vadd.f32 %v4213, 1.0
      %v4249 = vadd.f32 %v4215, 1.0
      %v4250 = vadd.f32 %v4217, 1.0
      %v4251 = vadd.f32 %v4219, 1.0
      %v4252 = vrcp.pop %v4220
      %v4253 = vmul.f32 1.0, %v4252
      %v4254 = vrcp.pop %v4221
      %v4255 = vmul.f32 1.0, %v4254
      %v4256 = vrcp.pop %v4222
      %v4257 = vmul.f32 1.0, %v4256
      %v4258 = vrcp.pop %v4223
      %v4259 = vmul.f32 1.0, %v4258
      %v4260 = vrcp.pop %v4224
      %v4261 = vmul.f32 1.0, %v4260
      %v4262 = vrcp.pop %v4225
      %v4263 = vmul.f32 1.0, %v4262
      %v4264 = vrcp.pop %v4226
      %v4265 = vmul.f32 1.0, %v4264
      %v4266 = vrcp.pop %v4227
      %v4267 = vmul.f32 1.0, %v4266
      %v4268 = vrcp.pop %v4228
      %v4269 = vmul.f32 1.0, %v4268
      %v4270 = vrcp.pop %v4229
      %v4271 = vmul.f32 1.0, %v4270
      %v4272 = vrcp.pop %v4230
      %v4273 = vmul.f32 1.0, %v4272
      %v4274 = vrcp.pop %v4231
      %v4275 = vmul.f32 1.0, %v4274
      %v4276 = vrcp.pop %v4232
      %v4277 = vmul.f32 1.0, %v4276
      %v4278 = vrcp.pop %v4233
      %v4279 = vmul.f32 1.0, %v4278
      %v4280 = vrcp.pop %v4234
      %v4281 = vmul.f32 1.0, %v4280
      %v4282 = vrcp.pop %v4235
      %v4283 = vmul.f32 1.0, %v4282
      %v4284 = vrcp.pop %v4236
      %v4285 = vmul.f32 1.0, %v4284
      %v4286 = vrcp.pop %v4237
      %v4287 = vmul.f32 1.0, %v4286
      %v4288 = vrcp.pop %v4238
      %v4289 = vmul.f32 1.0, %v4288
      %v4290 = vrcp.pop %v4239
      %v4291 = vmul.f32 1.0, %v4290
      %v4292 = vrcp.pop %v4240
      %v4293 = vmul.f32 1.0, %v4292
      %v4294 = vrcp.pop %v4241
      %v4295 = vmul.f32 1.0, %v4294
      %v4296 = vrcp.pop %v4242
      %v4297 = vmul.f32 1.0, %v4296
      %v4298 = vrcp.pop %v4243
      %v4299 = vmul.f32 1.0, %v4298
      %v4300 = vrcp.pop %v4244
      %v4301 = vmul.f32 1.0, %v4300
      %v4302 = vrcp.pop %v4245
      %v4303 = vmul.f32 1.0, %v4302
      %v4304 = vrcp.pop %v4246
      %v4305 = vmul.f32 1.0, %v4304
      %v4306 = vrcp.pop %v4247
      %v4307 = vmul.f32 1.0, %v4306
      %v4308 = vrcp.pop %v4248
      %v4309 = vmul.f32 1.0, %v4308
      %v4310 = vrcp.pop %v4249
      %v4311 = vmul.f32 1.0, %v4310
      %v4312 = vrcp.pop %v4250
      %v4313 = vmul.f32 1.0, %v4312
      %v4314 = vrcp.pop %v4251
      %v4315 = vmul.f32 1.0, %v4314
      %v4316 = vmul.f32 %v3930, %v4253
      %v4317 = vmul.f32 %v3935, %v4255
      %v4318 = vmul.f32 %v3940, %v4257
      %v4319 = vmul.f32 %v3945, %v4259
      %v4320 = vmul.f32 %v3950, %v4261
      %v4321 = vmul.f32 %v3955, %v4263
      %v4322 = vmul.f32 %v3960, %v4265
      %v4323 = vmul.f32 %v3965, %v4267
      %v4324 = vmul.f32 %v3970, %v4269
      %v4325 = vmul.f32 %v3975, %v4271
      %v4326 = vmul.f32 %v3980, %v4273
      %v4327 = vmul.f32 %v3985, %v4275
      %v4328 = vmul.f32 %v3990, %v4277
      %v4329 = vmul.f32 %v3995, %v4279
      %v4330 = vmul.f32 %v4000, %v4281
      %v4331 = vmul.f32 %v4005, %v4283
      %v4332 = vmul.f32 %v4010, %v4285
      %v4333 = vmul.f32 %v4015, %v4287
      %v4334 = vmul.f32 %v4020, %v4289
      %v4335 = vmul.f32 %v4025, %v4291
      %v4336 = vmul.f32 %v4030, %v4293
      %v4337 = vmul.f32 %v4035, %v4295
      %v4338 = vmul.f32 %v4040, %v4297
      %v4339 = vmul.f32 %v4045, %v4299
      %v4340 = vmul.f32 %v4050, %v4301
      %v4341 = vmul.f32 %v4055, %v4303
      %v4342 = vmul.f32 %v4060, %v4305
      %v4343 = vmul.f32 %v4065, %v4307
      %v4344 = vmul.f32 %v4070, %v4309
      %v4345 = vmul.f32 %v4075, %v4311
      %v4346 = vmul.f32 %v4080, %v4313
      %v4347 = vmul.f32 %v4085, %v4315
      %4348 = vst.msk [vmem:[%s300 + $0x1] sm:$0xff] %vm244, %v4316
      %4349 = vst.msk [vmem:[%s300 + $0x9] sm:$0xff] %vm244, %v4317
      %4350 = vst.msk [vmem:[%s300 + $0x19] sm:$0xff] %vm244, %v4318
      %4351 = vst.msk [vmem:[%s300 + $0x21] sm:$0xff] %vm244, %v4319
      %4352 = vst.msk [vmem:[%s300 + $0x31] sm:$0xff] %vm244, %v4320
      %4353 = vst.msk [vmem:[%s300 + $0x39] sm:$0xff] %vm244, %v4321
      %4354 = vst.msk [vmem:[%s300 + $0x49] sm:$0xff] %vm244, %v4322
      %4355 = vst.msk [vmem:[%s300 + $0x51] sm:$0xff] %vm244, %v4323
      %4356 = vst.msk [vmem:[%s300 + $0x61] sm:$0xff] %vm244, %v4324
      %4357 = vst.msk [vmem:[%s300 + $0x69] sm:$0xff] %vm244, %v4325
      %4358 = vst.msk [vmem:[%s300 + $0x79] sm:$0xff] %vm244, %v4326
      %4359 = vst.msk [vmem:[%s300 + $0x81] sm:$0xff] %vm244, %v4327
      %4360 = vst.msk [vmem:[%s300 + $0x91] sm:$0xff] %vm244, %v4328
      %4361 = vst.msk [vmem:[%s300 + $0x99] sm:$0xff] %vm244, %v4329
      %4362 = vst.msk [vmem:[%s300 + $0xa9] sm:$0xff] %vm244, %v4330
      %4363 = vst.msk [vmem:[%s300 + $0xb1] sm:$0xff] %vm244, %v4331
      %4364 = vst.msk [vmem:[%s300 + $0xc1] sm:$0xff] %vm244, %v4332
      %4365 = vst.msk [vmem:[%s300 + $0xc9] sm:$0xff] %vm244, %v4333
      %4366 = vst.msk [vmem:[%s300 + $0xd9] sm:$0xff] %vm244, %v4334
      %4367 = vst.msk [vmem:[%s300 + $0xe1] sm:$0xff] %vm244, %v4335
      %4368 = vst.msk [vmem:[%s300 + $0xf1] sm:$0xff] %vm244, %v4336
      %4369 = vst.msk [vmem:[%s300 + $0xf9] sm:$0xff] %vm244, %v4337
      %4370 = vst.msk [vmem:[%s300 + $0x109] sm:$0xff] %vm244, %v4338
      %4371 = vst.msk [vmem:[%s300 + $0x111] sm:$0xff] %vm244, %v4339
      %4372 = vst.msk [vmem:[%s300 + $0x121] sm:$0xff] %vm244, %v4340
      %4373 = vst.msk [vmem:[%s300 + $0x129] sm:$0xff] %vm244, %v4341
      %4374 = vst.msk [vmem:[%s300 + $0x139] sm:$0xff] %vm244, %v4342
      %4375 = vst.msk [vmem:[%s300 + $0x141] sm:$0xff] %vm244, %v4343
      %4376 = vst.msk [vmem:[%s300 + $0x151] sm:$0xff] %vm244, %v4344
      %4377 = vst.msk [vmem:[%s300 + $0x159] sm:$0xff] %vm244, %v4345
      %4378 = vst.msk [vmem:[%s300 + $0x169] sm:$0xff] %vm244, %v4346
      %4379 = vst.msk [vmem:[%s300 + $0x171] sm:$0xff] %vm244, %v4347
      %v4380 = vld [vmem:[#allocation2] sm:$0xff]
      %v4381 = vld [vmem:[#allocation2 + $0x8] sm:$0xff]
      %v4382 = vld [vmem:[#allocation2 + $0x10] sm:$0x3]
      %v4383 = vld [vmem:[#allocation2 + $0x18] sm:$0xff]
      %v4384 = vld [vmem:[#allocation2 + $0x20] sm:$0xff]
      %v4385 = vld [vmem:[#allocation2 + $0x28] sm:$0x3]
      %v4386 = vld [vmem:[#allocation2 + $0x30] sm:$0xff]
      %v4387 = vld [vmem:[#allocation2 + $0x38] sm:$0xff]
      %v4388 = vld [vmem:[#allocation2 + $0x40] sm:$0x3]
      %v4389 = vld [vmem:[#allocation2 + $0x48] sm:$0xff]
      %v4390 = vld [vmem:[#allocation2 + $0x50] sm:$0xff]
      %v4391 = vld [vmem:[#allocation2 + $0x58] sm:$0x3]
      %v4392 = vld [vmem:[#allocation2 + $0x60] sm:$0xff]
      %v4393 = vld [vmem:[#allocation2 + $0x68] sm:$0xff]
      %v4394 = vld [vmem:[#allocation2 + $0x70] sm:$0x3]
      %v4395 = vld [vmem:[#allocation2 + $0x78] sm:$0xff]
      %v4396 = vld [vmem:[#allocation2 + $0x80] sm:$0xff]
      %v4397 = vld [vmem:[#allocation2 + $0x88] sm:$0x3]
      %v4398 = vld [vmem:[#allocation2 + $0x90] sm:$0xff]
      %v4399 = vld [vmem:[#allocation2 + $0x98] sm:$0xff]
      %v4400 = vld [vmem:[#allocation2 + $0xa0] sm:$0x3]
      %v4401 = vld [vmem:[#allocation2 + $0xa8] sm:$0xff]
      %v4402 = vld [vmem:[#allocation2 + $0xb0] sm:$0xff]
      %v4403 = vld [vmem:[#allocation2 + $0xb8] sm:$0x3]
      %v4404 = vld [vmem:[#allocation2 + $0xc0] sm:$0xff]
      %v4405 = vld [vmem:[#allocation2 + $0xc8] sm:$0xff]
      %v4406 = vld [vmem:[#allocation2 + $0xd0] sm:$0x3]
      %v4407 = vld [vmem:[#allocation2 + $0xd8] sm:$0xff]
      %v4408 = vld [vmem:[#allocation2 + $0xe0] sm:$0xff]
      %v4409 = vld [vmem:[#allocation2 + $0xe8] sm:$0x3]
      %v4410 = vld [vmem:[#allocation2 + $0xf0] sm:$0xff]
      %v4411 = vld [vmem:[#allocation2 + $0xf8] sm:$0xff]
      %v4412 = vld [vmem:[#allocation2 + $0x100] sm:$0x3]
      %v4413 = vld [vmem:[#allocation2 + $0x108] sm:$0xff]
      %v4414 = vld [vmem:[#allocation2 + $0x110] sm:$0xff]
      %v4415 = vld [vmem:[#allocation2 + $0x118] sm:$0x3]
      %v4416 = vld [vmem:[#allocation2 + $0x120] sm:$0xff]
      %v4417 = vld [vmem:[#allocation2 + $0x128] sm:$0xff]
      %v4418 = vld [vmem:[#allocation2 + $0x130] sm:$0x3]
      %v4419 = vld [vmem:[#allocation2 + $0x138] sm:$0xff]
      %v4420 = vld [vmem:[#allocation2 + $0x140] sm:$0xff]
      %v4421 = vld [vmem:[#allocation2 + $0x148] sm:$0x3]
      %v4422 = vld [vmem:[#allocation2 + $0x150] sm:$0xff]
      %v4423 = vld [vmem:[#allocation2 + $0x158] sm:$0xff]
      %v4424 = vld [vmem:[#allocation2 + $0x160] sm:$0x3]
      %v4425 = vld [vmem:[#allocation2 + $0x168] sm:$0xff]
      %v4426 = vld [vmem:[#allocation2 + $0x170] sm:$0xff]
      %v4427 = vld [vmem:[#allocation2 + $0x178] sm:$0x3]
      %v4428 = vld [vmem:[#allocation2 + $0x180] sm:$0xff]
      %v4429 = vld [vmem:[#allocation2 + $0x188] sm:$0xff]
      %v4430 = vld [vmem:[#allocation2 + $0x190] sm:$0x3]
      %v4431 = vld [vmem:[#allocation2 + $0x198] sm:$0xff]
      %v4432 = vld [vmem:[#allocation2 + $0x1a0] sm:$0xff]
      %v4433 = vld [vmem:[#allocation2 + $0x1a8] sm:$0x3]
      %4434 = vst.msk [vmem:[#allocation3] sm:$0xff] %vm244, %v4380
      %4435 = vst.msk [vmem:[#allocation3 + $0x8] sm:$0xff] %vm244, %v4381
      %4436 = vst.msk [vmem:[#allocation3 + $0x10] sm:$0xff] %vm244, %v4383
      %4437 = vst.msk [vmem:[#allocation3 + $0x18] sm:$0xff] %vm244, %v4384
      %4438 = vst.msk [vmem:[#allocation3 + $0x20] sm:$0xff] %vm244, %v4386
      %4439 = vst.msk [vmem:[#allocation3 + $0x28] sm:$0xff] %vm244, %v4387
      %4440 = vst.msk [vmem:[#allocation3 + $0x30] sm:$0xff] %vm244, %v4389
      %4441 = vst.msk [vmem:[#allocation3 + $0x38] sm:$0xff] %vm244, %v4390
      %4442 = vst.msk [vmem:[#allocation3 + $0x40] sm:$0xff] %vm244, %v4392
      %4443 = vst.msk [vmem:[#allocation3 + $0x48] sm:$0xff] %vm244, %v4393
      %4444 = vst.msk [vmem:[#allocation3 + $0x50] sm:$0xff] %vm244, %v4395
      %4445 = vst.msk [vmem:[#allocation3 + $0x58] sm:$0xff] %vm244, %v4396
      %4446 = vst.msk [vmem:[#allocation3 + $0x60] sm:$0xff] %vm244, %v4398
      %4447 = vst.msk [vmem:[#allocation3 + $0x68] sm:$0xff] %vm244, %v4399
      %4448 = vst.msk [vmem:[#allocation3 + $0x70] sm:$0xff] %vm244, %v4401
      %4449 = vst.msk [vmem:[#allocation3 + $0x78] sm:$0xff] %vm244, %v4402
      %4450 = vst.msk [vmem:[#allocation3 + $0x80] sm:$0xff] %vm244, %v4404
      %4451 = vst.msk [vmem:[#allocation3 + $0x88] sm:$0xff] %vm244, %v4405
      %4452 = vst.msk [vmem:[#allocation3 + $0x90] sm:$0xff] %vm244, %v4407
      %4453 = vst.msk [vmem:[#allocation3 + $0x98] sm:$0xff] %vm244, %v4408
      %4454 = vst.msk [vmem:[#allocation3 + $0xa0] sm:$0xff] %vm244, %v4410
      %4455 = vst.msk [vmem:[#allocation3 + $0xa8] sm:$0xff] %vm244, %v4411
      %4456 = vst.msk [vmem:[#allocation3 + $0xb0] sm:$0xff] %vm244, %v4413
      %4457 = vst.msk [vmem:[#allocation3 + $0xb8] sm:$0xff] %vm244, %v4414
      %4458 = vst.msk [vmem:[#allocation3 + $0xc0] sm:$0xff] %vm244, %v4416
      %4459 = vst.msk [vmem:[#allocation3 + $0xc8] sm:$0xff] %vm244, %v4417
      %4460 = vst.msk [vmem:[#allocation3 + $0xd0] sm:$0xff] %vm244, %v4419
      %4461 = vst.msk [vmem:[#allocation3 + $0xd8] sm:$0xff] %vm244, %v4420
      %4462 = vst.msk [vmem:[#allocation3 + $0xe0] sm:$0xff] %vm244, %v4422
      %4463 = vst.msk [vmem:[#allocation3 + $0xe8] sm:$0xff] %vm244, %v4423
      %4464 = vst.msk [vmem:[#allocation3 + $0xf0] sm:$0xff] %vm244, %v4425
      %4465 = vst.msk [vmem:[#allocation3 + $0xf8] sm:$0xff] %vm244, %v4426
      %v4514 = vrot.slane %v4380, 1
      %v4515 = vrot.slane %v4381, 1
      %v4516 = vsel %vm467, %v4514, %v4515
      %v4517 = vrot.slane %v4382, 1
      %v4518 = vsel %vm467, %v4515, %v4517
      %v4519 = vrot.slane %v4383, 1
      %v4520 = vrot.slane %v4384, 1
      %v4521 = vsel %vm467, %v4519, %v4520
      %v4522 = vrot.slane %v4385, 1
      %v4523 = vsel %vm467, %v4520, %v4522
      %v4524 = vrot.slane %v4386, 1
      %v4525 = vrot.slane %v4387, 1
      %v4526 = vsel %vm467, %v4524, %v4525
      %v4527 = vrot.slane %v4388, 1
      %v4528 = vsel %vm467, %v4525, %v4527
      %v4529 = vrot.slane %v4389, 1
      %v4530 = vrot.slane %v4390, 1
      %v4531 = vsel %vm467, %v4529, %v4530
      %v4532 = vrot.slane %v4391, 1
      %v4533 = vsel %vm467, %v4530, %v4532
      %v4534 = vrot.slane %v4392, 1
      %v4535 = vrot.slane %v4393, 1
      %v4536 = vsel %vm467, %v4534, %v4535
      %v4537 = vrot.slane %v4394, 1
      %v4538 = vsel %vm467, %v4535, %v4537
      %v4539 = vrot.slane %v4395, 1
      %v4540 = vrot.slane %v4396, 1
      %v4541 = vsel %vm467, %v4539, %v4540
      %v4542 = vrot.slane %v4397, 1
      %v4543 = vsel %vm467, %v4540, %v4542
      %v4544 = vrot.slane %v4398, 1
      %v4545 = vrot.slane %v4399, 1
      %v4546 = vsel %vm467, %v4544, %v4545
      %v4547 = vrot.slane %v4400, 1
      %v4548 = vsel %vm467, %v4545, %v4547
      %v4549 = vrot.slane %v4401, 1
      %v4550 = vrot.slane %v4402, 1
      %v4551 = vsel %vm467, %v4549, %v4550
      %v4552 = vrot.slane %v4403, 1
      %v4553 = vsel %vm467, %v4550, %v4552
      %v4554 = vrot.slane %v4404, 1
      %v4555 = vrot.slane %v4405, 1
      %v4556 = vsel %vm467, %v4554, %v4555
      %v4557 = vrot.slane %v4406, 1
      %v4558 = vsel %vm467, %v4555, %v4557
      %v4559 = vrot.slane %v4407, 1
      %v4560 = vrot.slane %v4408, 1
      %v4561 = vsel %vm467, %v4559, %v4560
      %v4562 = vrot.slane %v4409, 1
      %v4563 = vsel %vm467, %v4560, %v4562
      %v4564 = vrot.slane %v4410, 1
      %v4565 = vrot.slane %v4411, 1
      %v4566 = vsel %vm467, %v4564, %v4565
      %v4567 = vrot.slane %v4412, 1
      %v4568 = vsel %vm467, %v4565, %v4567
      %v4569 = vrot.slane %v4413, 1
      %v4570 = vrot.slane %v4414, 1
      %v4571 = vsel %vm467, %v4569, %v4570
      %v4572 = vrot.slane %v4415, 1
      %v4573 = vsel %vm467, %v4570, %v4572
      %v4574 = vrot.slane %v4416, 1
      %v4575 = vrot.slane %v4417, 1
      %v4576 = vsel %vm467, %v4574, %v4575
      %v4577 = vrot.slane %v4418, 1
      %v4578 = vsel %vm467, %v4575, %v4577
      %v4579 = vrot.slane %v4419, 1
      %v4580 = vrot.slane %v4420, 1
      %v4581 = vsel %vm467, %v4579, %v4580
      %v4582 = vrot.slane %v4421, 1
      %v4583 = vsel %vm467, %v4580, %v4582
      %v4584 = vrot.slane %v4422, 1
      %v4585 = vrot.slane %v4423, 1
      %v4586 = vsel %vm467, %v4584, %v4585
      %v4587 = vrot.slane %v4424, 1
      %v4588 = vsel %vm467, %v4585, %v4587
      %v4589 = vrot.slane %v4425, 1
      %v4590 = vrot.slane %v4426, 1
      %v4591 = vsel %vm467, %v4589, %v4590
      %v4592 = vrot.slane %v4427, 1
      %v4593 = vsel %vm467, %v4590, %v4592
      %4594 = vrot.lane.b32.xlu0 %v4516, 4
      %v4595 = vpop.permute.xlu0 %4594
      %4596 = vrot.lane.b32.xlu0 %v4518, 4
      %v4597 = vpop.permute.xlu0 %4596
      %4598 = vrot.lane.b32.xlu0 %v4521, 4
      %v4599 = vpop.permute.xlu0 %4598
      %4600 = vrot.lane.b32.xlu0 %v4523, 4
      %v4601 = vpop.permute.xlu0 %4600
      %4602 = vrot.lane.b32.xlu0 %v4526, 4
      %v4603 = vpop.permute.xlu0 %4602
      %4604 = vrot.lane.b32.xlu0 %v4528, 4
      %v4605 = vpop.permute.xlu0 %4604
      %4606 = vrot.lane.b32.xlu0 %v4531, 4
      %v4607 = vpop.permute.xlu0 %4606
      %4608 = vrot.lane.b32.xlu0 %v4533, 4
      %v4609 = vpop.permute.xlu0 %4608
      %4610 = vrot.lane.b32.xlu0 %v4536, 4
      %v4611 = vpop.permute.xlu0 %4610
      %4612 = vrot.lane.b32.xlu0 %v4538, 4
      %v4613 = vpop.permute.xlu0 %4612
      %4614 = vrot.lane.b32.xlu0 %v4541, 4
      %v4615 = vpop.permute.xlu0 %4614
      %4616 = vrot.lane.b32.xlu0 %v4543, 4
      %v4617 = vpop.permute.xlu0 %4616
      %4618 = vrot.lane.b32.xlu0 %v4546, 4
      %v4619 = vpop.permute.xlu0 %4618
      %4620 = vrot.lane.b32.xlu0 %v4548, 4
      %v4621 = vpop.permute.xlu0 %4620
      %4622 = vrot.lane.b32.xlu0 %v4551, 4
      %v4623 = vpop.permute.xlu0 %4622
      %4624 = vrot.lane.b32.xlu0 %v4553, 4
      %v4625 = vpop.permute.xlu0 %4624
      %4626 = vrot.lane.b32.xlu0 %v4556, 4
      %v4627 = vpop.permute.xlu0 %4626
      %4628 = vrot.lane.b32.xlu0 %v4558, 4
      %v4629 = vpop.permute.xlu0 %4628
      %4630 = vrot.lane.b32.xlu0 %v4561, 4
      %v4631 = vpop.permute.xlu0 %4630
      %4632 = vrot.lane.b32.xlu0 %v4563, 4
      %v4633 = vpop.permute.xlu0 %4632
      %4634 = vrot.lane.b32.xlu0 %v4566, 4
      %v4635 = vpop.permute.xlu0 %4634
      %4636 = vrot.lane.b32.xlu0 %v4568, 4
      %v4637 = vpop.permute.xlu0 %4636
      %4638 = vrot.lane.b32.xlu0 %v4571, 4
      %v4639 = vpop.permute.xlu0 %4638
      %4640 = vrot.lane.b32.xlu0 %v4573, 4
      %v4641 = vpop.permute.xlu0 %4640
      %4642 = vrot.lane.b32.xlu0 %v4576, 4
      %v4643 = vpop.permute.xlu0 %4642
      %4644 = vrot.lane.b32.xlu0 %v4578, 4
      %v4645 = vpop.permute.xlu0 %4644
      %4646 = vrot.lane.b32.xlu0 %v4581, 4
      %v4647 = vpop.permute.xlu0 %4646
      %4648 = vrot.lane.b32.xlu0 %v4583, 4
      %v4649 = vpop.permute.xlu0 %4648
      %4650 = vrot.lane.b32.xlu0 %v4586, 4
      %v4651 = vpop.permute.xlu0 %4650
      %4652 = vrot.lane.b32.xlu0 %v4588, 4
      %v4653 = vpop.permute.xlu0 %4652
      %4654 = vrot.lane.b32.xlu0 %v4591, 4
      %v4655 = vpop.permute.xlu0 %4654
      %4656 = vrot.lane.b32.xlu0 %v4593, 4
      %v4657 = vpop.permute.xlu0 %4656
      %4690 = vst.msk [vmem:[#allocation3] sm:$0xff] %vm644, %v4595
      %4691 = vst.msk [vmem:[#allocation3 + $0x8] sm:$0xff] %vm644, %v4597
      %4692 = vst.msk [vmem:[#allocation3 + $0x10] sm:$0xff] %vm644, %v4599
      %4693 = vst.msk [vmem:[#allocation3 + $0x18] sm:$0xff] %vm644, %v4601
      %4694 = vst.msk [vmem:[#allocation3 + $0x20] sm:$0xff] %vm644, %v4603
      %4695 = vst.msk [vmem:[#allocation3 + $0x28] sm:$0xff] %vm644, %v4605
      %4696 = vst.msk [vmem:[#allocation3 + $0x30] sm:$0xff] %vm644, %v4607
      %4697 = vst.msk [vmem:[#allocation3 + $0x38] sm:$0xff] %vm644, %v4609
      %4698 = vst.msk [vmem:[#allocation3 + $0x40] sm:$0xff] %vm644, %v4611
      %4699 = vst.msk [vmem:[#allocation3 + $0x48] sm:$0xff] %vm644, %v4613
      %4700 = vst.msk [vmem:[#allocation3 + $0x50] sm:$0xff] %vm644, %v4615
      %4701 = vst.msk [vmem:[#allocation3 + $0x58] sm:$0xff] %vm644, %v4617
      %4702 = vst.msk [vmem:[#allocation3 + $0x60] sm:$0xff] %vm644, %v4619
      %4703 = vst.msk [vmem:[#allocation3 + $0x68] sm:$0xff] %vm644, %v4621
      %4704 = vst.msk [vmem:[#allocation3 + $0x70] sm:$0xff] %vm644, %v4623
      %4705 = vst.msk [vmem:[#allocation3 + $0x78] sm:$0xff] %vm644, %v4625
      %4706 = vst.msk [vmem:[#allocation3 + $0x80] sm:$0xff] %vm644, %v4627
      %4707 = vst.msk [vmem:[#allocation3 + $0x88] sm:$0xff] %vm644, %v4629
      %4708 = vst.msk [vmem:[#allocation3 + $0x90] sm:$0xff] %vm644, %v4631
      %4709 = vst.msk [vmem:[#allocation3 + $0x98] sm:$0xff] %vm644, %v4633
      %4710 = vst.msk [vmem:[#allocation3 + $0xa0] sm:$0xff] %vm644, %v4635
      %4711 = vst.msk [vmem:[#allocation3 + $0xa8] sm:$0xff] %vm644, %v4637
      %4712 = vst.msk [vmem:[#allocation3 + $0xb0] sm:$0xff] %vm644, %v4639
      %4713 = vst.msk [vmem:[#allocation3 + $0xb8] sm:$0xff] %vm644, %v4641
      %4714 = vst.msk [vmem:[#allocation3 + $0xc0] sm:$0xff] %vm644, %v4643
      %4715 = vst.msk [vmem:[#allocation3 + $0xc8] sm:$0xff] %vm644, %v4645
      %4716 = vst.msk [vmem:[#allocation3 + $0xd0] sm:$0xff] %vm644, %v4647
      %4717 = vst.msk [vmem:[#allocation3 + $0xd8] sm:$0xff] %vm644, %v4649
      %4718 = vst.msk [vmem:[#allocation3 + $0xe0] sm:$0xff] %vm644, %v4651
      %4719 = vst.msk [vmem:[#allocation3 + $0xe8] sm:$0xff] %vm644, %v4653
      %4720 = vst.msk [vmem:[#allocation3 + $0xf0] sm:$0xff] %vm644, %v4655
      %4721 = vst.msk [vmem:[#allocation3 + $0xf8] sm:$0xff] %vm644, %v4657
      %v4722 = vrot.slane %v4380, 2
      %v4723 = vrot.slane %v4381, 2
      %v4724 = vsel %vm677, %v4722, %v4723
      %v4725 = vrot.slane %v4382, 2
      %v4726 = vsel %vm677, %v4723, %v4725
      %v4727 = vrot.slane %v4383, 2
      %v4728 = vrot.slane %v4384, 2
      %v4729 = vsel %vm677, %v4727, %v4728
      %v4730 = vrot.slane %v4385, 2
      %v4731 = vsel %vm677, %v4728, %v4730
      %v4732 = vrot.slane %v4386, 2
      %v4733 = vrot.slane %v4387, 2
      %v4734 = vsel %vm677, %v4732, %v4733
      %v4735 = vrot.slane %v4388, 2
      %v4736 = vsel %vm677, %v4733, %v4735
      %v4737 = vrot.slane %v4389, 2
      %v4738 = vrot.slane %v4390, 2
      %v4739 = vsel %vm677, %v4737, %v4738
      %v4740 = vrot.slane %v4391, 2
      %v4741 = vsel %vm677, %v4738, %v4740
      %v4742 = vrot.slane %v4392, 2
      %v4743 = vrot.slane %v4393, 2
      %v4744 = vsel %vm677, %v4742, %v4743
      %v4745 = vrot.slane %v4394, 2
      %v4746 = vsel %vm677, %v4743, %v4745
      %v4747 = vrot.slane %v4395, 2
      %v4748 = vrot.slane %v4396, 2
      %v4749 = vsel %vm677, %v4747, %v4748
      %v4750 = vrot.slane %v4397, 2
      %v4751 = vsel %vm677, %v4748, %v4750
      %v4752 = vrot.slane %v4398, 2
      %v4753 = vrot.slane %v4399, 2
      %v4754 = vsel %vm677, %v4752, %v4753
      %v4755 = vrot.slane %v4400, 2
      %v4756 = vsel %vm677, %v4753, %v4755
      %v4757 = vrot.slane %v4401, 2
      %v4758 = vrot.slane %v4402, 2
      %v4759 = vsel %vm677, %v4757, %v4758
      %v4760 = vrot.slane %v4403, 2
      %v4761 = vsel %vm677, %v4758, %v4760
      %v4762 = vrot.slane %v4404, 2
      %v4763 = vrot.slane %v4405, 2
      %v4764 = vsel %vm677, %v4762, %v4763
      %v4765 = vrot.slane %v4406, 2
      %v4766 = vsel %vm677, %v4763, %v4765
      %v4767 = vrot.slane %v4407, 2
      %v4768 = vrot.slane %v4408, 2
      %v4769 = vsel %vm677, %v4767, %v4768
      %v4770 = vrot.slane %v4409, 2
      %v4771 = vsel %vm677, %v4768, %v4770
      %v4772 = vrot.slane %v4410, 2
      %v4773 = vrot.slane %v4411, 2
      %v4774 = vsel %vm677, %v4772, %v4773
      %v4775 = vrot.slane %v4412, 2
      %v4776 = vsel %vm677, %v4773, %v4775
      %v4777 = vrot.slane %v4413, 2
      %v4778 = vrot.slane %v4414, 2
      %v4779 = vsel %vm677, %v4777, %v4778
      %v4780 = vrot.slane %v4415, 2
      %v4781 = vsel %vm677, %v4778, %v4780
      %v4782 = vrot.slane %v4416, 2
      %v4783 = vrot.slane %v4417, 2
      %v4784 = vsel %vm677, %v4782, %v4783
      %v4785 = vrot.slane %v4418, 2
      %v4786 = vsel %vm677, %v4783, %v4785
      %v4787 = vrot.slane %v4419, 2
      %v4788 = vrot.slane %v4420, 2
      %v4789 = vsel %vm677, %v4787, %v4788
      %v4790 = vrot.slane %v4421, 2
      %v4791 = vsel %vm677, %v4788, %v4790
      %v4792 = vrot.slane %v4422, 2
      %v4793 = vrot.slane %v4423, 2
      %v4794 = vsel %vm677, %v4792, %v4793
      %v4795 = vrot.slane %v4424, 2
      %v4796 = vsel %vm677, %v4793, %v4795
      %v4797 = vrot.slane %v4425, 2
      %v4798 = vrot.slane %v4426, 2
      %v4799 = vsel %vm677, %v4797, %v4798
      %v4800 = vrot.slane %v4427, 2
      %v4801 = vsel %vm677, %v4798, %v4800
      %4802 = vrot.lane.b32.xlu0 %v4724, 8
      %v4803 = vpop.permute.xlu0 %4802
      %4804 = vrot.lane.b32.xlu0 %v4726, 8
      %v4805 = vpop.permute.xlu0 %4804
      %4806 = vrot.lane.b32.xlu0 %v4729, 8
      %v4807 = vpop.permute.xlu0 %4806
      %4808 = vrot.lane.b32.xlu0 %v4731, 8
      %v4809 = vpop.permute.xlu0 %4808
      %4810 = vrot.lane.b32.xlu0 %v4734, 8
      %v4811 = vpop.permute.xlu0 %4810
      %4812 = vrot.lane.b32.xlu0 %v4736, 8
      %v4813 = vpop.permute.xlu0 %4812
      %4814 = vrot.lane.b32.xlu0 %v4739, 8
      %v4815 = vpop.permute.xlu0 %4814
      %4816 = vrot.lane.b32.xlu0 %v4741, 8
      %v4817 = vpop.permute.xlu0 %4816
      %4818 = vrot.lane.b32.xlu0 %v4744, 8
      %v4819 = vpop.permute.xlu0 %4818
      %4820 = vrot.lane.b32.xlu0 %v4746, 8
      %v4821 = vpop.permute.xlu0 %4820
      %4822 = vrot.lane.b32.xlu0 %v4749, 8
      %v4823 = vpop.permute.xlu0 %4822
      %4824 = vrot.lane.b32.xlu0 %v4751, 8
      %v4825 = vpop.permute.xlu0 %4824
      %4826 = vrot.lane.b32.xlu0 %v4754, 8
      %v4827 = vpop.permute.xlu0 %4826
      %4828 = vrot.lane.b32.xlu0 %v4756, 8
      %v4829 = vpop.permute.xlu0 %4828
      %4830 = vrot.lane.b32.xlu0 %v4759, 8
      %v4831 = vpop.permute.xlu0 %4830
      %4832 = vrot.lane.b32.xlu0 %v4761, 8
      %v4833 = vpop.permute.xlu0 %4832
      %4834 = vrot.lane.b32.xlu0 %v4764, 8
      %v4835 = vpop.permute.xlu0 %4834
      %4836 = vrot.lane.b32.xlu0 %v4766, 8
      %v4837 = vpop.permute.xlu0 %4836
      %4838 = vrot.lane.b32.xlu0 %v4769, 8
      %v4839 = vpop.permute.xlu0 %4838
      %4840 = vrot.lane.b32.xlu0 %v4771, 8
      %v4841 = vpop.permute.xlu0 %4840
      %4842 = vrot.lane.b32.xlu0 %v4774, 8
      %v4843 = vpop.permute.xlu0 %4842
      %4844 = vrot.lane.b32.xlu0 %v4776, 8
      %v4845 = vpop.permute.xlu0 %4844
      %4846 = vrot.lane.b32.xlu0 %v4779, 8
      %v4847 = vpop.permute.xlu0 %4846
      %4848 = vrot.lane.b32.xlu0 %v4781, 8
      %v4849 = vpop.permute.xlu0 %4848
      %4850 = vrot.lane.b32.xlu0 %v4784, 8
      %v4851 = vpop.permute.xlu0 %4850
      %4852 = vrot.lane.b32.xlu0 %v4786, 8
      %v4853 = vpop.permute.xlu0 %4852
      %4854 = vrot.lane.b32.xlu0 %v4789, 8
      %v4855 = vpop.permute.xlu0 %4854
      %4856 = vrot.lane.b32.xlu0 %v4791, 8
      %v4857 = vpop.permute.xlu0 %4856
      %4858 = vrot.lane.b32.xlu0 %v4794, 8
      %v4859 = vpop.permute.xlu0 %4858
      %4860 = vrot.lane.b32.xlu0 %v4796, 8
      %v4861 = vpop.permute.xlu0 %4860
      %4862 = vrot.lane.b32.xlu0 %v4799, 8
      %v4863 = vpop.permute.xlu0 %4862
      %4864 = vrot.lane.b32.xlu0 %v4801, 8
      %v4865 = vpop.permute.xlu0 %4864
      %4898 = vst.msk [vmem:[#allocation3] sm:$0xff] %vm854, %v4803
      %4899 = vst.msk [vmem:[#allocation3 + $0x8] sm:$0xff] %vm854, %v4805
      %4900 = vst.msk [vmem:[#allocation3 + $0x10] sm:$0xff] %vm854, %v4807
      %4901 = vst.msk [vmem:[#allocation3 + $0x18] sm:$0xff] %vm854, %v4809
      %4902 = vst.msk [vmem:[#allocation3 + $0x20] sm:$0xff] %vm854, %v4811
      %4903 = vst.msk [vmem:[#allocation3 + $0x28] sm:$0xff] %vm854, %v4813
      %4904 = vst.msk [vmem:[#allocation3 + $0x30] sm:$0xff] %vm854, %v4815
      %4905 = vst.msk [vmem:[#allocation3 + $0x38] sm:$0xff] %vm854, %v4817
      %4906 = vst.msk [vmem:[#allocation3 + $0x40] sm:$0xff] %vm854, %v4819
      %4907 = vst.msk [vmem:[#allocation3 + $0x48] sm:$0xff] %vm854, %v4821
      %4908 = vst.msk [vmem:[#allocation3 + $0x50] sm:$0xff] %vm854, %v4823
      %4909 = vst.msk [vmem:[#allocation3 + $0x58] sm:$0xff] %vm854, %v4825
      %4910 = vst.msk [vmem:[#allocation3 + $0x60] sm:$0xff] %vm854, %v4827
      %4911 = vst.msk [vmem:[#allocation3 + $0x68] sm:$0xff] %vm854, %v4829
      %4912 = vst.msk [vmem:[#allocation3 + $0x70] sm:$0xff] %vm854, %v4831
      %4913 = vst.msk [vmem:[#allocation3 + $0x78] sm:$0xff] %vm854, %v4833
      %4914 = vst.msk [vmem:[#allocation3 + $0x80] sm:$0xff] %vm854, %v4835
      %4915 = vst.msk [vmem:[#allocation3 + $0x88] sm:$0xff] %vm854, %v4837
      %4916 = vst.msk [vmem:[#allocation3 + $0x90] sm:$0xff] %vm854, %v4839
      %4917 = vst.msk [vmem:[#allocation3 + $0x98] sm:$0xff] %vm854, %v4841
      %4918 = vst.msk [vmem:[#allocation3 + $0xa0] sm:$0xff] %vm854, %v4843
      %4919 = vst.msk [vmem:[#allocation3 + $0xa8] sm:$0xff] %vm854, %v4845
      %4920 = vst.msk [vmem:[#allocation3 + $0xb0] sm:$0xff] %vm854, %v4847
      %4921 = vst.msk [vmem:[#allocation3 + $0xb8] sm:$0xff] %vm854, %v4849
      %4922 = vst.msk [vmem:[#allocation3 + $0xc0] sm:$0xff] %vm854, %v4851
      %4923 = vst.msk [vmem:[#allocation3 + $0xc8] sm:$0xff] %vm854, %v4853
      %4924 = vst.msk [vmem:[#allocation3 + $0xd0] sm:$0xff] %vm854, %v4855
      %4925 = vst.msk [vmem:[#allocation3 + $0xd8] sm:$0xff] %vm854, %v4857
      %4926 = vst.msk [vmem:[#allocation3 + $0xe0] sm:$0xff] %vm854, %v4859
      %4927 = vst.msk [vmem:[#allocation3 + $0xe8] sm:$0xff] %vm854, %v4861
      %4928 = vst.msk [vmem:[#allocation3 + $0xf0] sm:$0xff] %vm854, %v4863
      %4929 = vst.msk [vmem:[#allocation3 + $0xf8] sm:$0xff] %vm854, %v4865
      %4932 = vrot.lane.b32.xlu0 %v4383, 12
      %v4933 = vpop.permute.xlu0 %4932
      %4934 = vrot.lane.b32.xlu0 %v4384, 12
      %v4935 = vpop.permute.xlu0 %4934
      %4936 = vrot.lane.b32.xlu0 %v4386, 12
      %v4937 = vpop.permute.xlu0 %4936
      %4938 = vrot.lane.b32.xlu0 %v4387, 12
      %v4939 = vpop.permute.xlu0 %4938
      %4940 = vrot.lane.b32.xlu0 %v4389, 12
      %v4941 = vpop.permute.xlu0 %4940
      %4942 = vrot.lane.b32.xlu0 %v4390, 12
      %v4943 = vpop.permute.xlu0 %4942
      %4944 = vrot.lane.b32.xlu0 %v4392, 12
      %v4945 = vpop.permute.xlu0 %4944
      %4946 = vrot.lane.b32.xlu0 %v4393, 12
      %v4947 = vpop.permute.xlu0 %4946
      %4948 = vrot.lane.b32.xlu0 %v4395, 12
      %v4949 = vpop.permute.xlu0 %4948
      %4950 = vrot.lane.b32.xlu0 %v4396, 12
      %v4951 = vpop.permute.xlu0 %4950
      %4952 = vrot.lane.b32.xlu0 %v4398, 12
      %v4953 = vpop.permute.xlu0 %4952
      %4954 = vrot.lane.b32.xlu0 %v4399, 12
      %v4955 = vpop.permute.xlu0 %4954
      %4956 = vrot.lane.b32.xlu0 %v4401, 12
      %v4957 = vpop.permute.xlu0 %4956
      %4958 = vrot.lane.b32.xlu0 %v4402, 12
      %v4959 = vpop.permute.xlu0 %4958
      %4960 = vrot.lane.b32.xlu0 %v4404, 12
      %v4961 = vpop.permute.xlu0 %4960
      %4962 = vrot.lane.b32.xlu0 %v4405, 12
      %v4963 = vpop.permute.xlu0 %4962
      %4964 = vrot.lane.b32.xlu0 %v4407, 12
      %v4965 = vpop.permute.xlu0 %4964
      %4966 = vrot.lane.b32.xlu0 %v4408, 12
      %v4967 = vpop.permute.xlu0 %4966
      %4968 = vrot.lane.b32.xlu0 %v4410, 12
      %v4969 = vpop.permute.xlu0 %4968
      %4970 = vrot.lane.b32.xlu0 %v4411, 12
      %v4971 = vpop.permute.xlu0 %4970
      %4972 = vrot.lane.b32.xlu0 %v4413, 12
      %v4973 = vpop.permute.xlu0 %4972
      %4974 = vrot.lane.b32.xlu0 %v4414, 12
      %v4975 = vpop.permute.xlu0 %4974
      %4976 = vrot.lane.b32.xlu0 %v4416, 12
      %v4977 = vpop.permute.xlu0 %4976
      %4978 = vrot.lane.b32.xlu0 %v4417, 12
      %v4979 = vpop.permute.xlu0 %4978
      %4980 = vrot.lane.b32.xlu0 %v4419, 12
      %v4981 = vpop.permute.xlu0 %4980
      %4982 = vrot.lane.b32.xlu0 %v4420, 12
      %v4983 = vpop.permute.xlu0 %4982
      %4984 = vrot.lane.b32.xlu0 %v4422, 12
      %v4985 = vpop.permute.xlu0 %4984
      %4986 = vrot.lane.b32.xlu0 %v4423, 12
      %v4987 = vpop.permute.xlu0 %4986
      %4988 = vrot.lane.b32.xlu0 %v4425, 12
      %v4989 = vpop.permute.xlu0 %4988
      %4990 = vrot.lane.b32.xlu0 %v4426, 12
      %v4991 = vpop.permute.xlu0 %4990
      %4992 = vrot.lane.b32.xlu0 %v4428, 12
      %v4993 = vpop.permute.xlu0 %4992
      %4994 = vrot.lane.b32.xlu0 %v4429, 12
      %v4995 = vpop.permute.xlu0 %4994
      %5028 = vst.msk [vmem:[#allocation3] sm:$0xff] %vm985, %v4933
      %5029 = vst.msk [vmem:[#allocation3 + $0x8] sm:$0xff] %vm985, %v4935
      %5030 = vst.msk [vmem:[#allocation3 + $0x10] sm:$0xff] %vm985, %v4937
      %5031 = vst.msk [vmem:[#allocation3 + $0x18] sm:$0xff] %vm985, %v4939
      %5032 = vst.msk [vmem:[#allocation3 + $0x20] sm:$0xff] %vm985, %v4941
      %5033 = vst.msk [vmem:[#allocation3 + $0x28] sm:$0xff] %vm985, %v4943
      %5034 = vst.msk [vmem:[#allocation3 + $0x30] sm:$0xff] %vm985, %v4945
      %5035 = vst.msk [vmem:[#allocation3 + $0x38] sm:$0xff] %vm985, %v4947
      %5036 = vst.msk [vmem:[#allocation3 + $0x40] sm:$0xff] %vm985, %v4949
      %5037 = vst.msk [vmem:[#allocation3 + $0x48] sm:$0xff] %vm985, %v4951
      %5038 = vst.msk [vmem:[#allocation3 + $0x50] sm:$0xff] %vm985, %v4953
      %5039 = vst.msk [vmem:[#allocation3 + $0x58] sm:$0xff] %vm985, %v4955
      %5040 = vst.msk [vmem:[#allocation3 + $0x60] sm:$0xff] %vm985, %v4957
      %5041 = vst.msk [vmem:[#allocation3 + $0x68] sm:$0xff] %vm985, %v4959
      %5042 = vst.msk [vmem:[#allocation3 + $0x70] sm:$0xff] %vm985, %v4961
      %5043 = vst.msk [vmem:[#allocation3 + $0x78] sm:$0xff] %vm985, %v4963
      %5044 = vst.msk [vmem:[#allocation3 + $0x80] sm:$0xff] %vm985, %v4965
      %5045 = vst.msk [vmem:[#allocation3 + $0x88] sm:$0xff] %vm985, %v4967
      %5046 = vst.msk [vmem:[#allocation3 + $0x90] sm:$0xff] %vm985, %v4969
      %5047 = vst.msk [vmem:[#allocation3 + $0x98] sm:$0xff] %vm985, %v4971
      %5048 = vst.msk [vmem:[#allocation3 + $0xa0] sm:$0xff] %vm985, %v4973
      %5049 = vst.msk [vmem:[#allocation3 + $0xa8] sm:$0xff] %vm985, %v4975
      %5050 = vst.msk [vmem:[#allocation3 + $0xb0] sm:$0xff] %vm985, %v4977
      %5051 = vst.msk [vmem:[#allocation3 + $0xb8] sm:$0xff] %vm985, %v4979
      %5052 = vst.msk [vmem:[#allocation3 + $0xc0] sm:$0xff] %vm985, %v4981
      %5053 = vst.msk [vmem:[#allocation3 + $0xc8] sm:$0xff] %vm985, %v4983
      %5054 = vst.msk [vmem:[#allocation3 + $0xd0] sm:$0xff] %vm985, %v4985
      %5055 = vst.msk [vmem:[#allocation3 + $0xd8] sm:$0xff] %vm985, %v4987
      %5056 = vst.msk [vmem:[#allocation3 + $0xe0] sm:$0xff] %vm985, %v4989
      %5057 = vst.msk [vmem:[#allocation3 + $0xe8] sm:$0xff] %vm985, %v4991
      %5058 = vst.msk [vmem:[#allocation3 + $0xf0] sm:$0xff] %vm985, %v4993
      %5059 = vst.msk [vmem:[#allocation3 + $0xf8] sm:$0xff] %vm985, %v4995
      %v5061 = vrot.slane %v4428, 1
      %v5062 = vrot.slane %v4429, 1
      %v5063 = vsel %vm467, %v5061, %v5062
      %v5064 = vrot.slane %v4430, 1
      %v5065 = vsel %vm467, %v5062, %v5064
      %5066 = vrot.lane.b32.xlu0 %v4521, 16
      %v5067 = vpop.permute.xlu0 %5066
      %5068 = vrot.lane.b32.xlu0 %v4523, 16
      %v5069 = vpop.permute.xlu0 %5068
      %5070 = vrot.lane.b32.xlu0 %v4526, 16
      %v5071 = vpop.permute.xlu0 %5070
      %5072 = vrot.lane.b32.xlu0 %v4528, 16
      %v5073 = vpop.permute.xlu0 %5072
      %5074 = vrot.lane.b32.xlu0 %v4531, 16
      %v5075 = vpop.permute.xlu0 %5074
      %5076 = vrot.lane.b32.xlu0 %v4533, 16
      %v5077 = vpop.permute.xlu0 %5076
      %5078 = vrot.lane.b32.xlu0 %v4536, 16
      %v5079 = vpop.permute.xlu0 %5078
      %5080 = vrot.lane.b32.xlu0 %v4538, 16
      %v5081 = vpop.permute.xlu0 %5080
      %5082 = vrot.lane.b32.xlu0 %v4541, 16
      %v5083 = vpop.permute.xlu0 %5082
      %5084 = vrot.lane.b32.xlu0 %v4543, 16
      %v5085 = vpop.permute.xlu0 %5084
      %5086 = vrot.lane.b32.xlu0 %v4546, 16
      %v5087 = vpop.permute.xlu0 %5086
      %5088 = vrot.lane.b32.xlu0 %v4548, 16
      %v5089 = vpop.permute.xlu0 %5088
      %5090 = vrot.lane.b32.xlu0 %v4551, 16
      %v5091 = vpop.permute.xlu0 %5090
      %5092 = vrot.lane.b32.xlu0 %v4553, 16
      %v5093 = vpop.permute.xlu0 %5092
      %5094 = vrot.lane.b32.xlu0 %v4556, 16
      %v5095 = vpop.permute.xlu0 %5094
      %5096 = vrot.lane.b32.xlu0 %v4558, 16
      %v5097 = vpop.permute.xlu0 %5096
      %5098 = vrot.lane.b32.xlu0 %v4561, 16
      %v5099 = vpop.permute.xlu0 %5098
      %5100 = vrot.lane.b32.xlu0 %v4563, 16
      %v5101 = vpop.permute.xlu0 %5100
      %5102 = vrot.lane.b32.xlu0 %v4566, 16
      %v5103 = vpop.permute.xlu0 %5102
      %5104 = vrot.lane.b32.xlu0 %v4568, 16
      %v5105 = vpop.permute.xlu0 %5104
      %5106 = vrot.lane.b32.xlu0 %v4571, 16
      %v5107 = vpop.permute.xlu0 %5106
      %5108 = vrot.lane.b32.xlu0 %v4573, 16
      %v5109 = vpop.permute.xlu0 %5108
      %5110 = vrot.lane.b32.xlu0 %v4576, 16
      %v5111 = vpop.permute.xlu0 %5110
      %5112 = vrot.lane.b32.xlu0 %v4578, 16
      %v5113 = vpop.permute.xlu0 %5112
      %5114 = vrot.lane.b32.xlu0 %v4581, 16
      %v5115 = vpop.permute.xlu0 %5114
      %5116 = vrot.lane.b32.xlu0 %v4583, 16
      %v5117 = vpop.permute.xlu0 %5116
      %5118 = vrot.lane.b32.xlu0 %v4586, 16
      %v5119 = vpop.permute.xlu0 %5118
      %5120 = vrot.lane.b32.xlu0 %v4588, 16
      %v5121 = vpop.permute.xlu0 %5120
      %5122 = vrot.lane.b32.xlu0 %v4591, 16
      %v5123 = vpop.permute.xlu0 %5122
      %5124 = vrot.lane.b32.xlu0 %v4593, 16
      %v5125 = vpop.permute.xlu0 %5124
      %5126 = vrot.lane.b32.xlu0 %v5063, 16
      %v5127 = vpop.permute.xlu0 %5126
      %5128 = vrot.lane.b32.xlu0 %v5065, 16
      %v5129 = vpop.permute.xlu0 %5128
      %5162 = vst.msk [vmem:[#allocation3] sm:$0xff] %vm1120, %v5067
      %5163 = vst.msk [vmem:[#allocation3 + $0x8] sm:$0xff] %vm1120, %v5069
      %5164 = vst.msk [vmem:[#allocation3 + $0x10] sm:$0xff] %vm1120, %v5071
      %5165 = vst.msk [vmem:[#allocation3 + $0x18] sm:$0xff] %vm1120, %v5073
      %5166 = vst.msk [vmem:[#allocation3 + $0x20] sm:$0xff] %vm1120, %v5075
      %5167 = vst.msk [vmem:[#allocation3 + $0x28] sm:$0xff] %vm1120, %v5077
      %5168 = vst.msk [vmem:[#allocation3 + $0x30] sm:$0xff] %vm1120, %v5079
      %5169 = vst.msk [vmem:[#allocation3 + $0x38] sm:$0xff] %vm1120, %v5081
      %5170 = vst.msk [vmem:[#allocation3 + $0x40] sm:$0xff] %vm1120, %v5083
      %5171 = vst.msk [vmem:[#allocation3 + $0x48] sm:$0xff] %vm1120, %v5085
      %5172 = vst.msk [vmem:[#allocation3 + $0x50] sm:$0xff] %vm1120, %v5087
      %5173 = vst.msk [vmem:[#allocation3 + $0x58] sm:$0xff] %vm1120, %v5089
      %5174 = vst.msk [vmem:[#allocation3 + $0x60] sm:$0xff] %vm1120, %v5091
      %5175 = vst.msk [vmem:[#allocation3 + $0x68] sm:$0xff] %vm1120, %v5093
      %5176 = vst.msk [vmem:[#allocation3 + $0x70] sm:$0xff] %vm1120, %v5095
      %5177 = vst.msk [vmem:[#allocation3 + $0x78] sm:$0xff] %vm1120, %v5097
      %5178 = vst.msk [vmem:[#allocation3 + $0x80] sm:$0xff] %vm1120, %v5099
      %5179 = vst.msk [vmem:[#allocation3 + $0x88] sm:$0xff] %vm1120, %v5101
      %5180 = vst.msk [vmem:[#allocation3 + $0x90] sm:$0xff] %vm1120, %v5103
      %5181 = vst.msk [vmem:[#allocation3 + $0x98] sm:$0xff] %vm1120, %v5105
      %5182 = vst.msk [vmem:[#allocation3 + $0xa0] sm:$0xff] %vm1120, %v5107
      %5183 = vst.msk [vmem:[#allocation3 + $0xa8] sm:$0xff] %vm1120, %v5109
      %5184 = vst.msk [vmem:[#allocation3 + $0xb0] sm:$0xff] %vm1120, %v5111
      %5185 = vst.msk [vmem:[#allocation3 + $0xb8] sm:$0xff] %vm1120, %v5113
      %5186 = vst.msk [vmem:[#allocation3 + $0xc0] sm:$0xff] %vm1120, %v5115
      %5187 = vst.msk [vmem:[#allocation3 + $0xc8] sm:$0xff] %vm1120, %v5117
      %5188 = vst.msk [vmem:[#allocation3 + $0xd0] sm:$0xff] %vm1120, %v5119
      %5189 = vst.msk [vmem:[#allocation3 + $0xd8] sm:$0xff] %vm1120, %v5121
      %5190 = vst.msk [vmem:[#allocation3 + $0xe0] sm:$0xff] %vm1120, %v5123
      %5191 = vst.msk [vmem:[#allocation3 + $0xe8] sm:$0xff] %vm1120, %v5125
      %5192 = vst.msk [vmem:[#allocation3 + $0xf0] sm:$0xff] %vm1120, %v5127
      %5193 = vst.msk [vmem:[#allocation3 + $0xf8] sm:$0xff] %vm1120, %v5129
      %v5194 = vrot.slane %v4428, 2
      %v5195 = vrot.slane %v4429, 2
      %v5196 = vsel %vm677, %v5194, %v5195
      %v5197 = vrot.slane %v4430, 2
      %v5198 = vsel %vm677, %v5195, %v5197
      %5199 = vrot.lane.b32.xlu0 %v4729, 20
      %v5200 = vpop.permute.xlu0 %5199
      %5201 = vrot.lane.b32.xlu0 %v4731, 20
      %v5202 = vpop.permute.xlu0 %5201
      %5203 = vrot.lane.b32.xlu0 %v4734, 20
      %v5204 = vpop.permute.xlu0 %5203
      %5205 = vrot.lane.b32.xlu0 %v4736, 20
      %v5206 = vpop.permute.xlu0 %5205
      %5207 = vrot.lane.b32.xlu0 %v4739, 20
      %v5208 = vpop.permute.xlu0 %5207
      %5209 = vrot.lane.b32.xlu0 %v4741, 20
      %v5210 = vpop.permute.xlu0 %5209
      %5211 = vrot.lane.b32.xlu0 %v4744, 20
      %v5212 = vpop.permute.xlu0 %5211
      %5213 = vrot.lane.b32.xlu0 %v4746, 20
      %v5214 = vpop.permute.xlu0 %5213
      %5215 = vrot.lane.b32.xlu0 %v4749, 20
      %v5216 = vpop.permute.xlu0 %5215
      %5217 = vrot.lane.b32.xlu0 %v4751, 20
      %v5218 = vpop.permute.xlu0 %5217
      %5219 = vrot.lane.b32.xlu0 %v4754, 20
      %v5220 = vpop.permute.xlu0 %5219
      %5221 = vrot.lane.b32.xlu0 %v4756, 20
      %v5222 = vpop.permute.xlu0 %5221
      %5223 = vrot.lane.b32.xlu0 %v4759, 20
      %v5224 = vpop.permute.xlu0 %5223
      %5225 = vrot.lane.b32.xlu0 %v4761, 20
      %v5226 = vpop.permute.xlu0 %5225
      %5227 = vrot.lane.b32.xlu0 %v4764, 20
      %v5228 = vpop.permute.xlu0 %5227
      %5229 = vrot.lane.b32.xlu0 %v4766, 20
      %v5230 = vpop.permute.xlu0 %5229
      %5231 = vrot.lane.b32.xlu0 %v4769, 20
      %v5232 = vpop.permute.xlu0 %5231
      %5233 = vrot.lane.b32.xlu0 %v4771, 20
      %v5234 = vpop.permute.xlu0 %5233
      %5235 = vrot.lane.b32.xlu0 %v4774, 20
      %v5236 = vpop.permute.xlu0 %5235
      %5237 = vrot.lane.b32.xlu0 %v4776, 20
      %v5238 = vpop.permute.xlu0 %5237
      %5239 = vrot.lane.b32.xlu0 %v4779, 20
      %v5240 = vpop.permute.xlu0 %5239
      %5241 = vrot.lane.b32.xlu0 %v4781, 20
      %v5242 = vpop.permute.xlu0 %5241
      %5243 = vrot.lane.b32.xlu0 %v4784, 20
      %v5244 = vpop.permute.xlu0 %5243
      %5245 = vrot.lane.b32.xlu0 %v4786, 20
      %v5246 = vpop.permute.xlu0 %5245
      %5247 = vrot.lane.b32.xlu0 %v4789, 20
      %v5248 = vpop.permute.xlu0 %5247
      %5249 = vrot.lane.b32.xlu0 %v4791, 20
      %v5250 = vpop.permute.xlu0 %5249
      %5251 = vrot.lane.b32.xlu0 %v4794, 20
      %v5252 = vpop.permute.xlu0 %5251
      %5253 = vrot.lane.b32.xlu0 %v4796, 20
      %v5254 = vpop.permute.xlu0 %5253
      %5255 = vrot.lane.b32.xlu0 %v4799, 20
      %v5256 = vpop.permute.xlu0 %5255
      %5257 = vrot.lane.b32.xlu0 %v4801, 20
      %v5258 = vpop.permute.xlu0 %5257
      %5259 = vrot.lane.b32.xlu0 %v5196, 20
      %v5260 = vpop.permute.xlu0 %5259
      %5261 = vrot.lane.b32.xlu0 %v5198, 20
      %v5262 = vpop.permute.xlu0 %5261
      %5295 = vst.msk [vmem:[#allocation3] sm:$0xff] %vm1254, %v5200
      %5296 = vst.msk [vmem:[#allocation3 + $0x8] sm:$0xff] %vm1254, %v5202
      %5297 = vst.msk [vmem:[#allocation3 + $0x10] sm:$0xff] %vm1254, %v5204
      %5298 = vst.msk [vmem:[#allocation3 + $0x18] sm:$0xff] %vm1254, %v5206
      %5299 = vst.msk [vmem:[#allocation3 + $0x20] sm:$0xff] %vm1254, %v5208
      %5300 = vst.msk [vmem:[#allocation3 + $0x28] sm:$0xff] %vm1254, %v5210
      %5301 = vst.msk [vmem:[#allocation3 + $0x30] sm:$0xff] %vm1254, %v5212
      %5302 = vst.msk [vmem:[#allocation3 + $0x38] sm:$0xff] %vm1254, %v5214
      %5303 = vst.msk [vmem:[#allocation3 + $0x40] sm:$0xff] %vm1254, %v5216
      %5304 = vst.msk [vmem:[#allocation3 + $0x48] sm:$0xff] %vm1254, %v5218
      %5305 = vst.msk [vmem:[#allocation3 + $0x50] sm:$0xff] %vm1254, %v5220
      %5306 = vst.msk [vmem:[#allocation3 + $0x58] sm:$0xff] %vm1254, %v5222
      %5307 = vst.msk [vmem:[#allocation3 + $0x60] sm:$0xff] %vm1254, %v5224
      %5308 = vst.msk [vmem:[#allocation3 + $0x68] sm:$0xff] %vm1254, %v5226
      %5309 = vst.msk [vmem:[#allocation3 + $0x70] sm:$0xff] %vm1254, %v5228
      %5310 = vst.msk [vmem:[#allocation3 + $0x78] sm:$0xff] %vm1254, %v5230
      %5311 = vst.msk [vmem:[#allocation3 + $0x80] sm:$0xff] %vm1254, %v5232
      %5312 = vst.msk [vmem:[#allocation3 + $0x88] sm:$0xff] %vm1254, %v5234
      %5313 = vst.msk [vmem:[#allocation3 + $0x90] sm:$0xff] %vm1254, %v5236
      %5314 = vst.msk [vmem:[#allocation3 + $0x98] sm:$0xff] %vm1254, %v5238
      %5315 = vst.msk [vmem:[#allocation3 + $0xa0] sm:$0xff] %vm1254, %v5240
      %5316 = vst.msk [vmem:[#allocation3 + $0xa8] sm:$0xff] %vm1254, %v5242
      %5317 = vst.msk [vmem:[#allocation3 + $0xb0] sm:$0xff] %vm1254, %v5244
      %5318 = vst.msk [vmem:[#allocation3 + $0xb8] sm:$0xff] %vm1254, %v5246
      %5319 = vst.msk [vmem:[#allocation3 + $0xc0] sm:$0xff] %vm1254, %v5248
      %5320 = vst.msk [vmem:[#allocation3 + $0xc8] sm:$0xff] %vm1254, %v5250
      %5321 = vst.msk [vmem:[#allocation3 + $0xd0] sm:$0xff] %vm1254, %v5252
      %5322 = vst.msk [vmem:[#allocation3 + $0xd8] sm:$0xff] %vm1254, %v5254
      %5323 = vst.msk [vmem:[#allocation3 + $0xe0] sm:$0xff] %vm1254, %v5256
      %5324 = vst.msk [vmem:[#allocation3 + $0xe8] sm:$0xff] %vm1254, %v5258
      %5325 = vst.msk [vmem:[#allocation3 + $0xf0] sm:$0xff] %vm1254, %v5260
      %5326 = vst.msk [vmem:[#allocation3 + $0xf8] sm:$0xff] %vm1254, %v5262
      %5329 = vrot.lane.b32.xlu0 %v4386, 24
      %v5330 = vpop.permute.xlu0 %5329
      %5331 = vrot.lane.b32.xlu0 %v4387, 24
      %v5332 = vpop.permute.xlu0 %5331
      %5333 = vrot.lane.b32.xlu0 %v4389, 24
      %v5334 = vpop.permute.xlu0 %5333
      %5335 = vrot.lane.b32.xlu0 %v4390, 24
      %v5336 = vpop.permute.xlu0 %5335
      %5337 = vrot.lane.b32.xlu0 %v4392, 24
      %v5338 = vpop.permute.xlu0 %5337
      %5339 = vrot.lane.b32.xlu0 %v4393, 24
      %v5340 = vpop.permute.xlu0 %5339
      %5341 = vrot.lane.b32.xlu0 %v4395, 24
      %v5342 = vpop.permute.xlu0 %5341
      %5343 = vrot.lane.b32.xlu0 %v4396, 24
      %v5344 = vpop.permute.xlu0 %5343
      %5345 = vrot.lane.b32.xlu0 %v4398, 24
      %v5346 = vpop.permute.xlu0 %5345
      %5347 = vrot.lane.b32.xlu0 %v4399, 24
      %v5348 = vpop.permute.xlu0 %5347
      %5349 = vrot.lane.b32.xlu0 %v4401, 24
      %v5350 = vpop.permute.xlu0 %5349
      %5351 = vrot.lane.b32.xlu0 %v4402, 24
      %v5352 = vpop.permute.xlu0 %5351
      %5353 = vrot.lane.b32.xlu0 %v4404, 24
      %v5354 = vpop.permute.xlu0 %5353
      %5355 = vrot.lane.b32.xlu0 %v4405, 24
      %v5356 = vpop.permute.xlu0 %5355
      %5357 = vrot.lane.b32.xlu0 %v4407, 24
      %v5358 = vpop.permute.xlu0 %5357
      %5359 = vrot.lane.b32.xlu0 %v4408, 24
      %v5360 = vpop.permute.xlu0 %5359
      %5361 = vrot.lane.b32.xlu0 %v4410, 24
      %v5362 = vpop.permute.xlu0 %5361
      %5363 = vrot.lane.b32.xlu0 %v4411, 24
      %v5364 = vpop.permute.xlu0 %5363
      %5365 = vrot.lane.b32.xlu0 %v4413, 24
      %v5366 = vpop.permute.xlu0 %5365
      %5367 = vrot.lane.b32.xlu0 %v4414, 24
      %v5368 = vpop.permute.xlu0 %5367
      %5369 = vrot.lane.b32.xlu0 %v4416, 24
      %v5370 = vpop.permute.xlu0 %5369
      %5371 = vrot.lane.b32.xlu0 %v4417, 24
      %v5372 = vpop.permute.xlu0 %5371
      %5373 = vrot.lane.b32.xlu0 %v4419, 24
      %v5374 = vpop.permute.xlu0 %5373
      %5375 = vrot.lane.b32.xlu0 %v4420, 24
      %v5376 = vpop.permute.xlu0 %5375
      %5377 = vrot.lane.b32.xlu0 %v4422, 24
      %v5378 = vpop.permute.xlu0 %5377
      %5379 = vrot.lane.b32.xlu0 %v4423, 24
      %v5380 = vpop.permute.xlu0 %5379
      %5381 = vrot.lane.b32.xlu0 %v4425, 24
      %v5382 = vpop.permute.xlu0 %5381
      %5383 = vrot.lane.b32.xlu0 %v4426, 24
      %v5384 = vpop.permute.xlu0 %5383
      %5385 = vrot.lane.b32.xlu0 %v4428, 24
      %v5386 = vpop.permute.xlu0 %5385
      %5387 = vrot.lane.b32.xlu0 %v4429, 24
      %v5388 = vpop.permute.xlu0 %5387
      %5389 = vrot.lane.b32.xlu0 %v4431, 24
      %v5390 = vpop.permute.xlu0 %5389
      %5391 = vrot.lane.b32.xlu0 %v4432, 24
      %v5392 = vpop.permute.xlu0 %5391
      %5425 = vst.msk [vmem:[#allocation3] sm:$0xff] %vm1385, %v5330
      %5426 = vst.msk [vmem:[#allocation3 + $0x8] sm:$0xff] %vm1385, %v5332
      %5427 = vst.msk [vmem:[#allocation3 + $0x10] sm:$0xff] %vm1385, %v5334
      %5428 = vst.msk [vmem:[#allocation3 + $0x18] sm:$0xff] %vm1385, %v5336
      %5429 = vst.msk [vmem:[#allocation3 + $0x20] sm:$0xff] %vm1385, %v5338
      %5430 = vst.msk [vmem:[#allocation3 + $0x28] sm:$0xff] %vm1385, %v5340
      %5431 = vst.msk [vmem:[#allocation3 + $0x30] sm:$0xff] %vm1385, %v5342
      %5432 = vst.msk [vmem:[#allocation3 + $0x38] sm:$0xff] %vm1385, %v5344
      %5433 = vst.msk [vmem:[#allocation3 + $0x40] sm:$0xff] %vm1385, %v5346
      %5434 = vst.msk [vmem:[#allocation3 + $0x48] sm:$0xff] %vm1385, %v5348
      %5435 = vst.msk [vmem:[#allocation3 + $0x50] sm:$0xff] %vm1385, %v5350
      %5436 = vst.msk [vmem:[#allocation3 + $0x58] sm:$0xff] %vm1385, %v5352
      %5437 = vst.msk [vmem:[#allocation3 + $0x60] sm:$0xff] %vm1385, %v5354
      %5438 = vst.msk [vmem:[#allocation3 + $0x68] sm:$0xff] %vm1385, %v5356
      %5439 = vst.msk [vmem:[#allocation3 + $0x70] sm:$0xff] %vm1385, %v5358
      %5440 = vst.msk [vmem:[#allocation3 + $0x78] sm:$0xff] %vm1385, %v5360
      %5441 = vst.msk [vmem:[#allocation3 + $0x80] sm:$0xff] %vm1385, %v5362
      %5442 = vst.msk [vmem:[#allocation3 + $0x88] sm:$0xff] %vm1385, %v5364
      %5443 = vst.msk [vmem:[#allocation3 + $0x90] sm:$0xff] %vm1385, %v5366
      %5444 = vst.msk [vmem:[#allocation3 + $0x98] sm:$0xff] %vm1385, %v5368
      %5445 = vst.msk [vmem:[#allocation3 + $0xa0] sm:$0xff] %vm1385, %v5370
      %5446 = vst.msk [vmem:[#allocation3 + $0xa8] sm:$0xff] %vm1385, %v5372
      %5447 = vst.msk [vmem:[#allocation3 + $0xb0] sm:$0xff] %vm1385, %v5374
      %5448 = vst.msk [vmem:[#allocation3 + $0xb8] sm:$0xff] %vm1385, %v5376
      %5449 = vst.msk [vmem:[#allocation3 + $0xc0] sm:$0xff] %vm1385, %v5378
      %5450 = vst.msk [vmem:[#allocation3 + $0xc8] sm:$0xff] %vm1385, %v5380
      %5451 = vst.msk [vmem:[#allocation3 + $0xd0] sm:$0xff] %vm1385, %v5382
      %5452 = vst.msk [vmem:[#allocation3 + $0xd8] sm:$0xff] %vm1385, %v5384
      %5453 = vst.msk [vmem:[#allocation3 + $0xe0] sm:$0xff] %vm1385, %v5386
      %5454 = vst.msk [vmem:[#allocation3 + $0xe8] sm:$0xff] %vm1385, %v5388
      %5455 = vst.msk [vmem:[#allocation3 + $0xf0] sm:$0xff] %vm1385, %v5390
      %5456 = vst.msk [vmem:[#allocation3 + $0xf8] sm:$0xff] %vm1385, %v5392
      %v5458 = vrot.slane %v4431, 1
      %v5459 = vrot.slane %v4432, 1
      %v5460 = vsel %vm467, %v5458, %v5459
      %v5461 = vrot.slane %v4433, 1
      %v5462 = vsel %vm467, %v5459, %v5461
      %5463 = vrot.lane.b32.xlu0 %v4526, 28
      %v5464 = vpop.permute.xlu0 %5463
      %5465 = vrot.lane.b32.xlu0 %v4528, 28
      %v5466 = vpop.permute.xlu0 %5465
      %5467 = vrot.lane.b32.xlu0 %v4531, 28
      %v5468 = vpop.permute.xlu0 %5467
      %5469 = vrot.lane.b32.xlu0 %v4533, 28
      %v5470 = vpop.permute.xlu0 %5469
      %5471 = vrot.lane.b32.xlu0 %v4536, 28
      %v5472 = vpop.permute.xlu0 %5471
      %5473 = vrot.lane.b32.xlu0 %v4538, 28
      %v5474 = vpop.permute.xlu0 %5473
      %5475 = vrot.lane.b32.xlu0 %v4541, 28
      %v5476 = vpop.permute.xlu0 %5475
      %5477 = vrot.lane.b32.xlu0 %v4543, 28
      %v5478 = vpop.permute.xlu0 %5477
      %5479 = vrot.lane.b32.xlu0 %v4546, 28
      %v5480 = vpop.permute.xlu0 %5479
      %5481 = vrot.lane.b32.xlu0 %v4548, 28
      %v5482 = vpop.permute.xlu0 %5481
      %5483 = vrot.lane.b32.xlu0 %v4551, 28
      %v5484 = vpop.permute.xlu0 %5483
      %5485 = vrot.lane.b32.xlu0 %v4553, 28
      %v5486 = vpop.permute.xlu0 %5485
      %5487 = vrot.lane.b32.xlu0 %v4556, 28
      %v5488 = vpop.permute.xlu0 %5487
      %5489 = vrot.lane.b32.xlu0 %v4558, 28
      %v5490 = vpop.permute.xlu0 %5489
      %5491 = vrot.lane.b32.xlu0 %v4561, 28
      %v5492 = vpop.permute.xlu0 %5491
      %5493 = vrot.lane.b32.xlu0 %v4563, 28
      %v5494 = vpop.permute.xlu0 %5493
      %5495 = vrot.lane.b32.xlu0 %v4566, 28
      %v5496 = vpop.permute.xlu0 %5495
      %5497 = vrot.lane.b32.xlu0 %v4568, 28
      %v5498 = vpop.permute.xlu0 %5497
      %5499 = vrot.lane.b32.xlu0 %v4571, 28
      %v5500 = vpop.permute.xlu0 %5499
      %5501 = vrot.lane.b32.xlu0 %v4573, 28
      %v5502 = vpop.permute.xlu0 %5501
      %5503 = vrot.lane.b32.xlu0 %v4576, 28
      %v5504 = vpop.permute.xlu0 %5503
      %5505 = vrot.lane.b32.xlu0 %v4578, 28
      %v5506 = vpop.permute.xlu0 %5505
      %5507 = vrot.lane.b32.xlu0 %v4581, 28
      %v5508 = vpop.permute.xlu0 %5507
      %5509 = vrot.lane.b32.xlu0 %v4583, 28
      %v5510 = vpop.permute.xlu0 %5509
      %5511 = vrot.lane.b32.xlu0 %v4586, 28
      %v5512 = vpop.permute.xlu0 %5511
      %5513 = vrot.lane.b32.xlu0 %v4588, 28
      %v5514 = vpop.permute.xlu0 %5513
      %5515 = vrot.lane.b32.xlu0 %v4591, 28
      %v5516 = vpop.permute.xlu0 %5515
      %5517 = vrot.lane.b32.xlu0 %v4593, 28
      %v5518 = vpop.permute.xlu0 %5517
      %5519 = vrot.lane.b32.xlu0 %v5063, 28
      %v5520 = vpop.permute.xlu0 %5519
      %5521 = vrot.lane.b32.xlu0 %v5065, 28
      %v5522 = vpop.permute.xlu0 %5521
      %5523 = vrot.lane.b32.xlu0 %v5460, 28
      %v5524 = vpop.permute.xlu0 %5523
      %5525 = vrot.lane.b32.xlu0 %v5462, 28
      %v5526 = vpop.permute.xlu0 %5525
      %5559 = vst.msk [vmem:[#allocation3] sm:$0xff] %vm1520, %v5464
      %5560 = vst.msk [vmem:[#allocation3 + $0x8] sm:$0xff] %vm1520, %v5466
      %5561 = vst.msk [vmem:[#allocation3 + $0x10] sm:$0xff] %vm1520, %v5468
      %5562 = vst.msk [vmem:[#allocation3 + $0x18] sm:$0xff] %vm1520, %v5470
      %5563 = vst.msk [vmem:[#allocation3 + $0x20] sm:$0xff] %vm1520, %v5472
      %5564 = vst.msk [vmem:[#allocation3 + $0x28] sm:$0xff] %vm1520, %v5474
      %5565 = vst.msk [vmem:[#allocation3 + $0x30] sm:$0xff] %vm1520, %v5476
      %5566 = vst.msk [vmem:[#allocation3 + $0x38] sm:$0xff] %vm1520, %v5478
      %5567 = vst.msk [vmem:[#allocation3 + $0x40] sm:$0xff] %vm1520, %v5480
      %5568 = vst.msk [vmem:[#allocation3 + $0x48] sm:$0xff] %vm1520, %v5482
      %5569 = vst.msk [vmem:[#allocation3 + $0x50] sm:$0xff] %vm1520, %v5484
      %5570 = vst.msk [vmem:[#allocation3 + $0x58] sm:$0xff] %vm1520, %v5486
      %5571 = vst.msk [vmem:[#allocation3 + $0x60] sm:$0xff] %vm1520, %v5488
      %5572 = vst.msk [vmem:[#allocation3 + $0x68] sm:$0xff] %vm1520, %v5490
      %5573 = vst.msk [vmem:[#allocation3 + $0x70] sm:$0xff] %vm1520, %v5492
      %5574 = vst.msk [vmem:[#allocation3 + $0x78] sm:$0xff] %vm1520, %v5494
      %5575 = vst.msk [vmem:[#allocation3 + $0x80] sm:$0xff] %vm1520, %v5496
      %5576 = vst.msk [vmem:[#allocation3 + $0x88] sm:$0xff] %vm1520, %v5498
      %5577 = vst.msk [vmem:[#allocation3 + $0x90] sm:$0xff] %vm1520, %v5500
      %5578 = vst.msk [vmem:[#allocation3 + $0x98] sm:$0xff] %vm1520, %v5502
      %5579 = vst.msk [vmem:[#allocation3 + $0xa0] sm:$0xff] %vm1520, %v5504
      %5580 = vst.msk [vmem:[#allocation3 + $0xa8] sm:$0xff] %vm1520, %v5506
      %5581 = vst.msk [vmem:[#allocation3 + $0xb0] sm:$0xff] %vm1520, %v5508
      %5582 = vst.msk [vmem:[#allocation3 + $0xb8] sm:$0xff] %vm1520, %v5510
      %5583 = vst.msk [vmem:[#allocation3 + $0xc0] sm:$0xff] %vm1520, %v5512
      %5584 = vst.msk [vmem:[#allocation3 + $0xc8] sm:$0xff] %vm1520, %v5514
      %5585 = vst.msk [vmem:[#allocation3 + $0xd0] sm:$0xff] %vm1520, %v5516
      %5586 = vst.msk [vmem:[#allocation3 + $0xd8] sm:$0xff] %vm1520, %v5518
      %5587 = vst.msk [vmem:[#allocation3 + $0xe0] sm:$0xff] %vm1520, %v5520
      %5588 = vst.msk [vmem:[#allocation3 + $0xe8] sm:$0xff] %vm1520, %v5522
      %5589 = vst.msk [vmem:[#allocation3 + $0xf0] sm:$0xff] %vm1520, %v5524
      %5590 = vst.msk [vmem:[#allocation3 + $0xf8] sm:$0xff] %vm1520, %v5526
      %v5591 = vrot.slane %v4431, 2
      %v5592 = vrot.slane %v4432, 2
      %v5593 = vsel %vm677, %v5591, %v5592
      %v5594 = vrot.slane %v4433, 2
      %v5595 = vsel %vm677, %v5592, %v5594
      %5596 = vrot.lane.b32.xlu0 %v4734, 32
      %v5597 = vpop.permute.xlu0 %5596
      %5598 = vrot.lane.b32.xlu0 %v4736, 32
      %v5599 = vpop.permute.xlu0 %5598
      %5600 = vrot.lane.b32.xlu0 %v4739, 32
      %v5601 = vpop.permute.xlu0 %5600
      %5602 = vrot.lane.b32.xlu0 %v4741, 32
      %v5603 = vpop.permute.xlu0 %5602
      %5604 = vrot.lane.b32.xlu0 %v4744, 32
      %v5605 = vpop.permute.xlu0 %5604
      %5606 = vrot.lane.b32.xlu0 %v4746, 32
      %v5607 = vpop.permute.xlu0 %5606
      %5608 = vrot.lane.b32.xlu0 %v4749, 32
      %v5609 = vpop.permute.xlu0 %5608
      %5610 = vrot.lane.b32.xlu0 %v4751, 32
      %v5611 = vpop.permute.xlu0 %5610
      %5612 = vrot.lane.b32.xlu0 %v4754, 32
      %v5613 = vpop.permute.xlu0 %5612
      %5614 = vrot.lane.b32.xlu0 %v4756, 32
      %v5615 = vpop.permute.xlu0 %5614
      %5616 = vrot.lane.b32.xlu0 %v4759, 32
      %v5617 = vpop.permute.xlu0 %5616
      %5618 = vrot.lane.b32.xlu0 %v4761, 32
      %v5619 = vpop.permute.xlu0 %5618
      %5620 = vrot.lane.b32.xlu0 %v4764, 32
      %v5621 = vpop.permute.xlu0 %5620
      %5622 = vrot.lane.b32.xlu0 %v4766, 32
      %v5623 = vpop.permute.xlu0 %5622
      %5624 = vrot.lane.b32.xlu0 %v4769, 32
      %v5625 = vpop.permute.xlu0 %5624
      %5626 = vrot.lane.b32.xlu0 %v4771, 32
      %v5627 = vpop.permute.xlu0 %5626
      %5628 = vrot.lane.b32.xlu0 %v4774, 32
      %v5629 = vpop.permute.xlu0 %5628
      %5630 = vrot.lane.b32.xlu0 %v4776, 32
      %v5631 = vpop.permute.xlu0 %5630
      %5632 = vrot.lane.b32.xlu0 %v4779, 32
      %v5633 = vpop.permute.xlu0 %5632
      %5634 = vrot.lane.b32.xlu0 %v4781, 32
      %v5635 = vpop.permute.xlu0 %5634
      %5636 = vrot.lane.b32.xlu0 %v4784, 32
      %v5637 = vpop.permute.xlu0 %5636
      %5638 = vrot.lane.b32.xlu0 %v4786, 32
      %v5639 = vpop.permute.xlu0 %5638
      %5640 = vrot.lane.b32.xlu0 %v4789, 32
      %v5641 = vpop.permute.xlu0 %5640
      %5642 = vrot.lane.b32.xlu0 %v4791, 32
      %v5643 = vpop.permute.xlu0 %5642
      %5644 = vrot.lane.b32.xlu0 %v4794, 32
      %v5645 = vpop.permute.xlu0 %5644
      %5646 = vrot.lane.b32.xlu0 %v4796, 32
      %v5647 = vpop.permute.xlu0 %5646
      %5648 = vrot.lane.b32.xlu0 %v4799, 32
      %v5649 = vpop.permute.xlu0 %5648
      %5650 = vrot.lane.b32.xlu0 %v4801, 32
      %v5651 = vpop.permute.xlu0 %5650
      %5652 = vrot.lane.b32.xlu0 %v5196, 32
      %v5653 = vpop.permute.xlu0 %5652
      %5654 = vrot.lane.b32.xlu0 %v5198, 32
      %v5655 = vpop.permute.xlu0 %5654
      %5656 = vrot.lane.b32.xlu0 %v5593, 32
      %v5657 = vpop.permute.xlu0 %5656
      %5658 = vrot.lane.b32.xlu0 %v5595, 32
      %v5659 = vpop.permute.xlu0 %5658
      %5692 = vst.msk [vmem:[#allocation3] sm:$0xff] %vm1654, %v5597
      %5693 = vst.msk [vmem:[#allocation3 + $0x8] sm:$0xff] %vm1654, %v5599
      %5694 = vst.msk [vmem:[#allocation3 + $0x10] sm:$0xff] %vm1654, %v5601
      %5695 = vst.msk [vmem:[#allocation3 + $0x18] sm:$0xff] %vm1654, %v5603
      %5696 = vst.msk [vmem:[#allocation3 + $0x20] sm:$0xff] %vm1654, %v5605
      %5697 = vst.msk [vmem:[#allocation3 + $0x28] sm:$0xff] %vm1654, %v5607
      %5698 = vst.msk [vmem:[#allocation3 + $0x30] sm:$0xff] %vm1654, %v5609
      %5699 = vst.msk [vmem:[#allocation3 + $0x38] sm:$0xff] %vm1654, %v5611
      %5700 = vst.msk [vmem:[#allocation3 + $0x40] sm:$0xff] %vm1654, %v5613
      %5701 = vst.msk [vmem:[#allocation3 + $0x48] sm:$0xff] %vm1654, %v5615
      %5702 = vst.msk [vmem:[#allocation3 + $0x50] sm:$0xff] %vm1654, %v5617
      %5703 = vst.msk [vmem:[#allocation3 + $0x58] sm:$0xff] %vm1654, %v5619
      %5704 = vst.msk [vmem:[#allocation3 + $0x60] sm:$0xff] %vm1654, %v5621
      %5705 = vst.msk [vmem:[#allocation3 + $0x68] sm:$0xff] %vm1654, %v5623
      %5706 = vst.msk [vmem:[#allocation3 + $0x70] sm:$0xff] %vm1654, %v5625
      %5707 = vst.msk [vmem:[#allocation3 + $0x78] sm:$0xff] %vm1654, %v5627
      %5708 = vst.msk [vmem:[#allocation3 + $0x80] sm:$0xff] %vm1654, %v5629
      %5709 = vst.msk [vmem:[#allocation3 + $0x88] sm:$0xff] %vm1654, %v5631
      %5710 = vst.msk [vmem:[#allocation3 + $0x90] sm:$0xff] %vm1654, %v5633
      %5711 = vst.msk [vmem:[#allocation3 + $0x98] sm:$0xff] %vm1654, %v5635
      %5712 = vst.msk [vmem:[#allocation3 + $0xa0] sm:$0xff] %vm1654, %v5637
      %5713 = vst.msk [vmem:[#allocation3 + $0xa8] sm:$0xff] %vm1654, %v5639
      %5714 = vst.msk [vmem:[#allocation3 + $0xb0] sm:$0xff] %vm1654, %v5641
      %5715 = vst.msk [vmem:[#allocation3 + $0xb8] sm:$0xff] %vm1654, %v5643
      %5716 = vst.msk [vmem:[#allocation3 + $0xc0] sm:$0xff] %vm1654, %v5645
      %5717 = vst.msk [vmem:[#allocation3 + $0xc8] sm:$0xff] %vm1654, %v5647
      %5718 = vst.msk [vmem:[#allocation3 + $0xd0] sm:$0xff] %vm1654, %v5649
      %5719 = vst.msk [vmem:[#allocation3 + $0xd8] sm:$0xff] %vm1654, %v5651
      %5720 = vst.msk [vmem:[#allocation3 + $0xe0] sm:$0xff] %vm1654, %v5653
      %5721 = vst.msk [vmem:[#allocation3 + $0xe8] sm:$0xff] %vm1654, %v5655
      %5722 = vst.msk [vmem:[#allocation3 + $0xf0] sm:$0xff] %vm1654, %v5657
      %5723 = vst.msk [vmem:[#allocation3 + $0xf8] sm:$0xff] %vm1654, %v5659
      %v5724 = vld [vmem:[#allocation3] sm:$0xff]
      %v5725 = vld [vmem:[#allocation3 + $0x8] sm:$0xff]
      %v5726 = vld [vmem:[#allocation3 + $0x10] sm:$0xff]
      %v5727 = vld [vmem:[#allocation3 + $0x18] sm:$0xff]
      %v5728 = vld [vmem:[#allocation3 + $0x20] sm:$0xff]
      %v5729 = vld [vmem:[#allocation3 + $0x28] sm:$0xff]
      %v5730 = vld [vmem:[#allocation3 + $0x30] sm:$0xff]
      %v5731 = vld [vmem:[#allocation3 + $0x38] sm:$0xff]
      %v5732 = vld [vmem:[#allocation3 + $0x40] sm:$0xff]
      %v5733 = vld [vmem:[#allocation3 + $0x48] sm:$0xff]
      %v5734 = vld [vmem:[#allocation3 + $0x50] sm:$0xff]
      %v5735 = vld [vmem:[#allocation3 + $0x58] sm:$0xff]
      %v5736 = vld [vmem:[#allocation3 + $0x60] sm:$0xff]
      %v5737 = vld [vmem:[#allocation3 + $0x68] sm:$0xff]
      %v5738 = vld [vmem:[#allocation3 + $0x70] sm:$0xff]
      %v5739 = vld [vmem:[#allocation3 + $0x78] sm:$0xff]
      %v5740 = vld [vmem:[#allocation3 + $0x80] sm:$0xff]
      %v5741 = vld [vmem:[#allocation3 + $0x88] sm:$0xff]
      %v5742 = vld [vmem:[#allocation3 + $0x90] sm:$0xff]
      %v5743 = vld [vmem:[#allocation3 + $0x98] sm:$0xff]
      %v5744 = vld [vmem:[#allocation3 + $0xa0] sm:$0xff]
      %v5745 = vld [vmem:[#allocation3 + $0xa8] sm:$0xff]
      %v5746 = vld [vmem:[#allocation3 + $0xb0] sm:$0xff]
      %v5747 = vld [vmem:[#allocation3 + $0xb8] sm:$0xff]
      %v5748 = vld [vmem:[#allocation3 + $0xc0] sm:$0xff]
      %v5749 = vld [vmem:[#allocation3 + $0xc8] sm:$0xff]
      %v5750 = vld [vmem:[#allocation3 + $0xd0] sm:$0xff]
      %v5751 = vld [vmem:[#allocation3 + $0xd8] sm:$0xff]
      %v5752 = vld [vmem:[#allocation3 + $0xe0] sm:$0xff]
      %v5753 = vld [vmem:[#allocation3 + $0xe8] sm:$0xff]
      %v5754 = vld [vmem:[#allocation3 + $0xf0] sm:$0xff]
      %v5755 = vld [vmem:[#allocation3 + $0xf8] sm:$0xff]
      %s5756 = scalar_lea.vmem %s1, 80
      %v5757 = vld [vmem:[%s5756] sm:$0xff]
      %v5758 = vld [vmem:[%s5756 + $0x8] sm:$0xff]
      %v5759 = vld [vmem:[%s5756 + $0x10] sm:$0xff]
      %v5760 = vld [vmem:[%s5756 + $0x18] sm:$0xff]
      %v5761 = vld [vmem:[%s5756 + $0x20] sm:$0xf]
      %v5762 = vlaneseq
      %v5763 = vshrl.u32 %v5762, 7
      %v5764 = vsub.s32 2, %v5763
      %v5765 = vrot.slane %v243, %v5764
      %v5767 = vsel %vm1728, %v5724, 0
      %v5770 = vsel %vm1728, %v5725, 0
      %v5773 = vsel %vm1728, %v5726, 0
      %v5776 = vsel %vm1728, %v5727, 0
      %v5779 = vsel %vm1728, %v5728, 0
      %v5782 = vsel %vm1728, %v5729, 0
      %v5785 = vsel %vm1728, %v5730, 0
      %v5788 = vsel %vm1728, %v5731, 0
      %v5791 = vsel %vm1728, %v5732, 0
      %v5794 = vsel %vm1728, %v5733, 0
      %v5797 = vsel %vm1728, %v5734, 0
      %v5800 = vsel %vm1728, %v5735, 0
      %v5803 = vsel %vm1728, %v5736, 0
      %v5806 = vsel %vm1728, %v5737, 0
      %v5809 = vsel %vm1728, %v5738, 0
      %v5812 = vsel %vm1728, %v5739, 0
      %v5815 = vsel %vm1728, %v5740, 0
      %v5818 = vsel %vm1728, %v5741, 0
      %v5821 = vsel %vm1728, %v5742, 0
      %v5824 = vsel %vm1728, %v5743, 0
      %v5827 = vsel %vm1728, %v5744, 0
      %v5830 = vsel %vm1728, %v5745, 0
      %v5833 = vsel %vm1728, %v5746, 0
      %v5836 = vsel %vm1728, %v5747, 0
      %v5839 = vsel %vm1728, %v5748, 0
      %v5842 = vsel %vm1728, %v5749, 0
      %v5845 = vsel %vm1728, %v5750, 0
      %v5848 = vsel %vm1728, %v5751, 0
      %v5851 = vsel %vm1728, %v5752, 0
      %v5854 = vsel %vm1728, %v5753, 0
      %v5857 = vsel %vm1728, %v5754, 0
      %v5860 = vsel %vm1728, %v5755, 0
      %v5863 = vsel %vm1825, %v5761, 0
      %5865 = vmatprep.subr.mxu0 0.0
      %5866 = vmatpush1.msra.mxu0 0.0
      %5867 = vmatprep.subr.mxu0 0.0
      %5868 = vmatpush1.msra.mxu0 0.0
      %5869 = vmatprep.subr.mxu0 0.0
      %5870 = vmatpush1.msra.mxu0 0.0
      %5871 = vmatprep.subr.mxu0 0.0
      %5872 = vmatpush1.msra.mxu0 0.0
      %5873 = vmatprep.subr.mxu0 0.0
      %5874 = vmatpush1.msra.mxu0 0.0
      %5875 = vmatprep.subr.mxu0 0.0
      %5876 = vmatpush1.msra.mxu0 0.0
      %5877 = vmatprep.subr.mxu0 0.0
      %5878 = vmatpush1.msra.mxu0 0.0
      %5879 = vmatprep.subr.mxu0 0.0
      %5880 = vmatpush1.msra.mxu0 0.0
      %5881 = vmatprep.subr.mxu0 0.0
      %5882 = vmatpush1.msra.mxu0 0.0
      %5883 = vmatprep.subr.mxu0 0.0
      %5884 = vmatpush1.msra.mxu0 0.0
      %5885 = vmatprep.subr.mxu0 0.0
      %5886 = vmatpush1.msra.mxu0 0.0
      %5887 = vmatprep.subr.mxu0 0.0
      %5888 = vmatpush1.msra.mxu0 %v5863
      %5889 = vmatprep.subr.mxu0 0.0
      %5890 = vmatpush1.msra.mxu0 %v5760
      %5891 = vmatprep.subr.mxu0 0.0
      %5892 = vmatpush1.msra.mxu0 %v5759
      %5893 = vmatprep.subr.mxu0 0.0
      %5894 = vmatpush1.msra.mxu0 %v5758
      %5895 = vmatprep.subr.mxu0 0.0
      %5896 = vmatpush1.msra.mxu0 %v5757
      %5897 = vmatprep.subr.mxu0 0.0
      %5898 = vmatpush2.msra.mxu0 0.0
      %5899 = vmatprep.subr.mxu0 0.0
      %5900 = vmatpush2.msra.mxu0 0.0
      %5901 = vmatprep.subr.mxu0 0.0
      %5902 = vmatpush2.msra.mxu0 0.0
      %5903 = vmatprep.subr.mxu0 0.0
      %5904 = vmatpush2.msra.mxu0 0.0
      %5905 = vmatprep.subr.mxu0 0.0
      %5906 = vmatpush2.msra.mxu0 0.0
      %5907 = vmatprep.subr.mxu0 0.0
      %5908 = vmatpush2.msra.mxu0 0.0
      %5909 = vmatprep.subr.mxu0 0.0
      %5910 = vmatpush2.msra.mxu0 0.0
      %5911 = vmatprep.subr.mxu0 0.0
      %5912 = vmatpush2.msra.mxu0 0.0
      %5913 = vmatprep.subr.mxu0 0.0
      %5914 = vmatpush2.msra.mxu0 0.0
      %5915 = vmatprep.subr.mxu0 0.0
      %5916 = vmatpush2.msra.mxu0 0.0
      %5917 = vmatprep.subr.mxu0 0.0
      %5918 = vmatpush2.msra.mxu0 0.0
      %5919 = vmatprep.subr.mxu0 0.0
      %5920 = vmatpush2.msra.mxu0 0.0
      %5921 = vmatprep.subr.mxu0 0.0
      %5922 = vmatpush2.msra.mxu0 0.0
      %5923 = vmatprep.subr.mxu0 0.0
      %5924 = vmatpush2.msra.mxu0 0.0
      %5925 = vmatprep.subr.mxu0 0.0
      %5926 = vmatpush2.msra.mxu0 0.0
      %5927 = vmatprep.subr.mxu0 0.0
      %5928 = vmatpush2.msra.mxu0 0.0
      %5929 = vmatprep.mubr.f32.mxu0 0.0
      %5930 = vmatmul.mubr.f32.gmra.mxu0 %v5767
      %v5931 = vpop.f32.mrf.mxu0
      %v5932 = vadd.f32 %v5765, %v5931
      %v5933 = vpop.f32.mrf.mxu0
      %5934 = vmatprep.mubr.f32.mxu0 0.0
      %5935 = vmatmul.mubr.f32.gmra.mxu0 %v5770
      %v5936 = vpop.f32.mrf.mxu0
      %v5937 = vadd.f32 %v5765, %v5936
      %v5938 = vpop.f32.mrf.mxu0
      %5939 = vmatprep.mubr.f32.mxu0 0.0
      %5940 = vmatmul.mubr.f32.gmra.mxu0 %v5773
      %v5941 = vpop.f32.mrf.mxu0
      %v5942 = vadd.f32 %v5765, %v5941
      %v5943 = vpop.f32.mrf.mxu0
      %5944 = vmatprep.mubr.f32.mxu0 0.0
      %5945 = vmatmul.mubr.f32.gmra.mxu0 %v5776
      %v5946 = vpop.f32.mrf.mxu0
      %v5947 = vadd.f32 %v5765, %v5946
      %v5948 = vpop.f32.mrf.mxu0
      %5949 = vmatprep.mubr.f32.mxu0 0.0
      %5950 = vmatmul.mubr.f32.gmra.mxu0 %v5779
      %v5951 = vpop.f32.mrf.mxu0
      %v5952 = vadd.f32 %v5765, %v5951
      %v5953 = vpop.f32.mrf.mxu0
      %5954 = vmatprep.mubr.f32.mxu0 0.0
      %5955 = vmatmul.mubr.f32.gmra.mxu0 %v5782
      %v5956 = vpop.f32.mrf.mxu0
      %v5957 = vadd.f32 %v5765, %v5956
      %v5958 = vpop.f32.mrf.mxu0
      %5959 = vmatprep.mubr.f32.mxu0 0.0
      %5960 = vmatmul.mubr.f32.gmra.mxu0 %v5785
      %v5961 = vpop.f32.mrf.mxu0
      %v5962 = vadd.f32 %v5765, %v5961
      %v5963 = vpop.f32.mrf.mxu0
      %5964 = vmatprep.mubr.f32.mxu0 0.0
      %5965 = vmatmul.mubr.f32.gmra.mxu0 %v5788
      %v5966 = vpop.f32.mrf.mxu0
      %v5967 = vadd.f32 %v5765, %v5966
      %v5968 = vpop.f32.mrf.mxu0
      %5969 = vmatprep.mubr.f32.mxu0 0.0
      %5970 = vmatmul.mubr.f32.gmra.mxu0 %v5791
      %v5971 = vpop.f32.mrf.mxu0
      %v5972 = vadd.f32 %v5765, %v5971
      %v5973 = vpop.f32.mrf.mxu0
      %5974 = vmatprep.mubr.f32.mxu0 0.0
      %5975 = vmatmul.mubr.f32.gmra.mxu0 %v5794
      %v5976 = vpop.f32.mrf.mxu0
      %v5977 = vadd.f32 %v5765, %v5976
      %v5978 = vpop.f32.mrf.mxu0
      %5979 = vmatprep.mubr.f32.mxu0 0.0
      %5980 = vmatmul.mubr.f32.gmra.mxu0 %v5797
      %v5981 = vpop.f32.mrf.mxu0
      %v5982 = vadd.f32 %v5765, %v5981
      %v5983 = vpop.f32.mrf.mxu0
      %5984 = vmatprep.mubr.f32.mxu0 0.0
      %5985 = vmatmul.mubr.f32.gmra.mxu0 %v5800
      %v5986 = vpop.f32.mrf.mxu0
      %v5987 = vadd.f32 %v5765, %v5986
      %v5988 = vpop.f32.mrf.mxu0
      %5989 = vmatprep.mubr.f32.mxu0 0.0
      %5990 = vmatmul.mubr.f32.gmra.mxu0 %v5803
      %v5991 = vpop.f32.mrf.mxu0
      %v5992 = vadd.f32 %v5765, %v5991
      %v5993 = vpop.f32.mrf.mxu0
      %5994 = vmatprep.mubr.f32.mxu0 0.0
      %5995 = vmatmul.mubr.f32.gmra.mxu0 %v5806
      %v5996 = vpop.f32.mrf.mxu0
      %v5997 = vadd.f32 %v5765, %v5996
      %v5998 = vpop.f32.mrf.mxu0
      %5999 = vmatprep.mubr.f32.mxu0 0.0
      %6000 = vmatmul.mubr.f32.gmra.mxu0 %v5809
      %v6001 = vpop.f32.mrf.mxu0
      %v6002 = vadd.f32 %v5765, %v6001
      %v6003 = vpop.f32.mrf.mxu0
      %6004 = vmatprep.mubr.f32.mxu0 0.0
      %6005 = vmatmul.mubr.f32.gmra.mxu0 %v5812
      %v6006 = vpop.f32.mrf.mxu0
      %v6007 = vadd.f32 %v5765, %v6006
      %v6008 = vpop.f32.mrf.mxu0
      %6009 = vmatprep.mubr.f32.mxu0 0.0
      %6010 = vmatmul.mubr.f32.gmra.mxu0 %v5815
      %v6011 = vpop.f32.mrf.mxu0
      %v6012 = vadd.f32 %v5765, %v6011
      %v6013 = vpop.f32.mrf.mxu0
      %6014 = vmatprep.mubr.f32.mxu0 0.0
      %6015 = vmatmul.mubr.f32.gmra.mxu0 %v5818
      %v6016 = vpop.f32.mrf.mxu0
      %v6017 = vadd.f32 %v5765, %v6016
      %v6018 = vpop.f32.mrf.mxu0
      %6019 = vmatprep.mubr.f32.mxu0 0.0
      %6020 = vmatmul.mubr.f32.gmra.mxu0 %v5821
      %v6021 = vpop.f32.mrf.mxu0
      %v6022 = vadd.f32 %v5765, %v6021
      %v6023 = vpop.f32.mrf.mxu0
      %6024 = vmatprep.mubr.f32.mxu0 0.0
      %6025 = vmatmul.mubr.f32.gmra.mxu0 %v5824
      %v6026 = vpop.f32.mrf.mxu0
      %v6027 = vadd.f32 %v5765, %v6026
      %v6028 = vpop.f32.mrf.mxu0
      %6029 = vmatprep.mubr.f32.mxu0 0.0
      %6030 = vmatmul.mubr.f32.gmra.mxu0 %v5827
      %v6031 = vpop.f32.mrf.mxu0
      %v6032 = vadd.f32 %v5765, %v6031
      %v6033 = vpop.f32.mrf.mxu0
      %6034 = vmatprep.mubr.f32.mxu0 0.0
      %6035 = vmatmul.mubr.f32.gmra.mxu0 %v5830
      %v6036 = vpop.f32.mrf.mxu0
      %v6037 = vadd.f32 %v5765, %v6036
      %v6038 = vpop.f32.mrf.mxu0
      %6039 = vmatprep.mubr.f32.mxu0 0.0
      %6040 = vmatmul.mubr.f32.gmra.mxu0 %v5833
      %v6041 = vpop.f32.mrf.mxu0
      %v6042 = vadd.f32 %v5765, %v6041
      %v6043 = vpop.f32.mrf.mxu0
      %6044 = vmatprep.mubr.f32.mxu0 0.0
      %6045 = vmatmul.mubr.f32.gmra.mxu0 %v5836
      %v6046 = vpop.f32.mrf.mxu0
      %v6047 = vadd.f32 %v5765, %v6046
      %v6048 = vpop.f32.mrf.mxu0
      %6049 = vmatprep.mubr.f32.mxu0 0.0
      %6050 = vmatmul.mubr.f32.gmra.mxu0 %v5839
      %v6051 = vpop.f32.mrf.mxu0
      %v6052 = vadd.f32 %v5765, %v6051
      %v6053 = vpop.f32.mrf.mxu0
      %6054 = vmatprep.mubr.f32.mxu0 0.0
      %6055 = vmatmul.mubr.f32.gmra.mxu0 %v5842
      %v6056 = vpop.f32.mrf.mxu0
      %v6057 = vadd.f32 %v5765, %v6056
      %v6058 = vpop.f32.mrf.mxu0
      %6059 = vmatprep.mubr.f32.mxu0 0.0
      %6060 = vmatmul.mubr.f32.gmra.mxu0 %v5845
      %v6061 = vpop.f32.mrf.mxu0
      %v6062 = vadd.f32 %v5765, %v6061
      %v6063 = vpop.f32.mrf.mxu0
      %6064 = vmatprep.mubr.f32.mxu0 0.0
      %6065 = vmatmul.mubr.f32.gmra.mxu0 %v5848
      %v6066 = vpop.f32.mrf.mxu0
      %v6067 = vadd.f32 %v5765, %v6066
      %v6068 = vpop.f32.mrf.mxu0
      %6069 = vmatprep.mubr.f32.mxu0 0.0
      %6070 = vmatmul.mubr.f32.gmra.mxu0 %v5851
      %v6071 = vpop.f32.mrf.mxu0
      %v6072 = vadd.f32 %v5765, %v6071
      %v6073 = vpop.f32.mrf.mxu0
      %6074 = vmatprep.mubr.f32.mxu0 0.0
      %6075 = vmatmul.mubr.f32.gmra.mxu0 %v5854
      %v6076 = vpop.f32.mrf.mxu0
      %v6077 = vadd.f32 %v5765, %v6076
      %v6078 = vpop.f32.mrf.mxu0
      %6079 = vmatprep.mubr.f32.mxu0 0.0
      %6080 = vmatmul.mubr.f32.gmra.mxu0 %v5857
      %v6081 = vpop.f32.mrf.mxu0
      %v6082 = vadd.f32 %v5765, %v6081
      %v6083 = vpop.f32.mrf.mxu0
      %6084 = vmatprep.mubr.f32.mxu0 0.0
      %6085 = vmatmul.mubr.f32.gmra.mxu0 %v5860
      %v6086 = vpop.f32.mrf.mxu0
      %v6087 = vadd.f32 %v5765, %v6086
      %v6088 = vpop.f32.mrf.mxu0
      %6089 = vdwg.mxu0
      %v6090 = vxor.u32 %v5932, 2147483648
      %v6091 = vxor.u32 %v5937, 2147483648
      %v6092 = vxor.u32 %v5942, 2147483648
      %v6093 = vxor.u32 %v5947, 2147483648
      %v6094 = vxor.u32 %v5952, 2147483648
      %v6095 = vxor.u32 %v5957, 2147483648
      %v6096 = vxor.u32 %v5962, 2147483648
      %v6097 = vxor.u32 %v5967, 2147483648
      %v6098 = vxor.u32 %v5972, 2147483648
      %v6099 = vxor.u32 %v5977, 2147483648
      %v6100 = vxor.u32 %v5982, 2147483648
      %v6101 = vxor.u32 %v5987, 2147483648
      %v6102 = vxor.u32 %v5992, 2147483648
      %v6103 = vxor.u32 %v5997, 2147483648
      %v6104 = vxor.u32 %v6002, 2147483648
      %v6105 = vxor.u32 %v6007, 2147483648
      %v6106 = vxor.u32 %v6012, 2147483648
      %v6107 = vxor.u32 %v6017, 2147483648
      %v6108 = vxor.u32 %v6022, 2147483648
      %v6109 = vxor.u32 %v6027, 2147483648
      %v6110 = vxor.u32 %v6032, 2147483648
      %v6111 = vxor.u32 %v6037, 2147483648
      %v6112 = vxor.u32 %v6042, 2147483648
      %v6113 = vxor.u32 %v6047, 2147483648
      %v6114 = vxor.u32 %v6052, 2147483648
      %v6115 = vxor.u32 %v6057, 2147483648
      %v6116 = vxor.u32 %v6062, 2147483648
      %v6117 = vxor.u32 %v6067, 2147483648
      %v6118 = vxor.u32 %v6072, 2147483648
      %v6119 = vxor.u32 %v6077, 2147483648
      %v6120 = vxor.u32 %v6082, 2147483648
      %v6121 = vxor.u32 %v6087, 2147483648
      %v6122 = vmul.f32 %v6090, 1.442695
      %v6123 = vpow.pop %v6122
      %v6124 = vmul.f32 %v6091, 1.442695
      %v6125 = vpow.pop %v6124
      %v6126 = vmul.f32 %v6092, 1.442695
      %v6127 = vpow.pop %v6126
      %v6128 = vmul.f32 %v6093, 1.442695
      %v6129 = vpow.pop %v6128
      %v6130 = vmul.f32 %v6094, 1.442695
      %v6131 = vpow.pop %v6130
      %v6132 = vmul.f32 %v6095, 1.442695
      %v6133 = vpow.pop %v6132
      %v6134 = vmul.f32 %v6096, 1.442695
      %v6135 = vpow.pop %v6134
      %v6136 = vmul.f32 %v6097, 1.442695
      %v6137 = vpow.pop %v6136
      %v6138 = vmul.f32 %v6098, 1.442695
      %v6139 = vpow.pop %v6138
      %v6140 = vmul.f32 %v6099, 1.442695
      %v6141 = vpow.pop %v6140
      %v6142 = vmul.f32 %v6100, 1.442695
      %v6143 = vpow.pop %v6142
      %v6144 = vmul.f32 %v6101, 1.442695
      %v6145 = vpow.pop %v6144
      %v6146 = vmul.f32 %v6102, 1.442695
      %v6147 = vpow.pop %v6146
      %v6148 = vmul.f32 %v6103, 1.442695
      %v6149 = vpow.pop %v6148
      %v6150 = vmul.f32 %v6104, 1.442695
      %v6151 = vpow.pop %v6150
      %v6152 = vmul.f32 %v6105, 1.442695
      %v6153 = vpow.pop %v6152
      %v6154 = vmul.f32 %v6106, 1.442695
      %v6155 = vpow.pop %v6154
      %v6156 = vmul.f32 %v6107, 1.442695
      %v6157 = vpow.pop %v6156
      %v6158 = vmul.f32 %v6108, 1.442695
      %v6159 = vpow.pop %v6158
      %v6160 = vmul.f32 %v6109, 1.442695
      %v6161 = vpow.pop %v6160
      %v6162 = vmul.f32 %v6110, 1.442695
      %v6163 = vpow.pop %v6162
      %v6164 = vmul.f32 %v6111, 1.442695
      %v6165 = vpow.pop %v6164
      %v6166 = vmul.f32 %v6112, 1.442695
      %v6167 = vpow.pop %v6166
      %v6168 = vmul.f32 %v6113, 1.442695
      %v6169 = vpow.pop %v6168
      %v6170 = vmul.f32 %v6114, 1.442695
      %v6171 = vpow.pop %v6170
      %v6172 = vmul.f32 %v6115, 1.442695
      %v6173 = vpow.pop %v6172
      %v6174 = vmul.f32 %v6116, 1.442695
      %v6175 = vpow.pop %v6174
      %v6176 = vmul.f32 %v6117, 1.442695
      %v6177 = vpow.pop %v6176
      %v6178 = vmul.f32 %v6118, 1.442695
      %v6179 = vpow.pop %v6178
      %v6180 = vmul.f32 %v6119, 1.442695
      %v6181 = vpow.pop %v6180
      %v6182 = vmul.f32 %v6120, 1.442695
      %v6183 = vpow.pop %v6182
      %v6184 = vmul.f32 %v6121, 1.442695
      %v6185 = vpow.pop %v6184
      %v6186 = vadd.f32 %v6123, 1.0
      %v6187 = vadd.f32 %v6125, 1.0
      %v6188 = vadd.f32 %v6127, 1.0
      %v6189 = vadd.f32 %v6129, 1.0
      %v6190 = vadd.f32 %v6131, 1.0
      %v6191 = vadd.f32 %v6133, 1.0
      %v6192 = vadd.f32 %v6135, 1.0
      %v6193 = vadd.f32 %v6137, 1.0
      %v6194 = vadd.f32 %v6139, 1.0
      %v6195 = vadd.f32 %v6141, 1.0
      %v6196 = vadd.f32 %v6143, 1.0
      %v6197 = vadd.f32 %v6145, 1.0
      %v6198 = vadd.f32 %v6147, 1.0
      %v6199 = vadd.f32 %v6149, 1.0
      %v6200 = vadd.f32 %v6151, 1.0
      %v6201 = vadd.f32 %v6153, 1.0
      %v6202 = vadd.f32 %v6155, 1.0
      %v6203 = vadd.f32 %v6157, 1.0
      %v6204 = vadd.f32 %v6159, 1.0
      %v6205 = vadd.f32 %v6161, 1.0
      %v6206 = vadd.f32 %v6163, 1.0
      %v6207 = vadd.f32 %v6165, 1.0
      %v6208 = vadd.f32 %v6167, 1.0
      %v6209 = vadd.f32 %v6169, 1.0
      %v6210 = vadd.f32 %v6171, 1.0
      %v6211 = vadd.f32 %v6173, 1.0
      %v6212 = vadd.f32 %v6175, 1.0
      %v6213 = vadd.f32 %v6177, 1.0
      %v6214 = vadd.f32 %v6179, 1.0
      %v6215 = vadd.f32 %v6181, 1.0
      %v6216 = vadd.f32 %v6183, 1.0
      %v6217 = vadd.f32 %v6185, 1.0
      %v6218 = vrcp.pop %v6186
      %v6219 = vmul.f32 1.0, %v6218
      %v6220 = vrcp.pop %v6187
      %v6221 = vmul.f32 1.0, %v6220
      %v6222 = vrcp.pop %v6188
      %v6223 = vmul.f32 1.0, %v6222
      %v6224 = vrcp.pop %v6189
      %v6225 = vmul.f32 1.0, %v6224
      %v6226 = vrcp.pop %v6190
      %v6227 = vmul.f32 1.0, %v6226
      %v6228 = vrcp.pop %v6191
      %v6229 = vmul.f32 1.0, %v6228
      %v6230 = vrcp.pop %v6192
      %v6231 = vmul.f32 1.0, %v6230
      %v6232 = vrcp.pop %v6193
      %v6233 = vmul.f32 1.0, %v6232
      %v6234 = vrcp.pop %v6194
      %v6235 = vmul.f32 1.0, %v6234
      %v6236 = vrcp.pop %v6195
      %v6237 = vmul.f32 1.0, %v6236
      %v6238 = vrcp.pop %v6196
      %v6239 = vmul.f32 1.0, %v6238
      %v6240 = vrcp.pop %v6197
      %v6241 = vmul.f32 1.0, %v6240
      %v6242 = vrcp.pop %v6198
      %v6243 = vmul.f32 1.0, %v6242
      %v6244 = vrcp.pop %v6199
      %v6245 = vmul.f32 1.0, %v6244
      %v6246 = vrcp.pop %v6200
      %v6247 = vmul.f32 1.0, %v6246
      %v6248 = vrcp.pop %v6201
      %v6249 = vmul.f32 1.0, %v6248
      %v6250 = vrcp.pop %v6202
      %v6251 = vmul.f32 1.0, %v6250
      %v6252 = vrcp.pop %v6203
      %v6253 = vmul.f32 1.0, %v6252
      %v6254 = vrcp.pop %v6204
      %v6255 = vmul.f32 1.0, %v6254
      %v6256 = vrcp.pop %v6205
      %v6257 = vmul.f32 1.0, %v6256
      %v6258 = vrcp.pop %v6206
      %v6259 = vmul.f32 1.0, %v6258
      %v6260 = vrcp.pop %v6207
      %v6261 = vmul.f32 1.0, %v6260
      %v6262 = vrcp.pop %v6208
      %v6263 = vmul.f32 1.0, %v6262
      %v6264 = vrcp.pop %v6209
      %v6265 = vmul.f32 1.0, %v6264
      %v6266 = vrcp.pop %v6210
      %v6267 = vmul.f32 1.0, %v6266
      %v6268 = vrcp.pop %v6211
      %v6269 = vmul.f32 1.0, %v6268
      %v6270 = vrcp.pop %v6212
      %v6271 = vmul.f32 1.0, %v6270
      %v6272 = vrcp.pop %v6213
      %v6273 = vmul.f32 1.0, %v6272
      %v6274 = vrcp.pop %v6214
      %v6275 = vmul.f32 1.0, %v6274
      %v6276 = vrcp.pop %v6215
      %v6277 = vmul.f32 1.0, %v6276
      %v6278 = vrcp.pop %v6216
      %v6279 = vmul.f32 1.0, %v6278
      %v6280 = vrcp.pop %v6217
      %v6281 = vmul.f32 1.0, %v6280
      %v6282 = vmul.f32 %v5932, %v6219
      %v6283 = vmul.f32 %v5937, %v6221
      %v6284 = vmul.f32 %v5942, %v6223
      %v6285 = vmul.f32 %v5947, %v6225
      %v6286 = vmul.f32 %v5952, %v6227
      %v6287 = vmul.f32 %v5957, %v6229
      %v6288 = vmul.f32 %v5962, %v6231
      %v6289 = vmul.f32 %v5967, %v6233
      %v6290 = vmul.f32 %v5972, %v6235
      %v6291 = vmul.f32 %v5977, %v6237
      %v6292 = vmul.f32 %v5982, %v6239
      %v6293 = vmul.f32 %v5987, %v6241
      %v6294 = vmul.f32 %v5992, %v6243
      %v6295 = vmul.f32 %v5997, %v6245
      %v6296 = vmul.f32 %v6002, %v6247
      %v6297 = vmul.f32 %v6007, %v6249
      %v6298 = vmul.f32 %v6012, %v6251
      %v6299 = vmul.f32 %v6017, %v6253
      %v6300 = vmul.f32 %v6022, %v6255
      %v6301 = vmul.f32 %v6027, %v6257
      %v6302 = vmul.f32 %v6032, %v6259
      %v6303 = vmul.f32 %v6037, %v6261
      %v6304 = vmul.f32 %v6042, %v6263
      %v6305 = vmul.f32 %v6047, %v6265
      %v6306 = vmul.f32 %v6052, %v6267
      %v6307 = vmul.f32 %v6057, %v6269
      %v6308 = vmul.f32 %v6062, %v6271
      %v6309 = vmul.f32 %v6067, %v6273
      %v6310 = vmul.f32 %v6072, %v6275
      %v6311 = vmul.f32 %v6077, %v6277
      %v6312 = vmul.f32 %v6082, %v6279
      %v6313 = vmul.f32 %v6087, %v6281
      %v6314 = vadd.f32 %v6282, %v211
      %v6315 = vadd.f32 %v6283, %v212
      %v6316 = vadd.f32 %v6284, %v213
      %v6317 = vadd.f32 %v6285, %v214
      %v6318 = vadd.f32 %v6286, %v215
      %v6319 = vadd.f32 %v6287, %v216
      %v6320 = vadd.f32 %v6288, %v217
      %v6321 = vadd.f32 %v6289, %v218
      %v6322 = vadd.f32 %v6290, %v219
      %v6323 = vadd.f32 %v6291, %v220
      %v6324 = vadd.f32 %v6292, %v221
      %v6325 = vadd.f32 %v6293, %v222
      %v6326 = vadd.f32 %v6294, %v223
      %v6327 = vadd.f32 %v6295, %v224
      %v6328 = vadd.f32 %v6296, %v225
      %v6329 = vadd.f32 %v6297, %v226
      %v6330 = vadd.f32 %v6298, %v227
      %v6331 = vadd.f32 %v6299, %v228
      %v6332 = vadd.f32 %v6300, %v229
      %v6333 = vadd.f32 %v6301, %v230
      %v6334 = vadd.f32 %v6302, %v231
      %v6335 = vadd.f32 %v6303, %v232
      %v6336 = vadd.f32 %v6304, %v233
      %v6337 = vadd.f32 %v6305, %v234
      %v6338 = vadd.f32 %v6306, %v235
      %v6339 = vadd.f32 %v6307, %v236
      %v6340 = vadd.f32 %v6308, %v237
      %v6341 = vadd.f32 %v6309, %v238
      %v6342 = vadd.f32 %v6310, %v239
      %v6343 = vadd.f32 %v6311, %v240
      %v6344 = vadd.f32 %v6312, %v241
      %v6345 = vadd.f32 %v6313, %v242
      %6346 = vst.msk [vmem:[%s210] sm:$0xff] %vm244, %v6314
      %6347 = vst.msk [vmem:[%s210 + $0x8] sm:$0xff] %vm244, %v6315
      %6348 = vst.msk [vmem:[%s210 + $0x10] sm:$0xff] %vm244, %v6316
      %6349 = vst.msk [vmem:[%s210 + $0x18] sm:$0xff] %vm244, %v6317
      %6350 = vst.msk [vmem:[%s210 + $0x20] sm:$0xff] %vm244, %v6318
      %6351 = vst.msk [vmem:[%s210 + $0x28] sm:$0xff] %vm244, %v6319
      %6352 = vst.msk [vmem:[%s210 + $0x30] sm:$0xff] %vm244, %v6320
      %6353 = vst.msk [vmem:[%s210 + $0x38] sm:$0xff] %vm244, %v6321
      %6354 = vst.msk [vmem:[%s210 + $0x40] sm:$0xff] %vm244, %v6322
      %6355 = vst.msk [vmem:[%s210 + $0x48] sm:$0xff] %vm244, %v6323
      %6356 = vst.msk [vmem:[%s210 + $0x50] sm:$0xff] %vm244, %v6324
      %6357 = vst.msk [vmem:[%s210 + $0x58] sm:$0xff] %vm244, %v6325
      %6358 = vst.msk [vmem:[%s210 + $0x60] sm:$0xff] %vm244, %v6326
      %6359 = vst.msk [vmem:[%s210 + $0x68] sm:$0xff] %vm244, %v6327
      %6360 = vst.msk [vmem:[%s210 + $0x70] sm:$0xff] %vm244, %v6328
      %6361 = vst.msk [vmem:[%s210 + $0x78] sm:$0xff] %vm244, %v6329
      %6362 = vst.msk [vmem:[%s210 + $0x80] sm:$0xff] %vm244, %v6330
      %6363 = vst.msk [vmem:[%s210 + $0x88] sm:$0xff] %vm244, %v6331
      %6364 = vst.msk [vmem:[%s210 + $0x90] sm:$0xff] %vm244, %v6332
      %6365 = vst.msk [vmem:[%s210 + $0x98] sm:$0xff] %vm244, %v6333
      %6366 = vst.msk [vmem:[%s210 + $0xa0] sm:$0xff] %vm244, %v6334
      %6367 = vst.msk [vmem:[%s210 + $0xa8] sm:$0xff] %vm244, %v6335
      %6368 = vst.msk [vmem:[%s210 + $0xb0] sm:$0xff] %vm244, %v6336
      %6369 = vst.msk [vmem:[%s210 + $0xb8] sm:$0xff] %vm244, %v6337
      %6370 = vst.msk [vmem:[%s210 + $0xc0] sm:$0xff] %vm244, %v6338
      %6371 = vst.msk [vmem:[%s210 + $0xc8] sm:$0xff] %vm244, %v6339
      %6372 = vst.msk [vmem:[%s210 + $0xd0] sm:$0xff] %vm244, %v6340
      %6373 = vst.msk [vmem:[%s210 + $0xd8] sm:$0xff] %vm244, %v6341
      %6374 = vst.msk [vmem:[%s210 + $0xe0] sm:$0xff] %vm244, %v6342
      %6375 = vst.msk [vmem:[%s210 + $0xe8] sm:$0xff] %vm244, %v6343
      %6376 = vst.msk [vmem:[%s210 + $0xf0] sm:$0xff] %vm244, %v6344
      %6377 = vst.msk [vmem:[%s210 + $0xf8] sm:$0xff] %vm244, %v6345
      %p6378 = scmp.lt.s32.totalorder %s16, 1
      %s6379 = scalar_select %p6378, %s16, 1
      %s6380 = smul.addr %s6379, 32
      %s6381 = smul.addr %s6380, 8
      %s6382 = scalar_lea.vmem %s3, %s6381
      %p6383 = scmp.lt.s32.totalorder %s16, 1
      %s6384 = scalar_select %p6383, %s16, 1
      %s6385 = smul.addr %s6384, 32
      %s6386 = smul.addr %s6385, 8
      %s6387 = scalar_lea.vmem %s4, %s6386
      // Predicated region
      $region33: #{spab2_forward.1} parent=31 // pred_check
        %p6388 = pneg %p102
      $region34: #{spab2_forward.1} parent=31 // pred_check_branch
        %6390 = sbr.rel (%p6388) target = $region36
      $region35: #{spab2_forward.1} parent=31 // pred_region
        _
      $region36: #{spab2_forward.1} parent=31 // pred_fallthru
        _
      // Predicated region
      $region37: #{spab2_forward.1} parent=31 // pred_check
        %p6391 = pneg %p128
      $region38: #{spab2_forward.1} parent=31 // pred_check_branch
        %6393 = sbr.rel (%p6391) target = $region40
      $region39: #{spab2_forward.1} parent=31 // pred_region
        _
      $region40: #{spab2_forward.1} parent=31 // pred_fallthru
        _
    $region32: #{spab2_forward.1} parent=5 // pred_fallthru
      _
    %p6394 = scmp.le.s32.totalorder 2, %s11
    // Predicated region
    $region41: #{spab2_forward.1} parent=5 // pred_check
      %p6395 = pneg %p6394
    $region42: #{spab2_forward.1} parent=5 // pred_check_branch
      %6397 = sbr.rel (%p6395) target = $region44
    $region43: #{spab2_forward.1} parent=5 // pred_region
      %s6398 = ssub.s32 %s11, 2
      // Predicated region
      $region45: #{spab2_forward.1} parent=43 // pred_check
        %p6399 = pneg %p108
      $region46: #{spab2_forward.1} parent=43 // pred_check_branch
        %6401 = sbr.rel (%p6399) target = $region48
      $region47: #{spab2_forward.1} parent=43 // pred_region
        %p6402 = scmp.lt.s32.totalorder %s17, 1
        %s6403 = scalar_select %p6402, %s17, 1
        %s6404 = smul.addr %s6403, 32
        %s6405 = smul.addr %s6404, 8
        %s6406 = scalar_lea.vmem %s3, %s6405
      $region48: #{spab2_forward.1} parent=43 // pred_fallthru
        _
      // Predicated region
      $region49: #{spab2_forward.1} parent=43 // pred_check
        %p6407 = pneg %p134
      $region50: #{spab2_forward.1} parent=43 // pred_check_branch
        %6409 = sbr.rel (%p6407) target = $region52
      $region51: #{spab2_forward.1} parent=43 // pred_region
        %p6410 = scmp.lt.s32.totalorder %s17, 1
        %s6411 = scalar_select %p6410, %s17, 1
        %s6412 = smul.addr %s6411, 32
        %s6413 = smul.addr %s6412, 8
        %s6414 = scalar_lea.vmem %s4, %s6413
      $region52: #{spab2_forward.1} parent=43 // pred_fallthru
        _
    $region44: #{spab2_forward.1} parent=5 // pred_fallthru
      _
  $region6: #{spab2_forward.1} parent=0 // loop_footer
    %s15 = sadd.s32 1, %s11
  $region7: #{spab2_forward.1} parent=0 // loop_footer_branch
    %10 = sbr.rel target = $region3
  $region8: #{spab2_forward.1} parent=0 // loop_exit
    _

</llo_original>
